<compile_context>
chip_gen: v7x
topology: tpu7x:2x2x1
jax: 0.10.0
libtpu: 0.0.40
codegen_flags: <defaults>
</compile_context>

<pallas_src>
import functools

import jax
import jax.numpy as jnp
from jax import lax
from jax.experimental import pallas as pl
from jax.experimental.pallas import tpu as pltpu


def _round_up(x, m):
    return (x + m - 1) // m * m


# ----------------------------------------------------------------------------
# Tile-size selection: batch block + unroll, with a conservative VMEM audit
# that fits every generation's scoped limit (we also raise vmem_limit_bytes).
# ----------------------------------------------------------------------------
def _pick_batch_block(Bp, tc, D, H, fused, out_pad,
                      max_batch_block=128, budget=20 << 20):
    G = 4 * H

    def need(bb):
        n = tc * bb * G * 4                       # per-chunk gates_x scratch
        n += 2 * tc * bb * D * 2                  # double-buffered bf16 input
        n += 2 * (bb * H * 4)                     # h / c state (f32)
        n += 2 * (D + H) * G * 2 + G * 4          # W_ih^T, W_hh^T (x2 bufs), bias
        if fused:
            n += tc * bb * H * 2                  # h-chunk scratch for the head
            n += 2 * tc * bb * out_pad * 4        # f32 output block (x2)
            n += 2 * H * out_pad * 2 + out_pad * 4
        else:
            n += 2 * tc * bb * H * 2              # bf16 hidden-seq output (x2)
        return n

    bb = min(max_batch_block, Bp)
    # Prefer >=2 batch blocks when the batch allows it, so the batch ("parallel")
    # grid axis can be sharded across both v7x TensorCores.
    if Bp >= 16 and Bp // bb < 2:
        bb = _round_up(Bp // 2, 8)
    while bb > 8 and (Bp % bb != 0 or need(bb) > budget):
        bb -= 8
    bb = max(bb, 8)
    # Larger bb raises vreg pressure of the fully-unrolled step (live `gates`
    # is (bb, 4H) f32); back off to a partial unroll to avoid spills.
    unroll = True if bb <= 32 else 8
    return bb, unroll


# ----------------------------------------------------------------------------
# Fused LSTM-layer kernel: per-chunk input projection + recurrence
# (+ optional Linear+Tanh head for the last layer).
# ----------------------------------------------------------------------------
def _lstm_layer_kernel(fuse_head, unroll, *refs):
    if fuse_head:
        (x_ref, wih_ref, whh_ref, b_ref, wlin_ref, blin_ref,
         y_ref, gx_scr, hseq_scr, h_scr, c_scr) = refs
    else:
        (x_ref, wih_ref, whh_ref, b_ref,
         y_ref, gx_scr, h_scr, c_scr) = refs
        wlin_ref = blin_ref = hseq_scr = None

    H = whh_ref.shape[0]
    tc, bb, D = x_ref.shape
    G = 4 * H

    # First time-chunk of this batch block: h_0 = c_0 = 0 (matches PyTorch).
    @pl.when(pl.program_id(1) == 0)
    def _():
        h_scr[...] = jnp.zeros_like(h_scr)
        c_scr[...] = jnp.zeros_like(c_scr)

    # Per-chunk input projection: gates_x = X @ W_ih^T + (b_ih + b_hh).
    # One (tc*bb, D) @ (D, 4H) matmul; the result never leaves VMEM.
    x2d = x_ref[...].reshape(tc * bb, D)
    gx = jnp.dot(x2d, wih_ref[...], preferred_element_type=jnp.float32)
    gx_scr[...] = (gx + b_ref[...]).reshape(tc, bb, G)

    whh = whh_ref[...]                      # (H, 4H) bf16, resident for the chunk
    # TODO(synk): hold W_hh staged in the MXU across the chunk via
    # pltpu.matmul_push_rhs / matmul_acc_lhs / matmul_pop to avoid re-streaming
    # the RHS every timestep of the serial recurrence.

    def step(tt, carry):
        h, c = carry                        # f32 (bb, H)
        # Only the recurrent matmul remains per step: bf16 MXU, f32 accumulation.
        gates = gx_scr[tt] + jnp.dot(
            h.astype(jnp.bfloat16), whh, preferred_element_type=jnp.float32)
        # PyTorch gate order i, f, g, o.  Lane-aligned slices when H % 128 == 0.
        i_g = jax.nn.sigmoid(gates[:, 0 * H:1 * H])
        f_g = jax.nn.sigmoid(gates[:, 1 * H:2 * H])
        g_g = jnp.tanh(gates[:, 2 * H:3 * H])
        o_g = jax.nn.sigmoid(gates[:, 3 * H:4 * H])
        c_new = f_g * c + i_g * g_g         # cell-state update stays in f32
        h_new = o_g * jnp.tanh(c_new)
        if fuse_head:
            hseq_scr[tt] = h_new.astype(jnp.bfloat16)   # stash for the chunk head
        else:
            y_ref[tt] = h_new.astype(y_ref.dtype)       # lane-dense (H-wide) store
        return h_new, c_new

    h, c = lax.fori_loop(0, tc, step, (h_scr[...], c_scr[...]), unroll=unroll)
    h_scr[...] = h                          # carry state to the next chunk
    c_scr[...] = c

    if fuse_head:
        # One lane-dense head matmul per chunk (out padded to a multiple of 128)
        # instead of tc tiny masked stores.
        out_pad = wlin_ref.shape[1]
        hseq = hseq_scr[...].reshape(tc * bb, H)
        y = jnp.tanh(jnp.dot(hseq, wlin_ref[...],
                             preferred_element_type=jnp.float32) + blin_ref[...])
        y_ref[...] = y.reshape(tc, bb, out_pad).astype(y_ref.dtype)


def lstm_layer(x_tm, w_ih_t, w_hh_t, b_sum, *, w_lin_t=None, b_lin=None,
               time_chunk=16, max_batch_block=128):
    """One LSTM layer over a time-major, padded input.

    x_tm:    (Tp, Bp, D) bf16   (Tp multiple of time_chunk, Bp multiple of 8)
    w_ih_t:  (D, 4H) bf16,  w_hh_t: (H, 4H) bf16,  b_sum: (1, 4H) f32
      - without head:  returns (Tp, Bp, H) bf16 hidden sequence
      - with head:     returns (Tp, Bp, out_pad) f32 (Linear+Tanh fused)
    """
    Tp, Bp, D = x_tm.shape
    H = w_hh_t.shape[0]
    G = 4 * H
    fused = w_lin_t is not None
    out_pad = w_lin_t.shape[1] if fused else 0

    tc = min(time_chunk, Tp)
    assert Tp % tc == 0 and Bp % 8 == 0
    bb, unroll = _pick_batch_block(Bp, tc, D, H, fused, out_pad,
                                   max_batch_block=max_batch_block)
    grid = (Bp // bb, Tp // tc)

    in_specs = [
        pl.BlockSpec((tc, bb, D), lambda b, c: (c, b, 0)),   # input chunk
        # Constant-index weights are fetched once and revisited.  (For large H
        # on v7x's 64 MiB VMEM, single-buffer them — pipeline_mode=pl.Buffered(1)
        # — to halve the resident weight footprint; at H=256 it is ~1 MiB.)
        pl.BlockSpec((D, G), lambda b, c: (0, 0)),           # W_ih^T
        pl.BlockSpec((H, G), lambda b, c: (0, 0)),           # W_hh^T
        pl.BlockSpec((1, G), lambda b, c: (0, 0)),           # b_ih + b_hh
    ]
    arrays = [x_tm, w_ih_t, w_hh_t, b_sum]
    scratch = [pltpu.VMEM((tc, bb, G), jnp.float32)]         # per-chunk gates_x

    if fused:
        in_specs += [
            pl.BlockSpec((H, out_pad), lambda b, c: (0, 0)),
            pl.BlockSpec((1, out_pad), lambda b, c: (0, 0)),
        ]
        arrays += [w_lin_t, b_lin]
        out_shape = jax.ShapeDtypeStruct((Tp, Bp, out_pad), jnp.float32)
        out_spec = pl.BlockSpec((tc, bb, out_pad), lambda b, c: (c, b, 0))
        scratch.append(pltpu.VMEM((tc, bb, H), jnp.bfloat16))  # h chunk for head
    else:
        out_shape = jax.ShapeDtypeStruct((Tp, Bp, H), jnp.bfloat16)
        out_spec = pl.BlockSpec((tc, bb, H), lambda b, c: (c, b, 0))

    scratch += [
        pltpu.VMEM((bb, H), jnp.float32),   # h state (f32)
        pltpu.VMEM((bb, H), jnp.float32),   # c state (f32)
    ]

    kernel = functools.partial(_lstm_layer_kernel, fused, unroll)
    return pl.pallas_call(
        kernel,
        out_shape=out_shape,
        grid_spec=pltpu.PrefetchScalarGridSpec(
            num_scalar_prefetch=0,
            grid=grid,
            in_specs=in_specs,
            out_specs=out_spec,
            scratch_shapes=scratch,
        ),
        compiler_params=pltpu.CompilerParams(
            # Batch blocks are independent (megacore-shardable); time is a true
            # recurrence.  Raise the scoped VMEM limit explicitly (tiles are
            # budgeted to ~20 MiB, comfortably under 48 MiB on all generations).
            dimension_semantics=("parallel", "arbitrary"),
            vmem_limit_bytes=48 * 1024 * 1024),
    )(*arrays)


# ----------------------------------------------------------------------------
# Module wrapper: deterministic parameter init + forward.
# ----------------------------------------------------------------------------
class LSTMGeneratorPallas:
    """Pallas/TPU port of the PyTorch LSTMGenerator forward pass."""

    def __init__(self, in_dim, out_dim, n_layers=1, hidden_dim=256, *, key,
                 time_chunk=16):
        self.in_dim = in_dim
        self.out_dim = out_dim
        self.n_layers = n_layers
        self.hidden_dim = hidden_dim
        self.time_chunk = time_chunk

        k = 1.0 / jnp.sqrt(hidden_dim)
        self.lstm_params = []
        for layer in range(n_layers):
            d_in = in_dim if layer == 0 else hidden_dim
            key, k1, k2, k3, k4 = jax.random.split(key, 5)
            # PyTorch stores W_ih:(4H, D), W_hh:(4H, H); keep the transposes so
            # the kernel computes x @ W^T directly.  Weights in bf16 for the
            # MXU; accumulation and cell state stay f32.
            w_ih_t = jax.random.uniform(k1, (d_in, 4 * hidden_dim),
                                        jnp.float32, -k, k).astype(jnp.bfloat16)
            w_hh_t = jax.random.uniform(k2, (hidden_dim, 4 * hidden_dim),
                                        jnp.float32, -k, k).astype(jnp.bfloat16)
            b_ih = jax.random.uniform(k3, (1, 4 * hidden_dim), jnp.float32, -k, k)
            b_hh = jax.random.uniform(k4, (1, 4 * hidden_dim), jnp.float32, -k, k)
            # The two biases are always summed -> pre-add once on the host.
            self.lstm_params.append((w_ih_t, w_hh_t, b_ih + b_hh))

        key, k5, k6 = jax.random.split(key, 3)
        self.w_lin_t = jax.random.uniform(k5, (hidden_dim, out_dim),
                                          jnp.float32, -k, k).astype(jnp.bfloat16)
        self.b_lin = jax.random.uniform(k6, (1, out_dim), jnp.float32, -k, k)
        # Lane-dense head: pad out_dim to a multiple of 128 (sliced in __call__).
        out_pad = _round_up(out_dim, 128)
        self.w_lin_pad = jnp.pad(self.w_lin_t, ((0, 0), (0, out_pad - out_dim)))
        self.b_lin_pad = jnp.pad(self.b_lin, ((0, 0), (0, out_pad - out_dim)))

    def __call__(self, x):
        """x: (batch, seq_len, in_dim) -> (batch, seq_len, out_dim)."""
        B, T, _ = x.shape

        # Time-major; pad batch to 8 sublanes and time to a multiple of the
        # chunk (padded timesteps come AFTER the valid ones, so they cannot
        # affect valid outputs; both pads are sliced off at the end).
        Bp = _round_up(B, 8)
        tc = min(self.time_chunk, T)
        Tp = _round_up(T, tc)
        x_tm = jnp.transpose(x, (1, 0, 2)).astype(jnp.bfloat16)       # (T, B, D)
        x_tm = jnp.pad(x_tm, ((0, Tp - T), (0, Bp - B), (0, 0)))

        layer_in = x_tm
        out_tm = None
        for li, (w_ih_t, w_hh_t, b_sum) in enumerate(self.lstm_params):
            if li == self.n_layers - 1:
                # Last layer: Linear+Tanh head fused into the chunk epilogue;
                # the (T, B, H) activations never round-trip through HBM.
                out_tm = lstm_layer(layer_in, w_ih_t, w_hh_t, b_sum,
                                    w_lin_t=self.w_lin_pad, b_lin=self.b_lin_pad,
                                    time_chunk=tc)
            else:
                layer_in = lstm_layer(layer_in, w_ih_t, w_hh_t, b_sum,
                                      time_chunk=tc)                  # (Tp,Bp,H) bf16

        out_tm = out_tm[:T, :B, :self.out_dim]          # drop time/batch/lane pad
        return jnp.transpose(out_tm, (1, 0, 2))         # (B, T, out_dim)


# ----------------------------------------------------------------------------
# Pure-JAX f32 reference (PyTorch semantics) for correctness checking.
# ----------------------------------------------------------------------------
def reference_forward(model, x):
    B, T, _ = x.shape
    H = model.hidden_dim

    h_seq = jnp.transpose(x, (1, 0, 2)).astype(jnp.float32)           # (T, B, D)
    for (w_ih_t, w_hh_t, b_sum) in model.lstm_params:
        wih = w_ih_t.astype(jnp.float32)
        whh = w_hh_t.astype(jnp.float32)

        def step(carry, x_t, wih=wih, whh=whh, b_sum=b_sum):
            h, c = carry
            gates = x_t @ wih + b_sum + h @ whh
            i = jax.nn.sigmoid(gates[:, 0 * H:1 * H])
            f = jax.nn.sigmoid(gates[:, 1 * H:2 * H])
            g = jnp.tanh(gates[:, 2 * H:3 * H])
            o = jax.nn.sigmoid(gates[:, 3 * H:4 * H])
            c = f * c + i * g
            h = o * jnp.tanh(c)
            return (h, c), h

        init = (jnp.zeros((B, H), jnp.float32), jnp.zeros((B, H), jnp.float32))
        _, h_seq = jax.lax.scan(step, init, h_seq)

    feats = jnp.transpose(h_seq, (1, 0, 2)).reshape(B * T, H)
    out = jnp.tanh(feats @ model.w_lin_t.astype(jnp.float32) + model.b_lin)
    return out.reshape(B, T, model.out_dim)


if __name__ == "__main__":
    key = jax.random.PRNGKey(0)
    k_param1, k_param2, k_input = jax.random.split(key, 3)

    batch, seq_len = 2, 32
    in_dim, hidden_dim, out_dim = 16, 256, 8      # hidden_dim = module default

    noise = jax.random.normal(k_input, (batch, seq_len, in_dim), jnp.float32)

    # n_layers=1 (module default): fused projection + recurrence + head.
    model1 = LSTMGeneratorPallas(in_dim, out_dim, n_layers=1,
                                 hidden_dim=hidden_dim, key=k_param1)
    out1 = jax.block_until_ready(model1(noise))
    assert out1.shape == (batch, seq_len, out_dim), out1.shape
    ref1 = jax.block_until_ready(reference_forward(model1, noise))
    err1 = float(jnp.max(jnp.abs(out1 - ref1)))
    # Tolerance accounts for bf16 MXU inputs (f32 accumulation / f32 cell state)
    # versus the all-f32 reference.
    assert err1 < 5e-2, err1

    # n_layers=2: also exercises the non-fused (hidden-sequence output) layer.
    model2 = LSTMGeneratorPallas(in_dim, out_dim, n_layers=2,
                                 hidden_dim=hidden_dim, key=k_param2)
    out2 = jax.block_until_ready(model2(noise))
    assert out2.shape == (batch, seq_len, out_dim), out2.shape
    ref2 = jax.block_until_ready(reference_forward(model2, noise))
    err2 = float(jnp.max(jnp.abs(out2 - ref2)))
    assert err2 < 5e-2, err2

    print("KERNEL_OK")
</pallas_src>

<mosaic_0001>
module attributes {stable_mosaic.version = 11 : i64} {
  func.func @_lstm_layer_kernel(%arg0: i32, %arg1: i32, %arg2: memref<16x8x16xbf16, #tpu.memory_space<vmem>>, %arg3: memref<16x1024xbf16, #tpu.memory_space<vmem>>, %arg4: memref<256x1024xbf16, #tpu.memory_space<vmem>>, %arg5: memref<1x1024xf32, #tpu.memory_space<vmem>>, %arg6: memref<256x128xbf16, #tpu.memory_space<vmem>>, %arg7: memref<1x128xf32, #tpu.memory_space<vmem>>, %arg8: memref<16x8x128xf32, #tpu.memory_space<vmem>>, %arg9: memref<16x8x1024xf32, #tpu.memory_space<vmem>>, %arg10: memref<16x8x256xbf16, #tpu.memory_space<vmem>>, %arg11: memref<8x256xf32, #tpu.memory_space<vmem>>, %arg12: memref<8x256xf32, #tpu.memory_space<vmem>>) attributes {dimension_semantics = [#tpu.dimension_semantics<parallel>, #tpu.dimension_semantics<arbitrary>], iteration_bounds = array<i64: 1, 2>, scalar_prefetch = 0 : i64, scratch_operands = 4 : i64, tpu.core_type = #tpu.core_type<tc>, window_params = [{transform_indices = @transform_0, window_bounds = array<i64: 16, 8, 16>}, {pipeline_mode = #tpu.pipeline_mode<synchronous>, transform_indices = @transform_1, window_bounds = array<i64: 16, 1024>}, {pipeline_mode = #tpu.pipeline_mode<synchronous>, transform_indices = @transform_2, window_bounds = array<i64: 256, 1024>}, {pipeline_mode = #tpu.pipeline_mode<synchronous>, transform_indices = @transform_3, window_bounds = array<i64: 1, 1024>}, {pipeline_mode = #tpu.pipeline_mode<synchronous>, transform_indices = @transform_4, window_bounds = array<i64: 256, 128>}, {pipeline_mode = #tpu.pipeline_mode<synchronous>, transform_indices = @transform_5, window_bounds = array<i64: 1, 128>}, {transform_indices = @transform_6, window_bounds = array<i64: 16, 8, 128>}]} {
    %c0_i32 = arith.constant 0 : i32
    %0 = arith.cmpi eq, %arg1, %c0_i32 : i32
    %1 = arith.extui %0 : i1 to i32
    %c0_i32_0 = arith.constant 0 : i32
    %2 = arith.cmpi ne, %1, %c0_i32_0 : i32
    scf.if %2 {
      %cst_160 = arith.constant 0.000000e+00 : f32
      %603 = vector.broadcast %cst_160 : f32 to vector<8x256xf32>
      %c0_161 = arith.constant 0 : index
      %c0_162 = arith.constant 0 : index
      %604 = vector.load %arg11[%c0_161, %c0_162] : memref<8x256xf32, #tpu.memory_space<vmem>>, vector<8x256xf32>
      tpu.vector_store %arg11[%c0_161, %c0_162], %603 {strides = array<i32>} : memref<8x256xf32, #tpu.memory_space<vmem>>, vector<8x256xf32>,
      %cst_163 = arith.constant 0.000000e+00 : f32
      %605 = vector.broadcast %cst_163 : f32 to vector<8x256xf32>
      %c0_164 = arith.constant 0 : index
      %c0_165 = arith.constant 0 : index
      %606 = vector.load %arg12[%c0_164, %c0_165] : memref<8x256xf32, #tpu.memory_space<vmem>>, vector<8x256xf32>
      tpu.vector_store %arg12[%c0_164, %c0_165], %605 {strides = array<i32>} : memref<8x256xf32, #tpu.memory_space<vmem>>, vector<8x256xf32>,
    } else {
    }
    %c0 = arith.constant 0 : index
    %c0_1 = arith.constant 0 : index
    %c0_2 = arith.constant 0 : index
    %3 = vector.load %arg2[%c0, %c0_1, %c0_2] : memref<16x8x16xbf16, #tpu.memory_space<vmem>>, vector<16x8x16xbf16>
    %4 = vector.shape_cast %3 : vector<16x8x16xbf16> to vector<128x16xbf16>
    %c0_3 = arith.constant 0 : index
    %c0_4 = arith.constant 0 : index
    %5 = vector.load %arg3[%c0_3, %c0_4] : memref<16x1024xbf16, #tpu.memory_space<vmem>>, vector<16x1024xbf16>
    %cst = arith.constant dense<0.000000e+00> : vector<128x1024xf32>
    %6 = tpu.matmul %4, %5, %cst {dimension_numbers = #tpu.dot_dimension_numbers<[1], [0], [0], [1], [0, 0, 1, 1], [], []>} : vector<128x16xbf16>, vector<16x1024xbf16>, vector<128x1024xf32> -> vector<128x1024xf32>
    %c0_5 = arith.constant 0 : index
    %c0_6 = arith.constant 0 : index
    %7 = vector.load %arg5[%c0_5, %c0_6] : memref<1x1024xf32, #tpu.memory_space<vmem>>, vector<1x1024xf32>
    %8 = vector.broadcast %7 : vector<1x1024xf32> to vector<128x1024xf32>
    %9 = arith.addf %6, %8 : vector<128x1024xf32>
    %10 = vector.shape_cast %9 : vector<128x1024xf32> to vector<16x8x1024xf32>
    %c0_7 = arith.constant 0 : index
    %c0_8 = arith.constant 0 : index
    %c0_9 = arith.constant 0 : index
    %11 = vector.load %arg9[%c0_7, %c0_8, %c0_9] : memref<16x8x1024xf32, #tpu.memory_space<vmem>>, vector<16x8x1024xf32>
    tpu.vector_store %arg9[%c0_7, %c0_8, %c0_9], %10 {strides = array<i32>} : memref<16x8x1024xf32, #tpu.memory_space<vmem>>, vector<16x8x1024xf32>,
    %c0_10 = arith.constant 0 : index
    %c0_11 = arith.constant 0 : index
    %12 = vector.load %arg4[%c0_10, %c0_11] : memref<256x1024xbf16, #tpu.memory_space<vmem>>, vector<256x1024xbf16>
    %c0_12 = arith.constant 0 : index
    %c0_13 = arith.constant 0 : index
    %13 = vector.load %arg11[%c0_12, %c0_13] : memref<8x256xf32, #tpu.memory_space<vmem>>, vector<8x256xf32>
    %c0_14 = arith.constant 0 : index
    %c0_15 = arith.constant 0 : index
    %14 = vector.load %arg12[%c0_14, %c0_15] : memref<8x256xf32, #tpu.memory_space<vmem>>, vector<8x256xf32>
    %c0_i32_16 = arith.constant 0 : i32
    %15 = arith.index_cast %c0_i32_16 : i32 to index
    %c0_17 = arith.constant 0 : index
    %c0_18 = arith.constant 0 : index
    %16 = vector.load %arg9[%15, %c0_17, %c0_18] : memref<16x8x1024xf32, #tpu.memory_space<vmem>>, vector<1x8x1024xf32>
    %17 = vector.shape_cast %16 : vector<1x8x1024xf32> to vector<8x1024xf32>
    %18 = arith.truncf %13 : vector<8x256xf32> to vector<8x256xbf16>
    %cst_19 = arith.constant dense<0.000000e+00> : vector<8x1024xf32>
    %19 = tpu.matmul %18, %12, %cst_19 {dimension_numbers = #tpu.dot_dimension_numbers<[1], [0], [0], [1], [0, 0, 1, 1], [], []>} : vector<8x256xbf16>, vector<256x1024xbf16>, vector<8x1024xf32> -> vector<8x1024xf32>
    %20 = arith.addf %17, %19 : vector<8x1024xf32>
    %21 = vector.extract_strided_slice %20 {offsets = [0, 0], sizes = [8, 256], strides = [1, 1]} : vector<8x1024xf32> to vector<8x256xf32>
    %22 = arith.negf %21 : vector<8x256xf32>
    %23 = math.exp %22 : vector<8x256xf32>
    %cst_20 = arith.constant 1.000000e+00 : f32
    %24 = vector.broadcast %cst_20 : f32 to vector<8x256xf32>
    %25 = arith.addf %24, %23 : vector<8x256xf32>
    %26 = arith.divf %24, %25 : vector<8x256xf32>
    %27 = vector.extract_strided_slice %20 {offsets = [0, 256], sizes = [8, 256], strides = [1, 1]} : vector<8x1024xf32> to vector<8x256xf32>
    %28 = arith.negf %27 : vector<8x256xf32>
    %29 = math.exp %28 : vector<8x256xf32>
    %cst_21 = arith.constant 1.000000e+00 : f32
    %30 = vector.broadcast %cst_21 : f32 to vector<8x256xf32>
    %31 = arith.addf %30, %29 : vector<8x256xf32>
    %32 = arith.divf %30, %31 : vector<8x256xf32>
    %33 = vector.extract_strided_slice %20 {offsets = [0, 512], sizes = [8, 256], strides = [1, 1]} : vector<8x1024xf32> to vector<8x256xf32>
    %34 = math.tanh %33 : vector<8x256xf32>
    %35 = vector.extract_strided_slice %20 {offsets = [0, 768], sizes = [8, 256], strides = [1, 1]} : vector<8x1024xf32> to vector<8x256xf32>
    %36 = arith.negf %35 : vector<8x256xf32>
    %37 = math.exp %36 : vector<8x256xf32>
    %cst_22 = arith.constant 1.000000e+00 : f32
    %38 = vector.broadcast %cst_22 : f32 to vector<8x256xf32>
    %39 = arith.addf %38, %37 : vector<8x256xf32>
    %40 = arith.divf %38, %39 : vector<8x256xf32>
    %41 = arith.mulf %32, %14 : vector<8x256xf32>
    %42 = arith.mulf %26, %34 : vector<8x256xf32>
    %43 = arith.addf %41, %42 : vector<8x256xf32>
    %44 = math.tanh %43 : vector<8x256xf32>
    %45 = arith.mulf %40, %44 : vector<8x256xf32>
    %46 = arith.truncf %45 : vector<8x256xf32> to vector<8x256xbf16>
    %47 = arith.index_cast %c0_i32_16 : i32 to index
    %c0_23 = arith.constant 0 : index
    %c0_24 = arith.constant 0 : index
    %48 = vector.load %arg10[%47, %c0_23, %c0_24] : memref<16x8x256xbf16, #tpu.memory_space<vmem>>, vector<1x8x256xbf16>
    %49 = vector.shape_cast %48 : vector<1x8x256xbf16> to vector<8x256xbf16>
    %50 = vector.shape_cast %46 : vector<8x256xbf16> to vector<1x8x256xbf16>
    tpu.vector_store %arg10[%47, %c0_23, %c0_24], %50 {strides = array<i32>} : memref<16x8x256xbf16, #tpu.memory_space<vmem>>, vector<1x8x256xbf16>,
    %c1_i32 = arith.constant 1 : i32
    %51 = arith.index_cast %c1_i32 : i32 to index
    %c0_25 = arith.constant 0 : index
    %c0_26 = arith.constant 0 : index
    %52 = vector.load %arg9[%51, %c0_25, %c0_26] : memref<16x8x1024xf32, #tpu.memory_space<vmem>>, vector<1x8x1024xf32>
    %53 = vector.shape_cast %52 : vector<1x8x1024xf32> to vector<8x1024xf32>
    %54 = arith.truncf %45 : vector<8x256xf32> to vector<8x256xbf16>
    %cst_27 = arith.constant dense<0.000000e+00> : vector<8x1024xf32>
    %55 = tpu.matmul %54, %12, %cst_27 {dimension_numbers = #tpu.dot_dimension_numbers<[1], [0], [0], [1], [0, 0, 1, 1], [], []>} : vector<8x256xbf16>, vector<256x1024xbf16>, vector<8x1024xf32> -> vector<8x1024xf32>
    %56 = arith.addf %53, %55 : vector<8x1024xf32>
    %57 = vector.extract_strided_slice %56 {offsets = [0, 0], sizes = [8, 256], strides = [1, 1]} : vector<8x1024xf32> to vector<8x256xf32>
    %58 = arith.negf %57 : vector<8x256xf32>
    %59 = math.exp %58 : vector<8x256xf32>
    %cst_28 = arith.constant 1.000000e+00 : f32
    %60 = vector.broadcast %cst_28 : f32 to vector<8x256xf32>
    %61 = arith.addf %60, %59 : vector<8x256xf32>
    %62 = arith.divf %60, %61 : vector<8x256xf32>
    %63 = vector.extract_strided_slice %56 {offsets = [0, 256], sizes = [8, 256], strides = [1, 1]} : vector<8x1024xf32> to vector<8x256xf32>
    %64 = arith.negf %63 : vector<8x256xf32>
    %65 = math.exp %64 : vector<8x256xf32>
    %cst_29 = arith.constant 1.000000e+00 : f32
    %66 = vector.broadcast %cst_29 : f32 to vector<8x256xf32>
    %67 = arith.addf %66, %65 : vector<8x256xf32>
    %68 = arith.divf %66, %67 : vector<8x256xf32>
    %69 = vector.extract_strided_slice %56 {offsets = [0, 512], sizes = [8, 256], strides = [1, 1]} : vector<8x1024xf32> to vector<8x256xf32>
    %70 = math.tanh %69 : vector<8x256xf32>
    %71 = vector.extract_strided_slice %56 {offsets = [0, 768], sizes = [8, 256], strides = [1, 1]} : vector<8x1024xf32> to vector<8x256xf32>
    %72 = arith.negf %71 : vector<8x256xf32>
    %73 = math.exp %72 : vector<8x256xf32>
    %cst_30 = arith.constant 1.000000e+00 : f32
    %74 = vector.broadcast %cst_30 : f32 to vector<8x256xf32>
    %75 = arith.addf %74, %73 : vector<8x256xf32>
    %76 = arith.divf %74, %75 : vector<8x256xf32>
    %77 = arith.mulf %68, %43 : vector<8x256xf32>
    %78 = arith.mulf %62, %70 : vector<8x256xf32>
    %79 = arith.addf %77, %78 : vector<8x256xf32>
    %80 = math.tanh %79 : vector<8x256xf32>
    %81 = arith.mulf %76, %80 : vector<8x256xf32>
    %82 = arith.truncf %81 : vector<8x256xf32> to vector<8x256xbf16>
    %83 = arith.index_cast %c1_i32 : i32 to index
    %c0_31 = arith.constant 0 : index
    %c0_32 = arith.constant 0 : index
    %84 = vector.load %arg10[%83, %c0_31, %c0_32] : memref<16x8x256xbf16, #tpu.memory_space<vmem>>, vector<1x8x256xbf16>
    %85 = vector.shape_cast %84 : vector<1x8x256xbf16> to vector<8x256xbf16>
    %86 = vector.shape_cast %82 : vector<8x256xbf16> to vector<1x8x256xbf16>
    tpu.vector_store %arg10[%83, %c0_31, %c0_32], %86 {strides = array<i32>} : memref<16x8x256xbf16, #tpu.memory_space<vmem>>, vector<1x8x256xbf16>,
    %c2_i32 = arith.constant 2 : i32
    %87 = arith.index_cast %c2_i32 : i32 to index
    %c0_33 = arith.constant 0 : index
    %c0_34 = arith.constant 0 : index
    %88 = vector.load %arg9[%87, %c0_33, %c0_34] : memref<16x8x1024xf32, #tpu.memory_space<vmem>>, vector<1x8x1024xf32>
    %89 = vector.shape_cast %88 : vector<1x8x1024xf32> to vector<8x1024xf32>
    %90 = arith.truncf %81 : vector<8x256xf32> to vector<8x256xbf16>
    %cst_35 = arith.constant dense<0.000000e+00> : vector<8x1024xf32>
    %91 = tpu.matmul %90, %12, %cst_35 {dimension_numbers = #tpu.dot_dimension_numbers<[1], [0], [0], [1], [0, 0, 1, 1], [], []>} : vector<8x256xbf16>, vector<256x1024xbf16>, vector<8x1024xf32> -> vector<8x1024xf32>
    %92 = arith.addf %89, %91 : vector<8x1024xf32>
    %93 = vector.extract_strided_slice %92 {offsets = [0, 0], sizes = [8, 256], strides = [1, 1]} : vector<8x1024xf32> to vector<8x256xf32>
    %94 = arith.negf %93 : vector<8x256xf32>
    %95 = math.exp %94 : vector<8x256xf32>
    %cst_36 = arith.constant 1.000000e+00 : f32
    %96 = vector.broadcast %cst_36 : f32 to vector<8x256xf32>
    %97 = arith.addf %96, %95 : vector<8x256xf32>
    %98 = arith.divf %96, %97 : vector<8x256xf32>
    %99 = vector.extract_strided_slice %92 {offsets = [0, 256], sizes = [8, 256], strides = [1, 1]} : vector<8x1024xf32> to vector<8x256xf32>
    %100 = arith.negf %99 : vector<8x256xf32>
    %101 = math.exp %100 : vector<8x256xf32>
    %cst_37 = arith.constant 1.000000e+00 : f32
    %102 = vector.broadcast %cst_37 : f32 to vector<8x256xf32>
    %103 = arith.addf %102, %101 : vector<8x256xf32>
    %104 = arith.divf %102, %103 : vector<8x256xf32>
    %105 = vector.extract_strided_slice %92 {offsets = [0, 512], sizes = [8, 256], strides = [1, 1]} : vector<8x1024xf32> to vector<8x256xf32>
    %106 = math.tanh %105 : vector<8x256xf32>
    %107 = vector.extract_strided_slice %92 {offsets = [0, 768], sizes = [8, 256], strides = [1, 1]} : vector<8x1024xf32> to vector<8x256xf32>
    %108 = arith.negf %107 : vector<8x256xf32>
    %109 = math.exp %108 : vector<8x256xf32>
    %cst_38 = arith.constant 1.000000e+00 : f32
    %110 = vector.broadcast %cst_38 : f32 to vector<8x256xf32>
    %111 = arith.addf %110, %109 : vector<8x256xf32>
    %112 = arith.divf %110, %111 : vector<8x256xf32>
    %113 = arith.mulf %104, %79 : vector<8x256xf32>
    %114 = arith.mulf %98, %106 : vector<8x256xf32>
    %115 = arith.addf %113, %114 : vector<8x256xf32>
    %116 = math.tanh %115 : vector<8x256xf32>
    %117 = arith.mulf %112, %116 : vector<8x256xf32>
    %118 = arith.truncf %117 : vector<8x256xf32> to vector<8x256xbf16>
    %119 = arith.index_cast %c2_i32 : i32 to index
    %c0_39 = arith.constant 0 : index
    %c0_40 = arith.constant 0 : index
    %120 = vector.load %arg10[%119, %c0_39, %c0_40] : memref<16x8x256xbf16, #tpu.memory_space<vmem>>, vector<1x8x256xbf16>
    %121 = vector.shape_cast %120 : vector<1x8x256xbf16> to vector<8x256xbf16>
    %122 = vector.shape_cast %118 : vector<8x256xbf16> to vector<1x8x256xbf16>
    tpu.vector_store %arg10[%119, %c0_39, %c0_40], %122 {strides = array<i32>} : memref<16x8x256xbf16, #tpu.memory_space<vmem>>, vector<1x8x256xbf16>,
    %c3_i32 = arith.constant 3 : i32
    %123 = arith.index_cast %c3_i32 : i32 to index
    %c0_41 = arith.constant 0 : index
    %c0_42 = arith.constant 0 : index
    %124 = vector.load %arg9[%123, %c0_41, %c0_42] : memref<16x8x1024xf32, #tpu.memory_space<vmem>>, vector<1x8x1024xf32>
    %125 = vector.shape_cast %124 : vector<1x8x1024xf32> to vector<8x1024xf32>
    %126 = arith.truncf %117 : vector<8x256xf32> to vector<8x256xbf16>
    %cst_43 = arith.constant dense<0.000000e+00> : vector<8x1024xf32>
    %127 = tpu.matmul %126, %12, %cst_43 {dimension_numbers = #tpu.dot_dimension_numbers<[1], [0], [0], [1], [0, 0, 1, 1], [], []>} : vector<8x256xbf16>, vector<256x1024xbf16>, vector<8x1024xf32> -> vector<8x1024xf32>
    %128 = arith.addf %125, %127 : vector<8x1024xf32>
    %129 = vector.extract_strided_slice %128 {offsets = [0, 0], sizes = [8, 256], strides = [1, 1]} : vector<8x1024xf32> to vector<8x256xf32>
    %130 = arith.negf %129 : vector<8x256xf32>
    %131 = math.exp %130 : vector<8x256xf32>
    %cst_44 = arith.constant 1.000000e+00 : f32
    %132 = vector.broadcast %cst_44 : f32 to vector<8x256xf32>
    %133 = arith.addf %132, %131 : vector<8x256xf32>
    %134 = arith.divf %132, %133 : vector<8x256xf32>
    %135 = vector.extract_strided_slice %128 {offsets = [0, 256], sizes = [8, 256], strides = [1, 1]} : vector<8x1024xf32> to vector<8x256xf32>
    %136 = arith.negf %135 : vector<8x256xf32>
    %137 = math.exp %136 : vector<8x256xf32>
    %cst_45 = arith.constant 1.000000e+00 : f32
    %138 = vector.broadcast %cst_45 : f32 to vector<8x256xf32>
    %139 = arith.addf %138, %137 : vector<8x256xf32>
    %140 = arith.divf %138, %139 : vector<8x256xf32>
    %141 = vector.extract_strided_slice %128 {offsets = [0, 512], sizes = [8, 256], strides = [1, 1]} : vector<8x1024xf32> to vector<8x256xf32>
    %142 = math.tanh %141 : vector<8x256xf32>
    %143 = vector.extract_strided_slice %128 {offsets = [0, 768], sizes = [8, 256], strides = [1, 1]} : vector<8x1024xf32> to vector<8x256xf32>
    %144 = arith.negf %143 : vector<8x256xf32>
    %145 = math.exp %144 : vector<8x256xf32>
    %cst_46 = arith.constant 1.000000e+00 : f32
    %146 = vector.broadcast %cst_46 : f32 to vector<8x256xf32>
    %147 = arith.addf %146, %145 : vector<8x256xf32>
    %148 = arith.divf %146, %147 : vector<8x256xf32>
    %149 = arith.mulf %140, %115 : vector<8x256xf32>
    %150 = arith.mulf %134, %142 : vector<8x256xf32>
    %151 = arith.addf %149, %150 : vector<8x256xf32>
    %152 = math.tanh %151 : vector<8x256xf32>
    %153 = arith.mulf %148, %152 : vector<8x256xf32>
    %154 = arith.truncf %153 : vector<8x256xf32> to vector<8x256xbf16>
    %155 = arith.index_cast %c3_i32 : i32 to index
    %c0_47 = arith.constant 0 : index
    %c0_48 = arith.constant 0 : index
    %156 = vector.load %arg10[%155, %c0_47, %c0_48] : memref<16x8x256xbf16, #tpu.memory_space<vmem>>, vector<1x8x256xbf16>
    %157 = vector.shape_cast %156 : vector<1x8x256xbf16> to vector<8x256xbf16>
    %158 = vector.shape_cast %154 : vector<8x256xbf16> to vector<1x8x256xbf16>
    tpu.vector_store %arg10[%155, %c0_47, %c0_48], %158 {strides = array<i32>} : memref<16x8x256xbf16, #tpu.memory_space<vmem>>, vector<1x8x256xbf16>,
    %c4_i32 = arith.constant 4 : i32
    %159 = arith.index_cast %c4_i32 : i32 to index
    %c0_49 = arith.constant 0 : index
    %c0_50 = arith.constant 0 : index
    %160 = vector.load %arg9[%159, %c0_49, %c0_50] : memref<16x8x1024xf32, #tpu.memory_space<vmem>>, vector<1x8x1024xf32>
    %161 = vector.shape_cast %160 : vector<1x8x1024xf32> to vector<8x1024xf32>
    %162 = arith.truncf %153 : vector<8x256xf32> to vector<8x256xbf16>
    %cst_51 = arith.constant dense<0.000000e+00> : vector<8x1024xf32>
    %163 = tpu.matmul %162, %12, %cst_51 {dimension_numbers = #tpu.dot_dimension_numbers<[1], [0], [0], [1], [0, 0, 1, 1], [], []>} : vector<8x256xbf16>, vector<256x1024xbf16>, vector<8x1024xf32> -> vector<8x1024xf32>
    %164 = arith.addf %161, %163 : vector<8x1024xf32>
    %165 = vector.extract_strided_slice %164 {offsets = [0, 0], sizes = [8, 256], strides = [1, 1]} : vector<8x1024xf32> to vector<8x256xf32>
    %166 = arith.negf %165 : vector<8x256xf32>
    %167 = math.exp %166 : vector<8x256xf32>
    %cst_52 = arith.constant 1.000000e+00 : f32
    %168 = vector.broadcast %cst_52 : f32 to vector<8x256xf32>
    %169 = arith.addf %168, %167 : vector<8x256xf32>
    %170 = arith.divf %168, %169 : vector<8x256xf32>
    %171 = vector.extract_strided_slice %164 {offsets = [0, 256], sizes = [8, 256], strides = [1, 1]} : vector<8x1024xf32> to vector<8x256xf32>
    %172 = arith.negf %171 : vector<8x256xf32>
    %173 = math.exp %172 : vector<8x256xf32>
    %cst_53 = arith.constant 1.000000e+00 : f32
    %174 = vector.broadcast %cst_53 : f32 to vector<8x256xf32>
    %175 = arith.addf %174, %173 : vector<8x256xf32>
    %176 = arith.divf %174, %175 : vector<8x256xf32>
    %177 = vector.extract_strided_slice %164 {offsets = [0, 512], sizes = [8, 256], strides = [1, 1]} : vector<8x1024xf32> to vector<8x256xf32>
    %178 = math.tanh %177 : vector<8x256xf32>
    %179 = vector.extract_strided_slice %164 {offsets = [0, 768], sizes = [8, 256], strides = [1, 1]} : vector<8x1024xf32> to vector<8x256xf32>
    %180 = arith.negf %179 : vector<8x256xf32>
    %181 = math.exp %180 : vector<8x256xf32>
    %cst_54 = arith.constant 1.000000e+00 : f32
    %182 = vector.broadcast %cst_54 : f32 to vector<8x256xf32>
    %183 = arith.addf %182, %181 : vector<8x256xf32>
    %184 = arith.divf %182, %183 : vector<8x256xf32>
    %185 = arith.mulf %176, %151 : vector<8x256xf32>
    %186 = arith.mulf %170, %178 : vector<8x256xf32>
    %187 = arith.addf %185, %186 : vector<8x256xf32>
    %188 = math.tanh %187 : vector<8x256xf32>
    %189 = arith.mulf %184, %188 : vector<8x256xf32>
    %190 = arith.truncf %189 : vector<8x256xf32> to vector<8x256xbf16>
    %191 = arith.index_cast %c4_i32 : i32 to index
    %c0_55 = arith.constant 0 : index
    %c0_56 = arith.constant 0 : index
    %192 = vector.load %arg10[%191, %c0_55, %c0_56] : memref<16x8x256xbf16, #tpu.memory_space<vmem>>, vector<1x8x256xbf16>
    %193 = vector.shape_cast %192 : vector<1x8x256xbf16> to vector<8x256xbf16>
    %194 = vector.shape_cast %190 : vector<8x256xbf16> to vector<1x8x256xbf16>
    tpu.vector_store %arg10[%191, %c0_55, %c0_56], %194 {strides = array<i32>} : memref<16x8x256xbf16, #tpu.memory_space<vmem>>, vector<1x8x256xbf16>,
    %c5_i32 = arith.constant 5 : i32
    %195 = arith.index_cast %c5_i32 : i32 to index
    %c0_57 = arith.constant 0 : index
    %c0_58 = arith.constant 0 : index
    %196 = vector.load %arg9[%195, %c0_57, %c0_58] : memref<16x8x1024xf32, #tpu.memory_space<vmem>>, vector<1x8x1024xf32>
    %197 = vector.shape_cast %196 : vector<1x8x1024xf32> to vector<8x1024xf32>
    %198 = arith.truncf %189 : vector<8x256xf32> to vector<8x256xbf16>
    %cst_59 = arith.constant dense<0.000000e+00> : vector<8x1024xf32>
    %199 = tpu.matmul %198, %12, %cst_59 {dimension_numbers = #tpu.dot_dimension_numbers<[1], [0], [0], [1], [0, 0, 1, 1], [], []>} : vector<8x256xbf16>, vector<256x1024xbf16>, vector<8x1024xf32> -> vector<8x1024xf32>
    %200 = arith.addf %197, %199 : vector<8x1024xf32>
    %201 = vector.extract_strided_slice %200 {offsets = [0, 0], sizes = [8, 256], strides = [1, 1]} : vector<8x1024xf32> to vector<8x256xf32>
    %202 = arith.negf %201 : vector<8x256xf32>
    %203 = math.exp %202 : vector<8x256xf32>
    %cst_60 = arith.constant 1.000000e+00 : f32
    %204 = vector.broadcast %cst_60 : f32 to vector<8x256xf32>
    %205 = arith.addf %204, %203 : vector<8x256xf32>
    %206 = arith.divf %204, %205 : vector<8x256xf32>
    %207 = vector.extract_strided_slice %200 {offsets = [0, 256], sizes = [8, 256], strides = [1, 1]} : vector<8x1024xf32> to vector<8x256xf32>
    %208 = arith.negf %207 : vector<8x256xf32>
    %209 = math.exp %208 : vector<8x256xf32>
    %cst_61 = arith.constant 1.000000e+00 : f32
    %210 = vector.broadcast %cst_61 : f32 to vector<8x256xf32>
    %211 = arith.addf %210, %209 : vector<8x256xf32>
    %212 = arith.divf %210, %211 : vector<8x256xf32>
    %213 = vector.extract_strided_slice %200 {offsets = [0, 512], sizes = [8, 256], strides = [1, 1]} : vector<8x1024xf32> to vector<8x256xf32>
    %214 = math.tanh %213 : vector<8x256xf32>
    %215 = vector.extract_strided_slice %200 {offsets = [0, 768], sizes = [8, 256], strides = [1, 1]} : vector<8x1024xf32> to vector<8x256xf32>
    %216 = arith.negf %215 : vector<8x256xf32>
    %217 = math.exp %216 : vector<8x256xf32>
    %cst_62 = arith.constant 1.000000e+00 : f32
    %218 = vector.broadcast %cst_62 : f32 to vector<8x256xf32>
    %219 = arith.addf %218, %217 : vector<8x256xf32>
    %220 = arith.divf %218, %219 : vector<8x256xf32>
    %221 = arith.mulf %212, %187 : vector<8x256xf32>
    %222 = arith.mulf %206, %214 : vector<8x256xf32>
    %223 = arith.addf %221, %222 : vector<8x256xf32>
    %224 = math.tanh %223 : vector<8x256xf32>
    %225 = arith.mulf %220, %224 : vector<8x256xf32>
    %226 = arith.truncf %225 : vector<8x256xf32> to vector<8x256xbf16>
    %227 = arith.index_cast %c5_i32 : i32 to index
    %c0_63 = arith.constant 0 : index
    %c0_64 = arith.constant 0 : index
    %228 = vector.load %arg10[%227, %c0_63, %c0_64] : memref<16x8x256xbf16, #tpu.memory_space<vmem>>, vector<1x8x256xbf16>
    %229 = vector.shape_cast %228 : vector<1x8x256xbf16> to vector<8x256xbf16>
    %230 = vector.shape_cast %226 : vector<8x256xbf16> to vector<1x8x256xbf16>
    tpu.vector_store %arg10[%227, %c0_63, %c0_64], %230 {strides = array<i32>} : memref<16x8x256xbf16, #tpu.memory_space<vmem>>, vector<1x8x256xbf16>,
    %c6_i32 = arith.constant 6 : i32
    %231 = arith.index_cast %c6_i32 : i32 to index
    %c0_65 = arith.constant 0 : index
    %c0_66 = arith.constant 0 : index
    %232 = vector.load %arg9[%231, %c0_65, %c0_66] : memref<16x8x1024xf32, #tpu.memory_space<vmem>>, vector<1x8x1024xf32>
    %233 = vector.shape_cast %232 : vector<1x8x1024xf32> to vector<8x1024xf32>
    %234 = arith.truncf %225 : vector<8x256xf32> to vector<8x256xbf16>
    %cst_67 = arith.constant dense<0.000000e+00> : vector<8x1024xf32>
    %235 = tpu.matmul %234, %12, %cst_67 {dimension_numbers = #tpu.dot_dimension_numbers<[1], [0], [0], [1], [0, 0, 1, 1], [], []>} : vector<8x256xbf16>, vector<256x1024xbf16>, vector<8x1024xf32> -> vector<8x1024xf32>
    %236 = arith.addf %233, %235 : vector<8x1024xf32>
    %237 = vector.extract_strided_slice %236 {offsets = [0, 0], sizes = [8, 256], strides = [1, 1]} : vector<8x1024xf32> to vector<8x256xf32>
    %238 = arith.negf %237 : vector<8x256xf32>
    %239 = math.exp %238 : vector<8x256xf32>
    %cst_68 = arith.constant 1.000000e+00 : f32
    %240 = vector.broadcast %cst_68 : f32 to vector<8x256xf32>
    %241 = arith.addf %240, %239 : vector<8x256xf32>
    %242 = arith.divf %240, %241 : vector<8x256xf32>
    %243 = vector.extract_strided_slice %236 {offsets = [0, 256], sizes = [8, 256], strides = [1, 1]} : vector<8x1024xf32> to vector<8x256xf32>
    %244 = arith.negf %243 : vector<8x256xf32>
    %245 = math.exp %244 : vector<8x256xf32>
    %cst_69 = arith.constant 1.000000e+00 : f32
    %246 = vector.broadcast %cst_69 : f32 to vector<8x256xf32>
    %247 = arith.addf %246, %245 : vector<8x256xf32>
    %248 = arith.divf %246, %247 : vector<8x256xf32>
    %249 = vector.extract_strided_slice %236 {offsets = [0, 512], sizes = [8, 256], strides = [1, 1]} : vector<8x1024xf32> to vector<8x256xf32>
    %250 = math.tanh %249 : vector<8x256xf32>
    %251 = vector.extract_strided_slice %236 {offsets = [0, 768], sizes = [8, 256], strides = [1, 1]} : vector<8x1024xf32> to vector<8x256xf32>
    %252 = arith.negf %251 : vector<8x256xf32>
    %253 = math.exp %252 : vector<8x256xf32>
    %cst_70 = arith.constant 1.000000e+00 : f32
    %254 = vector.broadcast %cst_70 : f32 to vector<8x256xf32>
    %255 = arith.addf %254, %253 : vector<8x256xf32>
    %256 = arith.divf %254, %255 : vector<8x256xf32>
    %257 = arith.mulf %248, %223 : vector<8x256xf32>
    %258 = arith.mulf %242, %250 : vector<8x256xf32>
    %259 = arith.addf %257, %258 : vector<8x256xf32>
    %260 = math.tanh %259 : vector<8x256xf32>
    %261 = arith.mulf %256, %260 : vector<8x256xf32>
    %262 = arith.truncf %261 : vector<8x256xf32> to vector<8x256xbf16>
    %263 = arith.index_cast %c6_i32 : i32 to index
    %c0_71 = arith.constant 0 : index
    %c0_72 = arith.constant 0 : index
    %264 = vector.load %arg10[%263, %c0_71, %c0_72] : memref<16x8x256xbf16, #tpu.memory_space<vmem>>, vector<1x8x256xbf16>
    %265 = vector.shape_cast %264 : vector<1x8x256xbf16> to vector<8x256xbf16>
    %266 = vector.shape_cast %262 : vector<8x256xbf16> to vector<1x8x256xbf16>
    tpu.vector_store %arg10[%263, %c0_71, %c0_72], %266 {strides = array<i32>} : memref<16x8x256xbf16, #tpu.memory_space<vmem>>, vector<1x8x256xbf16>,
    %c7_i32 = arith.constant 7 : i32
    %267 = arith.index_cast %c7_i32 : i32 to index
    %c0_73 = arith.constant 0 : index
    %c0_74 = arith.constant 0 : index
    %268 = vector.load %arg9[%267, %c0_73, %c0_74] : memref<16x8x1024xf32, #tpu.memory_space<vmem>>, vector<1x8x1024xf32>
    %269 = vector.shape_cast %268 : vector<1x8x1024xf32> to vector<8x1024xf32>
    %270 = arith.truncf %261 : vector<8x256xf32> to vector<8x256xbf16>
    %cst_75 = arith.constant dense<0.000000e+00> : vector<8x1024xf32>
    %271 = tpu.matmul %270, %12, %cst_75 {dimension_numbers = #tpu.dot_dimension_numbers<[1], [0], [0], [1], [0, 0, 1, 1], [], []>} : vector<8x256xbf16>, vector<256x1024xbf16>, vector<8x1024xf32> -> vector<8x1024xf32>
    %272 = arith.addf %269, %271 : vector<8x1024xf32>
    %273 = vector.extract_strided_slice %272 {offsets = [0, 0], sizes = [8, 256], strides = [1, 1]} : vector<8x1024xf32> to vector<8x256xf32>
    %274 = arith.negf %273 : vector<8x256xf32>
    %275 = math.exp %274 : vector<8x256xf32>
    %cst_76 = arith.constant 1.000000e+00 : f32
    %276 = vector.broadcast %cst_76 : f32 to vector<8x256xf32>
    %277 = arith.addf %276, %275 : vector<8x256xf32>
    %278 = arith.divf %276, %277 : vector<8x256xf32>
    %279 = vector.extract_strided_slice %272 {offsets = [0, 256], sizes = [8, 256], strides = [1, 1]} : vector<8x1024xf32> to vector<8x256xf32>
    %280 = arith.negf %279 : vector<8x256xf32>
    %281 = math.exp %280 : vector<8x256xf32>
    %cst_77 = arith.constant 1.000000e+00 : f32
    %282 = vector.broadcast %cst_77 : f32 to vector<8x256xf32>
    %283 = arith.addf %282, %281 : vector<8x256xf32>
    %284 = arith.divf %282, %283 : vector<8x256xf32>
    %285 = vector.extract_strided_slice %272 {offsets = [0, 512], sizes = [8, 256], strides = [1, 1]} : vector<8x1024xf32> to vector<8x256xf32>
    %286 = math.tanh %285 : vector<8x256xf32>
    %287 = vector.extract_strided_slice %272 {offsets = [0, 768], sizes = [8, 256], strides = [1, 1]} : vector<8x1024xf32> to vector<8x256xf32>
    %288 = arith.negf %287 : vector<8x256xf32>
    %289 = math.exp %288 : vector<8x256xf32>
    %cst_78 = arith.constant 1.000000e+00 : f32
    %290 = vector.broadcast %cst_78 : f32 to vector<8x256xf32>
    %291 = arith.addf %290, %289 : vector<8x256xf32>
    %292 = arith.divf %290, %291 : vector<8x256xf32>
    %293 = arith.mulf %284, %259 : vector<8x256xf32>
    %294 = arith.mulf %278, %286 : vector<8x256xf32>
    %295 = arith.addf %293, %294 : vector<8x256xf32>
    %296 = math.tanh %295 : vector<8x256xf32>
    %297 = arith.mulf %292, %296 : vector<8x256xf32>
    %298 = arith.truncf %297 : vector<8x256xf32> to vector<8x256xbf16>
    %299 = arith.index_cast %c7_i32 : i32 to index
    %c0_79 = arith.constant 0 : index
    %c0_80 = arith.constant 0 : index
    %300 = vector.load %arg10[%299, %c0_79, %c0_80] : memref<16x8x256xbf16, #tpu.memory_space<vmem>>, vector<1x8x256xbf16>
    %301 = vector.shape_cast %300 : vector<1x8x256xbf16> to vector<8x256xbf16>
    %302 = vector.shape_cast %298 : vector<8x256xbf16> to vector<1x8x256xbf16>
    tpu.vector_store %arg10[%299, %c0_79, %c0_80], %302 {strides = array<i32>} : memref<16x8x256xbf16, #tpu.memory_space<vmem>>, vector<1x8x256xbf16>,
    %c8_i32 = arith.constant 8 : i32
    %303 = arith.index_cast %c8_i32 : i32 to index
    %c0_81 = arith.constant 0 : index
    %c0_82 = arith.constant 0 : index
    %304 = vector.load %arg9[%303, %c0_81, %c0_82] : memref<16x8x1024xf32, #tpu.memory_space<vmem>>, vector<1x8x1024xf32>
    %305 = vector.shape_cast %304 : vector<1x8x1024xf32> to vector<8x1024xf32>
    %306 = arith.truncf %297 : vector<8x256xf32> to vector<8x256xbf16>
    %cst_83 = arith.constant dense<0.000000e+00> : vector<8x1024xf32>
    %307 = tpu.matmul %306, %12, %cst_83 {dimension_numbers = #tpu.dot_dimension_numbers<[1], [0], [0], [1], [0, 0, 1, 1], [], []>} : vector<8x256xbf16>, vector<256x1024xbf16>, vector<8x1024xf32> -> vector<8x1024xf32>
    %308 = arith.addf %305, %307 : vector<8x1024xf32>
    %309 = vector.extract_strided_slice %308 {offsets = [0, 0], sizes = [8, 256], strides = [1, 1]} : vector<8x1024xf32> to vector<8x256xf32>
    %310 = arith.negf %309 : vector<8x256xf32>
    %311 = math.exp %310 : vector<8x256xf32>
    %cst_84 = arith.constant 1.000000e+00 : f32
    %312 = vector.broadcast %cst_84 : f32 to vector<8x256xf32>
    %313 = arith.addf %312, %311 : vector<8x256xf32>
    %314 = arith.divf %312, %313 : vector<8x256xf32>
    %315 = vector.extract_strided_slice %308 {offsets = [0, 256], sizes = [8, 256], strides = [1, 1]} : vector<8x1024xf32> to vector<8x256xf32>
    %316 = arith.negf %315 : vector<8x256xf32>
    %317 = math.exp %316 : vector<8x256xf32>
    %cst_85 = arith.constant 1.000000e+00 : f32
    %318 = vector.broadcast %cst_85 : f32 to vector<8x256xf32>
    %319 = arith.addf %318, %317 : vector<8x256xf32>
    %320 = arith.divf %318, %319 : vector<8x256xf32>
    %321 = vector.extract_strided_slice %308 {offsets = [0, 512], sizes = [8, 256], strides = [1, 1]} : vector<8x1024xf32> to vector<8x256xf32>
    %322 = math.tanh %321 : vector<8x256xf32>
    %323 = vector.extract_strided_slice %308 {offsets = [0, 768], sizes = [8, 256], strides = [1, 1]} : vector<8x1024xf32> to vector<8x256xf32>
    %324 = arith.negf %323 : vector<8x256xf32>
    %325 = math.exp %324 : vector<8x256xf32>
    %cst_86 = arith.constant 1.000000e+00 : f32
    %326 = vector.broadcast %cst_86 : f32 to vector<8x256xf32>
    %327 = arith.addf %326, %325 : vector<8x256xf32>
    %328 = arith.divf %326, %327 : vector<8x256xf32>
    %329 = arith.mulf %320, %295 : vector<8x256xf32>
    %330 = arith.mulf %314, %322 : vector<8x256xf32>
    %331 = arith.addf %329, %330 : vector<8x256xf32>
    %332 = math.tanh %331 : vector<8x256xf32>
    %333 = arith.mulf %328, %332 : vector<8x256xf32>
    %334 = arith.truncf %333 : vector<8x256xf32> to vector<8x256xbf16>
    %335 = arith.index_cast %c8_i32 : i32 to index
    %c0_87 = arith.constant 0 : index
    %c0_88 = arith.constant 0 : index
    %336 = vector.load %arg10[%335, %c0_87, %c0_88] : memref<16x8x256xbf16, #tpu.memory_space<vmem>>, vector<1x8x256xbf16>
    %337 = vector.shape_cast %336 : vector<1x8x256xbf16> to vector<8x256xbf16>
    %338 = vector.shape_cast %334 : vector<8x256xbf16> to vector<1x8x256xbf16>
    tpu.vector_store %arg10[%335, %c0_87, %c0_88], %338 {strides = array<i32>} : memref<16x8x256xbf16, #tpu.memory_space<vmem>>, vector<1x8x256xbf16>,
    %c9_i32 = arith.constant 9 : i32
    %339 = arith.index_cast %c9_i32 : i32 to index
    %c0_89 = arith.constant 0 : index
    %c0_90 = arith.constant 0 : index
    %340 = vector.load %arg9[%339, %c0_89, %c0_90] : memref<16x8x1024xf32, #tpu.memory_space<vmem>>, vector<1x8x1024xf32>
    %341 = vector.shape_cast %340 : vector<1x8x1024xf32> to vector<8x1024xf32>
    %342 = arith.truncf %333 : vector<8x256xf32> to vector<8x256xbf16>
    %cst_91 = arith.constant dense<0.000000e+00> : vector<8x1024xf32>
    %343 = tpu.matmul %342, %12, %cst_91 {dimension_numbers = #tpu.dot_dimension_numbers<[1], [0], [0], [1], [0, 0, 1, 1], [], []>} : vector<8x256xbf16>, vector<256x1024xbf16>, vector<8x1024xf32> -> vector<8x1024xf32>
    %344 = arith.addf %341, %343 : vector<8x1024xf32>
    %345 = vector.extract_strided_slice %344 {offsets = [0, 0], sizes = [8, 256], strides = [1, 1]} : vector<8x1024xf32> to vector<8x256xf32>
    %346 = arith.negf %345 : vector<8x256xf32>
    %347 = math.exp %346 : vector<8x256xf32>
    %cst_92 = arith.constant 1.000000e+00 : f32
    %348 = vector.broadcast %cst_92 : f32 to vector<8x256xf32>
    %349 = arith.addf %348, %347 : vector<8x256xf32>
    %350 = arith.divf %348, %349 : vector<8x256xf32>
    %351 = vector.extract_strided_slice %344 {offsets = [0, 256], sizes = [8, 256], strides = [1, 1]} : vector<8x1024xf32> to vector<8x256xf32>
    %352 = arith.negf %351 : vector<8x256xf32>
    %353 = math.exp %352 : vector<8x256xf32>
    %cst_93 = arith.constant 1.000000e+00 : f32
    %354 = vector.broadcast %cst_93 : f32 to vector<8x256xf32>
    %355 = arith.addf %354, %353 : vector<8x256xf32>
    %356 = arith.divf %354, %355 : vector<8x256xf32>
    %357 = vector.extract_strided_slice %344 {offsets = [0, 512], sizes = [8, 256], strides = [1, 1]} : vector<8x1024xf32> to vector<8x256xf32>
    %358 = math.tanh %357 : vector<8x256xf32>
    %359 = vector.extract_strided_slice %344 {offsets = [0, 768], sizes = [8, 256], strides = [1, 1]} : vector<8x1024xf32> to vector<8x256xf32>
    %360 = arith.negf %359 : vector<8x256xf32>
    %361 = math.exp %360 : vector<8x256xf32>
    %cst_94 = arith.constant 1.000000e+00 : f32
    %362 = vector.broadcast %cst_94 : f32 to vector<8x256xf32>
    %363 = arith.addf %362, %361 : vector<8x256xf32>
    %364 = arith.divf %362, %363 : vector<8x256xf32>
    %365 = arith.mulf %356, %331 : vector<8x256xf32>
    %366 = arith.mulf %350, %358 : vector<8x256xf32>
    %367 = arith.addf %365, %366 : vector<8x256xf32>
    %368 = math.tanh %367 : vector<8x256xf32>
    %369 = arith.mulf %364, %368 : vector<8x256xf32>
    %370 = arith.truncf %369 : vector<8x256xf32> to vector<8x256xbf16>
    %371 = arith.index_cast %c9_i32 : i32 to index
    %c0_95 = arith.constant 0 : index
    %c0_96 = arith.constant 0 : index
    %372 = vector.load %arg10[%371, %c0_95, %c0_96] : memref<16x8x256xbf16, #tpu.memory_space<vmem>>, vector<1x8x256xbf16>
    %373 = vector.shape_cast %372 : vector<1x8x256xbf16> to vector<8x256xbf16>
    %374 = vector.shape_cast %370 : vector<8x256xbf16> to vector<1x8x256xbf16>
    tpu.vector_store %arg10[%371, %c0_95, %c0_96], %374 {strides = array<i32>} : memref<16x8x256xbf16, #tpu.memory_space<vmem>>, vector<1x8x256xbf16>,
    %c10_i32 = arith.constant 10 : i32
    %375 = arith.index_cast %c10_i32 : i32 to index
    %c0_97 = arith.constant 0 : index
    %c0_98 = arith.constant 0 : index
    %376 = vector.load %arg9[%375, %c0_97, %c0_98] : memref<16x8x1024xf32, #tpu.memory_space<vmem>>, vector<1x8x1024xf32>
    %377 = vector.shape_cast %376 : vector<1x8x1024xf32> to vector<8x1024xf32>
    %378 = arith.truncf %369 : vector<8x256xf32> to vector<8x256xbf16>
    %cst_99 = arith.constant dense<0.000000e+00> : vector<8x1024xf32>
    %379 = tpu.matmul %378, %12, %cst_99 {dimension_numbers = #tpu.dot_dimension_numbers<[1], [0], [0], [1], [0, 0, 1, 1], [], []>} : vector<8x256xbf16>, vector<256x1024xbf16>, vector<8x1024xf32> -> vector<8x1024xf32>
    %380 = arith.addf %377, %379 : vector<8x1024xf32>
    %381 = vector.extract_strided_slice %380 {offsets = [0, 0], sizes = [8, 256], strides = [1, 1]} : vector<8x1024xf32> to vector<8x256xf32>
    %382 = arith.negf %381 : vector<8x256xf32>
    %383 = math.exp %382 : vector<8x256xf32>
    %cst_100 = arith.constant 1.000000e+00 : f32
    %384 = vector.broadcast %cst_100 : f32 to vector<8x256xf32>
    %385 = arith.addf %384, %383 : vector<8x256xf32>
    %386 = arith.divf %384, %385 : vector<8x256xf32>
    %387 = vector.extract_strided_slice %380 {offsets = [0, 256], sizes = [8, 256], strides = [1, 1]} : vector<8x1024xf32> to vector<8x256xf32>
    %388 = arith.negf %387 : vector<8x256xf32>
    %389 = math.exp %388 : vector<8x256xf32>
    %cst_101 = arith.constant 1.000000e+00 : f32
    %390 = vector.broadcast %cst_101 : f32 to vector<8x256xf32>
    %391 = arith.addf %390, %389 : vector<8x256xf32>
    %392 = arith.divf %390, %391 : vector<8x256xf32>
    %393 = vector.extract_strided_slice %380 {offsets = [0, 512], sizes = [8, 256], strides = [1, 1]} : vector<8x1024xf32> to vector<8x256xf32>
    %394 = math.tanh %393 : vector<8x256xf32>
    %395 = vector.extract_strided_slice %380 {offsets = [0, 768], sizes = [8, 256], strides = [1, 1]} : vector<8x1024xf32> to vector<8x256xf32>
    %396 = arith.negf %395 : vector<8x256xf32>
    %397 = math.exp %396 : vector<8x256xf32>
    %cst_102 = arith.constant 1.000000e+00 : f32
    %398 = vector.broadcast %cst_102 : f32 to vector<8x256xf32>
    %399 = arith.addf %398, %397 : vector<8x256xf32>
    %400 = arith.divf %398, %399 : vector<8x256xf32>
    %401 = arith.mulf %392, %367 : vector<8x256xf32>
    %402 = arith.mulf %386, %394 : vector<8x256xf32>
    %403 = arith.addf %401, %402 : vector<8x256xf32>
    %404 = math.tanh %403 : vector<8x256xf32>
    %405 = arith.mulf %400, %404 : vector<8x256xf32>
    %406 = arith.truncf %405 : vector<8x256xf32> to vector<8x256xbf16>
    %407 = arith.index_cast %c10_i32 : i32 to index
    %c0_103 = arith.constant 0 : index
    %c0_104 = arith.constant 0 : index
    %408 = vector.load %arg10[%407, %c0_103, %c0_104] : memref<16x8x256xbf16, #tpu.memory_space<vmem>>, vector<1x8x256xbf16>
    %409 = vector.shape_cast %408 : vector<1x8x256xbf16> to vector<8x256xbf16>
    %410 = vector.shape_cast %406 : vector<8x256xbf16> to vector<1x8x256xbf16>
    tpu.vector_store %arg10[%407, %c0_103, %c0_104], %410 {strides = array<i32>} : memref<16x8x256xbf16, #tpu.memory_space<vmem>>, vector<1x8x256xbf16>,
    %c11_i32 = arith.constant 11 : i32
    %411 = arith.index_cast %c11_i32 : i32 to index
    %c0_105 = arith.constant 0 : index
    %c0_106 = arith.constant 0 : index
    %412 = vector.load %arg9[%411, %c0_105, %c0_106] : memref<16x8x1024xf32, #tpu.memory_space<vmem>>, vector<1x8x1024xf32>
    %413 = vector.shape_cast %412 : vector<1x8x1024xf32> to vector<8x1024xf32>
    %414 = arith.truncf %405 : vector<8x256xf32> to vector<8x256xbf16>
    %cst_107 = arith.constant dense<0.000000e+00> : vector<8x1024xf32>
    %415 = tpu.matmul %414, %12, %cst_107 {dimension_numbers = #tpu.dot_dimension_numbers<[1], [0], [0], [1], [0, 0, 1, 1], [], []>} : vector<8x256xbf16>, vector<256x1024xbf16>, vector<8x1024xf32> -> vector<8x1024xf32>
    %416 = arith.addf %413, %415 : vector<8x1024xf32>
    %417 = vector.extract_strided_slice %416 {offsets = [0, 0], sizes = [8, 256], strides = [1, 1]} : vector<8x1024xf32> to vector<8x256xf32>
    %418 = arith.negf %417 : vector<8x256xf32>
    %419 = math.exp %418 : vector<8x256xf32>
    %cst_108 = arith.constant 1.000000e+00 : f32
    %420 = vector.broadcast %cst_108 : f32 to vector<8x256xf32>
    %421 = arith.addf %420, %419 : vector<8x256xf32>
    %422 = arith.divf %420, %421 : vector<8x256xf32>
    %423 = vector.extract_strided_slice %416 {offsets = [0, 256], sizes = [8, 256], strides = [1, 1]} : vector<8x1024xf32> to vector<8x256xf32>
    %424 = arith.negf %423 : vector<8x256xf32>
    %425 = math.exp %424 : vector<8x256xf32>
    %cst_109 = arith.constant 1.000000e+00 : f32
    %426 = vector.broadcast %cst_109 : f32 to vector<8x256xf32>
    %427 = arith.addf %426, %425 : vector<8x256xf32>
    %428 = arith.divf %426, %427 : vector<8x256xf32>
    %429 = vector.extract_strided_slice %416 {offsets = [0, 512], sizes = [8, 256], strides = [1, 1]} : vector<8x1024xf32> to vector<8x256xf32>
    %430 = math.tanh %429 : vector<8x256xf32>
    %431 = vector.extract_strided_slice %416 {offsets = [0, 768], sizes = [8, 256], strides = [1, 1]} : vector<8x1024xf32> to vector<8x256xf32>
    %432 = arith.negf %431 : vector<8x256xf32>
    %433 = math.exp %432 : vector<8x256xf32>
    %cst_110 = arith.constant 1.000000e+00 : f32
    %434 = vector.broadcast %cst_110 : f32 to vector<8x256xf32>
    %435 = arith.addf %434, %433 : vector<8x256xf32>
    %436 = arith.divf %434, %435 : vector<8x256xf32>
    %437 = arith.mulf %428, %403 : vector<8x256xf32>
    %438 = arith.mulf %422, %430 : vector<8x256xf32>
    %439 = arith.addf %437, %438 : vector<8x256xf32>
    %440 = math.tanh %439 : vector<8x256xf32>
    %441 = arith.mulf %436, %440 : vector<8x256xf32>
    %442 = arith.truncf %441 : vector<8x256xf32> to vector<8x256xbf16>
    %443 = arith.index_cast %c11_i32 : i32 to index
    %c0_111 = arith.constant 0 : index
    %c0_112 = arith.constant 0 : index
    %444 = vector.load %arg10[%443, %c0_111, %c0_112] : memref<16x8x256xbf16, #tpu.memory_space<vmem>>, vector<1x8x256xbf16>
    %445 = vector.shape_cast %444 : vector<1x8x256xbf16> to vector<8x256xbf16>
    %446 = vector.shape_cast %442 : vector<8x256xbf16> to vector<1x8x256xbf16>
    tpu.vector_store %arg10[%443, %c0_111, %c0_112], %446 {strides = array<i32>} : memref<16x8x256xbf16, #tpu.memory_space<vmem>>, vector<1x8x256xbf16>,
    %c12_i32 = arith.constant 12 : i32
    %447 = arith.index_cast %c12_i32 : i32 to index
    %c0_113 = arith.constant 0 : index
    %c0_114 = arith.constant 0 : index
    %448 = vector.load %arg9[%447, %c0_113, %c0_114] : memref<16x8x1024xf32, #tpu.memory_space<vmem>>, vector<1x8x1024xf32>
    %449 = vector.shape_cast %448 : vector<1x8x1024xf32> to vector<8x1024xf32>
    %450 = arith.truncf %441 : vector<8x256xf32> to vector<8x256xbf16>
    %cst_115 = arith.constant dense<0.000000e+00> : vector<8x1024xf32>
    %451 = tpu.matmul %450, %12, %cst_115 {dimension_numbers = #tpu.dot_dimension_numbers<[1], [0], [0], [1], [0, 0, 1, 1], [], []>} : vector<8x256xbf16>, vector<256x1024xbf16>, vector<8x1024xf32> -> vector<8x1024xf32>
    %452 = arith.addf %449, %451 : vector<8x1024xf32>
    %453 = vector.extract_strided_slice %452 {offsets = [0, 0], sizes = [8, 256], strides = [1, 1]} : vector<8x1024xf32> to vector<8x256xf32>
    %454 = arith.negf %453 : vector<8x256xf32>
    %455 = math.exp %454 : vector<8x256xf32>
    %cst_116 = arith.constant 1.000000e+00 : f32
    %456 = vector.broadcast %cst_116 : f32 to vector<8x256xf32>
    %457 = arith.addf %456, %455 : vector<8x256xf32>
    %458 = arith.divf %456, %457 : vector<8x256xf32>
    %459 = vector.extract_strided_slice %452 {offsets = [0, 256], sizes = [8, 256], strides = [1, 1]} : vector<8x1024xf32> to vector<8x256xf32>
    %460 = arith.negf %459 : vector<8x256xf32>
    %461 = math.exp %460 : vector<8x256xf32>
    %cst_117 = arith.constant 1.000000e+00 : f32
    %462 = vector.broadcast %cst_117 : f32 to vector<8x256xf32>
    %463 = arith.addf %462, %461 : vector<8x256xf32>
    %464 = arith.divf %462, %463 : vector<8x256xf32>
    %465 = vector.extract_strided_slice %452 {offsets = [0, 512], sizes = [8, 256], strides = [1, 1]} : vector<8x1024xf32> to vector<8x256xf32>
    %466 = math.tanh %465 : vector<8x256xf32>
    %467 = vector.extract_strided_slice %452 {offsets = [0, 768], sizes = [8, 256], strides = [1, 1]} : vector<8x1024xf32> to vector<8x256xf32>
    %468 = arith.negf %467 : vector<8x256xf32>
    %469 = math.exp %468 : vector<8x256xf32>
    %cst_118 = arith.constant 1.000000e+00 : f32
    %470 = vector.broadcast %cst_118 : f32 to vector<8x256xf32>
    %471 = arith.addf %470, %469 : vector<8x256xf32>
    %472 = arith.divf %470, %471 : vector<8x256xf32>
    %473 = arith.mulf %464, %439 : vector<8x256xf32>
    %474 = arith.mulf %458, %466 : vector<8x256xf32>
    %475 = arith.addf %473, %474 : vector<8x256xf32>
    %476 = math.tanh %475 : vector<8x256xf32>
    %477 = arith.mulf %472, %476 : vector<8x256xf32>
    %478 = arith.truncf %477 : vector<8x256xf32> to vector<8x256xbf16>
    %479 = arith.index_cast %c12_i32 : i32 to index
    %c0_119 = arith.constant 0 : index
    %c0_120 = arith.constant 0 : index
    %480 = vector.load %arg10[%479, %c0_119, %c0_120] : memref<16x8x256xbf16, #tpu.memory_space<vmem>>, vector<1x8x256xbf16>
    %481 = vector.shape_cast %480 : vector<1x8x256xbf16> to vector<8x256xbf16>
    %482 = vector.shape_cast %478 : vector<8x256xbf16> to vector<1x8x256xbf16>
    tpu.vector_store %arg10[%479, %c0_119, %c0_120], %482 {strides = array<i32>} : memref<16x8x256xbf16, #tpu.memory_space<vmem>>, vector<1x8x256xbf16>,
    %c13_i32 = arith.constant 13 : i32
    %483 = arith.index_cast %c13_i32 : i32 to index
    %c0_121 = arith.constant 0 : index
    %c0_122 = arith.constant 0 : index
    %484 = vector.load %arg9[%483, %c0_121, %c0_122] : memref<16x8x1024xf32, #tpu.memory_space<vmem>>, vector<1x8x1024xf32>
    %485 = vector.shape_cast %484 : vector<1x8x1024xf32> to vector<8x1024xf32>
    %486 = arith.truncf %477 : vector<8x256xf32> to vector<8x256xbf16>
    %cst_123 = arith.constant dense<0.000000e+00> : vector<8x1024xf32>
    %487 = tpu.matmul %486, %12, %cst_123 {dimension_numbers = #tpu.dot_dimension_numbers<[1], [0], [0], [1], [0, 0, 1, 1], [], []>} : vector<8x256xbf16>, vector<256x1024xbf16>, vector<8x1024xf32> -> vector<8x1024xf32>
    %488 = arith.addf %485, %487 : vector<8x1024xf32>
    %489 = vector.extract_strided_slice %488 {offsets = [0, 0], sizes = [8, 256], strides = [1, 1]} : vector<8x1024xf32> to vector<8x256xf32>
    %490 = arith.negf %489 : vector<8x256xf32>
    %491 = math.exp %490 : vector<8x256xf32>
    %cst_124 = arith.constant 1.000000e+00 : f32
    %492 = vector.broadcast %cst_124 : f32 to vector<8x256xf32>
    %493 = arith.addf %492, %491 : vector<8x256xf32>
    %494 = arith.divf %492, %493 : vector<8x256xf32>
    %495 = vector.extract_strided_slice %488 {offsets = [0, 256], sizes = [8, 256], strides = [1, 1]} : vector<8x1024xf32> to vector<8x256xf32>
    %496 = arith.negf %495 : vector<8x256xf32>
    %497 = math.exp %496 : vector<8x256xf32>
    %cst_125 = arith.constant 1.000000e+00 : f32
    %498 = vector.broadcast %cst_125 : f32 to vector<8x256xf32>
    %499 = arith.addf %498, %497 : vector<8x256xf32>
    %500 = arith.divf %498, %499 : vector<8x256xf32>
    %501 = vector.extract_strided_slice %488 {offsets = [0, 512], sizes = [8, 256], strides = [1, 1]} : vector<8x1024xf32> to vector<8x256xf32>
    %502 = math.tanh %501 : vector<8x256xf32>
    %503 = vector.extract_strided_slice %488 {offsets = [0, 768], sizes = [8, 256], strides = [1, 1]} : vector<8x1024xf32> to vector<8x256xf32>
    %504 = arith.negf %503 : vector<8x256xf32>
    %505 = math.exp %504 : vector<8x256xf32>
    %cst_126 = arith.constant 1.000000e+00 : f32
    %506 = vector.broadcast %cst_126 : f32 to vector<8x256xf32>
    %507 = arith.addf %506, %505 : vector<8x256xf32>
    %508 = arith.divf %506, %507 : vector<8x256xf32>
    %509 = arith.mulf %500, %475 : vector<8x256xf32>
    %510 = arith.mulf %494, %502 : vector<8x256xf32>
    %511 = arith.addf %509, %510 : vector<8x256xf32>
    %512 = math.tanh %511 : vector<8x256xf32>
    %513 = arith.mulf %508, %512 : vector<8x256xf32>
    %514 = arith.truncf %513 : vector<8x256xf32> to vector<8x256xbf16>
    %515 = arith.index_cast %c13_i32 : i32 to index
    %c0_127 = arith.constant 0 : index
    %c0_128 = arith.constant 0 : index
    %516 = vector.load %arg10[%515, %c0_127, %c0_128] : memref<16x8x256xbf16, #tpu.memory_space<vmem>>, vector<1x8x256xbf16>
    %517 = vector.shape_cast %516 : vector<1x8x256xbf16> to vector<8x256xbf16>
    %518 = vector.shape_cast %514 : vector<8x256xbf16> to vector<1x8x256xbf16>
    tpu.vector_store %arg10[%515, %c0_127, %c0_128], %518 {strides = array<i32>} : memref<16x8x256xbf16, #tpu.memory_space<vmem>>, vector<1x8x256xbf16>,
    %c14_i32 = arith.constant 14 : i32
    %519 = arith.index_cast %c14_i32 : i32 to index
    %c0_129 = arith.constant 0 : index
    %c0_130 = arith.constant 0 : index
    %520 = vector.load %arg9[%519, %c0_129, %c0_130] : memref<16x8x1024xf32, #tpu.memory_space<vmem>>, vector<1x8x1024xf32>
    %521 = vector.shape_cast %520 : vector<1x8x1024xf32> to vector<8x1024xf32>
    %522 = arith.truncf %513 : vector<8x256xf32> to vector<8x256xbf16>
    %cst_131 = arith.constant dense<0.000000e+00> : vector<8x1024xf32>
    %523 = tpu.matmul %522, %12, %cst_131 {dimension_numbers = #tpu.dot_dimension_numbers<[1], [0], [0], [1], [0, 0, 1, 1], [], []>} : vector<8x256xbf16>, vector<256x1024xbf16>, vector<8x1024xf32> -> vector<8x1024xf32>
    %524 = arith.addf %521, %523 : vector<8x1024xf32>
    %525 = vector.extract_strided_slice %524 {offsets = [0, 0], sizes = [8, 256], strides = [1, 1]} : vector<8x1024xf32> to vector<8x256xf32>
    %526 = arith.negf %525 : vector<8x256xf32>
    %527 = math.exp %526 : vector<8x256xf32>
    %cst_132 = arith.constant 1.000000e+00 : f32
    %528 = vector.broadcast %cst_132 : f32 to vector<8x256xf32>
    %529 = arith.addf %528, %527 : vector<8x256xf32>
    %530 = arith.divf %528, %529 : vector<8x256xf32>
    %531 = vector.extract_strided_slice %524 {offsets = [0, 256], sizes = [8, 256], strides = [1, 1]} : vector<8x1024xf32> to vector<8x256xf32>
    %532 = arith.negf %531 : vector<8x256xf32>
    %533 = math.exp %532 : vector<8x256xf32>
    %cst_133 = arith.constant 1.000000e+00 : f32
    %534 = vector.broadcast %cst_133 : f32 to vector<8x256xf32>
    %535 = arith.addf %534, %533 : vector<8x256xf32>
    %536 = arith.divf %534, %535 : vector<8x256xf32>
    %537 = vector.extract_strided_slice %524 {offsets = [0, 512], sizes = [8, 256], strides = [1, 1]} : vector<8x1024xf32> to vector<8x256xf32>
    %538 = math.tanh %537 : vector<8x256xf32>
    %539 = vector.extract_strided_slice %524 {offsets = [0, 768], sizes = [8, 256], strides = [1, 1]} : vector<8x1024xf32> to vector<8x256xf32>
    %540 = arith.negf %539 : vector<8x256xf32>
    %541 = math.exp %540 : vector<8x256xf32>
    %cst_134 = arith.constant 1.000000e+00 : f32
    %542 = vector.broadcast %cst_134 : f32 to vector<8x256xf32>
    %543 = arith.addf %542, %541 : vector<8x256xf32>
    %544 = arith.divf %542, %543 : vector<8x256xf32>
    %545 = arith.mulf %536, %511 : vector<8x256xf32>
    %546 = arith.mulf %530, %538 : vector<8x256xf32>
    %547 = arith.addf %545, %546 : vector<8x256xf32>
    %548 = math.tanh %547 : vector<8x256xf32>
    %549 = arith.mulf %544, %548 : vector<8x256xf32>
    %550 = arith.truncf %549 : vector<8x256xf32> to vector<8x256xbf16>
    %551 = arith.index_cast %c14_i32 : i32 to index
    %c0_135 = arith.constant 0 : index
    %c0_136 = arith.constant 0 : index
    %552 = vector.load %arg10[%551, %c0_135, %c0_136] : memref<16x8x256xbf16, #tpu.memory_space<vmem>>, vector<1x8x256xbf16>
    %553 = vector.shape_cast %552 : vector<1x8x256xbf16> to vector<8x256xbf16>
    %554 = vector.shape_cast %550 : vector<8x256xbf16> to vector<1x8x256xbf16>
    tpu.vector_store %arg10[%551, %c0_135, %c0_136], %554 {strides = array<i32>} : memref<16x8x256xbf16, #tpu.memory_space<vmem>>, vector<1x8x256xbf16>,
    %c15_i32 = arith.constant 15 : i32
    %555 = arith.index_cast %c15_i32 : i32 to index
    %c0_137 = arith.constant 0 : index
    %c0_138 = arith.constant 0 : index
    %556 = vector.load %arg9[%555, %c0_137, %c0_138] : memref<16x8x1024xf32, #tpu.memory_space<vmem>>, vector<1x8x1024xf32>
    %557 = vector.shape_cast %556 : vector<1x8x1024xf32> to vector<8x1024xf32>
    %558 = arith.truncf %549 : vector<8x256xf32> to vector<8x256xbf16>
    %cst_139 = arith.constant dense<0.000000e+00> : vector<8x1024xf32>
    %559 = tpu.matmul %558, %12, %cst_139 {dimension_numbers = #tpu.dot_dimension_numbers<[1], [0], [0], [1], [0, 0, 1, 1], [], []>} : vector<8x256xbf16>, vector<256x1024xbf16>, vector<8x1024xf32> -> vector<8x1024xf32>
    %560 = arith.addf %557, %559 : vector<8x1024xf32>
    %561 = vector.extract_strided_slice %560 {offsets = [0, 0], sizes = [8, 256], strides = [1, 1]} : vector<8x1024xf32> to vector<8x256xf32>
    %562 = arith.negf %561 : vector<8x256xf32>
    %563 = math.exp %562 : vector<8x256xf32>
    %cst_140 = arith.constant 1.000000e+00 : f32
    %564 = vector.broadcast %cst_140 : f32 to vector<8x256xf32>
    %565 = arith.addf %564, %563 : vector<8x256xf32>
    %566 = arith.divf %564, %565 : vector<8x256xf32>
    %567 = vector.extract_strided_slice %560 {offsets = [0, 256], sizes = [8, 256], strides = [1, 1]} : vector<8x1024xf32> to vector<8x256xf32>
    %568 = arith.negf %567 : vector<8x256xf32>
    %569 = math.exp %568 : vector<8x256xf32>
    %cst_141 = arith.constant 1.000000e+00 : f32
    %570 = vector.broadcast %cst_141 : f32 to vector<8x256xf32>
    %571 = arith.addf %570, %569 : vector<8x256xf32>
    %572 = arith.divf %570, %571 : vector<8x256xf32>
    %573 = vector.extract_strided_slice %560 {offsets = [0, 512], sizes = [8, 256], strides = [1, 1]} : vector<8x1024xf32> to vector<8x256xf32>
    %574 = math.tanh %573 : vector<8x256xf32>
    %575 = vector.extract_strided_slice %560 {offsets = [0, 768], sizes = [8, 256], strides = [1, 1]} : vector<8x1024xf32> to vector<8x256xf32>
    %576 = arith.negf %575 : vector<8x256xf32>
    %577 = math.exp %576 : vector<8x256xf32>
    %cst_142 = arith.constant 1.000000e+00 : f32
    %578 = vector.broadcast %cst_142 : f32 to vector<8x256xf32>
    %579 = arith.addf %578, %577 : vector<8x256xf32>
    %580 = arith.divf %578, %579 : vector<8x256xf32>
    %581 = arith.mulf %572, %547 : vector<8x256xf32>
    %582 = arith.mulf %566, %574 : vector<8x256xf32>
    %583 = arith.addf %581, %582 : vector<8x256xf32>
    %584 = math.tanh %583 : vector<8x256xf32>
    %585 = arith.mulf %580, %584 : vector<8x256xf32>
    %586 = arith.truncf %585 : vector<8x256xf32> to vector<8x256xbf16>
    %587 = arith.index_cast %c15_i32 : i32 to index
    %c0_143 = arith.constant 0 : index
    %c0_144 = arith.constant 0 : index
    %588 = vector.load %arg10[%587, %c0_143, %c0_144] : memref<16x8x256xbf16, #tpu.memory_space<vmem>>, vector<1x8x256xbf16>
    %589 = vector.shape_cast %588 : vector<1x8x256xbf16> to vector<8x256xbf16>
    %590 = vector.shape_cast %586 : vector<8x256xbf16> to vector<1x8x256xbf16>
    tpu.vector_store %arg10[%587, %c0_143, %c0_144], %590 {strides = array<i32>} : memref<16x8x256xbf16, #tpu.memory_space<vmem>>, vector<1x8x256xbf16>,
    %c16_i32 = arith.constant 16 : i32
    %c0_145 = arith.constant 0 : index
    %c0_146 = arith.constant 0 : index
    %591 = vector.load %arg11[%c0_145, %c0_146] : memref<8x256xf32, #tpu.memory_space<vmem>>, vector<8x256xf32>
    tpu.vector_store %arg11[%c0_145, %c0_146], %585 {strides = array<i32>} : memref<8x256xf32, #tpu.memory_space<vmem>>, vector<8x256xf32>,
    %c0_147 = arith.constant 0 : index
    %c0_148 = arith.constant 0 : index
    %592 = vector.load %arg12[%c0_147, %c0_148] : memref<8x256xf32, #tpu.memory_space<vmem>>, vector<8x256xf32>
    tpu.vector_store %arg12[%c0_147, %c0_148], %583 {strides = array<i32>} : memref<8x256xf32, #tpu.memory_space<vmem>>, vector<8x256xf32>,
    %c0_149 = arith.constant 0 : index
    %c0_150 = arith.constant 0 : index
    %c0_151 = arith.constant 0 : index
    %593 = vector.load %arg10[%c0_149, %c0_150, %c0_151] : memref<16x8x256xbf16, #tpu.memory_space<vmem>>, vector<16x8x256xbf16>
    %594 = vector.shape_cast %593 : vector<16x8x256xbf16> to vector<128x256xbf16>
    %c0_152 = arith.constant 0 : index
    %c0_153 = arith.constant 0 : index
    %595 = vector.load %arg6[%c0_152, %c0_153] : memref<256x128xbf16, #tpu.memory_space<vmem>>, vector<256x128xbf16>
    %cst_154 = arith.constant dense<0.000000e+00> : vector<128x128xf32>
    %596 = tpu.matmul %594, %595, %cst_154 {dimension_numbers = #tpu.dot_dimension_numbers<[1], [0], [0], [1], [0, 0, 1, 1], [], []>} : vector<128x256xbf16>, vector<256x128xbf16>, vector<128x128xf32> -> vector<128x128xf32>
    %c0_155 = arith.constant 0 : index
    %c0_156 = arith.constant 0 : index
    %597 = vector.load %arg7[%c0_155, %c0_156] : memref<1x128xf32, #tpu.memory_space<vmem>>, vector<1x128xf32>
    %598 = vector.broadcast %597 : vector<1x128xf32> to vector<128x128xf32>
    %599 = arith.addf %596, %598 : vector<128x128xf32>
    %600 = math.tanh %599 : vector<128x128xf32>
    %601 = vector.shape_cast %600 : vector<128x128xf32> to vector<16x8x128xf32>
    %c0_157 = arith.constant 0 : index
    %c0_158 = arith.constant 0 : index
    %c0_159 = arith.constant 0 : index
    %602 = vector.load %arg8[%c0_157, %c0_158, %c0_159] : memref<16x8x128xf32, #tpu.memory_space<vmem>>, vector<16x8x128xf32>
    tpu.vector_store %arg8[%c0_157, %c0_158, %c0_159], %601 {strides = array<i32>} : memref<16x8x128xf32, #tpu.memory_space<vmem>>, vector<16x8x128xf32>,
    return
  }
  func.func @transform_0(%arg0: i32, %arg1: i32) -> (i32, i32, i32) {
    %c0_i32 = arith.constant 0 : i32
    %c0_i32_0 = arith.constant 0 : i32
    return %arg1, %arg0, %c0_i32 : i32, i32, i32
  }
  func.func @transform_1(%arg0: i32, %arg1: i32) -> (i32, i32) {
    %c0_i32 = arith.constant 0 : i32
    %c0_i32_0 = arith.constant 0 : i32
    %c0_i32_1 = arith.constant 0 : i32
    return %c0_i32, %c0_i32_0 : i32, i32
  }
  func.func @transform_2(%arg0: i32, %arg1: i32) -> (i32, i32) {
    %c0_i32 = arith.constant 0 : i32
    %c0_i32_0 = arith.constant 0 : i32
    %c0_i32_1 = arith.constant 0 : i32
    return %c0_i32, %c0_i32_0 : i32, i32
  }
  func.func @transform_3(%arg0: i32, %arg1: i32) -> (i32, i32) {
    %c0_i32 = arith.constant 0 : i32
    %c0_i32_0 = arith.constant 0 : i32
    %c0_i32_1 = arith.constant 0 : i32
    return %c0_i32, %c0_i32_0 : i32, i32
  }
  func.func @transform_4(%arg0: i32, %arg1: i32) -> (i32, i32) {
    %c0_i32 = arith.constant 0 : i32
    %c0_i32_0 = arith.constant 0 : i32
    %c0_i32_1 = arith.constant 0 : i32
    return %c0_i32, %c0_i32_0 : i32, i32
  }
  func.func @transform_5(%arg0: i32, %arg1: i32) -> (i32, i32) {
    %c0_i32 = arith.constant 0 : i32
    %c0_i32_0 = arith.constant 0 : i32
    %c0_i32_1 = arith.constant 0 : i32
    return %c0_i32, %c0_i32_0 : i32, i32
  }
  func.func @transform_6(%arg0: i32, %arg1: i32) -> (i32, i32, i32) {
    %c0_i32 = arith.constant 0 : i32
    %c0_i32_0 = arith.constant 0 : i32
    return %arg1, %arg0, %c0_i32 : i32, i32, i32
  }
}

</mosaic_0001>

<llo_original>
// kernel: tpu_custom_call.1
$region0: #{tpu_custom_call.1}
  #allocation0 [shape = 'u32[]', space=smem, size = 0x4, offset = 0x4, fixed_abs, tag = 'smem constant byte address 0x4 - core index']
  #allocation1 [shape = 'u32[144,128]{1,0:T(1,128)}', space=vmem, size = 0x12000, scoped, tag = 'internal scratch']
  #allocation2 [shape = 'f32[16,8,1024]{2,1,0:T(8,128)}', space=vmem, size = 0x80000, scoped, tag = 'scratch operand']
  #allocation3 [shape = 'bf16[16,8,256]{2,1,0:T(8,128)(2,1)}', space=vmem, size = 0x10000, scoped, tag = 'scratch operand']
  #allocation4 [shape = 'f32[8,256]{1,0:T(8,128)}', space=vmem, size = 0x2000, scoped, tag = 'scratch operand']
  #allocation5 [shape = 'f32[8,256]{1,0:T(8,128)}', space=vmem, size = 0x2000, scoped, tag = 'scratch operand']
  %s0 = inlined_call_operand.vmem [shape: bf16[32,8,16], index: 0, kind: input, shape index: {}]
  %s1 = inlined_call_operand.vmem [shape: bf16[16,1024], index: 1, kind: input, shape index: {}]
  %s2 = inlined_call_operand.hbm [shape: bf16[256,1024], index: 2, kind: input, shape index: {}]
  %s3 = inlined_call_operand.vmem [shape: f32[1,1024], index: 3, kind: input, shape index: {}]
  %s4 = inlined_call_operand.vmem [shape: bf16[256,128], index: 4, kind: input, shape index: {}]
  %s5 = inlined_call_operand.vmem [shape: f32[1,128], index: 5, kind: input, shape index: {}]
  %s6 = inlined_call_operand.hbm [shape: f32[32,8,128], index: 6, kind: output, shape index: {}]
  %s7 = sld [smem:[#allocation0]]
  $region65: #{tpu_custom_call.1} parent=0
    _
  %s9 = ssub.s32 1, %s7
  %s10 = scalar_select 0, %s9, %s7
  $region1: #{tpu_custom_call.1} parent=0
    #allocation6 [shape = 'u8[524288]{0}', space=vmem, size = 0x80000, scoped, tag = 'input window, operand 2, single buffered']
    #allocation7 [shape = 's32[2]{0}', space=sflag, size = 0x8, scoped, tag = 'scoped memory for tpu_custom_call.1']
    #allocation8 [shape = 's32[2]{0}', space=sflag, size = 0x8, scoped, tag = 'scoped memory for tpu_custom_call.1']
    #allocation9 [shape = 'u8[131072]{0}', space=vmem, size = 0x20000, scoped, tag = 'output window, operand 0']
    %11 = vsyncpa [#allocation7], 0
    %12 = vsyncpa [#allocation8], 0
    %s13 = scalar_lea.sflag [#allocation8], 1
    %14 = vsyncpa %s13, 0
    loop: start=0, step=1, limit=4
    $region2: #{tpu_custom_call.1} parent=1 // loop_pre_header
      _
    $region3: #{tpu_custom_call.1} parent=1 // loop_header
      %s16 = sphi 0, %s20
      %p17 = scmp.ge.s32.totalorder %s16, 4
      %s23 = sphi 0, %s35
      %s24 = sphi 0, %s31
      %s25 = sphi 0, %s23
      %s26 = sphi 0, %s24
      %s27 = sphi 0, %s25
      %s28 = sphi 0, %s26
      %s40 = sphi 0, %s42
      %s43 = sphi 0, %s40
      %s44 = sphi 0, %s43
      %s60 = sphi 0, %s44
      %s64 = sphi 0, %s64
      %s66 = sphi 0, %s64
      %s67 = sphi 0, %s66
      %s81 = sphi 0, %s67
      %s85 = sphi 0, %s85
      %s87 = sphi 0, %s85
      %s88 = sphi 0, %s87
      %s102 = sphi 0, %s88
      %s106 = sphi 0, %s106
      %s108 = sphi 0, %s106
      %s109 = sphi 0, %s108
      %s123 = sphi 0, %s109
      %s127 = sphi 0, %s127
      %s129 = sphi 0, %s127
      %s130 = sphi 0, %s129
      %s144 = sphi 0, %s130
      %s148 = sphi 0, %s148
      %s150 = sphi 0, %s148
      %s151 = sphi 0, %s150
      %s165 = sphi 0, %s151
      %s173 = sphi 0, %s175
      %s176 = sphi 0, %s173
      %s177 = sphi 0, %s176
      %s193 = sphi 0, %s177
    $region4: #{tpu_custom_call.1} parent=1 // loop_header_branch
      %19 = sbr.rel (%p17) target = $region8
    $region5: #{tpu_custom_call.1} parent=1 // loop_body
      %s21 = ssub.s32 %s16, 1
      %s22 = ssub.s32 %s16, 2
      %s29 = sadd.s32 1, %s24
      %p30 = scmp.ge.s32.totalorder %s29, 2
      %s31 = scalar_select %p30, 0, %s29
      %s32 = sadd.s32 1, %s23
      %s33 = scalar_select %p30, %s32, %s23
      %p34 = scmp.ge.s32.totalorder %s33, 1
      %s35 = scalar_select %p34, 0, %s33
      %s36 = ssub.s32 %s24, %s31
      %s37 = ssub.s32 %s23, %s35
      %s38 = sor.u32 %s36, %s37
      %p39 = scmp.eq.s32.totalorder %s38, 0
      %s41 = sadd.s32 %s40, 1
      %s42 = scalar_select %p39, %s40, %s41
      %p45 = pneg %p39
      %p46 = scmp.eq.s32.totalorder %s16, 1
      %p47 = por %p45, %p46
      %p48 = scmp.ne.s32.totalorder %s40, %s43
      %p49 = scmp.eq.s32.totalorder %s16, 0
      %p50 = por %p48, %p49
      %p51 = scmp.ne.s32.totalorder %s40, %s43
      %p52 = scmp.eq.s32.totalorder %s21, 1
      %p53 = por %p51, %p52
      %p54 = scmp.ne.s32.totalorder %s43, %s44
      %p55 = scmp.eq.s32.totalorder %s21, 0
      %p56 = por %p54, %p55
      %p57 = scmp.ne.s32.totalorder %s43, %s44
      %p58 = scmp.eq.s32.totalorder %s22, 1
      %p59 = por %p57, %p58
      %p61 = scmp.ne.s32.totalorder %s44, %s60
      %p62 = scmp.eq.s32.totalorder %s22, 0
      %p63 = por %p61, %p62
      %s65 = sadd.s32 %s64, 1
      %p68 = scmp.eq.s32.totalorder %s16, 1
      %p69 = scmp.ne.s32.totalorder %s64, %s66
      %p70 = scmp.eq.s32.totalorder %s16, 0
      %p71 = por %p69, %p70
      %p72 = scmp.ne.s32.totalorder %s64, %s66
      %p73 = scmp.eq.s32.totalorder %s21, 1
      %p74 = por %p72, %p73
      %p75 = scmp.ne.s32.totalorder %s66, %s67
      %p76 = scmp.eq.s32.totalorder %s21, 0
      %p77 = por %p75, %p76
      %p78 = scmp.ne.s32.totalorder %s66, %s67
      %p79 = scmp.eq.s32.totalorder %s22, 1
      %p80 = por %p78, %p79
      %p82 = scmp.ne.s32.totalorder %s67, %s81
      %p83 = scmp.eq.s32.totalorder %s22, 0
      %p84 = por %p82, %p83
      %s86 = sadd.s32 %s85, 1
      %p89 = scmp.eq.s32.totalorder %s16, 1
      %p90 = scmp.ne.s32.totalorder %s85, %s87
      %p91 = scmp.eq.s32.totalorder %s16, 0
      %p92 = por %p90, %p91
      %p93 = scmp.ne.s32.totalorder %s85, %s87
      %p94 = scmp.eq.s32.totalorder %s21, 1
      %p95 = por %p93, %p94
      %p96 = scmp.ne.s32.totalorder %s87, %s88
      %p97 = scmp.eq.s32.totalorder %s21, 0
      %p98 = por %p96, %p97
      %p99 = scmp.ne.s32.totalorder %s87, %s88
      %p100 = scmp.eq.s32.totalorder %s22, 1
      %p101 = por %p99, %p100
      %p103 = scmp.ne.s32.totalorder %s88, %s102
      %p104 = scmp.eq.s32.totalorder %s22, 0
      %p105 = por %p103, %p104
      %s107 = sadd.s32 %s106, 1
      %p110 = scmp.eq.s32.totalorder %s16, 1
      %p111 = scmp.ne.s32.totalorder %s106, %s108
      %p112 = scmp.eq.s32.totalorder %s16, 0
      %p113 = por %p111, %p112
      %p114 = scmp.ne.s32.totalorder %s106, %s108
      %p115 = scmp.eq.s32.totalorder %s21, 1
      %p116 = por %p114, %p115
      %p117 = scmp.ne.s32.totalorder %s108, %s109
      %p118 = scmp.eq.s32.totalorder %s21, 0
      %p119 = por %p117, %p118
      %p120 = scmp.ne.s32.totalorder %s108, %s109
      %p121 = scmp.eq.s32.totalorder %s22, 1
      %p122 = por %p120, %p121
      %p124 = scmp.ne.s32.totalorder %s109, %s123
      %p125 = scmp.eq.s32.totalorder %s22, 0
      %p126 = por %p124, %p125
      %s128 = sadd.s32 %s127, 1
      %p131 = scmp.eq.s32.totalorder %s16, 1
      %p132 = scmp.ne.s32.totalorder %s127, %s129
      %p133 = scmp.eq.s32.totalorder %s16, 0
      %p134 = por %p132, %p133
      %p135 = scmp.ne.s32.totalorder %s127, %s129
      %p136 = scmp.eq.s32.totalorder %s21, 1
      %p137 = por %p135, %p136
      %p138 = scmp.ne.s32.totalorder %s129, %s130
      %p139 = scmp.eq.s32.totalorder %s21, 0
      %p140 = por %p138, %p139
      %p141 = scmp.ne.s32.totalorder %s129, %s130
      %p142 = scmp.eq.s32.totalorder %s22, 1
      %p143 = por %p141, %p142
      %p145 = scmp.ne.s32.totalorder %s130, %s144
      %p146 = scmp.eq.s32.totalorder %s22, 0
      %p147 = por %p145, %p146
      %s149 = sadd.s32 %s148, 1
      %p152 = scmp.eq.s32.totalorder %s16, 1
      %p153 = scmp.ne.s32.totalorder %s148, %s150
      %p154 = scmp.eq.s32.totalorder %s16, 0
      %p155 = por %p153, %p154
      %p156 = scmp.ne.s32.totalorder %s148, %s150
      %p157 = scmp.eq.s32.totalorder %s21, 1
      %p158 = por %p156, %p157
      %p159 = scmp.ne.s32.totalorder %s150, %s151
      %p160 = scmp.eq.s32.totalorder %s21, 0
      %p161 = por %p159, %p160
      %p162 = scmp.ne.s32.totalorder %s150, %s151
      %p163 = scmp.eq.s32.totalorder %s22, 1
      %p164 = por %p162, %p163
      %p166 = scmp.ne.s32.totalorder %s151, %s165
      %p167 = scmp.eq.s32.totalorder %s22, 0
      %p168 = por %p166, %p167
      %s169 = ssub.s32 %s24, %s31
      %s170 = ssub.s32 %s23, %s35
      %s171 = sor.u32 %s169, %s170
      %p172 = scmp.eq.s32.totalorder %s171, 0
      %s174 = sadd.s32 %s173, 1
      %s175 = scalar_select %p172, %s173, %s174
      %p178 = pneg %p172
      %p179 = scmp.eq.s32.totalorder %s16, 1
      %p180 = por %p178, %p179
      %p181 = scmp.ne.s32.totalorder %s173, %s176
      %p182 = scmp.eq.s32.totalorder %s16, 0
      %p183 = por %p181, %p182
      %p184 = scmp.ne.s32.totalorder %s173, %s176
      %p185 = scmp.eq.s32.totalorder %s21, 1
      %p186 = por %p184, %p185
      %p187 = scmp.ne.s32.totalorder %s176, %s177
      %p188 = scmp.eq.s32.totalorder %s21, 0
      %p189 = por %p187, %p188
      %p190 = scmp.ne.s32.totalorder %s176, %s177
      %p191 = scmp.eq.s32.totalorder %s22, 1
      %p192 = por %p190, %p191
      %p194 = scmp.ne.s32.totalorder %s177, %s193
      %p195 = scmp.eq.s32.totalorder %s22, 0
      %p196 = por %p194, %p195
      %p197 = scmp.le.s32.totalorder 1, %s16
      %p198 = scmp.lt.s32.totalorder %s16, 3
      %p199 = pnand %p197, %p198
      %p200 = pneg %p199
      // Predicated region
      $region9: #{tpu_custom_call.1} parent=5 // pred_check
        _
      $region10: #{tpu_custom_call.1} parent=5 // pred_check_branch
        %202 = sbr.rel (%p199) target = $region12
      $region11: #{tpu_custom_call.1} parent=5 // pred_region
        %s203 = ssub.s32 %s16, 1
        // Predicated region
        $region13: #{tpu_custom_call.1} parent=11 // pred_check
          %p204 = pneg %p77
        $region14: #{tpu_custom_call.1} parent=11 // pred_check_branch
          %206 = sbr.rel (%p204) target = $region16
        $region15: #{tpu_custom_call.1} parent=11 // pred_region
          _
        $region16: #{tpu_custom_call.1} parent=11 // pred_fallthru
          _
        // Predicated region
        $region17: #{tpu_custom_call.1} parent=11 // pred_check
          %p207 = pneg %p98
        $region18: #{tpu_custom_call.1} parent=11 // pred_check_branch
          %209 = sbr.rel (%p207) target = $region20
        $region19: #{tpu_custom_call.1} parent=11 // pred_region
          %s211 = ssub.s32 16384, 16384
          %212 = vsyncadd [#allocation7], %s211
          %s213 = sshll.u32 [#allocation6], 4
          %s214 = int_to_ptr.vmem [resolvable:$true] %s213
          %219 = dma.hbm_to_vmem [thread:$0]  %s2, 16384, %s214, [#allocation7], 512, 512, 32
        $region20: #{tpu_custom_call.1} parent=11 // pred_fallthru
          _
        // Predicated region
        $region21: #{tpu_custom_call.1} parent=11 // pred_check
          %p220 = pneg %p119
        $region22: #{tpu_custom_call.1} parent=11 // pred_check_branch
          %222 = sbr.rel (%p220) target = $region24
        $region23: #{tpu_custom_call.1} parent=11 // pred_region
          _
        $region24: #{tpu_custom_call.1} parent=11 // pred_fallthru
          _
        // Predicated region
        $region25: #{tpu_custom_call.1} parent=11 // pred_check
          %p223 = pneg %p140
        $region26: #{tpu_custom_call.1} parent=11 // pred_check_branch
          %225 = sbr.rel (%p223) target = $region28
        $region27: #{tpu_custom_call.1} parent=11 // pred_region
          _
        $region28: #{tpu_custom_call.1} parent=11 // pred_fallthru
          _
        // Predicated region
        $region29: #{tpu_custom_call.1} parent=11 // pred_check
          %p226 = pneg %p161
        $region30: #{tpu_custom_call.1} parent=11 // pred_check_branch
          %228 = sbr.rel (%p226) target = $region32
        $region31: #{tpu_custom_call.1} parent=11 // pred_region
          _
        $region32: #{tpu_custom_call.1} parent=11 // pred_fallthru
          _
      $region12: #{tpu_custom_call.1} parent=5 // pred_fallthru
        _
      %p229 = scmp.lt.s32.totalorder %s16, 2
      // Predicated region
      $region33: #{tpu_custom_call.1} parent=5 // pred_check
        %p230 = pneg %p229
      $region34: #{tpu_custom_call.1} parent=5 // pred_check_branch
        %232 = sbr.rel (%p230) target = $region36
      $region35: #{tpu_custom_call.1} parent=5 // pred_region
        // Predicated region
        $region37: #{tpu_custom_call.1} parent=35 // pred_check
          %p233 = pneg %p50
        $region38: #{tpu_custom_call.1} parent=35 // pred_check_branch
          %235 = sbr.rel (%p233) target = $region40
        $region39: #{tpu_custom_call.1} parent=35 // pred_region
          %s236 = smul.u32 16, %s24
          %p237 = scmp.lt.s32.totalorder %s236, 31
          %s238 = scalar_select %p237, %s236, 31
          %p239 = scmp.lt.s32.totalorder %s23, 0
          %s240 = scalar_select %p239, %s23, 0
          %s241 = sadd.s32 %s240, %s238
          %s242 = smul.addr %s241, 4
          %s243 = scalar_lea.vmem %s0, %s242
          %s244 = smul.u32 16, %s24
        $region40: #{tpu_custom_call.1} parent=35 // pred_fallthru
          _
      $region36: #{tpu_custom_call.1} parent=5 // pred_fallthru
        _
      %p245 = scmp.le.s32.totalorder 1, %s16
      %p246 = scmp.lt.s32.totalorder %s16, 3
      %p247 = pnand %p245, %p246
      %p248 = pneg %p247
      // Predicated region
      $region41: #{tpu_custom_call.1} parent=5 // pred_check
        _
      $region42: #{tpu_custom_call.1} parent=5 // pred_check_branch
        %250 = sbr.rel (%p247) target = $region44
      $region43: #{tpu_custom_call.1} parent=5 // pred_region
        %s251 = ssub.s32 %s16, 1
        // Predicated region
        $region45: #{tpu_custom_call.1} parent=43 // pred_check
          %p252 = pneg %p98
        $region46: #{tpu_custom_call.1} parent=43 // pred_check_branch
          %254 = sbr.rel (%p252) target = $region48
        $region47: #{tpu_custom_call.1} parent=43 // pred_region
          %255 = dma.done [#allocation7], 16384
        $region48: #{tpu_custom_call.1} parent=43 // pred_fallthru
          _
        %s256 = smul.u32 16, %s26
        %p257 = scmp.lt.s32.totalorder %s256, 31
        %s258 = scalar_select %p257, %s256, 31
        %p259 = scmp.lt.s32.totalorder %s25, 0
        %s260 = scalar_select %p259, %s25, 0
        %s261 = sadd.s32 %s260, %s258
        %s262 = smul.addr %s261, 4
        %s263 = scalar_lea.vmem %s0, %s262
        %p264 = pneg %p56
        %p265 = pneg %p53
        %p266 = pneg %p77
        %p267 = pneg %p74
        %p268 = pneg %p98
        %p269 = pneg %p95
        %p270 = pneg %p119
        %p271 = pneg %p116
        %p272 = pneg %p140
        %p273 = pneg %p137
        %p274 = pneg %p161
        %p275 = pneg %p158
        %p276 = pneg %p189
        %p277 = pneg %p186
        %s278 = sand.u32 %s176, 1
        %s279 = scalar_lea.sflag [#allocation8], %s278
        %s280 = sand.u32 %s176, 1
        %s281 = smul.addr %s280, 128
        %s282 = scalar_lea.vmem [#allocation9], %s281
        %s283 = smul.u32 16, %s26
        %p284 = scmp.lt.s32.totalorder %s283, 31
        %s285 = scalar_select %p284, %s283, 31
        %p286 = scmp.lt.s32.totalorder %s25, 0
        %s287 = scalar_select %p286, %s25, 0
        %s288 = sadd.s32 %s287, %s285
        %s289 = smul.addr %s288, 4
        %s290 = scalar_lea.vmem %s0, %s289
        %s291 = smul.u32 16, %s26
        %s292 = smul.u32 16, %s26
        %p294 = scmp.eq.s32.totalorder %s26, 0
        // Predicated region
        $region49: #{tpu_custom_call.1} parent=43 // pred_check
          %p295 = pneg %p294
        $region50: #{tpu_custom_call.1} parent=43 // pred_check_branch
          %297 = sbr.rel (%p295) target = $region52
        $region51: #{tpu_custom_call.1} parent=43 // pred_region
          %298 = vst [vmem:[#allocation4] sm:$0xff] 0.0
          %299 = vst [vmem:[#allocation4 + $0x8] sm:$0xff] 0.0
          %300 = vst [vmem:[#allocation5] sm:$0xff] 0.0
          %301 = vst [vmem:[#allocation5 + $0x8] sm:$0xff] 0.0
        $region52: #{tpu_custom_call.1} parent=43 // pred_fallthru
          _
        %v302 = vld [vmem:[%s290] sm:$0xf]
        %v303 = vld [vmem:[%s290 + $0x4] sm:$0xf]
        %v304 = vld [vmem:[%s290 + $0x8] sm:$0xf]
        %v305 = vld [vmem:[%s290 + $0xc] sm:$0xf]
        %v306 = vld [vmem:[%s290 + $0x10] sm:$0xf]
        %v307 = vld [vmem:[%s290 + $0x14] sm:$0xf]
        %v308 = vld [vmem:[%s290 + $0x18] sm:$0xf]
        %v309 = vld [vmem:[%s290 + $0x1c] sm:$0xf]
        %v310 = vld [vmem:[%s290 + $0x20] sm:$0xf]
        %v311 = vld [vmem:[%s290 + $0x24] sm:$0xf]
        %v312 = vld [vmem:[%s290 + $0x28] sm:$0xf]
        %v313 = vld [vmem:[%s290 + $0x2c] sm:$0xf]
        %v314 = vld [vmem:[%s290 + $0x30] sm:$0xf]
        %v315 = vld [vmem:[%s290 + $0x34] sm:$0xf]
        %v316 = vld [vmem:[%s290 + $0x38] sm:$0xf]
        %v317 = vld [vmem:[%s290 + $0x3c] sm:$0xf]
        %v318 = vld [vmem:[%s1] sm:$0xff]
        %v319 = vld [vmem:[%s1 + $0x8] sm:$0xff]
        %v320 = vld [vmem:[%s1 + $0x10] sm:$0xff]
        %v321 = vld [vmem:[%s1 + $0x18] sm:$0xff]
        %v322 = vld [vmem:[%s1 + $0x20] sm:$0xff]
        %v323 = vld [vmem:[%s1 + $0x28] sm:$0xff]
        %v324 = vld [vmem:[%s1 + $0x30] sm:$0xff]
        %v325 = vld [vmem:[%s1 + $0x38] sm:$0xff]
        %v326 = vld [vmem:[%s3] sm:$0xff]
        %v328 = vlaneseq
        %v329 = vshrl.u32 %v328, 7
        %v330 = vsub.s32 0, %v329
        %v331 = vrot.slane %v326, %v330
        %v332 = vlaneseq
        %v333 = vshrl.u32 %v332, 7
        %v334 = vsub.s32 1, %v333
        %v335 = vrot.slane %v326, %v334
        %v336 = vlaneseq
        %v337 = vshrl.u32 %v336, 7
        %v338 = vsub.s32 2, %v337
        %v339 = vrot.slane %v326, %v338
        %v340 = vlaneseq
        %v341 = vshrl.u32 %v340, 7
        %v342 = vsub.s32 3, %v341
        %v343 = vrot.slane %v326, %v342
        %v344 = vlaneseq
        %v345 = vshrl.u32 %v344, 7
        %v346 = vsub.s32 4, %v345
        %v347 = vrot.slane %v326, %v346
        %v348 = vlaneseq
        %v349 = vshrl.u32 %v348, 7
        %v350 = vsub.s32 5, %v349
        %v351 = vrot.slane %v326, %v350
        %v352 = vlaneseq
        %v353 = vshrl.u32 %v352, 7
        %v354 = vsub.s32 6, %v353
        %v355 = vrot.slane %v326, %v354
        %v356 = vlaneseq
        %v357 = vshrl.u32 %v356, 7
        %v358 = vsub.s32 7, %v357
        %v359 = vrot.slane %v326, %v358
        %v384 = vunpack.c.l.b16 %v302
        %v385 = vunpack.c.l.b16 %v303
        %v386 = vunpack.c.l.b16 %v304
        %v387 = vunpack.c.l.b16 %v305
        %v388 = vunpack.c.l.b16 %v306
        %v389 = vunpack.c.l.b16 %v307
        %v390 = vunpack.c.l.b16 %v308
        %v391 = vunpack.c.l.b16 %v309
        %v392 = vunpack.c.l.b16 %v310
        %v393 = vunpack.c.l.b16 %v311
        %v394 = vunpack.c.l.b16 %v312
        %v395 = vunpack.c.l.b16 %v313
        %v396 = vunpack.c.l.b16 %v314
        %v397 = vunpack.c.l.b16 %v315
        %v398 = vunpack.c.l.b16 %v316
        %v399 = vunpack.c.l.b16 %v317
        %v400 = vpack.c.b16 %v385, %v384
        %v401 = vpack.c.b16 %v387, %v386
        %v402 = vpack.c.b16 %v389, %v388
        %v403 = vpack.c.b16 %v391, %v390
        %v404 = vpack.c.b16 %v393, %v392
        %v405 = vpack.c.b16 %v395, %v394
        %v406 = vpack.c.b16 %v397, %v396
        %v407 = vpack.c.b16 %v399, %v398
        %v416 = vunpack.c.l.b16 %v318
        %v417 = vunpack.c.h.b16 %v318
        %v418 = vunpack.c.l.b16 %v319
        %v419 = vunpack.c.h.b16 %v319
        %v420 = vunpack.c.l.b16 %v320
        %v421 = vunpack.c.h.b16 %v320
        %v422 = vunpack.c.l.b16 %v321
        %v423 = vunpack.c.h.b16 %v321
        %v424 = vunpack.c.l.b16 %v322
        %v425 = vunpack.c.h.b16 %v322
        %v426 = vunpack.c.l.b16 %v323
        %v427 = vunpack.c.h.b16 %v323
        %v428 = vunpack.c.l.b16 %v324
        %v429 = vunpack.c.h.b16 %v324
        %v430 = vunpack.c.l.b16 %v325
        %v431 = vunpack.c.h.b16 %v325
        %v432 = vpack.c.b16 %v424, %v416
        %v433 = vpack.c.b16 %v425, %v417
        %v434 = vpack.c.b16 %v426, %v418
        %v435 = vpack.c.b16 %v427, %v419
        %v436 = vpack.c.b16 %v428, %v420
        %v437 = vpack.c.b16 %v429, %v421
        %v438 = vpack.c.b16 %v430, %v422
        %v439 = vpack.c.b16 %v431, %v423
        %vm448 = vcmask 130048
        %v450 = vsel %vm448, %v400, 0
        %v453 = vsel %vm448, %v401, 0
        %v456 = vsel %vm448, %v402, 0
        %v459 = vsel %vm448, %v403, 0
        %v462 = vsel %vm448, %v404, 0
        %v465 = vsel %vm448, %v405, 0
        %v468 = vsel %vm448, %v406, 0
        %v471 = vsel %vm448, %v407, 0
        %473 = vmatprep.subr.bf16.mxu0 %v433
        %474 = vmatpush1.bf16.msra.mxu0 %v432
        %475 = vmatprep.subr.bf16.mxu0 0
        %476 = vmatpush1.bf16.msra.mxu0 0
        %477 = vmatprep.subr.bf16.mxu0 0
        %478 = vmatpush1.bf16.msra.mxu0 0
        %479 = vmatprep.subr.bf16.mxu0 0
        %480 = vmatpush1.bf16.msra.mxu0 0
        %481 = vmatprep.subr.bf16.mxu0 0
        %482 = vmatpush1.bf16.msra.mxu0 0
        %483 = vmatprep.subr.bf16.mxu0 0
        %484 = vmatpush1.bf16.msra.mxu0 0
        %485 = vmatprep.subr.bf16.mxu0 0
        %486 = vmatpush1.bf16.msra.mxu0 0
        %487 = vmatprep.subr.bf16.mxu0 0
        %488 = vmatpush1.bf16.msra.mxu0 0
        %489 = vmatprep.subr.bf16.mxu0 0
        %490 = vmatpush1.bf16.msra.mxu0 0
        %491 = vmatprep.subr.bf16.mxu0 0
        %492 = vmatpush1.bf16.msra.mxu0 0
        %493 = vmatprep.subr.bf16.mxu0 0
        %494 = vmatpush1.bf16.msra.mxu0 0
        %495 = vmatprep.subr.bf16.mxu0 0
        %496 = vmatpush1.bf16.msra.mxu0 0
        %497 = vmatprep.subr.bf16.mxu0 0
        %498 = vmatpush1.bf16.msra.mxu0 0
        %499 = vmatprep.subr.bf16.mxu0 0
        %500 = vmatpush1.bf16.msra.mxu0 0
        %501 = vmatprep.subr.bf16.mxu0 0
        %502 = vmatpush1.bf16.msra.mxu0 0
        %503 = vmatprep.subr.bf16.mxu0 0
        %504 = vmatpush1.bf16.msra.mxu0 0
        %505 = vmatprep.mubr.bf16.mxu0 0
        %506 = vmatmul.mubr.bf16.gmra.mrb[0].mxu0 %v450
        %v507 = vpop.f32.mrb[0].mxu0
        %v508 = vadd.f32 %v331, %v507
        %v509 = vpop.f32.mrb[0].mxu0
        %v510 = vadd.f32 %v335, %v509
        %v511 = vpop.f32.mrb[0].mxu0
        %v512 = vadd.f32 %v331, %v511
        %v513 = vpop.f32.mrb[0].mxu0
        %v514 = vadd.f32 %v335, %v513
        %515 = vmatprep.mubr.bf16.mxu0 0
        %516 = vmatmul.mubr.bf16.gmra.mrb[0].mxu0 %v453
        %v517 = vpop.f32.mrb[0].mxu0
        %v518 = vadd.f32 %v331, %v517
        %v519 = vpop.f32.mrb[0].mxu0
        %v520 = vadd.f32 %v335, %v519
        %v521 = vpop.f32.mrb[0].mxu0
        %v522 = vadd.f32 %v331, %v521
        %v523 = vpop.f32.mrb[0].mxu0
        %v524 = vadd.f32 %v335, %v523
        %525 = vmatprep.mubr.bf16.mxu0 0
        %526 = vmatmul.mubr.bf16.gmra.mrb[0].mxu0 %v456
        %v527 = vpop.f32.mrb[0].mxu0
        %v528 = vadd.f32 %v331, %v527
        %v529 = vpop.f32.mrb[0].mxu0
        %v530 = vadd.f32 %v335, %v529
        %v531 = vpop.f32.mrb[0].mxu0
        %v532 = vadd.f32 %v331, %v531
        %v533 = vpop.f32.mrb[0].mxu0
        %v534 = vadd.f32 %v335, %v533
        %535 = vmatprep.mubr.bf16.mxu0 0
        %536 = vmatmul.mubr.bf16.gmra.mrb[0].mxu0 %v459
        %v537 = vpop.f32.mrb[0].mxu0
        %v538 = vadd.f32 %v331, %v537
        %v539 = vpop.f32.mrb[0].mxu0
        %v540 = vadd.f32 %v335, %v539
        %v541 = vpop.f32.mrb[0].mxu0
        %v542 = vadd.f32 %v331, %v541
        %v543 = vpop.f32.mrb[0].mxu0
        %v544 = vadd.f32 %v335, %v543
        %545 = vmatprep.mubr.bf16.mxu0 0
        %546 = vmatmul.mubr.bf16.gmra.mrb[0].mxu0 %v462
        %v547 = vpop.f32.mrb[0].mxu0
        %v548 = vadd.f32 %v331, %v547
        %v549 = vpop.f32.mrb[0].mxu0
        %v550 = vadd.f32 %v335, %v549
        %v551 = vpop.f32.mrb[0].mxu0
        %v552 = vadd.f32 %v331, %v551
        %v553 = vpop.f32.mrb[0].mxu0
        %v554 = vadd.f32 %v335, %v553
        %555 = vmatprep.mubr.bf16.mxu0 0
        %556 = vmatmul.mubr.bf16.gmra.mrb[0].mxu0 %v465
        %v557 = vpop.f32.mrb[0].mxu0
        %v558 = vadd.f32 %v331, %v557
        %v559 = vpop.f32.mrb[0].mxu0
        %v560 = vadd.f32 %v335, %v559
        %v561 = vpop.f32.mrb[0].mxu0
        %v562 = vadd.f32 %v331, %v561
        %v563 = vpop.f32.mrb[0].mxu0
        %v564 = vadd.f32 %v335, %v563
        %565 = vmatprep.mubr.bf16.mxu0 0
        %566 = vmatmul.mubr.bf16.gmra.mrb[0].mxu0 %v468
        %v567 = vpop.f32.mrb[0].mxu0
        %v568 = vadd.f32 %v331, %v567
        %v569 = vpop.f32.mrb[0].mxu0
        %v570 = vadd.f32 %v335, %v569
        %v571 = vpop.f32.mrb[0].mxu0
        %v572 = vadd.f32 %v331, %v571
        %v573 = vpop.f32.mrb[0].mxu0
        %v574 = vadd.f32 %v335, %v573
        %575 = vmatprep.mubr.bf16.mxu0 0
        %576 = vmatmul.mubr.bf16.gmra.mrb[0].mxu0 %v471
        %v577 = vpop.f32.mrb[0].mxu0
        %v578 = vadd.f32 %v331, %v577
        %v579 = vpop.f32.mrb[0].mxu0
        %v580 = vadd.f32 %v335, %v579
        %v581 = vpop.f32.mrb[0].mxu0
        %v582 = vadd.f32 %v331, %v581
        %v583 = vpop.f32.mrb[0].mxu0
        %v584 = vadd.f32 %v335, %v583
        %585 = vdwg.mxu0
        %586 = vmatprep.subr.bf16.mxu0 %v435
        %587 = vmatpush1.bf16.msra.mxu0 %v434
        %588 = vmatprep.subr.bf16.mxu0 0
        %589 = vmatpush1.bf16.msra.mxu0 0
        %590 = vmatprep.subr.bf16.mxu0 0
        %591 = vmatpush1.bf16.msra.mxu0 0
        %592 = vmatprep.subr.bf16.mxu0 0
        %593 = vmatpush1.bf16.msra.mxu0 0
        %594 = vmatprep.subr.bf16.mxu0 0
        %595 = vmatpush1.bf16.msra.mxu0 0
        %596 = vmatprep.subr.bf16.mxu0 0
        %597 = vmatpush1.bf16.msra.mxu0 0
        %598 = vmatprep.subr.bf16.mxu0 0
        %599 = vmatpush1.bf16.msra.mxu0 0
        %600 = vmatprep.subr.bf16.mxu0 0
        %601 = vmatpush1.bf16.msra.mxu0 0
        %602 = vmatprep.subr.bf16.mxu0 0
        %603 = vmatpush1.bf16.msra.mxu0 0
        %604 = vmatprep.subr.bf16.mxu0 0
        %605 = vmatpush1.bf16.msra.mxu0 0
        %606 = vmatprep.subr.bf16.mxu0 0
        %607 = vmatpush1.bf16.msra.mxu0 0
        %608 = vmatprep.subr.bf16.mxu0 0
        %609 = vmatpush1.bf16.msra.mxu0 0
        %610 = vmatprep.subr.bf16.mxu0 0
        %611 = vmatpush1.bf16.msra.mxu0 0
        %612 = vmatprep.subr.bf16.mxu0 0
        %613 = vmatpush1.bf16.msra.mxu0 0
        %614 = vmatprep.subr.bf16.mxu0 0
        %615 = vmatpush1.bf16.msra.mxu0 0
        %616 = vmatprep.subr.bf16.mxu0 0
        %617 = vmatpush1.bf16.msra.mxu0 0
        %618 = vmatprep.mubr.bf16.mxu0 0
        %619 = vmatmul.mubr.bf16.gmra.mrb[0].mxu0 %v450
        %v620 = vpop.f32.mrb[0].mxu0
        %v621 = vadd.f32 %v339, %v620
        %v622 = vpop.f32.mrb[0].mxu0
        %v623 = vadd.f32 %v343, %v622
        %v624 = vpop.f32.mrb[0].mxu0
        %v625 = vadd.f32 %v339, %v624
        %v626 = vpop.f32.mrb[0].mxu0
        %v627 = vadd.f32 %v343, %v626
        %628 = vmatprep.mubr.bf16.mxu0 0
        %629 = vmatmul.mubr.bf16.gmra.mrb[0].mxu0 %v453
        %v630 = vpop.f32.mrb[0].mxu0
        %v631 = vadd.f32 %v339, %v630
        %v632 = vpop.f32.mrb[0].mxu0
        %v633 = vadd.f32 %v343, %v632
        %v634 = vpop.f32.mrb[0].mxu0
        %v635 = vadd.f32 %v339, %v634
        %v636 = vpop.f32.mrb[0].mxu0
        %v637 = vadd.f32 %v343, %v636
        %638 = vmatprep.mubr.bf16.mxu0 0
        %639 = vmatmul.mubr.bf16.gmra.mrb[0].mxu0 %v456
        %v640 = vpop.f32.mrb[0].mxu0
        %v641 = vadd.f32 %v339, %v640
        %v642 = vpop.f32.mrb[0].mxu0
        %v643 = vadd.f32 %v343, %v642
        %v644 = vpop.f32.mrb[0].mxu0
        %v645 = vadd.f32 %v339, %v644
        %v646 = vpop.f32.mrb[0].mxu0
        %v647 = vadd.f32 %v343, %v646
        %648 = vmatprep.mubr.bf16.mxu0 0
        %649 = vmatmul.mubr.bf16.gmra.mrb[0].mxu0 %v459
        %v650 = vpop.f32.mrb[0].mxu0
        %v651 = vadd.f32 %v339, %v650
        %v652 = vpop.f32.mrb[0].mxu0
        %v653 = vadd.f32 %v343, %v652
        %v654 = vpop.f32.mrb[0].mxu0
        %v655 = vadd.f32 %v339, %v654
        %v656 = vpop.f32.mrb[0].mxu0
        %v657 = vadd.f32 %v343, %v656
        %658 = vmatprep.mubr.bf16.mxu0 0
        %659 = vmatmul.mubr.bf16.gmra.mrb[0].mxu0 %v462
        %v660 = vpop.f32.mrb[0].mxu0
        %v661 = vadd.f32 %v339, %v660
        %v662 = vpop.f32.mrb[0].mxu0
        %v663 = vadd.f32 %v343, %v662
        %v664 = vpop.f32.mrb[0].mxu0
        %v665 = vadd.f32 %v339, %v664
        %v666 = vpop.f32.mrb[0].mxu0
        %v667 = vadd.f32 %v343, %v666
        %668 = vmatprep.mubr.bf16.mxu0 0
        %669 = vmatmul.mubr.bf16.gmra.mrb[0].mxu0 %v465
        %v670 = vpop.f32.mrb[0].mxu0
        %v671 = vadd.f32 %v339, %v670
        %v672 = vpop.f32.mrb[0].mxu0
        %v673 = vadd.f32 %v343, %v672
        %v674 = vpop.f32.mrb[0].mxu0
        %v675 = vadd.f32 %v339, %v674
        %v676 = vpop.f32.mrb[0].mxu0
        %v677 = vadd.f32 %v343, %v676
        %678 = vmatprep.mubr.bf16.mxu0 0
        %679 = vmatmul.mubr.bf16.gmra.mrb[0].mxu0 %v468
        %v680 = vpop.f32.mrb[0].mxu0
        %v681 = vadd.f32 %v339, %v680
        %v682 = vpop.f32.mrb[0].mxu0
        %v683 = vadd.f32 %v343, %v682
        %v684 = vpop.f32.mrb[0].mxu0
        %v685 = vadd.f32 %v339, %v684
        %v686 = vpop.f32.mrb[0].mxu0
        %v687 = vadd.f32 %v343, %v686
        %688 = vmatprep.mubr.bf16.mxu0 0
        %689 = vmatmul.mubr.bf16.gmra.mrb[0].mxu0 %v471
        %v690 = vpop.f32.mrb[0].mxu0
        %v691 = vadd.f32 %v339, %v690
        %v692 = vpop.f32.mrb[0].mxu0
        %v693 = vadd.f32 %v343, %v692
        %v694 = vpop.f32.mrb[0].mxu0
        %v695 = vadd.f32 %v339, %v694
        %v696 = vpop.f32.mrb[0].mxu0
        %v697 = vadd.f32 %v343, %v696
        %698 = vdwg.mxu0
        %699 = vmatprep.subr.bf16.mxu0 %v437
        %700 = vmatpush1.bf16.msra.mxu0 %v436
        %701 = vmatprep.subr.bf16.mxu0 0
        %702 = vmatpush1.bf16.msra.mxu0 0
        %703 = vmatprep.subr.bf16.mxu0 0
        %704 = vmatpush1.bf16.msra.mxu0 0
        %705 = vmatprep.subr.bf16.mxu0 0
        %706 = vmatpush1.bf16.msra.mxu0 0
        %707 = vmatprep.subr.bf16.mxu0 0
        %708 = vmatpush1.bf16.msra.mxu0 0
        %709 = vmatprep.subr.bf16.mxu0 0
        %710 = vmatpush1.bf16.msra.mxu0 0
        %711 = vmatprep.subr.bf16.mxu0 0
        %712 = vmatpush1.bf16.msra.mxu0 0
        %713 = vmatprep.subr.bf16.mxu0 0
        %714 = vmatpush1.bf16.msra.mxu0 0
        %715 = vmatprep.subr.bf16.mxu0 0
        %716 = vmatpush1.bf16.msra.mxu0 0
        %717 = vmatprep.subr.bf16.mxu0 0
        %718 = vmatpush1.bf16.msra.mxu0 0
        %719 = vmatprep.subr.bf16.mxu0 0
        %720 = vmatpush1.bf16.msra.mxu0 0
        %721 = vmatprep.subr.bf16.mxu0 0
        %722 = vmatpush1.bf16.msra.mxu0 0
        %723 = vmatprep.subr.bf16.mxu0 0
        %724 = vmatpush1.bf16.msra.mxu0 0
        %725 = vmatprep.subr.bf16.mxu0 0
        %726 = vmatpush1.bf16.msra.mxu0 0
        %727 = vmatprep.subr.bf16.mxu0 0
        %728 = vmatpush1.bf16.msra.mxu0 0
        %729 = vmatprep.subr.bf16.mxu0 0
        %730 = vmatpush1.bf16.msra.mxu0 0
        %731 = vmatprep.mubr.bf16.mxu0 0
        %732 = vmatmul.mubr.bf16.gmra.mrb[0].mxu0 %v450
        %v733 = vpop.f32.mrb[0].mxu0
        %v734 = vadd.f32 %v347, %v733
        %v735 = vpop.f32.mrb[0].mxu0
        %v736 = vadd.f32 %v351, %v735
        %v737 = vpop.f32.mrb[0].mxu0
        %v738 = vadd.f32 %v347, %v737
        %v739 = vpop.f32.mrb[0].mxu0
        %v740 = vadd.f32 %v351, %v739
        %741 = vmatprep.mubr.bf16.mxu0 0
        %742 = vmatmul.mubr.bf16.gmra.mrb[0].mxu0 %v453
        %v743 = vpop.f32.mrb[0].mxu0
        %v744 = vadd.f32 %v347, %v743
        %v745 = vpop.f32.mrb[0].mxu0
        %v746 = vadd.f32 %v351, %v745
        %v747 = vpop.f32.mrb[0].mxu0
        %v748 = vadd.f32 %v347, %v747
        %v749 = vpop.f32.mrb[0].mxu0
        %v750 = vadd.f32 %v351, %v749
        %751 = vmatprep.mubr.bf16.mxu0 0
        %752 = vmatmul.mubr.bf16.gmra.mrb[0].mxu0 %v456
        %v753 = vpop.f32.mrb[0].mxu0
        %v754 = vadd.f32 %v347, %v753
        %v755 = vpop.f32.mrb[0].mxu0
        %v756 = vadd.f32 %v351, %v755
        %v757 = vpop.f32.mrb[0].mxu0
        %v758 = vadd.f32 %v347, %v757
        %v759 = vpop.f32.mrb[0].mxu0
        %v760 = vadd.f32 %v351, %v759
        %761 = vmatprep.mubr.bf16.mxu0 0
        %762 = vmatmul.mubr.bf16.gmra.mrb[0].mxu0 %v459
        %v763 = vpop.f32.mrb[0].mxu0
        %v764 = vadd.f32 %v347, %v763
        %v765 = vpop.f32.mrb[0].mxu0
        %v766 = vadd.f32 %v351, %v765
        %v767 = vpop.f32.mrb[0].mxu0
        %v768 = vadd.f32 %v347, %v767
        %v769 = vpop.f32.mrb[0].mxu0
        %v770 = vadd.f32 %v351, %v769
        %771 = vmatprep.mubr.bf16.mxu0 0
        %772 = vmatmul.mubr.bf16.gmra.mrb[0].mxu0 %v462
        %v773 = vpop.f32.mrb[0].mxu0
        %v774 = vadd.f32 %v347, %v773
        %v775 = vpop.f32.mrb[0].mxu0
        %v776 = vadd.f32 %v351, %v775
        %v777 = vpop.f32.mrb[0].mxu0
        %v778 = vadd.f32 %v347, %v777
        %v779 = vpop.f32.mrb[0].mxu0
        %v780 = vadd.f32 %v351, %v779
        %781 = vmatprep.mubr.bf16.mxu0 0
        %782 = vmatmul.mubr.bf16.gmra.mrb[0].mxu0 %v465
        %v783 = vpop.f32.mrb[0].mxu0
        %v784 = vadd.f32 %v347, %v783
        %v785 = vpop.f32.mrb[0].mxu0
        %v786 = vadd.f32 %v351, %v785
        %v787 = vpop.f32.mrb[0].mxu0
        %v788 = vadd.f32 %v347, %v787
        %v789 = vpop.f32.mrb[0].mxu0
        %v790 = vadd.f32 %v351, %v789
        %791 = vmatprep.mubr.bf16.mxu0 0
        %792 = vmatmul.mubr.bf16.gmra.mrb[0].mxu0 %v468
        %v793 = vpop.f32.mrb[0].mxu0
        %v794 = vadd.f32 %v347, %v793
        %v795 = vpop.f32.mrb[0].mxu0
        %v796 = vadd.f32 %v351, %v795
        %v797 = vpop.f32.mrb[0].mxu0
        %v798 = vadd.f32 %v347, %v797
        %v799 = vpop.f32.mrb[0].mxu0
        %v800 = vadd.f32 %v351, %v799
        %801 = vmatprep.mubr.bf16.mxu0 0
        %802 = vmatmul.mubr.bf16.gmra.mrb[0].mxu0 %v471
        %v803 = vpop.f32.mrb[0].mxu0
        %v804 = vadd.f32 %v347, %v803
        %v805 = vpop.f32.mrb[0].mxu0
        %v806 = vadd.f32 %v351, %v805
        %v807 = vpop.f32.mrb[0].mxu0
        %v808 = vadd.f32 %v347, %v807
        %v809 = vpop.f32.mrb[0].mxu0
        %v810 = vadd.f32 %v351, %v809
        %811 = vdwg.mxu0
        %812 = vmatprep.subr.bf16.mxu0 %v439
        %813 = vmatpush1.bf16.msra.mxu0 %v438
        %814 = vmatprep.subr.bf16.mxu0 0
        %815 = vmatpush1.bf16.msra.mxu0 0
        %816 = vmatprep.subr.bf16.mxu0 0
        %817 = vmatpush1.bf16.msra.mxu0 0
        %818 = vmatprep.subr.bf16.mxu0 0
        %819 = vmatpush1.bf16.msra.mxu0 0
        %820 = vmatprep.subr.bf16.mxu0 0
        %821 = vmatpush1.bf16.msra.mxu0 0
        %822 = vmatprep.subr.bf16.mxu0 0
        %823 = vmatpush1.bf16.msra.mxu0 0
        %824 = vmatprep.subr.bf16.mxu0 0
        %825 = vmatpush1.bf16.msra.mxu0 0
        %826 = vmatprep.subr.bf16.mxu0 0
        %827 = vmatpush1.bf16.msra.mxu0 0
        %828 = vmatprep.subr.bf16.mxu0 0
        %829 = vmatpush1.bf16.msra.mxu0 0
        %830 = vmatprep.subr.bf16.mxu0 0
        %831 = vmatpush1.bf16.msra.mxu0 0
        %832 = vmatprep.subr.bf16.mxu0 0
        %833 = vmatpush1.bf16.msra.mxu0 0
        %834 = vmatprep.subr.bf16.mxu0 0
        %835 = vmatpush1.bf16.msra.mxu0 0
        %836 = vmatprep.subr.bf16.mxu0 0
        %837 = vmatpush1.bf16.msra.mxu0 0
        %838 = vmatprep.subr.bf16.mxu0 0
        %839 = vmatpush1.bf16.msra.mxu0 0
        %840 = vmatprep.subr.bf16.mxu0 0
        %841 = vmatpush1.bf16.msra.mxu0 0
        %842 = vmatprep.subr.bf16.mxu0 0
        %843 = vmatpush1.bf16.msra.mxu0 0
        %844 = vmatprep.mubr.bf16.mxu0 0
        %845 = vmatmul.mubr.bf16.gmra.mrb[0].mxu0 %v450
        %v846 = vpop.f32.mrb[0].mxu0
        %v847 = vadd.f32 %v355, %v846
        %v848 = vpop.f32.mrb[0].mxu0
        %v849 = vadd.f32 %v359, %v848
        %v850 = vpop.f32.mrb[0].mxu0
        %v851 = vadd.f32 %v355, %v850
        %v852 = vpop.f32.mrb[0].mxu0
        %v853 = vadd.f32 %v359, %v852
        %854 = vmatprep.mubr.bf16.mxu0 0
        %855 = vmatmul.mubr.bf16.gmra.mrb[0].mxu0 %v453
        %v856 = vpop.f32.mrb[0].mxu0
        %v857 = vadd.f32 %v355, %v856
        %v858 = vpop.f32.mrb[0].mxu0
        %v859 = vadd.f32 %v359, %v858
        %v860 = vpop.f32.mrb[0].mxu0
        %v861 = vadd.f32 %v355, %v860
        %v862 = vpop.f32.mrb[0].mxu0
        %v863 = vadd.f32 %v359, %v862
        %864 = vmatprep.mubr.bf16.mxu0 0
        %865 = vmatmul.mubr.bf16.gmra.mrb[0].mxu0 %v456
        %v866 = vpop.f32.mrb[0].mxu0
        %v867 = vadd.f32 %v355, %v866
        %v868 = vpop.f32.mrb[0].mxu0
        %v869 = vadd.f32 %v359, %v868
        %v870 = vpop.f32.mrb[0].mxu0
        %v871 = vadd.f32 %v355, %v870
        %v872 = vpop.f32.mrb[0].mxu0
        %v873 = vadd.f32 %v359, %v872
        %874 = vmatprep.mubr.bf16.mxu0 0
        %875 = vmatmul.mubr.bf16.gmra.mrb[0].mxu0 %v459
        %v876 = vpop.f32.mrb[0].mxu0
        %v877 = vadd.f32 %v355, %v876
        %v878 = vpop.f32.mrb[0].mxu0
        %v879 = vadd.f32 %v359, %v878
        %v880 = vpop.f32.mrb[0].mxu0
        %v881 = vadd.f32 %v355, %v880
        %v882 = vpop.f32.mrb[0].mxu0
        %v883 = vadd.f32 %v359, %v882
        %884 = vmatprep.mubr.bf16.mxu0 0
        %885 = vmatmul.mubr.bf16.gmra.mrb[0].mxu0 %v462
        %v886 = vpop.f32.mrb[0].mxu0
        %v887 = vadd.f32 %v355, %v886
        %v888 = vpop.f32.mrb[0].mxu0
        %v889 = vadd.f32 %v359, %v888
        %v890 = vpop.f32.mrb[0].mxu0
        %v891 = vadd.f32 %v355, %v890
        %v892 = vpop.f32.mrb[0].mxu0
        %v893 = vadd.f32 %v359, %v892
        %894 = vmatprep.mubr.bf16.mxu0 0
        %895 = vmatmul.mubr.bf16.gmra.mrb[0].mxu0 %v465
        %v896 = vpop.f32.mrb[0].mxu0
        %v897 = vadd.f32 %v355, %v896
        %v898 = vpop.f32.mrb[0].mxu0
        %v899 = vadd.f32 %v359, %v898
        %v900 = vpop.f32.mrb[0].mxu0
        %v901 = vadd.f32 %v355, %v900
        %v902 = vpop.f32.mrb[0].mxu0
        %v903 = vadd.f32 %v359, %v902
        %904 = vmatprep.mubr.bf16.mxu0 0
        %905 = vmatmul.mubr.bf16.gmra.mrb[0].mxu0 %v468
        %v906 = vpop.f32.mrb[0].mxu0
        %v907 = vadd.f32 %v355, %v906
        %v908 = vpop.f32.mrb[0].mxu0
        %v909 = vadd.f32 %v359, %v908
        %v910 = vpop.f32.mrb[0].mxu0
        %v911 = vadd.f32 %v355, %v910
        %v912 = vpop.f32.mrb[0].mxu0
        %v913 = vadd.f32 %v359, %v912
        %914 = vmatprep.mubr.bf16.mxu0 0
        %915 = vmatmul.mubr.bf16.gmra.mrb[0].mxu0 %v471
        %v916 = vpop.f32.mrb[0].mxu0
        %v917 = vadd.f32 %v355, %v916
        %v918 = vpop.f32.mrb[0].mxu0
        %v919 = vadd.f32 %v359, %v918
        %v920 = vpop.f32.mrb[0].mxu0
        %v921 = vadd.f32 %v355, %v920
        %v922 = vpop.f32.mrb[0].mxu0
        %v923 = vadd.f32 %v359, %v922
        %924 = vdwg.mxu0
        %925 = vst [vmem:[#allocation2] sm:$0xff] %v508
        %926 = vst [vmem:[#allocation2 + $0x8] sm:$0xff] %v510
        %927 = vst [vmem:[#allocation2 + $0x10] sm:$0xff] %v621
        %928 = vst [vmem:[#allocation2 + $0x18] sm:$0xff] %v623
        %929 = vst [vmem:[#allocation2 + $0x20] sm:$0xff] %v734
        %930 = vst [vmem:[#allocation2 + $0x28] sm:$0xff] %v736
        %931 = vst [vmem:[#allocation2 + $0x30] sm:$0xff] %v847
        %932 = vst [vmem:[#allocation2 + $0x38] sm:$0xff] %v849
        %933 = vst [vmem:[#allocation2 + $0x40] sm:$0xff] %v512
        %934 = vst [vmem:[#allocation2 + $0x48] sm:$0xff] %v514
        %935 = vst [vmem:[#allocation2 + $0x50] sm:$0xff] %v625
        %936 = vst [vmem:[#allocation2 + $0x58] sm:$0xff] %v627
        %937 = vst [vmem:[#allocation2 + $0x60] sm:$0xff] %v738
        %938 = vst [vmem:[#allocation2 + $0x68] sm:$0xff] %v740
        %939 = vst [vmem:[#allocation2 + $0x70] sm:$0xff] %v851
        %940 = vst [vmem:[#allocation2 + $0x78] sm:$0xff] %v853
        %941 = vst [vmem:[#allocation2 + $0x80] sm:$0xff] %v518
        %942 = vst [vmem:[#allocation2 + $0x88] sm:$0xff] %v520
        %943 = vst [vmem:[#allocation2 + $0x90] sm:$0xff] %v631
        %944 = vst [vmem:[#allocation2 + $0x98] sm:$0xff] %v633
        %945 = vst [vmem:[#allocation2 + $0xa0] sm:$0xff] %v744
        %946 = vst [vmem:[#allocation2 + $0xa8] sm:$0xff] %v746
        %947 = vst [vmem:[#allocation2 + $0xb0] sm:$0xff] %v857
        %948 = vst [vmem:[#allocation2 + $0xb8] sm:$0xff] %v859
        %949 = vst [vmem:[#allocation2 + $0xc0] sm:$0xff] %v522
        %950 = vst [vmem:[#allocation2 + $0xc8] sm:$0xff] %v524
        %951 = vst [vmem:[#allocation2 + $0xd0] sm:$0xff] %v635
        %952 = vst [vmem:[#allocation2 + $0xd8] sm:$0xff] %v637
        %953 = vst [vmem:[#allocation2 + $0xe0] sm:$0xff] %v748
        %954 = vst [vmem:[#allocation2 + $0xe8] sm:$0xff] %v750
        %955 = vst [vmem:[#allocation2 + $0xf0] sm:$0xff] %v861
        %956 = vst [vmem:[#allocation2 + $0xf8] sm:$0xff] %v863
        %957 = vst [vmem:[#allocation2 + $0x100] sm:$0xff] %v528
        %958 = vst [vmem:[#allocation2 + $0x108] sm:$0xff] %v530
        %959 = vst [vmem:[#allocation2 + $0x110] sm:$0xff] %v641
        %960 = vst [vmem:[#allocation2 + $0x118] sm:$0xff] %v643
        %961 = vst [vmem:[#allocation2 + $0x120] sm:$0xff] %v754
        %962 = vst [vmem:[#allocation2 + $0x128] sm:$0xff] %v756
        %963 = vst [vmem:[#allocation2 + $0x130] sm:$0xff] %v867
        %964 = vst [vmem:[#allocation2 + $0x138] sm:$0xff] %v869
        %965 = vst [vmem:[#allocation2 + $0x140] sm:$0xff] %v532
        %966 = vst [vmem:[#allocation2 + $0x148] sm:$0xff] %v534
        %967 = vst [vmem:[#allocation2 + $0x150] sm:$0xff] %v645
        %968 = vst [vmem:[#allocation2 + $0x158] sm:$0xff] %v647
        %969 = vst [vmem:[#allocation2 + $0x160] sm:$0xff] %v758
        %970 = vst [vmem:[#allocation2 + $0x168] sm:$0xff] %v760
        %971 = vst [vmem:[#allocation2 + $0x170] sm:$0xff] %v871
        %972 = vst [vmem:[#allocation2 + $0x178] sm:$0xff] %v873
        %973 = vst [vmem:[#allocation2 + $0x180] sm:$0xff] %v538
        %974 = vst [vmem:[#allocation2 + $0x188] sm:$0xff] %v540
        %975 = vst [vmem:[#allocation2 + $0x190] sm:$0xff] %v651
        %976 = vst [vmem:[#allocation2 + $0x198] sm:$0xff] %v653
        %977 = vst [vmem:[#allocation2 + $0x1a0] sm:$0xff] %v764
        %978 = vst [vmem:[#allocation2 + $0x1a8] sm:$0xff] %v766
        %979 = vst [vmem:[#allocation2 + $0x1b0] sm:$0xff] %v877
        %980 = vst [vmem:[#allocation2 + $0x1b8] sm:$0xff] %v879
        %981 = vst [vmem:[#allocation2 + $0x1c0] sm:$0xff] %v542
        %982 = vst [vmem:[#allocation2 + $0x1c8] sm:$0xff] %v544
        %983 = vst [vmem:[#allocation2 + $0x1d0] sm:$0xff] %v655
        %984 = vst [vmem:[#allocation2 + $0x1d8] sm:$0xff] %v657
        %985 = vst [vmem:[#allocation2 + $0x1e0] sm:$0xff] %v768
        %986 = vst [vmem:[#allocation2 + $0x1e8] sm:$0xff] %v770
        %987 = vst [vmem:[#allocation2 + $0x1f0] sm:$0xff] %v881
        %988 = vst [vmem:[#allocation2 + $0x1f8] sm:$0xff] %v883
        %989 = vst [vmem:[#allocation2 + $0x200] sm:$0xff] %v548
        %990 = vst [vmem:[#allocation2 + $0x208] sm:$0xff] %v550
        %991 = vst [vmem:[#allocation2 + $0x210] sm:$0xff] %v661
        %992 = vst [vmem:[#allocation2 + $0x218] sm:$0xff] %v663
        %993 = vst [vmem:[#allocation2 + $0x220] sm:$0xff] %v774
        %994 = vst [vmem:[#allocation2 + $0x228] sm:$0xff] %v776
        %995 = vst [vmem:[#allocation2 + $0x230] sm:$0xff] %v887
        %996 = vst [vmem:[#allocation2 + $0x238] sm:$0xff] %v889
        %997 = vst [vmem:[#allocation2 + $0x240] sm:$0xff] %v552
        %998 = vst [vmem:[#allocation2 + $0x248] sm:$0xff] %v554
        %999 = vst [vmem:[#allocation2 + $0x250] sm:$0xff] %v665
        %1000 = vst [vmem:[#allocation2 + $0x258] sm:$0xff] %v667
        %1001 = vst [vmem:[#allocation2 + $0x260] sm:$0xff] %v778
        %1002 = vst [vmem:[#allocation2 + $0x268] sm:$0xff] %v780
        %1003 = vst [vmem:[#allocation2 + $0x270] sm:$0xff] %v891
        %1004 = vst [vmem:[#allocation2 + $0x278] sm:$0xff] %v893
        %1005 = vst [vmem:[#allocation2 + $0x280] sm:$0xff] %v558
        %1006 = vst [vmem:[#allocation2 + $0x288] sm:$0xff] %v560
        %1007 = vst [vmem:[#allocation2 + $0x290] sm:$0xff] %v671
        %1008 = vst [vmem:[#allocation2 + $0x298] sm:$0xff] %v673
        %1009 = vst [vmem:[#allocation2 + $0x2a0] sm:$0xff] %v784
        %1010 = vst [vmem:[#allocation2 + $0x2a8] sm:$0xff] %v786
        %1011 = vst [vmem:[#allocation2 + $0x2b0] sm:$0xff] %v897
        %1012 = vst [vmem:[#allocation2 + $0x2b8] sm:$0xff] %v899
        %1013 = vst [vmem:[#allocation2 + $0x2c0] sm:$0xff] %v562
        %1014 = vst [vmem:[#allocation2 + $0x2c8] sm:$0xff] %v564
        %1015 = vst [vmem:[#allocation2 + $0x2d0] sm:$0xff] %v675
        %1016 = vst [vmem:[#allocation2 + $0x2d8] sm:$0xff] %v677
        %1017 = vst [vmem:[#allocation2 + $0x2e0] sm:$0xff] %v788
        %1018 = vst [vmem:[#allocation2 + $0x2e8] sm:$0xff] %v790
        %1019 = vst [vmem:[#allocation2 + $0x2f0] sm:$0xff] %v901
        %1020 = vst [vmem:[#allocation2 + $0x2f8] sm:$0xff] %v903
        %1021 = vst [vmem:[#allocation2 + $0x300] sm:$0xff] %v568
        %1022 = vst [vmem:[#allocation2 + $0x308] sm:$0xff] %v570
        %1023 = vst [vmem:[#allocation2 + $0x310] sm:$0xff] %v681
        %1024 = vst [vmem:[#allocation2 + $0x318] sm:$0xff] %v683
        %1025 = vst [vmem:[#allocation2 + $0x320] sm:$0xff] %v794
        %1026 = vst [vmem:[#allocation2 + $0x328] sm:$0xff] %v796
        %1027 = vst [vmem:[#allocation2 + $0x330] sm:$0xff] %v907
        %1028 = vst [vmem:[#allocation2 + $0x338] sm:$0xff] %v909
        %1029 = vst [vmem:[#allocation2 + $0x340] sm:$0xff] %v572
        %1030 = vst [vmem:[#allocation2 + $0x348] sm:$0xff] %v574
        %1031 = vst [vmem:[#allocation2 + $0x350] sm:$0xff] %v685
        %1032 = vst [vmem:[#allocation2 + $0x358] sm:$0xff] %v687
        %1033 = vst [vmem:[#allocation2 + $0x360] sm:$0xff] %v798
        %1034 = vst [vmem:[#allocation2 + $0x368] sm:$0xff] %v800
        %1035 = vst [vmem:[#allocation2 + $0x370] sm:$0xff] %v911
        %1036 = vst [vmem:[#allocation2 + $0x378] sm:$0xff] %v913
        %1037 = vst [vmem:[#allocation2 + $0x380] sm:$0xff] %v578
        %1038 = vst [vmem:[#allocation2 + $0x388] sm:$0xff] %v580
        %1039 = vst [vmem:[#allocation2 + $0x390] sm:$0xff] %v691
        %1040 = vst [vmem:[#allocation2 + $0x398] sm:$0xff] %v693
        %1041 = vst [vmem:[#allocation2 + $0x3a0] sm:$0xff] %v804
        %1042 = vst [vmem:[#allocation2 + $0x3a8] sm:$0xff] %v806
        %1043 = vst [vmem:[#allocation2 + $0x3b0] sm:$0xff] %v917
        %1044 = vst [vmem:[#allocation2 + $0x3b8] sm:$0xff] %v919
        %1045 = vst [vmem:[#allocation2 + $0x3c0] sm:$0xff] %v582
        %1046 = vst [vmem:[#allocation2 + $0x3c8] sm:$0xff] %v584
        %1047 = vst [vmem:[#allocation2 + $0x3d0] sm:$0xff] %v695
        %1048 = vst [vmem:[#allocation2 + $0x3d8] sm:$0xff] %v697
        %1049 = vst [vmem:[#allocation2 + $0x3e0] sm:$0xff] %v808
        %1050 = vst [vmem:[#allocation2 + $0x3e8] sm:$0xff] %v810
        %1051 = vst [vmem:[#allocation2 + $0x3f0] sm:$0xff] %v921
        %1052 = vst [vmem:[#allocation2 + $0x3f8] sm:$0xff] %v923
        %v1053 = vld [vmem:[#allocation6] sm:$0xff]
        %v1054 = vld [vmem:[#allocation6 + $0x8] sm:$0xff]
        %v1055 = vld [vmem:[#allocation6 + $0x10] sm:$0xff]
        %v1056 = vld [vmem:[#allocation6 + $0x18] sm:$0xff]
        %v1057 = vld [vmem:[#allocation6 + $0x20] sm:$0xff]
        %v1058 = vld [vmem:[#allocation6 + $0x28] sm:$0xff]
        %v1059 = vld [vmem:[#allocation6 + $0x30] sm:$0xff]
        %v1060 = vld [vmem:[#allocation6 + $0x38] sm:$0xff]
        %v1061 = vld [vmem:[#allocation6 + $0x40] sm:$0xff]
        %v1062 = vld [vmem:[#allocation6 + $0x48] sm:$0xff]
        %v1063 = vld [vmem:[#allocation6 + $0x50] sm:$0xff]
        %v1064 = vld [vmem:[#allocation6 + $0x58] sm:$0xff]
        %v1065 = vld [vmem:[#allocation6 + $0x60] sm:$0xff]
        %v1066 = vld [vmem:[#allocation6 + $0x68] sm:$0xff]
        %v1067 = vld [vmem:[#allocation6 + $0x70] sm:$0xff]
        %v1068 = vld [vmem:[#allocation6 + $0x78] sm:$0xff]
        %v1069 = vld [vmem:[#allocation6 + $0x80] sm:$0xff]
        %v1070 = vld [vmem:[#allocation6 + $0x88] sm:$0xff]
        %v1071 = vld [vmem:[#allocation6 + $0x90] sm:$0xff]
        %v1072 = vld [vmem:[#allocation6 + $0x98] sm:$0xff]
        %v1073 = vld [vmem:[#allocation6 + $0xa0] sm:$0xff]
        %v1074 = vld [vmem:[#allocation6 + $0xa8] sm:$0xff]
        %v1075 = vld [vmem:[#allocation6 + $0xb0] sm:$0xff]
        %v1076 = vld [vmem:[#allocation6 + $0xb8] sm:$0xff]
        %v1077 = vld [vmem:[#allocation6 + $0xc0] sm:$0xff]
        %v1078 = vld [vmem:[#allocation6 + $0xc8] sm:$0xff]
        %v1079 = vld [vmem:[#allocation6 + $0xd0] sm:$0xff]
        %v1080 = vld [vmem:[#allocation6 + $0xd8] sm:$0xff]
        %v1081 = vld [vmem:[#allocation6 + $0xe0] sm:$0xff]
        %v1082 = vld [vmem:[#allocation6 + $0xe8] sm:$0xff]
        %v1083 = vld [vmem:[#allocation6 + $0xf0] sm:$0xff]
        %v1084 = vld [vmem:[#allocation6 + $0xf8] sm:$0xff]
        %v1085 = vld [vmem:[#allocation6 + $0x100] sm:$0xff]
        %v1086 = vld [vmem:[#allocation6 + $0x108] sm:$0xff]
        %v1087 = vld [vmem:[#allocation6 + $0x110] sm:$0xff]
        %v1088 = vld [vmem:[#allocation6 + $0x118] sm:$0xff]
        %v1089 = vld [vmem:[#allocation6 + $0x120] sm:$0xff]
        %v1090 = vld [vmem:[#allocation6 + $0x128] sm:$0xff]
        %v1091 = vld [vmem:[#allocation6 + $0x130] sm:$0xff]
        %v1092 = vld [vmem:[#allocation6 + $0x138] sm:$0xff]
        %v1093 = vld [vmem:[#allocation6 + $0x140] sm:$0xff]
        %v1094 = vld [vmem:[#allocation6 + $0x148] sm:$0xff]
        %v1095 = vld [vmem:[#allocation6 + $0x150] sm:$0xff]
        %v1096 = vld [vmem:[#allocation6 + $0x158] sm:$0xff]
        %v1097 = vld [vmem:[#allocation6 + $0x160] sm:$0xff]
        %v1098 = vld [vmem:[#allocation6 + $0x168] sm:$0xff]
        %v1099 = vld [vmem:[#allocation6 + $0x170] sm:$0xff]
        %v1100 = vld [vmem:[#allocation6 + $0x178] sm:$0xff]
        %v1101 = vld [vmem:[#allocation6 + $0x180] sm:$0xff]
        %v1102 = vld [vmem:[#allocation6 + $0x188] sm:$0xff]
        %v1103 = vld [vmem:[#allocation6 + $0x190] sm:$0xff]
        %v1104 = vld [vmem:[#allocation6 + $0x198] sm:$0xff]
        %v1105 = vld [vmem:[#allocation6 + $0x1a0] sm:$0xff]
        %v1106 = vld [vmem:[#allocation6 + $0x1a8] sm:$0xff]
        %v1107 = vld [vmem:[#allocation6 + $0x1b0] sm:$0xff]
        %v1108 = vld [vmem:[#allocation6 + $0x1b8] sm:$0xff]
        %v1109 = vld [vmem:[#allocation6 + $0x1c0] sm:$0xff]
        %v1110 = vld [vmem:[#allocation6 + $0x1c8] sm:$0xff]
        %v1111 = vld [vmem:[#allocation6 + $0x1d0] sm:$0xff]
        %v1112 = vld [vmem:[#allocation6 + $0x1d8] sm:$0xff]
        %v1113 = vld [vmem:[#allocation6 + $0x1e0] sm:$0xff]
        %v1114 = vld [vmem:[#allocation6 + $0x1e8] sm:$0xff]
        %v1115 = vld [vmem:[#allocation6 + $0x1f0] sm:$0xff]
        %v1116 = vld [vmem:[#allocation6 + $0x1f8] sm:$0xff]
        %v1117 = vld [vmem:[#allocation6 + $0x200] sm:$0xff]
        %v1118 = vld [vmem:[#allocation6 + $0x208] sm:$0xff]
        %v1119 = vld [vmem:[#allocation6 + $0x210] sm:$0xff]
        %v1120 = vld [vmem:[#allocation6 + $0x218] sm:$0xff]
        %v1121 = vld [vmem:[#allocation6 + $0x220] sm:$0xff]
        %v1122 = vld [vmem:[#allocation6 + $0x228] sm:$0xff]
        %v1123 = vld [vmem:[#allocation6 + $0x230] sm:$0xff]
        %v1124 = vld [vmem:[#allocation6 + $0x238] sm:$0xff]
        %v1125 = vld [vmem:[#allocation6 + $0x240] sm:$0xff]
        %v1126 = vld [vmem:[#allocation6 + $0x248] sm:$0xff]
        %v1127 = vld [vmem:[#allocation6 + $0x250] sm:$0xff]
        %v1128 = vld [vmem:[#allocation6 + $0x258] sm:$0xff]
        %v1129 = vld [vmem:[#allocation6 + $0x260] sm:$0xff]
        %v1130 = vld [vmem:[#allocation6 + $0x268] sm:$0xff]
        %v1131 = vld [vmem:[#allocation6 + $0x270] sm:$0xff]
        %v1132 = vld [vmem:[#allocation6 + $0x278] sm:$0xff]
        %v1133 = vld [vmem:[#allocation6 + $0x280] sm:$0xff]
        %v1134 = vld [vmem:[#allocation6 + $0x288] sm:$0xff]
        %v1135 = vld [vmem:[#allocation6 + $0x290] sm:$0xff]
        %v1136 = vld [vmem:[#allocation6 + $0x298] sm:$0xff]
        %v1137 = vld [vmem:[#allocation6 + $0x2a0] sm:$0xff]
        %v1138 = vld [vmem:[#allocation6 + $0x2a8] sm:$0xff]
        %v1139 = vld [vmem:[#allocation6 + $0x2b0] sm:$0xff]
        %v1140 = vld [vmem:[#allocation6 + $0x2b8] sm:$0xff]
        %v1141 = vld [vmem:[#allocation6 + $0x2c0] sm:$0xff]
        %v1142 = vld [vmem:[#allocation6 + $0x2c8] sm:$0xff]
        %v1143 = vld [vmem:[#allocation6 + $0x2d0] sm:$0xff]
        %v1144 = vld [vmem:[#allocation6 + $0x2d8] sm:$0xff]
        %v1145 = vld [vmem:[#allocation6 + $0x2e0] sm:$0xff]
        %v1146 = vld [vmem:[#allocation6 + $0x2e8] sm:$0xff]
        %v1147 = vld [vmem:[#allocation6 + $0x2f0] sm:$0xff]
        %v1148 = vld [vmem:[#allocation6 + $0x2f8] sm:$0xff]
        %v1149 = vld [vmem:[#allocation6 + $0x300] sm:$0xff]
        %v1150 = vld [vmem:[#allocation6 + $0x308] sm:$0xff]
        %v1151 = vld [vmem:[#allocation6 + $0x310] sm:$0xff]
        %v1152 = vld [vmem:[#allocation6 + $0x318] sm:$0xff]
        %v1153 = vld [vmem:[#allocation6 + $0x320] sm:$0xff]
        %v1154 = vld [vmem:[#allocation6 + $0x328] sm:$0xff]
        %v1155 = vld [vmem:[#allocation6 + $0x330] sm:$0xff]
        %v1156 = vld [vmem:[#allocation6 + $0x338] sm:$0xff]
        %v1157 = vld [vmem:[#allocation6 + $0x340] sm:$0xff]
        %v1158 = vld [vmem:[#allocation6 + $0x348] sm:$0xff]
        %v1159 = vld [vmem:[#allocation6 + $0x350] sm:$0xff]
        %v1160 = vld [vmem:[#allocation6 + $0x358] sm:$0xff]
        %v1161 = vld [vmem:[#allocation6 + $0x360] sm:$0xff]
        %v1162 = vld [vmem:[#allocation6 + $0x368] sm:$0xff]
        %v1163 = vld [vmem:[#allocation6 + $0x370] sm:$0xff]
        %v1164 = vld [vmem:[#allocation6 + $0x378] sm:$0xff]
        %v1165 = vld [vmem:[#allocation6 + $0x380] sm:$0xff]
        %v1166 = vld [vmem:[#allocation6 + $0x388] sm:$0xff]
        %v1167 = vld [vmem:[#allocation6 + $0x390] sm:$0xff]
        %v1168 = vld [vmem:[#allocation6 + $0x398] sm:$0xff]
        %v1169 = vld [vmem:[#allocation6 + $0x3a0] sm:$0xff]
        %v1170 = vld [vmem:[#allocation6 + $0x3a8] sm:$0xff]
        %v1171 = vld [vmem:[#allocation6 + $0x3b0] sm:$0xff]
        %v1172 = vld [vmem:[#allocation6 + $0x3b8] sm:$0xff]
        %v1173 = vld [vmem:[#allocation6 + $0x3c0] sm:$0xff]
        %v1174 = vld [vmem:[#allocation6 + $0x3c8] sm:$0xff]
        %v1175 = vld [vmem:[#allocation6 + $0x3d0] sm:$0xff]
        %v1176 = vld [vmem:[#allocation6 + $0x3d8] sm:$0xff]
        %v1177 = vld [vmem:[#allocation6 + $0x3e0] sm:$0xff]
        %v1178 = vld [vmem:[#allocation6 + $0x3e8] sm:$0xff]
        %v1179 = vld [vmem:[#allocation6 + $0x3f0] sm:$0xff]
        %v1180 = vld [vmem:[#allocation6 + $0x3f8] sm:$0xff]
        %v1181 = vld [vmem:[#allocation4] sm:$0xff]
        %v1182 = vld [vmem:[#allocation4 + $0x8] sm:$0xff]
        %v1183 = vld [vmem:[#allocation5] sm:$0xff]
        %v1184 = vld [vmem:[#allocation5 + $0x8] sm:$0xff]
        %v1185 = vld [vmem:[#allocation2] sm:$0xff]
        %v1186 = vld [vmem:[#allocation2 + $0x8] sm:$0xff]
        %v1187 = vld [vmem:[#allocation2 + $0x10] sm:$0xff]
        %v1188 = vld [vmem:[#allocation2 + $0x18] sm:$0xff]
        %v1189 = vld [vmem:[#allocation2 + $0x20] sm:$0xff]
        %v1190 = vld [vmem:[#allocation2 + $0x28] sm:$0xff]
        %v1191 = vld [vmem:[#allocation2 + $0x30] sm:$0xff]
        %v1192 = vld [vmem:[#allocation2 + $0x38] sm:$0xff]
        %v1193 = vpack.c.bf16 %v1181, %v1181
        %v1194 = vpack.c.bf16 %v1182, %v1182
        %v1323 = vunpack.c.l.b16 %v1053
        %v1324 = vunpack.c.h.b16 %v1053
        %v1325 = vunpack.c.l.b16 %v1054
        %v1326 = vunpack.c.h.b16 %v1054
        %v1327 = vunpack.c.l.b16 %v1055
        %v1328 = vunpack.c.h.b16 %v1055
        %v1329 = vunpack.c.l.b16 %v1056
        %v1330 = vunpack.c.h.b16 %v1056
        %v1331 = vunpack.c.l.b16 %v1057
        %v1332 = vunpack.c.h.b16 %v1057
        %v1333 = vunpack.c.l.b16 %v1058
        %v1334 = vunpack.c.h.b16 %v1058
        %v1335 = vunpack.c.l.b16 %v1059
        %v1336 = vunpack.c.h.b16 %v1059
        %v1337 = vunpack.c.l.b16 %v1060
        %v1338 = vunpack.c.h.b16 %v1060
        %v1339 = vunpack.c.l.b16 %v1061
        %v1340 = vunpack.c.h.b16 %v1061
        %v1341 = vunpack.c.l.b16 %v1062
        %v1342 = vunpack.c.h.b16 %v1062
        %v1343 = vunpack.c.l.b16 %v1063
        %v1344 = vunpack.c.h.b16 %v1063
        %v1345 = vunpack.c.l.b16 %v1064
        %v1346 = vunpack.c.h.b16 %v1064
        %v1347 = vunpack.c.l.b16 %v1065
        %v1348 = vunpack.c.h.b16 %v1065
        %v1349 = vunpack.c.l.b16 %v1066
        %v1350 = vunpack.c.h.b16 %v1066
        %v1351 = vunpack.c.l.b16 %v1067
        %v1352 = vunpack.c.h.b16 %v1067
        %v1353 = vunpack.c.l.b16 %v1068
        %v1354 = vunpack.c.h.b16 %v1068
        %v1355 = vunpack.c.l.b16 %v1069
        %v1356 = vunpack.c.h.b16 %v1069
        %v1357 = vunpack.c.l.b16 %v1070
        %v1358 = vunpack.c.h.b16 %v1070
        %v1359 = vunpack.c.l.b16 %v1071
        %v1360 = vunpack.c.h.b16 %v1071
        %v1361 = vunpack.c.l.b16 %v1072
        %v1362 = vunpack.c.h.b16 %v1072
        %v1363 = vunpack.c.l.b16 %v1073
        %v1364 = vunpack.c.h.b16 %v1073
        %v1365 = vunpack.c.l.b16 %v1074
        %v1366 = vunpack.c.h.b16 %v1074
        %v1367 = vunpack.c.l.b16 %v1075
        %v1368 = vunpack.c.h.b16 %v1075
        %v1369 = vunpack.c.l.b16 %v1076
        %v1370 = vunpack.c.h.b16 %v1076
        %v1371 = vunpack.c.l.b16 %v1077
        %v1372 = vunpack.c.h.b16 %v1077
        %v1373 = vunpack.c.l.b16 %v1078
        %v1374 = vunpack.c.h.b16 %v1078
        %v1375 = vunpack.c.l.b16 %v1079
        %v1376 = vunpack.c.h.b16 %v1079
        %v1377 = vunpack.c.l.b16 %v1080
        %v1378 = vunpack.c.h.b16 %v1080
        %v1379 = vunpack.c.l.b16 %v1081
        %v1380 = vunpack.c.h.b16 %v1081
        %v1381 = vunpack.c.l.b16 %v1082
        %v1382 = vunpack.c.h.b16 %v1082
        %v1383 = vunpack.c.l.b16 %v1083
        %v1384 = vunpack.c.h.b16 %v1083
        %v1385 = vunpack.c.l.b16 %v1084
        %v1386 = vunpack.c.h.b16 %v1084
        %v1387 = vunpack.c.l.b16 %v1085
        %v1388 = vunpack.c.h.b16 %v1085
        %v1389 = vunpack.c.l.b16 %v1086
        %v1390 = vunpack.c.h.b16 %v1086
        %v1391 = vunpack.c.l.b16 %v1087
        %v1392 = vunpack.c.h.b16 %v1087
        %v1393 = vunpack.c.l.b16 %v1088
        %v1394 = vunpack.c.h.b16 %v1088
        %v1395 = vunpack.c.l.b16 %v1089
        %v1396 = vunpack.c.h.b16 %v1089
        %v1397 = vunpack.c.l.b16 %v1090
        %v1398 = vunpack.c.h.b16 %v1090
        %v1399 = vunpack.c.l.b16 %v1091
        %v1400 = vunpack.c.h.b16 %v1091
        %v1401 = vunpack.c.l.b16 %v1092
        %v1402 = vunpack.c.h.b16 %v1092
        %v1403 = vunpack.c.l.b16 %v1093
        %v1404 = vunpack.c.h.b16 %v1093
        %v1405 = vunpack.c.l.b16 %v1094
        %v1406 = vunpack.c.h.b16 %v1094
        %v1407 = vunpack.c.l.b16 %v1095
        %v1408 = vunpack.c.h.b16 %v1095
        %v1409 = vunpack.c.l.b16 %v1096
        %v1410 = vunpack.c.h.b16 %v1096
        %v1411 = vunpack.c.l.b16 %v1097
        %v1412 = vunpack.c.h.b16 %v1097
        %v1413 = vunpack.c.l.b16 %v1098
        %v1414 = vunpack.c.h.b16 %v1098
        %v1415 = vunpack.c.l.b16 %v1099
        %v1416 = vunpack.c.h.b16 %v1099
        %v1417 = vunpack.c.l.b16 %v1100
        %v1418 = vunpack.c.h.b16 %v1100
        %v1419 = vunpack.c.l.b16 %v1101
        %v1420 = vunpack.c.h.b16 %v1101
        %v1421 = vunpack.c.l.b16 %v1102
        %v1422 = vunpack.c.h.b16 %v1102
        %v1423 = vunpack.c.l.b16 %v1103
        %v1424 = vunpack.c.h.b16 %v1103
        %v1425 = vunpack.c.l.b16 %v1104
        %v1426 = vunpack.c.h.b16 %v1104
        %v1427 = vunpack.c.l.b16 %v1105
        %v1428 = vunpack.c.h.b16 %v1105
        %v1429 = vunpack.c.l.b16 %v1106
        %v1430 = vunpack.c.h.b16 %v1106
        %v1431 = vunpack.c.l.b16 %v1107
        %v1432 = vunpack.c.h.b16 %v1107
        %v1433 = vunpack.c.l.b16 %v1108
        %v1434 = vunpack.c.h.b16 %v1108
        %v1435 = vunpack.c.l.b16 %v1109
        %v1436 = vunpack.c.h.b16 %v1109
        %v1437 = vunpack.c.l.b16 %v1110
        %v1438 = vunpack.c.h.b16 %v1110
        %v1439 = vunpack.c.l.b16 %v1111
        %v1440 = vunpack.c.h.b16 %v1111
        %v1441 = vunpack.c.l.b16 %v1112
        %v1442 = vunpack.c.h.b16 %v1112
        %v1443 = vunpack.c.l.b16 %v1113
        %v1444 = vunpack.c.h.b16 %v1113
        %v1445 = vunpack.c.l.b16 %v1114
        %v1446 = vunpack.c.h.b16 %v1114
        %v1447 = vunpack.c.l.b16 %v1115
        %v1448 = vunpack.c.h.b16 %v1115
        %v1449 = vunpack.c.l.b16 %v1116
        %v1450 = vunpack.c.h.b16 %v1116
        %v1451 = vunpack.c.l.b16 %v1117
        %v1452 = vunpack.c.h.b16 %v1117
        %v1453 = vunpack.c.l.b16 %v1118
        %v1454 = vunpack.c.h.b16 %v1118
        %v1455 = vunpack.c.l.b16 %v1119
        %v1456 = vunpack.c.h.b16 %v1119
        %v1457 = vunpack.c.l.b16 %v1120
        %v1458 = vunpack.c.h.b16 %v1120
        %v1459 = vunpack.c.l.b16 %v1121
        %v1460 = vunpack.c.h.b16 %v1121
        %v1461 = vunpack.c.l.b16 %v1122
        %v1462 = vunpack.c.h.b16 %v1122
        %v1463 = vunpack.c.l.b16 %v1123
        %v1464 = vunpack.c.h.b16 %v1123
        %v1465 = vunpack.c.l.b16 %v1124
        %v1466 = vunpack.c.h.b16 %v1124
        %v1467 = vunpack.c.l.b16 %v1125
        %v1468 = vunpack.c.h.b16 %v1125
        %v1469 = vunpack.c.l.b16 %v1126
        %v1470 = vunpack.c.h.b16 %v1126
        %v1471 = vunpack.c.l.b16 %v1127
        %v1472 = vunpack.c.h.b16 %v1127
        %v1473 = vunpack.c.l.b16 %v1128
        %v1474 = vunpack.c.h.b16 %v1128
        %v1475 = vunpack.c.l.b16 %v1129
        %v1476 = vunpack.c.h.b16 %v1129
        %v1477 = vunpack.c.l.b16 %v1130
        %v1478 = vunpack.c.h.b16 %v1130
        %v1479 = vunpack.c.l.b16 %v1131
        %v1480 = vunpack.c.h.b16 %v1131
        %v1481 = vunpack.c.l.b16 %v1132
        %v1482 = vunpack.c.h.b16 %v1132
        %v1483 = vunpack.c.l.b16 %v1133
        %v1484 = vunpack.c.h.b16 %v1133
        %v1485 = vunpack.c.l.b16 %v1134
        %v1486 = vunpack.c.h.b16 %v1134
        %v1487 = vunpack.c.l.b16 %v1135
        %v1488 = vunpack.c.h.b16 %v1135
        %v1489 = vunpack.c.l.b16 %v1136
        %v1490 = vunpack.c.h.b16 %v1136
        %v1491 = vunpack.c.l.b16 %v1137
        %v1492 = vunpack.c.h.b16 %v1137
        %v1493 = vunpack.c.l.b16 %v1138
        %v1494 = vunpack.c.h.b16 %v1138
        %v1495 = vunpack.c.l.b16 %v1139
        %v1496 = vunpack.c.h.b16 %v1139
        %v1497 = vunpack.c.l.b16 %v1140
        %v1498 = vunpack.c.h.b16 %v1140
        %v1499 = vunpack.c.l.b16 %v1141
        %v1500 = vunpack.c.h.b16 %v1141
        %v1501 = vunpack.c.l.b16 %v1142
        %v1502 = vunpack.c.h.b16 %v1142
        %v1503 = vunpack.c.l.b16 %v1143
        %v1504 = vunpack.c.h.b16 %v1143
        %v1505 = vunpack.c.l.b16 %v1144
        %v1506 = vunpack.c.h.b16 %v1144
        %v1507 = vunpack.c.l.b16 %v1145
        %v1508 = vunpack.c.h.b16 %v1145
        %v1509 = vunpack.c.l.b16 %v1146
        %v1510 = vunpack.c.h.b16 %v1146
        %v1511 = vunpack.c.l.b16 %v1147
        %v1512 = vunpack.c.h.b16 %v1147
        %v1513 = vunpack.c.l.b16 %v1148
        %v1514 = vunpack.c.h.b16 %v1148
        %v1515 = vunpack.c.l.b16 %v1149
        %v1516 = vunpack.c.h.b16 %v1149
        %v1517 = vunpack.c.l.b16 %v1150
        %v1518 = vunpack.c.h.b16 %v1150
        %v1519 = vunpack.c.l.b16 %v1151
        %v1520 = vunpack.c.h.b16 %v1151
        %v1521 = vunpack.c.l.b16 %v1152
        %v1522 = vunpack.c.h.b16 %v1152
        %v1523 = vunpack.c.l.b16 %v1153
        %v1524 = vunpack.c.h.b16 %v1153
        %v1525 = vunpack.c.l.b16 %v1154
        %v1526 = vunpack.c.h.b16 %v1154
        %v1527 = vunpack.c.l.b16 %v1155
        %v1528 = vunpack.c.h.b16 %v1155
        %v1529 = vunpack.c.l.b16 %v1156
        %v1530 = vunpack.c.h.b16 %v1156
        %v1531 = vunpack.c.l.b16 %v1157
        %v1532 = vunpack.c.h.b16 %v1157
        %v1533 = vunpack.c.l.b16 %v1158
        %v1534 = vunpack.c.h.b16 %v1158
        %v1535 = vunpack.c.l.b16 %v1159
        %v1536 = vunpack.c.h.b16 %v1159
        %v1537 = vunpack.c.l.b16 %v1160
        %v1538 = vunpack.c.h.b16 %v1160
        %v1539 = vunpack.c.l.b16 %v1161
        %v1540 = vunpack.c.h.b16 %v1161
        %v1541 = vunpack.c.l.b16 %v1162
        %v1542 = vunpack.c.h.b16 %v1162
        %v1543 = vunpack.c.l.b16 %v1163
        %v1544 = vunpack.c.h.b16 %v1163
        %v1545 = vunpack.c.l.b16 %v1164
        %v1546 = vunpack.c.h.b16 %v1164
        %v1547 = vunpack.c.l.b16 %v1165
        %v1548 = vunpack.c.h.b16 %v1165
        %v1549 = vunpack.c.l.b16 %v1166
        %v1550 = vunpack.c.h.b16 %v1166
        %v1551 = vunpack.c.l.b16 %v1167
        %v1552 = vunpack.c.h.b16 %v1167
        %v1553 = vunpack.c.l.b16 %v1168
        %v1554 = vunpack.c.h.b16 %v1168
        %v1555 = vunpack.c.l.b16 %v1169
        %v1556 = vunpack.c.h.b16 %v1169
        %v1557 = vunpack.c.l.b16 %v1170
        %v1558 = vunpack.c.h.b16 %v1170
        %v1559 = vunpack.c.l.b16 %v1171
        %v1560 = vunpack.c.h.b16 %v1171
        %v1561 = vunpack.c.l.b16 %v1172
        %v1562 = vunpack.c.h.b16 %v1172
        %v1563 = vunpack.c.l.b16 %v1173
        %v1564 = vunpack.c.h.b16 %v1173
        %v1565 = vunpack.c.l.b16 %v1174
        %v1566 = vunpack.c.h.b16 %v1174
        %v1567 = vunpack.c.l.b16 %v1175
        %v1568 = vunpack.c.h.b16 %v1175
        %v1569 = vunpack.c.l.b16 %v1176
        %v1570 = vunpack.c.h.b16 %v1176
        %v1571 = vunpack.c.l.b16 %v1177
        %v1572 = vunpack.c.h.b16 %v1177
        %v1573 = vunpack.c.l.b16 %v1178
        %v1574 = vunpack.c.h.b16 %v1178
        %v1575 = vunpack.c.l.b16 %v1179
        %v1576 = vunpack.c.h.b16 %v1179
        %v1577 = vunpack.c.l.b16 %v1180
        %v1578 = vunpack.c.h.b16 %v1180
        %v1579 = vpack.c.b16 %v1331, %v1323
        %v1580 = vpack.c.b16 %v1332, %v1324
        %v1581 = vpack.c.b16 %v1333, %v1325
        %v1582 = vpack.c.b16 %v1334, %v1326
        %v1583 = vpack.c.b16 %v1335, %v1327
        %v1584 = vpack.c.b16 %v1336, %v1328
        %v1585 = vpack.c.b16 %v1337, %v1329
        %v1586 = vpack.c.b16 %v1338, %v1330
        %v1587 = vpack.c.b16 %v1347, %v1339
        %v1588 = vpack.c.b16 %v1348, %v1340
        %v1589 = vpack.c.b16 %v1349, %v1341
        %v1590 = vpack.c.b16 %v1350, %v1342
        %v1591 = vpack.c.b16 %v1351, %v1343
        %v1592 = vpack.c.b16 %v1352, %v1344
        %v1593 = vpack.c.b16 %v1353, %v1345
        %v1594 = vpack.c.b16 %v1354, %v1346
        %v1595 = vpack.c.b16 %v1363, %v1355
        %v1596 = vpack.c.b16 %v1364, %v1356
        %v1597 = vpack.c.b16 %v1365, %v1357
        %v1598 = vpack.c.b16 %v1366, %v1358
        %v1599 = vpack.c.b16 %v1367, %v1359
        %v1600 = vpack.c.b16 %v1368, %v1360
        %v1601 = vpack.c.b16 %v1369, %v1361
        %v1602 = vpack.c.b16 %v1370, %v1362
        %v1603 = vpack.c.b16 %v1379, %v1371
        %v1604 = vpack.c.b16 %v1380, %v1372
        %v1605 = vpack.c.b16 %v1381, %v1373
        %v1606 = vpack.c.b16 %v1382, %v1374
        %v1607 = vpack.c.b16 %v1383, %v1375
        %v1608 = vpack.c.b16 %v1384, %v1376
        %v1609 = vpack.c.b16 %v1385, %v1377
        %v1610 = vpack.c.b16 %v1386, %v1378
        %v1611 = vpack.c.b16 %v1395, %v1387
        %v1612 = vpack.c.b16 %v1396, %v1388
        %v1613 = vpack.c.b16 %v1397, %v1389
        %v1614 = vpack.c.b16 %v1398, %v1390
        %v1615 = vpack.c.b16 %v1399, %v1391
        %v1616 = vpack.c.b16 %v1400, %v1392
        %v1617 = vpack.c.b16 %v1401, %v1393
        %v1618 = vpack.c.b16 %v1402, %v1394
        %v1619 = vpack.c.b16 %v1411, %v1403
        %v1620 = vpack.c.b16 %v1412, %v1404
        %v1621 = vpack.c.b16 %v1413, %v1405
        %v1622 = vpack.c.b16 %v1414, %v1406
        %v1623 = vpack.c.b16 %v1415, %v1407
        %v1624 = vpack.c.b16 %v1416, %v1408
        %v1625 = vpack.c.b16 %v1417, %v1409
        %v1626 = vpack.c.b16 %v1418, %v1410
        %v1627 = vpack.c.b16 %v1427, %v1419
        %v1628 = vpack.c.b16 %v1428, %v1420
        %v1629 = vpack.c.b16 %v1429, %v1421
        %v1630 = vpack.c.b16 %v1430, %v1422
        %v1631 = vpack.c.b16 %v1431, %v1423
        %v1632 = vpack.c.b16 %v1432, %v1424
        %v1633 = vpack.c.b16 %v1433, %v1425
        %v1634 = vpack.c.b16 %v1434, %v1426
        %v1635 = vpack.c.b16 %v1443, %v1435
        %v1636 = vpack.c.b16 %v1444, %v1436
        %v1637 = vpack.c.b16 %v1445, %v1437
        %v1638 = vpack.c.b16 %v1446, %v1438
        %v1639 = vpack.c.b16 %v1447, %v1439
        %v1640 = vpack.c.b16 %v1448, %v1440
        %v1641 = vpack.c.b16 %v1449, %v1441
        %v1642 = vpack.c.b16 %v1450, %v1442
        %v1643 = vpack.c.b16 %v1459, %v1451
        %v1644 = vpack.c.b16 %v1460, %v1452
        %v1645 = vpack.c.b16 %v1461, %v1453
        %v1646 = vpack.c.b16 %v1462, %v1454
        %v1647 = vpack.c.b16 %v1463, %v1455
        %v1648 = vpack.c.b16 %v1464, %v1456
        %v1649 = vpack.c.b16 %v1465, %v1457
        %v1650 = vpack.c.b16 %v1466, %v1458
        %v1651 = vpack.c.b16 %v1475, %v1467
        %v1652 = vpack.c.b16 %v1476, %v1468
        %v1653 = vpack.c.b16 %v1477, %v1469
        %v1654 = vpack.c.b16 %v1478, %v1470
        %v1655 = vpack.c.b16 %v1479, %v1471
        %v1656 = vpack.c.b16 %v1480, %v1472
        %v1657 = vpack.c.b16 %v1481, %v1473
        %v1658 = vpack.c.b16 %v1482, %v1474
        %v1659 = vpack.c.b16 %v1491, %v1483
        %v1660 = vpack.c.b16 %v1492, %v1484
        %v1661 = vpack.c.b16 %v1493, %v1485
        %v1662 = vpack.c.b16 %v1494, %v1486
        %v1663 = vpack.c.b16 %v1495, %v1487
        %v1664 = vpack.c.b16 %v1496, %v1488
        %v1665 = vpack.c.b16 %v1497, %v1489
        %v1666 = vpack.c.b16 %v1498, %v1490
        %v1667 = vpack.c.b16 %v1507, %v1499
        %v1668 = vpack.c.b16 %v1508, %v1500
        %v1669 = vpack.c.b16 %v1509, %v1501
        %v1670 = vpack.c.b16 %v1510, %v1502
        %v1671 = vpack.c.b16 %v1511, %v1503
        %v1672 = vpack.c.b16 %v1512, %v1504
        %v1673 = vpack.c.b16 %v1513, %v1505
        %v1674 = vpack.c.b16 %v1514, %v1506
        %v1675 = vpack.c.b16 %v1523, %v1515
        %v1676 = vpack.c.b16 %v1524, %v1516
        %v1677 = vpack.c.b16 %v1525, %v1517
        %v1678 = vpack.c.b16 %v1526, %v1518
        %v1679 = vpack.c.b16 %v1527, %v1519
        %v1680 = vpack.c.b16 %v1528, %v1520
        %v1681 = vpack.c.b16 %v1529, %v1521
        %v1682 = vpack.c.b16 %v1530, %v1522
        %v1683 = vpack.c.b16 %v1539, %v1531
        %v1684 = vpack.c.b16 %v1540, %v1532
        %v1685 = vpack.c.b16 %v1541, %v1533
        %v1686 = vpack.c.b16 %v1542, %v1534
        %v1687 = vpack.c.b16 %v1543, %v1535
        %v1688 = vpack.c.b16 %v1544, %v1536
        %v1689 = vpack.c.b16 %v1545, %v1537
        %v1690 = vpack.c.b16 %v1546, %v1538
        %v1691 = vpack.c.b16 %v1555, %v1547
        %v1692 = vpack.c.b16 %v1556, %v1548
        %v1693 = vpack.c.b16 %v1557, %v1549
        %v1694 = vpack.c.b16 %v1558, %v1550
        %v1695 = vpack.c.b16 %v1559, %v1551
        %v1696 = vpack.c.b16 %v1560, %v1552
        %v1697 = vpack.c.b16 %v1561, %v1553
        %v1698 = vpack.c.b16 %v1562, %v1554
        %v1699 = vpack.c.b16 %v1571, %v1563
        %v1700 = vpack.c.b16 %v1572, %v1564
        %v1701 = vpack.c.b16 %v1573, %v1565
        %v1702 = vpack.c.b16 %v1574, %v1566
        %v1703 = vpack.c.b16 %v1575, %v1567
        %v1704 = vpack.c.b16 %v1576, %v1568
        %v1705 = vpack.c.b16 %v1577, %v1569
        %v1706 = vpack.c.b16 %v1578, %v1570
        %1835 = vmatprep.subr.bf16.mxu0 %v1580
        %1836 = vmatpush1.bf16.msra.mxu0 %v1579
        %1837 = vmatprep.subr.bf16.mxu0 %v1588
        %1838 = vmatpush1.bf16.msra.mxu0 %v1587
        %1839 = vmatprep.subr.bf16.mxu0 %v1596
        %1840 = vmatpush1.bf16.msra.mxu0 %v1595
        %1841 = vmatprep.subr.bf16.mxu0 %v1604
        %1842 = vmatpush1.bf16.msra.mxu0 %v1603
        %1843 = vmatprep.subr.bf16.mxu0 %v1612
        %1844 = vmatpush1.bf16.msra.mxu0 %v1611
        %1845 = vmatprep.subr.bf16.mxu0 %v1620
        %1846 = vmatpush1.bf16.msra.mxu0 %v1619
        %1847 = vmatprep.subr.bf16.mxu0 %v1628
        %1848 = vmatpush1.bf16.msra.mxu0 %v1627
        %1849 = vmatprep.subr.bf16.mxu0 %v1636
        %1850 = vmatpush1.bf16.msra.mxu0 %v1635
        %1851 = vmatprep.subr.bf16.mxu0 %v1644
        %1852 = vmatpush1.bf16.msra.mxu0 %v1643
        %1853 = vmatprep.subr.bf16.mxu0 %v1652
        %1854 = vmatpush1.bf16.msra.mxu0 %v1651
        %1855 = vmatprep.subr.bf16.mxu0 %v1660
        %1856 = vmatpush1.bf16.msra.mxu0 %v1659
        %1857 = vmatprep.subr.bf16.mxu0 %v1668
        %1858 = vmatpush1.bf16.msra.mxu0 %v1667
        %1859 = vmatprep.subr.bf16.mxu0 %v1676
        %1860 = vmatpush1.bf16.msra.mxu0 %v1675
        %1861 = vmatprep.subr.bf16.mxu0 %v1684
        %1862 = vmatpush1.bf16.msra.mxu0 %v1683
        %1863 = vmatprep.subr.bf16.mxu0 %v1692
        %1864 = vmatpush1.bf16.msra.mxu0 %v1691
        %1865 = vmatprep.subr.bf16.mxu0 %v1700
        %1866 = vmatpush1.bf16.msra.mxu0 %v1699
        %1867 = vmatprep.mubr.bf16.mxu0 %v1194
        %1868 = vmatmul.mubr.bf16.gmra.mrb[0].mxu0 %v1193
        %v1869 = vpop.f32.mrb[0].mxu0
        %v1870 = vadd.f32 0.0, %v1869
        %v1871 = vpop.f32.mrb[0].mxu0
        %v1872 = vadd.f32 0.0, %v1871
        %v1873 = vpop.f32.mrb[0].mxu0
        %v1874 = vpop.f32.mrb[0].mxu0
        %1875 = vdwg.mxu0
        %1876 = vmatprep.subr.bf16.mxu0 %v1582
        %1877 = vmatpush1.bf16.msra.mxu0 %v1581
        %1878 = vmatprep.subr.bf16.mxu0 %v1590
        %1879 = vmatpush1.bf16.msra.mxu0 %v1589
        %1880 = vmatprep.subr.bf16.mxu0 %v1598
        %1881 = vmatpush1.bf16.msra.mxu0 %v1597
        %1882 = vmatprep.subr.bf16.mxu0 %v1606
        %1883 = vmatpush1.bf16.msra.mxu0 %v1605
        %1884 = vmatprep.subr.bf16.mxu0 %v1614
        %1885 = vmatpush1.bf16.msra.mxu0 %v1613
        %1886 = vmatprep.subr.bf16.mxu0 %v1622
        %1887 = vmatpush1.bf16.msra.mxu0 %v1621
        %1888 = vmatprep.subr.bf16.mxu0 %v1630
        %1889 = vmatpush1.bf16.msra.mxu0 %v1629
        %1890 = vmatprep.subr.bf16.mxu0 %v1638
        %1891 = vmatpush1.bf16.msra.mxu0 %v1637
        %1892 = vmatprep.subr.bf16.mxu0 %v1646
        %1893 = vmatpush1.bf16.msra.mxu0 %v1645
        %1894 = vmatprep.subr.bf16.mxu0 %v1654
        %1895 = vmatpush1.bf16.msra.mxu0 %v1653
        %1896 = vmatprep.subr.bf16.mxu0 %v1662
        %1897 = vmatpush1.bf16.msra.mxu0 %v1661
        %1898 = vmatprep.subr.bf16.mxu0 %v1670
        %1899 = vmatpush1.bf16.msra.mxu0 %v1669
        %1900 = vmatprep.subr.bf16.mxu0 %v1678
        %1901 = vmatpush1.bf16.msra.mxu0 %v1677
        %1902 = vmatprep.subr.bf16.mxu0 %v1686
        %1903 = vmatpush1.bf16.msra.mxu0 %v1685
        %1904 = vmatprep.subr.bf16.mxu0 %v1694
        %1905 = vmatpush1.bf16.msra.mxu0 %v1693
        %1906 = vmatprep.subr.bf16.mxu0 %v1702
        %1907 = vmatpush1.bf16.msra.mxu0 %v1701
        %1908 = vmatprep.mubr.bf16.mxu0 %v1194
        %1909 = vmatmul.mubr.bf16.gmra.mrb[0].mxu0 %v1193
        %v1910 = vpop.f32.mrb[0].mxu0
        %v1911 = vadd.f32 0.0, %v1910
        %v1912 = vpop.f32.mrb[0].mxu0
        %v1913 = vadd.f32 0.0, %v1912
        %v1914 = vpop.f32.mrb[0].mxu0
        %v1915 = vpop.f32.mrb[0].mxu0
        %1916 = vdwg.mxu0
        %1917 = vmatprep.subr.bf16.mxu0 %v1584
        %1918 = vmatpush1.bf16.msra.mxu0 %v1583
        %1919 = vmatprep.subr.bf16.mxu0 %v1592
        %1920 = vmatpush1.bf16.msra.mxu0 %v1591
        %1921 = vmatprep.subr.bf16.mxu0 %v1600
        %1922 = vmatpush1.bf16.msra.mxu0 %v1599
        %1923 = vmatprep.subr.bf16.mxu0 %v1608
        %1924 = vmatpush1.bf16.msra.mxu0 %v1607
        %1925 = vmatprep.subr.bf16.mxu0 %v1616
        %1926 = vmatpush1.bf16.msra.mxu0 %v1615
        %1927 = vmatprep.subr.bf16.mxu0 %v1624
        %1928 = vmatpush1.bf16.msra.mxu0 %v1623
        %1929 = vmatprep.subr.bf16.mxu0 %v1632
        %1930 = vmatpush1.bf16.msra.mxu0 %v1631
        %1931 = vmatprep.subr.bf16.mxu0 %v1640
        %1932 = vmatpush1.bf16.msra.mxu0 %v1639
        %1933 = vmatprep.subr.bf16.mxu0 %v1648
        %1934 = vmatpush1.bf16.msra.mxu0 %v1647
        %1935 = vmatprep.subr.bf16.mxu0 %v1656
        %1936 = vmatpush1.bf16.msra.mxu0 %v1655
        %1937 = vmatprep.subr.bf16.mxu0 %v1664
        %1938 = vmatpush1.bf16.msra.mxu0 %v1663
        %1939 = vmatprep.subr.bf16.mxu0 %v1672
        %1940 = vmatpush1.bf16.msra.mxu0 %v1671
        %1941 = vmatprep.subr.bf16.mxu0 %v1680
        %1942 = vmatpush1.bf16.msra.mxu0 %v1679
        %1943 = vmatprep.subr.bf16.mxu0 %v1688
        %1944 = vmatpush1.bf16.msra.mxu0 %v1687
        %1945 = vmatprep.subr.bf16.mxu0 %v1696
        %1946 = vmatpush1.bf16.msra.mxu0 %v1695
        %1947 = vmatprep.subr.bf16.mxu0 %v1704
        %1948 = vmatpush1.bf16.msra.mxu0 %v1703
        %1949 = vmatprep.mubr.bf16.mxu0 %v1194
        %1950 = vmatmul.mubr.bf16.gmra.mrb[0].mxu0 %v1193
        %v1951 = vpop.f32.mrb[0].mxu0
        %v1952 = vadd.f32 0.0, %v1951
        %v1953 = vpop.f32.mrb[0].mxu0
        %v1954 = vadd.f32 0.0, %v1953
        %v1955 = vpop.f32.mrb[0].mxu0
        %v1956 = vpop.f32.mrb[0].mxu0
        %1957 = vdwg.mxu0
        %1958 = vmatprep.subr.bf16.mxu0 %v1586
        %1959 = vmatpush1.bf16.msra.mxu0 %v1585
        %1960 = vmatprep.subr.bf16.mxu0 %v1594
        %1961 = vmatpush1.bf16.msra.mxu0 %v1593
        %1962 = vmatprep.subr.bf16.mxu0 %v1602
        %1963 = vmatpush1.bf16.msra.mxu0 %v1601
        %1964 = vmatprep.subr.bf16.mxu0 %v1610
        %1965 = vmatpush1.bf16.msra.mxu0 %v1609
        %1966 = vmatprep.subr.bf16.mxu0 %v1618
        %1967 = vmatpush1.bf16.msra.mxu0 %v1617
        %1968 = vmatprep.subr.bf16.mxu0 %v1626
        %1969 = vmatpush1.bf16.msra.mxu0 %v1625
        %1970 = vmatprep.subr.bf16.mxu0 %v1634
        %1971 = vmatpush1.bf16.msra.mxu0 %v1633
        %1972 = vmatprep.subr.bf16.mxu0 %v1642
        %1973 = vmatpush1.bf16.msra.mxu0 %v1641
        %1974 = vmatprep.subr.bf16.mxu0 %v1650
        %1975 = vmatpush1.bf16.msra.mxu0 %v1649
        %1976 = vmatprep.subr.bf16.mxu0 %v1658
        %1977 = vmatpush1.bf16.msra.mxu0 %v1657
        %1978 = vmatprep.subr.bf16.mxu0 %v1666
        %1979 = vmatpush1.bf16.msra.mxu0 %v1665
        %1980 = vmatprep.subr.bf16.mxu0 %v1674
        %1981 = vmatpush1.bf16.msra.mxu0 %v1673
        %1982 = vmatprep.subr.bf16.mxu0 %v1682
        %1983 = vmatpush1.bf16.msra.mxu0 %v1681
        %1984 = vmatprep.subr.bf16.mxu0 %v1690
        %1985 = vmatpush1.bf16.msra.mxu0 %v1689
        %1986 = vmatprep.subr.bf16.mxu0 %v1698
        %1987 = vmatpush1.bf16.msra.mxu0 %v1697
        %1988 = vmatprep.subr.bf16.mxu0 %v1706
        %1989 = vmatpush1.bf16.msra.mxu0 %v1705
        %1990 = vmatprep.mubr.bf16.mxu0 %v1194
        %1991 = vmatmul.mubr.bf16.gmra.mrb[0].mxu0 %v1193
        %v1992 = vpop.f32.mrb[0].mxu0
        %v1993 = vadd.f32 0.0, %v1992
        %v1994 = vpop.f32.mrb[0].mxu0
        %v1995 = vadd.f32 0.0, %v1994
        %v1996 = vpop.f32.mrb[0].mxu0
        %v1997 = vpop.f32.mrb[0].mxu0
        %1998 = vdwg.mxu0
        %v1999 = vadd.f32 %v1185, %v1870
        %v2000 = vadd.f32 %v1186, %v1872
        %v2001 = vadd.f32 %v1187, %v1911
        %v2002 = vadd.f32 %v1188, %v1913
        %v2003 = vadd.f32 %v1189, %v1952
        %v2004 = vadd.f32 %v1190, %v1954
        %v2005 = vadd.f32 %v1191, %v1993
        %v2006 = vadd.f32 %v1192, %v1995
        %v2007 = vxor.u32 %v1999, 2147483648
        %v2008 = vxor.u32 %v2000, 2147483648
        %v2009 = vmul.f32 %v2007, 1.442695
        %v2010 = vpow.pop %v2009
        %v2011 = vmul.f32 %v2008, 1.442695
        %v2012 = vpow.pop %v2011
        %v2013 = vadd.f32 %v2010, 1.0
        %v2014 = vadd.f32 %v2012, 1.0
        %v2015 = vrcp.pop %v2013
        %v2016 = vmul.f32 1.0, %v2015
        %v2017 = vrcp.pop %v2014
        %v2018 = vmul.f32 1.0, %v2017
        %v2019 = vxor.u32 %v2001, 2147483648
        %v2020 = vxor.u32 %v2002, 2147483648
        %v2021 = vmul.f32 %v2019, 1.442695
        %v2022 = vpow.pop %v2021
        %v2023 = vmul.f32 %v2020, 1.442695
        %v2024 = vpow.pop %v2023
        %v2025 = vadd.f32 %v2022, 1.0
        %v2026 = vadd.f32 %v2024, 1.0
        %v2027 = vrcp.pop %v2025
        %v2028 = vmul.f32 1.0, %v2027
        %v2029 = vrcp.pop %v2026
        %v2030 = vmul.f32 1.0, %v2029
        %v2031 = vtanh.pop %v2003
        %v2032 = vtanh.pop %v2004
        %v2033 = vxor.u32 %v2005, 2147483648
        %v2034 = vxor.u32 %v2006, 2147483648
        %v2035 = vmul.f32 %v2033, 1.442695
        %v2036 = vpow.pop %v2035
        %v2037 = vmul.f32 %v2034, 1.442695
        %v2038 = vpow.pop %v2037
        %v2039 = vadd.f32 %v2036, 1.0
        %v2040 = vadd.f32 %v2038, 1.0
        %v2041 = vrcp.pop %v2039
        %v2042 = vmul.f32 1.0, %v2041
        %v2043 = vrcp.pop %v2040
        %v2044 = vmul.f32 1.0, %v2043
        %v2045 = vmul.f32 %v2028, %v1183
        %v2046 = vmul.f32 %v2030, %v1184
        %v2047 = vmul.f32 %v2016, %v2031
        %v2048 = vmul.f32 %v2018, %v2032
        %v2049 = vadd.f32 %v2045, %v2047
        %v2050 = vadd.f32 %v2046, %v2048
        %v2051 = vtanh.pop %v2049
        %v2052 = vtanh.pop %v2050
        %v2053 = vmul.f32 %v2042, %v2051
        %v2054 = vmul.f32 %v2044, %v2052
        %v2055 = vpack.c.bf16 %v2053, %v2053
        %v2056 = vpack.c.bf16 %v2054, %v2054
        %v2059 = vunpack.c.l.b16 %v2055
        %v2060 = vunpack.c.l.b16 %v2056
        %v2061 = vpack.c.b16 %v2060, %v2059
        %2063 = vst [vmem:[#allocation3] sm:$0xff] %v2061
        %s2064 = scalar_lea.vmem [#allocation2], 64
        %v2065 = vld [vmem:[%s2064] sm:$0xff]
        %v2066 = vld [vmem:[%s2064 + $0x8] sm:$0xff]
        %v2067 = vld [vmem:[%s2064 + $0x10] sm:$0xff]
        %v2068 = vld [vmem:[%s2064 + $0x18] sm:$0xff]
        %v2069 = vld [vmem:[%s2064 + $0x20] sm:$0xff]
        %v2070 = vld [vmem:[%s2064 + $0x28] sm:$0xff]
        %v2071 = vld [vmem:[%s2064 + $0x30] sm:$0xff]
        %v2072 = vld [vmem:[%s2064 + $0x38] sm:$0xff]
        %2073 = vmatprep.subr.bf16.mxu0 %v1580
        %2074 = vmatpush1.bf16.msra.mxu0 %v1579
        %2075 = vmatprep.subr.bf16.mxu0 %v1588
        %2076 = vmatpush1.bf16.msra.mxu0 %v1587
        %2077 = vmatprep.subr.bf16.mxu0 %v1596
        %2078 = vmatpush1.bf16.msra.mxu0 %v1595
        %2079 = vmatprep.subr.bf16.mxu0 %v1604
        %2080 = vmatpush1.bf16.msra.mxu0 %v1603
        %2081 = vmatprep.subr.bf16.mxu0 %v1612
        %2082 = vmatpush1.bf16.msra.mxu0 %v1611
        %2083 = vmatprep.subr.bf16.mxu0 %v1620
        %2084 = vmatpush1.bf16.msra.mxu0 %v1619
        %2085 = vmatprep.subr.bf16.mxu0 %v1628
        %2086 = vmatpush1.bf16.msra.mxu0 %v1627
        %2087 = vmatprep.subr.bf16.mxu0 %v1636
        %2088 = vmatpush1.bf16.msra.mxu0 %v1635
        %2089 = vmatprep.subr.bf16.mxu0 %v1644
        %2090 = vmatpush1.bf16.msra.mxu0 %v1643
        %2091 = vmatprep.subr.bf16.mxu0 %v1652
        %2092 = vmatpush1.bf16.msra.mxu0 %v1651
        %2093 = vmatprep.subr.bf16.mxu0 %v1660
        %2094 = vmatpush1.bf16.msra.mxu0 %v1659
        %2095 = vmatprep.subr.bf16.mxu0 %v1668
        %2096 = vmatpush1.bf16.msra.mxu0 %v1667
        %2097 = vmatprep.subr.bf16.mxu0 %v1676
        %2098 = vmatpush1.bf16.msra.mxu0 %v1675
        %2099 = vmatprep.subr.bf16.mxu0 %v1684
        %2100 = vmatpush1.bf16.msra.mxu0 %v1683
        %2101 = vmatprep.subr.bf16.mxu0 %v1692
        %2102 = vmatpush1.bf16.msra.mxu0 %v1691
        %2103 = vmatprep.subr.bf16.mxu0 %v1700
        %2104 = vmatpush1.bf16.msra.mxu0 %v1699
        %2105 = vmatprep.mubr.bf16.mxu0 %v2056
        %2106 = vmatmul.mubr.bf16.gmra.mrb[0].mxu0 %v2055
        %v2107 = vpop.f32.mrb[0].mxu0
        %v2108 = vadd.f32 0.0, %v2107
        %v2109 = vpop.f32.mrb[0].mxu0
        %v2110 = vadd.f32 0.0, %v2109
        %v2111 = vpop.f32.mrb[0].mxu0
        %v2112 = vpop.f32.mrb[0].mxu0
        %2113 = vdwg.mxu0
        %2114 = vmatprep.subr.bf16.mxu0 %v1582
        %2115 = vmatpush1.bf16.msra.mxu0 %v1581
        %2116 = vmatprep.subr.bf16.mxu0 %v1590
        %2117 = vmatpush1.bf16.msra.mxu0 %v1589
        %2118 = vmatprep.subr.bf16.mxu0 %v1598
        %2119 = vmatpush1.bf16.msra.mxu0 %v1597
        %2120 = vmatprep.subr.bf16.mxu0 %v1606
        %2121 = vmatpush1.bf16.msra.mxu0 %v1605
        %2122 = vmatprep.subr.bf16.mxu0 %v1614
        %2123 = vmatpush1.bf16.msra.mxu0 %v1613
        %2124 = vmatprep.subr.bf16.mxu0 %v1622
        %2125 = vmatpush1.bf16.msra.mxu0 %v1621
        %2126 = vmatprep.subr.bf16.mxu0 %v1630
        %2127 = vmatpush1.bf16.msra.mxu0 %v1629
        %2128 = vmatprep.subr.bf16.mxu0 %v1638
        %2129 = vmatpush1.bf16.msra.mxu0 %v1637
        %2130 = vmatprep.subr.bf16.mxu0 %v1646
        %2131 = vmatpush1.bf16.msra.mxu0 %v1645
        %2132 = vmatprep.subr.bf16.mxu0 %v1654
        %2133 = vmatpush1.bf16.msra.mxu0 %v1653
        %2134 = vmatprep.subr.bf16.mxu0 %v1662
        %2135 = vmatpush1.bf16.msra.mxu0 %v1661
        %2136 = vmatprep.subr.bf16.mxu0 %v1670
        %2137 = vmatpush1.bf16.msra.mxu0 %v1669
        %2138 = vmatprep.subr.bf16.mxu0 %v1678
        %2139 = vmatpush1.bf16.msra.mxu0 %v1677
        %2140 = vmatprep.subr.bf16.mxu0 %v1686
        %2141 = vmatpush1.bf16.msra.mxu0 %v1685
        %2142 = vmatprep.subr.bf16.mxu0 %v1694
        %2143 = vmatpush1.bf16.msra.mxu0 %v1693
        %2144 = vmatprep.subr.bf16.mxu0 %v1702
        %2145 = vmatpush1.bf16.msra.mxu0 %v1701
        %2146 = vmatprep.mubr.bf16.mxu0 %v2056
        %2147 = vmatmul.mubr.bf16.gmra.mrb[0].mxu0 %v2055
        %v2148 = vpop.f32.mrb[0].mxu0
        %v2149 = vadd.f32 0.0, %v2148
        %v2150 = vpop.f32.mrb[0].mxu0
        %v2151 = vadd.f32 0.0, %v2150
        %v2152 = vpop.f32.mrb[0].mxu0
        %v2153 = vpop.f32.mrb[0].mxu0
        %2154 = vdwg.mxu0
        %2155 = vmatprep.subr.bf16.mxu0 %v1584
        %2156 = vmatpush1.bf16.msra.mxu0 %v1583
        %2157 = vmatprep.subr.bf16.mxu0 %v1592
        %2158 = vmatpush1.bf16.msra.mxu0 %v1591
        %2159 = vmatprep.subr.bf16.mxu0 %v1600
        %2160 = vmatpush1.bf16.msra.mxu0 %v1599
        %2161 = vmatprep.subr.bf16.mxu0 %v1608
        %2162 = vmatpush1.bf16.msra.mxu0 %v1607
        %2163 = vmatprep.subr.bf16.mxu0 %v1616
        %2164 = vmatpush1.bf16.msra.mxu0 %v1615
        %2165 = vmatprep.subr.bf16.mxu0 %v1624
        %2166 = vmatpush1.bf16.msra.mxu0 %v1623
        %2167 = vmatprep.subr.bf16.mxu0 %v1632
        %2168 = vmatpush1.bf16.msra.mxu0 %v1631
        %2169 = vmatprep.subr.bf16.mxu0 %v1640
        %2170 = vmatpush1.bf16.msra.mxu0 %v1639
        %2171 = vmatprep.subr.bf16.mxu0 %v1648
        %2172 = vmatpush1.bf16.msra.mxu0 %v1647
        %2173 = vmatprep.subr.bf16.mxu0 %v1656
        %2174 = vmatpush1.bf16.msra.mxu0 %v1655
        %2175 = vmatprep.subr.bf16.mxu0 %v1664
        %2176 = vmatpush1.bf16.msra.mxu0 %v1663
        %2177 = vmatprep.subr.bf16.mxu0 %v1672
        %2178 = vmatpush1.bf16.msra.mxu0 %v1671
        %2179 = vmatprep.subr.bf16.mxu0 %v1680
        %2180 = vmatpush1.bf16.msra.mxu0 %v1679
        %2181 = vmatprep.subr.bf16.mxu0 %v1688
        %2182 = vmatpush1.bf16.msra.mxu0 %v1687
        %2183 = vmatprep.subr.bf16.mxu0 %v1696
        %2184 = vmatpush1.bf16.msra.mxu0 %v1695
        %2185 = vmatprep.subr.bf16.mxu0 %v1704
        %2186 = vmatpush1.bf16.msra.mxu0 %v1703
        %2187 = vmatprep.mubr.bf16.mxu0 %v2056
        %2188 = vmatmul.mubr.bf16.gmra.mrb[0].mxu0 %v2055
        %v2189 = vpop.f32.mrb[0].mxu0
        %v2190 = vadd.f32 0.0, %v2189
        %v2191 = vpop.f32.mrb[0].mxu0
        %v2192 = vadd.f32 0.0, %v2191
        %v2193 = vpop.f32.mrb[0].mxu0
        %v2194 = vpop.f32.mrb[0].mxu0
        %2195 = vdwg.mxu0
        %2196 = vmatprep.subr.bf16.mxu0 %v1586
        %2197 = vmatpush1.bf16.msra.mxu0 %v1585
        %2198 = vmatprep.subr.bf16.mxu0 %v1594
        %2199 = vmatpush1.bf16.msra.mxu0 %v1593
        %2200 = vmatprep.subr.bf16.mxu0 %v1602
        %2201 = vmatpush1.bf16.msra.mxu0 %v1601
        %2202 = vmatprep.subr.bf16.mxu0 %v1610
        %2203 = vmatpush1.bf16.msra.mxu0 %v1609
        %2204 = vmatprep.subr.bf16.mxu0 %v1618
        %2205 = vmatpush1.bf16.msra.mxu0 %v1617
        %2206 = vmatprep.subr.bf16.mxu0 %v1626
        %2207 = vmatpush1.bf16.msra.mxu0 %v1625
        %2208 = vmatprep.subr.bf16.mxu0 %v1634
        %2209 = vmatpush1.bf16.msra.mxu0 %v1633
        %2210 = vmatprep.subr.bf16.mxu0 %v1642
        %2211 = vmatpush1.bf16.msra.mxu0 %v1641
        %2212 = vmatprep.subr.bf16.mxu0 %v1650
        %2213 = vmatpush1.bf16.msra.mxu0 %v1649
        %2214 = vmatprep.subr.bf16.mxu0 %v1658
        %2215 = vmatpush1.bf16.msra.mxu0 %v1657
        %2216 = vmatprep.subr.bf16.mxu0 %v1666
        %2217 = vmatpush1.bf16.msra.mxu0 %v1665
        %2218 = vmatprep.subr.bf16.mxu0 %v1674
        %2219 = vmatpush1.bf16.msra.mxu0 %v1673
        %2220 = vmatprep.subr.bf16.mxu0 %v1682
        %2221 = vmatpush1.bf16.msra.mxu0 %v1681
        %2222 = vmatprep.subr.bf16.mxu0 %v1690
        %2223 = vmatpush1.bf16.msra.mxu0 %v1689
        %2224 = vmatprep.subr.bf16.mxu0 %v1698
        %2225 = vmatpush1.bf16.msra.mxu0 %v1697
        %2226 = vmatprep.subr.bf16.mxu0 %v1706
        %2227 = vmatpush1.bf16.msra.mxu0 %v1705
        %2228 = vmatprep.mubr.bf16.mxu0 %v2056
        %2229 = vmatmul.mubr.bf16.gmra.mrb[0].mxu0 %v2055
        %v2230 = vpop.f32.mrb[0].mxu0
        %v2231 = vadd.f32 0.0, %v2230
        %v2232 = vpop.f32.mrb[0].mxu0
        %v2233 = vadd.f32 0.0, %v2232
        %v2234 = vpop.f32.mrb[0].mxu0
        %v2235 = vpop.f32.mrb[0].mxu0
        %2236 = vdwg.mxu0
        %v2237 = vadd.f32 %v2065, %v2108
        %v2238 = vadd.f32 %v2066, %v2110
        %v2239 = vadd.f32 %v2067, %v2149
        %v2240 = vadd.f32 %v2068, %v2151
        %v2241 = vadd.f32 %v2069, %v2190
        %v2242 = vadd.f32 %v2070, %v2192
        %v2243 = vadd.f32 %v2071, %v2231
        %v2244 = vadd.f32 %v2072, %v2233
        %v2245 = vxor.u32 %v2237, 2147483648
        %v2246 = vxor.u32 %v2238, 2147483648
        %v2247 = vmul.f32 %v2245, 1.442695
        %v2248 = vpow.pop %v2247
        %v2249 = vmul.f32 %v2246, 1.442695
        %v2250 = vpow.pop %v2249
        %v2251 = vadd.f32 %v2248, 1.0
        %v2252 = vadd.f32 %v2250, 1.0
        %v2253 = vrcp.pop %v2251
        %v2254 = vmul.f32 1.0, %v2253
        %v2255 = vrcp.pop %v2252
        %v2256 = vmul.f32 1.0, %v2255
        %v2257 = vxor.u32 %v2239, 2147483648
        %v2258 = vxor.u32 %v2240, 2147483648
        %v2259 = vmul.f32 %v2257, 1.442695
        %v2260 = vpow.pop %v2259
        %v2261 = vmul.f32 %v2258, 1.442695
        %v2262 = vpow.pop %v2261
        %v2263 = vadd.f32 %v2260, 1.0
        %v2264 = vadd.f32 %v2262, 1.0
        %v2265 = vrcp.pop %v2263
        %v2266 = vmul.f32 1.0, %v2265
        %v2267 = vrcp.pop %v2264
        %v2268 = vmul.f32 1.0, %v2267
        %v2269 = vtanh.pop %v2241
        %v2270 = vtanh.pop %v2242
        %v2271 = vxor.u32 %v2243, 2147483648
        %v2272 = vxor.u32 %v2244, 2147483648
        %v2273 = vmul.f32 %v2271, 1.442695
        %v2274 = vpow.pop %v2273
        %v2275 = vmul.f32 %v2272, 1.442695
        %v2276 = vpow.pop %v2275
        %v2277 = vadd.f32 %v2274, 1.0
        %v2278 = vadd.f32 %v2276, 1.0
        %v2279 = vrcp.pop %v2277
        %v2280 = vmul.f32 1.0, %v2279
        %v2281 = vrcp.pop %v2278
        %v2282 = vmul.f32 1.0, %v2281
        %v2283 = vmul.f32 %v2266, %v2049
        %v2284 = vmul.f32 %v2268, %v2050
        %v2285 = vmul.f32 %v2254, %v2269
        %v2286 = vmul.f32 %v2256, %v2270
        %v2287 = vadd.f32 %v2283, %v2285
        %v2288 = vadd.f32 %v2284, %v2286
        %v2289 = vtanh.pop %v2287
        %v2290 = vtanh.pop %v2288
        %v2291 = vmul.f32 %v2280, %v2289
        %v2292 = vmul.f32 %v2282, %v2290
        %v2293 = vpack.c.bf16 %v2291, %v2291
        %v2294 = vpack.c.bf16 %v2292, %v2292
        %v2297 = vunpack.c.l.b16 %v2293
        %v2298 = vunpack.c.l.b16 %v2294
        %v2299 = vpack.c.b16 %v2298, %v2297
        %s2301 = scalar_lea.vmem [#allocation3], 8
        %2302 = vst [vmem:[%s2301] sm:$0xff] %v2299
        %s2303 = scalar_lea.vmem [#allocation2], 128
        %v2304 = vld [vmem:[%s2303] sm:$0xff]
        %v2305 = vld [vmem:[%s2303 + $0x8] sm:$0xff]
        %v2306 = vld [vmem:[%s2303 + $0x10] sm:$0xff]
        %v2307 = vld [vmem:[%s2303 + $0x18] sm:$0xff]
        %v2308 = vld [vmem:[%s2303 + $0x20] sm:$0xff]
        %v2309 = vld [vmem:[%s2303 + $0x28] sm:$0xff]
        %v2310 = vld [vmem:[%s2303 + $0x30] sm:$0xff]
        %v2311 = vld [vmem:[%s2303 + $0x38] sm:$0xff]
        %2312 = vmatprep.subr.bf16.mxu0 %v1580
        %2313 = vmatpush1.bf16.msra.mxu0 %v1579
        %2314 = vmatprep.subr.bf16.mxu0 %v1588
        %2315 = vmatpush1.bf16.msra.mxu0 %v1587
        %2316 = vmatprep.subr.bf16.mxu0 %v1596
        %2317 = vmatpush1.bf16.msra.mxu0 %v1595
        %2318 = vmatprep.subr.bf16.mxu0 %v1604
        %2319 = vmatpush1.bf16.msra.mxu0 %v1603
        %2320 = vmatprep.subr.bf16.mxu0 %v1612
        %2321 = vmatpush1.bf16.msra.mxu0 %v1611
        %2322 = vmatprep.subr.bf16.mxu0 %v1620
        %2323 = vmatpush1.bf16.msra.mxu0 %v1619
        %2324 = vmatprep.subr.bf16.mxu0 %v1628
        %2325 = vmatpush1.bf16.msra.mxu0 %v1627
        %2326 = vmatprep.subr.bf16.mxu0 %v1636
        %2327 = vmatpush1.bf16.msra.mxu0 %v1635
        %2328 = vmatprep.subr.bf16.mxu0 %v1644
        %2329 = vmatpush1.bf16.msra.mxu0 %v1643
        %2330 = vmatprep.subr.bf16.mxu0 %v1652
        %2331 = vmatpush1.bf16.msra.mxu0 %v1651
        %2332 = vmatprep.subr.bf16.mxu0 %v1660
        %2333 = vmatpush1.bf16.msra.mxu0 %v1659
        %2334 = vmatprep.subr.bf16.mxu0 %v1668
        %2335 = vmatpush1.bf16.msra.mxu0 %v1667
        %2336 = vmatprep.subr.bf16.mxu0 %v1676
        %2337 = vmatpush1.bf16.msra.mxu0 %v1675
        %2338 = vmatprep.subr.bf16.mxu0 %v1684
        %2339 = vmatpush1.bf16.msra.mxu0 %v1683
        %2340 = vmatprep.subr.bf16.mxu0 %v1692
        %2341 = vmatpush1.bf16.msra.mxu0 %v1691
        %2342 = vmatprep.subr.bf16.mxu0 %v1700
        %2343 = vmatpush1.bf16.msra.mxu0 %v1699
        %2344 = vmatprep.mubr.bf16.mxu0 %v2294
        %2345 = vmatmul.mubr.bf16.gmra.mrb[0].mxu0 %v2293
        %v2346 = vpop.f32.mrb[0].mxu0
        %v2347 = vadd.f32 0.0, %v2346
        %v2348 = vpop.f32.mrb[0].mxu0
        %v2349 = vadd.f32 0.0, %v2348
        %v2350 = vpop.f32.mrb[0].mxu0
        %v2351 = vpop.f32.mrb[0].mxu0
        %2352 = vdwg.mxu0
        %2353 = vmatprep.subr.bf16.mxu0 %v1582
        %2354 = vmatpush1.bf16.msra.mxu0 %v1581
        %2355 = vmatprep.subr.bf16.mxu0 %v1590
        %2356 = vmatpush1.bf16.msra.mxu0 %v1589
        %2357 = vmatprep.subr.bf16.mxu0 %v1598
        %2358 = vmatpush1.bf16.msra.mxu0 %v1597
        %2359 = vmatprep.subr.bf16.mxu0 %v1606
        %2360 = vmatpush1.bf16.msra.mxu0 %v1605
        %2361 = vmatprep.subr.bf16.mxu0 %v1614
        %2362 = vmatpush1.bf16.msra.mxu0 %v1613
        %2363 = vmatprep.subr.bf16.mxu0 %v1622
        %2364 = vmatpush1.bf16.msra.mxu0 %v1621
        %2365 = vmatprep.subr.bf16.mxu0 %v1630
        %2366 = vmatpush1.bf16.msra.mxu0 %v1629
        %2367 = vmatprep.subr.bf16.mxu0 %v1638
        %2368 = vmatpush1.bf16.msra.mxu0 %v1637
        %2369 = vmatprep.subr.bf16.mxu0 %v1646
        %2370 = vmatpush1.bf16.msra.mxu0 %v1645
        %2371 = vmatprep.subr.bf16.mxu0 %v1654
        %2372 = vmatpush1.bf16.msra.mxu0 %v1653
        %2373 = vmatprep.subr.bf16.mxu0 %v1662
        %2374 = vmatpush1.bf16.msra.mxu0 %v1661
        %2375 = vmatprep.subr.bf16.mxu0 %v1670
        %2376 = vmatpush1.bf16.msra.mxu0 %v1669
        %2377 = vmatprep.subr.bf16.mxu0 %v1678
        %2378 = vmatpush1.bf16.msra.mxu0 %v1677
        %2379 = vmatprep.subr.bf16.mxu0 %v1686
        %2380 = vmatpush1.bf16.msra.mxu0 %v1685
        %2381 = vmatprep.subr.bf16.mxu0 %v1694
        %2382 = vmatpush1.bf16.msra.mxu0 %v1693
        %2383 = vmatprep.subr.bf16.mxu0 %v1702
        %2384 = vmatpush1.bf16.msra.mxu0 %v1701
        %2385 = vmatprep.mubr.bf16.mxu0 %v2294
        %2386 = vmatmul.mubr.bf16.gmra.mrb[0].mxu0 %v2293
        %v2387 = vpop.f32.mrb[0].mxu0
        %v2388 = vadd.f32 0.0, %v2387
        %v2389 = vpop.f32.mrb[0].mxu0
        %v2390 = vadd.f32 0.0, %v2389
        %v2391 = vpop.f32.mrb[0].mxu0
        %v2392 = vpop.f32.mrb[0].mxu0
        %2393 = vdwg.mxu0
        %2394 = vmatprep.subr.bf16.mxu0 %v1584
        %2395 = vmatpush1.bf16.msra.mxu0 %v1583
        %2396 = vmatprep.subr.bf16.mxu0 %v1592
        %2397 = vmatpush1.bf16.msra.mxu0 %v1591
        %2398 = vmatprep.subr.bf16.mxu0 %v1600
        %2399 = vmatpush1.bf16.msra.mxu0 %v1599
        %2400 = vmatprep.subr.bf16.mxu0 %v1608
        %2401 = vmatpush1.bf16.msra.mxu0 %v1607
        %2402 = vmatprep.subr.bf16.mxu0 %v1616
        %2403 = vmatpush1.bf16.msra.mxu0 %v1615
        %2404 = vmatprep.subr.bf16.mxu0 %v1624
        %2405 = vmatpush1.bf16.msra.mxu0 %v1623
        %2406 = vmatprep.subr.bf16.mxu0 %v1632
        %2407 = vmatpush1.bf16.msra.mxu0 %v1631
        %2408 = vmatprep.subr.bf16.mxu0 %v1640
        %2409 = vmatpush1.bf16.msra.mxu0 %v1639
        %2410 = vmatprep.subr.bf16.mxu0 %v1648
        %2411 = vmatpush1.bf16.msra.mxu0 %v1647
        %2412 = vmatprep.subr.bf16.mxu0 %v1656
        %2413 = vmatpush1.bf16.msra.mxu0 %v1655
        %2414 = vmatprep.subr.bf16.mxu0 %v1664
        %2415 = vmatpush1.bf16.msra.mxu0 %v1663
        %2416 = vmatprep.subr.bf16.mxu0 %v1672
        %2417 = vmatpush1.bf16.msra.mxu0 %v1671
        %2418 = vmatprep.subr.bf16.mxu0 %v1680
        %2419 = vmatpush1.bf16.msra.mxu0 %v1679
        %2420 = vmatprep.subr.bf16.mxu0 %v1688
        %2421 = vmatpush1.bf16.msra.mxu0 %v1687
        %2422 = vmatprep.subr.bf16.mxu0 %v1696
        %2423 = vmatpush1.bf16.msra.mxu0 %v1695
        %2424 = vmatprep.subr.bf16.mxu0 %v1704
        %2425 = vmatpush1.bf16.msra.mxu0 %v1703
        %2426 = vmatprep.mubr.bf16.mxu0 %v2294
        %2427 = vmatmul.mubr.bf16.gmra.mrb[0].mxu0 %v2293
        %v2428 = vpop.f32.mrb[0].mxu0
        %v2429 = vadd.f32 0.0, %v2428
        %v2430 = vpop.f32.mrb[0].mxu0
        %v2431 = vadd.f32 0.0, %v2430
        %v2432 = vpop.f32.mrb[0].mxu0
        %v2433 = vpop.f32.mrb[0].mxu0
        %2434 = vdwg.mxu0
        %2435 = vmatprep.subr.bf16.mxu0 %v1586
        %2436 = vmatpush1.bf16.msra.mxu0 %v1585
        %2437 = vmatprep.subr.bf16.mxu0 %v1594
        %2438 = vmatpush1.bf16.msra.mxu0 %v1593
        %2439 = vmatprep.subr.bf16.mxu0 %v1602
        %2440 = vmatpush1.bf16.msra.mxu0 %v1601
        %2441 = vmatprep.subr.bf16.mxu0 %v1610
        %2442 = vmatpush1.bf16.msra.mxu0 %v1609
        %2443 = vmatprep.subr.bf16.mxu0 %v1618
        %2444 = vmatpush1.bf16.msra.mxu0 %v1617
        %2445 = vmatprep.subr.bf16.mxu0 %v1626
        %2446 = vmatpush1.bf16.msra.mxu0 %v1625
        %2447 = vmatprep.subr.bf16.mxu0 %v1634
        %2448 = vmatpush1.bf16.msra.mxu0 %v1633
        %2449 = vmatprep.subr.bf16.mxu0 %v1642
        %2450 = vmatpush1.bf16.msra.mxu0 %v1641
        %2451 = vmatprep.subr.bf16.mxu0 %v1650
        %2452 = vmatpush1.bf16.msra.mxu0 %v1649
        %2453 = vmatprep.subr.bf16.mxu0 %v1658
        %2454 = vmatpush1.bf16.msra.mxu0 %v1657
        %2455 = vmatprep.subr.bf16.mxu0 %v1666
        %2456 = vmatpush1.bf16.msra.mxu0 %v1665
        %2457 = vmatprep.subr.bf16.mxu0 %v1674
        %2458 = vmatpush1.bf16.msra.mxu0 %v1673
        %2459 = vmatprep.subr.bf16.mxu0 %v1682
        %2460 = vmatpush1.bf16.msra.mxu0 %v1681
        %2461 = vmatprep.subr.bf16.mxu0 %v1690
        %2462 = vmatpush1.bf16.msra.mxu0 %v1689
        %2463 = vmatprep.subr.bf16.mxu0 %v1698
        %2464 = vmatpush1.bf16.msra.mxu0 %v1697
        %2465 = vmatprep.subr.bf16.mxu0 %v1706
        %2466 = vmatpush1.bf16.msra.mxu0 %v1705
        %2467 = vmatprep.mubr.bf16.mxu0 %v2294
        %2468 = vmatmul.mubr.bf16.gmra.mrb[0].mxu0 %v2293
        %v2469 = vpop.f32.mrb[0].mxu0
        %v2470 = vadd.f32 0.0, %v2469
        %v2471 = vpop.f32.mrb[0].mxu0
        %v2472 = vadd.f32 0.0, %v2471
        %v2473 = vpop.f32.mrb[0].mxu0
        %v2474 = vpop.f32.mrb[0].mxu0
        %2475 = vdwg.mxu0
        %v2476 = vadd.f32 %v2304, %v2347
        %v2477 = vadd.f32 %v2305, %v2349
        %v2478 = vadd.f32 %v2306, %v2388
        %v2479 = vadd.f32 %v2307, %v2390
        %v2480 = vadd.f32 %v2308, %v2429
        %v2481 = vadd.f32 %v2309, %v2431
        %v2482 = vadd.f32 %v2310, %v2470
        %v2483 = vadd.f32 %v2311, %v2472
        %v2484 = vxor.u32 %v2476, 2147483648
        %v2485 = vxor.u32 %v2477, 2147483648
        %v2486 = vmul.f32 %v2484, 1.442695
        %v2487 = vpow.pop %v2486
        %v2488 = vmul.f32 %v2485, 1.442695
        %v2489 = vpow.pop %v2488
        %v2490 = vadd.f32 %v2487, 1.0
        %v2491 = vadd.f32 %v2489, 1.0
        %v2492 = vrcp.pop %v2490
        %v2493 = vmul.f32 1.0, %v2492
        %v2494 = vrcp.pop %v2491
        %v2495 = vmul.f32 1.0, %v2494
        %v2496 = vxor.u32 %v2478, 2147483648
        %v2497 = vxor.u32 %v2479, 2147483648
        %v2498 = vmul.f32 %v2496, 1.442695
        %v2499 = vpow.pop %v2498
        %v2500 = vmul.f32 %v2497, 1.442695
        %v2501 = vpow.pop %v2500
        %v2502 = vadd.f32 %v2499, 1.0
        %v2503 = vadd.f32 %v2501, 1.0
        %v2504 = vrcp.pop %v2502
        %v2505 = vmul.f32 1.0, %v2504
        %v2506 = vrcp.pop %v2503
        %v2507 = vmul.f32 1.0, %v2506
        %v2508 = vtanh.pop %v2480
        %v2509 = vtanh.pop %v2481
        %v2510 = vxor.u32 %v2482, 2147483648
        %v2511 = vxor.u32 %v2483, 2147483648
        %v2512 = vmul.f32 %v2510, 1.442695
        %v2513 = vpow.pop %v2512
        %v2514 = vmul.f32 %v2511, 1.442695
        %v2515 = vpow.pop %v2514
        %v2516 = vadd.f32 %v2513, 1.0
        %v2517 = vadd.f32 %v2515, 1.0
        %v2518 = vrcp.pop %v2516
        %v2519 = vmul.f32 1.0, %v2518
        %v2520 = vrcp.pop %v2517
        %v2521 = vmul.f32 1.0, %v2520
        %v2522 = vmul.f32 %v2505, %v2287
        %v2523 = vmul.f32 %v2507, %v2288
        %v2524 = vmul.f32 %v2493, %v2508
        %v2525 = vmul.f32 %v2495, %v2509
        %v2526 = vadd.f32 %v2522, %v2524
        %v2527 = vadd.f32 %v2523, %v2525
        %v2528 = vtanh.pop %v2526
        %v2529 = vtanh.pop %v2527
        %v2530 = vmul.f32 %v2519, %v2528
        %v2531 = vmul.f32 %v2521, %v2529
        %v2532 = vpack.c.bf16 %v2530, %v2530
        %v2533 = vpack.c.bf16 %v2531, %v2531
        %v2536 = vunpack.c.l.b16 %v2532
        %v2537 = vunpack.c.l.b16 %v2533
        %v2538 = vpack.c.b16 %v2537, %v2536
        %s2540 = scalar_lea.vmem [#allocation3], 16
        %2541 = vst [vmem:[%s2540] sm:$0xff] %v2538
        %s2542 = scalar_lea.vmem [#allocation2], 192
        %v2543 = vld [vmem:[%s2542] sm:$0xff]
        %v2544 = vld [vmem:[%s2542 + $0x8] sm:$0xff]
        %v2545 = vld [vmem:[%s2542 + $0x10] sm:$0xff]
        %v2546 = vld [vmem:[%s2542 + $0x18] sm:$0xff]
        %v2547 = vld [vmem:[%s2542 + $0x20] sm:$0xff]
        %v2548 = vld [vmem:[%s2542 + $0x28] sm:$0xff]
        %v2549 = vld [vmem:[%s2542 + $0x30] sm:$0xff]
        %v2550 = vld [vmem:[%s2542 + $0x38] sm:$0xff]
        %2551 = vmatprep.subr.bf16.mxu0 %v1580
        %2552 = vmatpush1.bf16.msra.mxu0 %v1579
        %2553 = vmatprep.subr.bf16.mxu0 %v1588
        %2554 = vmatpush1.bf16.msra.mxu0 %v1587
        %2555 = vmatprep.subr.bf16.mxu0 %v1596
        %2556 = vmatpush1.bf16.msra.mxu0 %v1595
        %2557 = vmatprep.subr.bf16.mxu0 %v1604
        %2558 = vmatpush1.bf16.msra.mxu0 %v1603
        %2559 = vmatprep.subr.bf16.mxu0 %v1612
        %2560 = vmatpush1.bf16.msra.mxu0 %v1611
        %2561 = vmatprep.subr.bf16.mxu0 %v1620
        %2562 = vmatpush1.bf16.msra.mxu0 %v1619
        %2563 = vmatprep.subr.bf16.mxu0 %v1628
        %2564 = vmatpush1.bf16.msra.mxu0 %v1627
        %2565 = vmatprep.subr.bf16.mxu0 %v1636
        %2566 = vmatpush1.bf16.msra.mxu0 %v1635
        %2567 = vmatprep.subr.bf16.mxu0 %v1644
        %2568 = vmatpush1.bf16.msra.mxu0 %v1643
        %2569 = vmatprep.subr.bf16.mxu0 %v1652
        %2570 = vmatpush1.bf16.msra.mxu0 %v1651
        %2571 = vmatprep.subr.bf16.mxu0 %v1660
        %2572 = vmatpush1.bf16.msra.mxu0 %v1659
        %2573 = vmatprep.subr.bf16.mxu0 %v1668
        %2574 = vmatpush1.bf16.msra.mxu0 %v1667
        %2575 = vmatprep.subr.bf16.mxu0 %v1676
        %2576 = vmatpush1.bf16.msra.mxu0 %v1675
        %2577 = vmatprep.subr.bf16.mxu0 %v1684
        %2578 = vmatpush1.bf16.msra.mxu0 %v1683
        %2579 = vmatprep.subr.bf16.mxu0 %v1692
        %2580 = vmatpush1.bf16.msra.mxu0 %v1691
        %2581 = vmatprep.subr.bf16.mxu0 %v1700
        %2582 = vmatpush1.bf16.msra.mxu0 %v1699
        %2583 = vmatprep.mubr.bf16.mxu0 %v2533
        %2584 = vmatmul.mubr.bf16.gmra.mrb[0].mxu0 %v2532
        %v2585 = vpop.f32.mrb[0].mxu0
        %v2586 = vadd.f32 0.0, %v2585
        %v2587 = vpop.f32.mrb[0].mxu0
        %v2588 = vadd.f32 0.0, %v2587
        %v2589 = vpop.f32.mrb[0].mxu0
        %v2590 = vpop.f32.mrb[0].mxu0
        %2591 = vdwg.mxu0
        %2592 = vmatprep.subr.bf16.mxu0 %v1582
        %2593 = vmatpush1.bf16.msra.mxu0 %v1581
        %2594 = vmatprep.subr.bf16.mxu0 %v1590
        %2595 = vmatpush1.bf16.msra.mxu0 %v1589
        %2596 = vmatprep.subr.bf16.mxu0 %v1598
        %2597 = vmatpush1.bf16.msra.mxu0 %v1597
        %2598 = vmatprep.subr.bf16.mxu0 %v1606
        %2599 = vmatpush1.bf16.msra.mxu0 %v1605
        %2600 = vmatprep.subr.bf16.mxu0 %v1614
        %2601 = vmatpush1.bf16.msra.mxu0 %v1613
        %2602 = vmatprep.subr.bf16.mxu0 %v1622
        %2603 = vmatpush1.bf16.msra.mxu0 %v1621
        %2604 = vmatprep.subr.bf16.mxu0 %v1630
        %2605 = vmatpush1.bf16.msra.mxu0 %v1629
        %2606 = vmatprep.subr.bf16.mxu0 %v1638
        %2607 = vmatpush1.bf16.msra.mxu0 %v1637
        %2608 = vmatprep.subr.bf16.mxu0 %v1646
        %2609 = vmatpush1.bf16.msra.mxu0 %v1645
        %2610 = vmatprep.subr.bf16.mxu0 %v1654
        %2611 = vmatpush1.bf16.msra.mxu0 %v1653
        %2612 = vmatprep.subr.bf16.mxu0 %v1662
        %2613 = vmatpush1.bf16.msra.mxu0 %v1661
        %2614 = vmatprep.subr.bf16.mxu0 %v1670
        %2615 = vmatpush1.bf16.msra.mxu0 %v1669
        %2616 = vmatprep.subr.bf16.mxu0 %v1678
        %2617 = vmatpush1.bf16.msra.mxu0 %v1677
        %2618 = vmatprep.subr.bf16.mxu0 %v1686
        %2619 = vmatpush1.bf16.msra.mxu0 %v1685
        %2620 = vmatprep.subr.bf16.mxu0 %v1694
        %2621 = vmatpush1.bf16.msra.mxu0 %v1693
        %2622 = vmatprep.subr.bf16.mxu0 %v1702
        %2623 = vmatpush1.bf16.msra.mxu0 %v1701
        %2624 = vmatprep.mubr.bf16.mxu0 %v2533
        %2625 = vmatmul.mubr.bf16.gmra.mrb[0].mxu0 %v2532
        %v2626 = vpop.f32.mrb[0].mxu0
        %v2627 = vadd.f32 0.0, %v2626
        %v2628 = vpop.f32.mrb[0].mxu0
        %v2629 = vadd.f32 0.0, %v2628
        %v2630 = vpop.f32.mrb[0].mxu0
        %v2631 = vpop.f32.mrb[0].mxu0
        %2632 = vdwg.mxu0
        %2633 = vmatprep.subr.bf16.mxu0 %v1584
        %2634 = vmatpush1.bf16.msra.mxu0 %v1583
        %2635 = vmatprep.subr.bf16.mxu0 %v1592
        %2636 = vmatpush1.bf16.msra.mxu0 %v1591
        %2637 = vmatprep.subr.bf16.mxu0 %v1600
        %2638 = vmatpush1.bf16.msra.mxu0 %v1599
        %2639 = vmatprep.subr.bf16.mxu0 %v1608
        %2640 = vmatpush1.bf16.msra.mxu0 %v1607
        %2641 = vmatprep.subr.bf16.mxu0 %v1616
        %2642 = vmatpush1.bf16.msra.mxu0 %v1615
        %2643 = vmatprep.subr.bf16.mxu0 %v1624
        %2644 = vmatpush1.bf16.msra.mxu0 %v1623
        %2645 = vmatprep.subr.bf16.mxu0 %v1632
        %2646 = vmatpush1.bf16.msra.mxu0 %v1631
        %2647 = vmatprep.subr.bf16.mxu0 %v1640
        %2648 = vmatpush1.bf16.msra.mxu0 %v1639
        %2649 = vmatprep.subr.bf16.mxu0 %v1648
        %2650 = vmatpush1.bf16.msra.mxu0 %v1647
        %2651 = vmatprep.subr.bf16.mxu0 %v1656
        %2652 = vmatpush1.bf16.msra.mxu0 %v1655
        %2653 = vmatprep.subr.bf16.mxu0 %v1664
        %2654 = vmatpush1.bf16.msra.mxu0 %v1663
        %2655 = vmatprep.subr.bf16.mxu0 %v1672
        %2656 = vmatpush1.bf16.msra.mxu0 %v1671
        %2657 = vmatprep.subr.bf16.mxu0 %v1680
        %2658 = vmatpush1.bf16.msra.mxu0 %v1679
        %2659 = vmatprep.subr.bf16.mxu0 %v1688
        %2660 = vmatpush1.bf16.msra.mxu0 %v1687
        %2661 = vmatprep.subr.bf16.mxu0 %v1696
        %2662 = vmatpush1.bf16.msra.mxu0 %v1695
        %2663 = vmatprep.subr.bf16.mxu0 %v1704
        %2664 = vmatpush1.bf16.msra.mxu0 %v1703
        %2665 = vmatprep.mubr.bf16.mxu0 %v2533
        %2666 = vmatmul.mubr.bf16.gmra.mrb[0].mxu0 %v2532
        %v2667 = vpop.f32.mrb[0].mxu0
        %v2668 = vadd.f32 0.0, %v2667
        %v2669 = vpop.f32.mrb[0].mxu0
        %v2670 = vadd.f32 0.0, %v2669
        %v2671 = vpop.f32.mrb[0].mxu0
        %v2672 = vpop.f32.mrb[0].mxu0
        %2673 = vdwg.mxu0
        %2674 = vmatprep.subr.bf16.mxu0 %v1586
        %2675 = vmatpush1.bf16.msra.mxu0 %v1585
        %2676 = vmatprep.subr.bf16.mxu0 %v1594
        %2677 = vmatpush1.bf16.msra.mxu0 %v1593
        %2678 = vmatprep.subr.bf16.mxu0 %v1602
        %2679 = vmatpush1.bf16.msra.mxu0 %v1601
        %2680 = vmatprep.subr.bf16.mxu0 %v1610
        %2681 = vmatpush1.bf16.msra.mxu0 %v1609
        %2682 = vmatprep.subr.bf16.mxu0 %v1618
        %2683 = vmatpush1.bf16.msra.mxu0 %v1617
        %2684 = vmatprep.subr.bf16.mxu0 %v1626
        %2685 = vmatpush1.bf16.msra.mxu0 %v1625
        %2686 = vmatprep.subr.bf16.mxu0 %v1634
        %2687 = vmatpush1.bf16.msra.mxu0 %v1633
        %2688 = vmatprep.subr.bf16.mxu0 %v1642
        %2689 = vmatpush1.bf16.msra.mxu0 %v1641
        %2690 = vmatprep.subr.bf16.mxu0 %v1650
        %2691 = vmatpush1.bf16.msra.mxu0 %v1649
        %2692 = vmatprep.subr.bf16.mxu0 %v1658
        %2693 = vmatpush1.bf16.msra.mxu0 %v1657
        %2694 = vmatprep.subr.bf16.mxu0 %v1666
        %2695 = vmatpush1.bf16.msra.mxu0 %v1665
        %2696 = vmatprep.subr.bf16.mxu0 %v1674
        %2697 = vmatpush1.bf16.msra.mxu0 %v1673
        %2698 = vmatprep.subr.bf16.mxu0 %v1682
        %2699 = vmatpush1.bf16.msra.mxu0 %v1681
        %2700 = vmatprep.subr.bf16.mxu0 %v1690
        %2701 = vmatpush1.bf16.msra.mxu0 %v1689
        %2702 = vmatprep.subr.bf16.mxu0 %v1698
        %2703 = vmatpush1.bf16.msra.mxu0 %v1697
        %2704 = vmatprep.subr.bf16.mxu0 %v1706
        %2705 = vmatpush1.bf16.msra.mxu0 %v1705
        %2706 = vmatprep.mubr.bf16.mxu0 %v2533
        %2707 = vmatmul.mubr.bf16.gmra.mrb[0].mxu0 %v2532
        %v2708 = vpop.f32.mrb[0].mxu0
        %v2709 = vadd.f32 0.0, %v2708
        %v2710 = vpop.f32.mrb[0].mxu0
        %v2711 = vadd.f32 0.0, %v2710
        %v2712 = vpop.f32.mrb[0].mxu0
        %v2713 = vpop.f32.mrb[0].mxu0
        %2714 = vdwg.mxu0
        %v2715 = vadd.f32 %v2543, %v2586
        %v2716 = vadd.f32 %v2544, %v2588
        %v2717 = vadd.f32 %v2545, %v2627
        %v2718 = vadd.f32 %v2546, %v2629
        %v2719 = vadd.f32 %v2547, %v2668
        %v2720 = vadd.f32 %v2548, %v2670
        %v2721 = vadd.f32 %v2549, %v2709
        %v2722 = vadd.f32 %v2550, %v2711
        %v2723 = vxor.u32 %v2715, 2147483648
        %v2724 = vxor.u32 %v2716, 2147483648
        %v2725 = vmul.f32 %v2723, 1.442695
        %v2726 = vpow.pop %v2725
        %v2727 = vmul.f32 %v2724, 1.442695
        %v2728 = vpow.pop %v2727
        %v2729 = vadd.f32 %v2726, 1.0
        %v2730 = vadd.f32 %v2728, 1.0
        %v2731 = vrcp.pop %v2729
        %v2732 = vmul.f32 1.0, %v2731
        %v2733 = vrcp.pop %v2730
        %v2734 = vmul.f32 1.0, %v2733
        %v2735 = vxor.u32 %v2717, 2147483648
        %v2736 = vxor.u32 %v2718, 2147483648
        %v2737 = vmul.f32 %v2735, 1.442695
        %v2738 = vpow.pop %v2737
        %v2739 = vmul.f32 %v2736, 1.442695
        %v2740 = vpow.pop %v2739
        %v2741 = vadd.f32 %v2738, 1.0
        %v2742 = vadd.f32 %v2740, 1.0
        %v2743 = vrcp.pop %v2741
        %v2744 = vmul.f32 1.0, %v2743
        %v2745 = vrcp.pop %v2742
        %v2746 = vmul.f32 1.0, %v2745
        %v2747 = vtanh.pop %v2719
        %v2748 = vtanh.pop %v2720
        %v2749 = vxor.u32 %v2721, 2147483648
        %v2750 = vxor.u32 %v2722, 2147483648
        %v2751 = vmul.f32 %v2749, 1.442695
        %v2752 = vpow.pop %v2751
        %v2753 = vmul.f32 %v2750, 1.442695
        %v2754 = vpow.pop %v2753
        %v2755 = vadd.f32 %v2752, 1.0
        %v2756 = vadd.f32 %v2754, 1.0
        %v2757 = vrcp.pop %v2755
        %v2758 = vmul.f32 1.0, %v2757
        %v2759 = vrcp.pop %v2756
        %v2760 = vmul.f32 1.0, %v2759
        %v2761 = vmul.f32 %v2744, %v2526
        %v2762 = vmul.f32 %v2746, %v2527
        %v2763 = vmul.f32 %v2732, %v2747
        %v2764 = vmul.f32 %v2734, %v2748
        %v2765 = vadd.f32 %v2761, %v2763
        %v2766 = vadd.f32 %v2762, %v2764
        %v2767 = vtanh.pop %v2765
        %v2768 = vtanh.pop %v2766
        %v2769 = vmul.f32 %v2758, %v2767
        %v2770 = vmul.f32 %v2760, %v2768
        %v2771 = vpack.c.bf16 %v2769, %v2769
        %v2772 = vpack.c.bf16 %v2770, %v2770
        %v2775 = vunpack.c.l.b16 %v2771
        %v2776 = vunpack.c.l.b16 %v2772
        %v2777 = vpack.c.b16 %v2776, %v2775
        %s2779 = scalar_lea.vmem [#allocation3], 24
        %2780 = vst [vmem:[%s2779] sm:$0xff] %v2777
        %s2781 = scalar_lea.vmem [#allocation2], 256
        %v2782 = vld [vmem:[%s2781] sm:$0xff]
        %v2783 = vld [vmem:[%s2781 + $0x8] sm:$0xff]
        %v2784 = vld [vmem:[%s2781 + $0x10] sm:$0xff]
        %v2785 = vld [vmem:[%s2781 + $0x18] sm:$0xff]
        %v2786 = vld [vmem:[%s2781 + $0x20] sm:$0xff]
        %v2787 = vld [vmem:[%s2781 + $0x28] sm:$0xff]
        %v2788 = vld [vmem:[%s2781 + $0x30] sm:$0xff]
        %v2789 = vld [vmem:[%s2781 + $0x38] sm:$0xff]
        %2790 = vmatprep.subr.bf16.mxu0 %v1580
        %2791 = vmatpush1.bf16.msra.mxu0 %v1579
        %2792 = vmatprep.subr.bf16.mxu0 %v1588
        %2793 = vmatpush1.bf16.msra.mxu0 %v1587
        %2794 = vmatprep.subr.bf16.mxu0 %v1596
        %2795 = vmatpush1.bf16.msra.mxu0 %v1595
        %2796 = vmatprep.subr.bf16.mxu0 %v1604
        %2797 = vmatpush1.bf16.msra.mxu0 %v1603
        %2798 = vmatprep.subr.bf16.mxu0 %v1612
        %2799 = vmatpush1.bf16.msra.mxu0 %v1611
        %2800 = vmatprep.subr.bf16.mxu0 %v1620
        %2801 = vmatpush1.bf16.msra.mxu0 %v1619
        %2802 = vmatprep.subr.bf16.mxu0 %v1628
        %2803 = vmatpush1.bf16.msra.mxu0 %v1627
        %2804 = vmatprep.subr.bf16.mxu0 %v1636
        %2805 = vmatpush1.bf16.msra.mxu0 %v1635
        %2806 = vmatprep.subr.bf16.mxu0 %v1644
        %2807 = vmatpush1.bf16.msra.mxu0 %v1643
        %2808 = vmatprep.subr.bf16.mxu0 %v1652
        %2809 = vmatpush1.bf16.msra.mxu0 %v1651
        %2810 = vmatprep.subr.bf16.mxu0 %v1660
        %2811 = vmatpush1.bf16.msra.mxu0 %v1659
        %2812 = vmatprep.subr.bf16.mxu0 %v1668
        %2813 = vmatpush1.bf16.msra.mxu0 %v1667
        %2814 = vmatprep.subr.bf16.mxu0 %v1676
        %2815 = vmatpush1.bf16.msra.mxu0 %v1675
        %2816 = vmatprep.subr.bf16.mxu0 %v1684
        %2817 = vmatpush1.bf16.msra.mxu0 %v1683
        %2818 = vmatprep.subr.bf16.mxu0 %v1692
        %2819 = vmatpush1.bf16.msra.mxu0 %v1691
        %2820 = vmatprep.subr.bf16.mxu0 %v1700
        %2821 = vmatpush1.bf16.msra.mxu0 %v1699
        %2822 = vmatprep.mubr.bf16.mxu0 %v2772
        %2823 = vmatmul.mubr.bf16.gmra.mrb[0].mxu0 %v2771
        %v2824 = vpop.f32.mrb[0].mxu0
        %v2825 = vadd.f32 0.0, %v2824
        %v2826 = vpop.f32.mrb[0].mxu0
        %v2827 = vadd.f32 0.0, %v2826
        %v2828 = vpop.f32.mrb[0].mxu0
        %v2829 = vpop.f32.mrb[0].mxu0
        %2830 = vdwg.mxu0
        %2831 = vmatprep.subr.bf16.mxu0 %v1582
        %2832 = vmatpush1.bf16.msra.mxu0 %v1581
        %2833 = vmatprep.subr.bf16.mxu0 %v1590
        %2834 = vmatpush1.bf16.msra.mxu0 %v1589
        %2835 = vmatprep.subr.bf16.mxu0 %v1598
        %2836 = vmatpush1.bf16.msra.mxu0 %v1597
        %2837 = vmatprep.subr.bf16.mxu0 %v1606
        %2838 = vmatpush1.bf16.msra.mxu0 %v1605
        %2839 = vmatprep.subr.bf16.mxu0 %v1614
        %2840 = vmatpush1.bf16.msra.mxu0 %v1613
        %2841 = vmatprep.subr.bf16.mxu0 %v1622
        %2842 = vmatpush1.bf16.msra.mxu0 %v1621
        %2843 = vmatprep.subr.bf16.mxu0 %v1630
        %2844 = vmatpush1.bf16.msra.mxu0 %v1629
        %2845 = vmatprep.subr.bf16.mxu0 %v1638
        %2846 = vmatpush1.bf16.msra.mxu0 %v1637
        %2847 = vmatprep.subr.bf16.mxu0 %v1646
        %2848 = vmatpush1.bf16.msra.mxu0 %v1645
        %2849 = vmatprep.subr.bf16.mxu0 %v1654
        %2850 = vmatpush1.bf16.msra.mxu0 %v1653
        %2851 = vmatprep.subr.bf16.mxu0 %v1662
        %2852 = vmatpush1.bf16.msra.mxu0 %v1661
        %2853 = vmatprep.subr.bf16.mxu0 %v1670
        %2854 = vmatpush1.bf16.msra.mxu0 %v1669
        %2855 = vmatprep.subr.bf16.mxu0 %v1678
        %2856 = vmatpush1.bf16.msra.mxu0 %v1677
        %2857 = vmatprep.subr.bf16.mxu0 %v1686
        %2858 = vmatpush1.bf16.msra.mxu0 %v1685
        %2859 = vmatprep.subr.bf16.mxu0 %v1694
        %2860 = vmatpush1.bf16.msra.mxu0 %v1693
        %2861 = vmatprep.subr.bf16.mxu0 %v1702
        %2862 = vmatpush1.bf16.msra.mxu0 %v1701
        %2863 = vmatprep.mubr.bf16.mxu0 %v2772
        %2864 = vmatmul.mubr.bf16.gmra.mrb[0].mxu0 %v2771
        %v2865 = vpop.f32.mrb[0].mxu0
        %v2866 = vadd.f32 0.0, %v2865
        %v2867 = vpop.f32.mrb[0].mxu0
        %v2868 = vadd.f32 0.0, %v2867
        %v2869 = vpop.f32.mrb[0].mxu0
        %v2870 = vpop.f32.mrb[0].mxu0
        %2871 = vdwg.mxu0
        %2872 = vmatprep.subr.bf16.mxu0 %v1584
        %2873 = vmatpush1.bf16.msra.mxu0 %v1583
        %2874 = vmatprep.subr.bf16.mxu0 %v1592
        %2875 = vmatpush1.bf16.msra.mxu0 %v1591
        %2876 = vmatprep.subr.bf16.mxu0 %v1600
        %2877 = vmatpush1.bf16.msra.mxu0 %v1599
        %2878 = vmatprep.subr.bf16.mxu0 %v1608
        %2879 = vmatpush1.bf16.msra.mxu0 %v1607
        %2880 = vmatprep.subr.bf16.mxu0 %v1616
        %2881 = vmatpush1.bf16.msra.mxu0 %v1615
        %2882 = vmatprep.subr.bf16.mxu0 %v1624
        %2883 = vmatpush1.bf16.msra.mxu0 %v1623
        %2884 = vmatprep.subr.bf16.mxu0 %v1632
        %2885 = vmatpush1.bf16.msra.mxu0 %v1631
        %2886 = vmatprep.subr.bf16.mxu0 %v1640
        %2887 = vmatpush1.bf16.msra.mxu0 %v1639
        %2888 = vmatprep.subr.bf16.mxu0 %v1648
        %2889 = vmatpush1.bf16.msra.mxu0 %v1647
        %2890 = vmatprep.subr.bf16.mxu0 %v1656
        %2891 = vmatpush1.bf16.msra.mxu0 %v1655
        %2892 = vmatprep.subr.bf16.mxu0 %v1664
        %2893 = vmatpush1.bf16.msra.mxu0 %v1663
        %2894 = vmatprep.subr.bf16.mxu0 %v1672
        %2895 = vmatpush1.bf16.msra.mxu0 %v1671
        %2896 = vmatprep.subr.bf16.mxu0 %v1680
        %2897 = vmatpush1.bf16.msra.mxu0 %v1679
        %2898 = vmatprep.subr.bf16.mxu0 %v1688
        %2899 = vmatpush1.bf16.msra.mxu0 %v1687
        %2900 = vmatprep.subr.bf16.mxu0 %v1696
        %2901 = vmatpush1.bf16.msra.mxu0 %v1695
        %2902 = vmatprep.subr.bf16.mxu0 %v1704
        %2903 = vmatpush1.bf16.msra.mxu0 %v1703
        %2904 = vmatprep.mubr.bf16.mxu0 %v2772
        %2905 = vmatmul.mubr.bf16.gmra.mrb[0].mxu0 %v2771
        %v2906 = vpop.f32.mrb[0].mxu0
        %v2907 = vadd.f32 0.0, %v2906
        %v2908 = vpop.f32.mrb[0].mxu0
        %v2909 = vadd.f32 0.0, %v2908
        %v2910 = vpop.f32.mrb[0].mxu0
        %v2911 = vpop.f32.mrb[0].mxu0
        %2912 = vdwg.mxu0
        %2913 = vmatprep.subr.bf16.mxu0 %v1586
        %2914 = vmatpush1.bf16.msra.mxu0 %v1585
        %2915 = vmatprep.subr.bf16.mxu0 %v1594
        %2916 = vmatpush1.bf16.msra.mxu0 %v1593
        %2917 = vmatprep.subr.bf16.mxu0 %v1602
        %2918 = vmatpush1.bf16.msra.mxu0 %v1601
        %2919 = vmatprep.subr.bf16.mxu0 %v1610
        %2920 = vmatpush1.bf16.msra.mxu0 %v1609
        %2921 = vmatprep.subr.bf16.mxu0 %v1618
        %2922 = vmatpush1.bf16.msra.mxu0 %v1617
        %2923 = vmatprep.subr.bf16.mxu0 %v1626
        %2924 = vmatpush1.bf16.msra.mxu0 %v1625
        %2925 = vmatprep.subr.bf16.mxu0 %v1634
        %2926 = vmatpush1.bf16.msra.mxu0 %v1633
        %2927 = vmatprep.subr.bf16.mxu0 %v1642
        %2928 = vmatpush1.bf16.msra.mxu0 %v1641
        %2929 = vmatprep.subr.bf16.mxu0 %v1650
        %2930 = vmatpush1.bf16.msra.mxu0 %v1649
        %2931 = vmatprep.subr.bf16.mxu0 %v1658
        %2932 = vmatpush1.bf16.msra.mxu0 %v1657
        %2933 = vmatprep.subr.bf16.mxu0 %v1666
        %2934 = vmatpush1.bf16.msra.mxu0 %v1665
        %2935 = vmatprep.subr.bf16.mxu0 %v1674
        %2936 = vmatpush1.bf16.msra.mxu0 %v1673
        %2937 = vmatprep.subr.bf16.mxu0 %v1682
        %2938 = vmatpush1.bf16.msra.mxu0 %v1681
        %2939 = vmatprep.subr.bf16.mxu0 %v1690
        %2940 = vmatpush1.bf16.msra.mxu0 %v1689
        %2941 = vmatprep.subr.bf16.mxu0 %v1698
        %2942 = vmatpush1.bf16.msra.mxu0 %v1697
        %2943 = vmatprep.subr.bf16.mxu0 %v1706
        %2944 = vmatpush1.bf16.msra.mxu0 %v1705
        %2945 = vmatprep.mubr.bf16.mxu0 %v2772
        %2946 = vmatmul.mubr.bf16.gmra.mrb[0].mxu0 %v2771
        %v2947 = vpop.f32.mrb[0].mxu0
        %v2948 = vadd.f32 0.0, %v2947
        %v2949 = vpop.f32.mrb[0].mxu0
        %v2950 = vadd.f32 0.0, %v2949
        %v2951 = vpop.f32.mrb[0].mxu0
        %v2952 = vpop.f32.mrb[0].mxu0
        %2953 = vdwg.mxu0
        %v2954 = vadd.f32 %v2782, %v2825
        %v2955 = vadd.f32 %v2783, %v2827
        %v2956 = vadd.f32 %v2784, %v2866
        %v2957 = vadd.f32 %v2785, %v2868
        %v2958 = vadd.f32 %v2786, %v2907
        %v2959 = vadd.f32 %v2787, %v2909
        %v2960 = vadd.f32 %v2788, %v2948
        %v2961 = vadd.f32 %v2789, %v2950
        %v2962 = vxor.u32 %v2954, 2147483648
        %v2963 = vxor.u32 %v2955, 2147483648
        %v2964 = vmul.f32 %v2962, 1.442695
        %v2965 = vpow.pop %v2964
        %v2966 = vmul.f32 %v2963, 1.442695
        %v2967 = vpow.pop %v2966
        %v2968 = vadd.f32 %v2965, 1.0
        %v2969 = vadd.f32 %v2967, 1.0
        %v2970 = vrcp.pop %v2968
        %v2971 = vmul.f32 1.0, %v2970
        %v2972 = vrcp.pop %v2969
        %v2973 = vmul.f32 1.0, %v2972
        %v2974 = vxor.u32 %v2956, 2147483648
        %v2975 = vxor.u32 %v2957, 2147483648
        %v2976 = vmul.f32 %v2974, 1.442695
        %v2977 = vpow.pop %v2976
        %v2978 = vmul.f32 %v2975, 1.442695
        %v2979 = vpow.pop %v2978
        %v2980 = vadd.f32 %v2977, 1.0
        %v2981 = vadd.f32 %v2979, 1.0
        %v2982 = vrcp.pop %v2980
        %v2983 = vmul.f32 1.0, %v2982
        %v2984 = vrcp.pop %v2981
        %v2985 = vmul.f32 1.0, %v2984
        %v2986 = vtanh.pop %v2958
        %v2987 = vtanh.pop %v2959
        %v2988 = vxor.u32 %v2960, 2147483648
        %v2989 = vxor.u32 %v2961, 2147483648
        %v2990 = vmul.f32 %v2988, 1.442695
        %v2991 = vpow.pop %v2990
        %v2992 = vmul.f32 %v2989, 1.442695
        %v2993 = vpow.pop %v2992
        %v2994 = vadd.f32 %v2991, 1.0
        %v2995 = vadd.f32 %v2993, 1.0
        %v2996 = vrcp.pop %v2994
        %v2997 = vmul.f32 1.0, %v2996
        %v2998 = vrcp.pop %v2995
        %v2999 = vmul.f32 1.0, %v2998
        %v3000 = vmul.f32 %v2983, %v2765
        %v3001 = vmul.f32 %v2985, %v2766
        %v3002 = vmul.f32 %v2971, %v2986
        %v3003 = vmul.f32 %v2973, %v2987
        %v3004 = vadd.f32 %v3000, %v3002
        %v3005 = vadd.f32 %v3001, %v3003
        %v3006 = vtanh.pop %v3004
        %v3007 = vtanh.pop %v3005
        %v3008 = vmul.f32 %v2997, %v3006
        %v3009 = vmul.f32 %v2999, %v3007
        %v3010 = vpack.c.bf16 %v3008, %v3008
        %v3011 = vpack.c.bf16 %v3009, %v3009
        %v3014 = vunpack.c.l.b16 %v3010
        %v3015 = vunpack.c.l.b16 %v3011
        %v3016 = vpack.c.b16 %v3015, %v3014
        %s3018 = scalar_lea.vmem [#allocation3], 32
        %3019 = vst [vmem:[%s3018] sm:$0xff] %v3016
        %s3020 = scalar_lea.vmem [#allocation2], 320
        %v3021 = vld [vmem:[%s3020] sm:$0xff]
        %v3022 = vld [vmem:[%s3020 + $0x8] sm:$0xff]
        %v3023 = vld [vmem:[%s3020 + $0x10] sm:$0xff]
        %v3024 = vld [vmem:[%s3020 + $0x18] sm:$0xff]
        %v3025 = vld [vmem:[%s3020 + $0x20] sm:$0xff]
        %v3026 = vld [vmem:[%s3020 + $0x28] sm:$0xff]
        %v3027 = vld [vmem:[%s3020 + $0x30] sm:$0xff]
        %v3028 = vld [vmem:[%s3020 + $0x38] sm:$0xff]
        %3029 = vmatprep.subr.bf16.mxu0 %v1580
        %3030 = vmatpush1.bf16.msra.mxu0 %v1579
        %3031 = vmatprep.subr.bf16.mxu0 %v1588
        %3032 = vmatpush1.bf16.msra.mxu0 %v1587
        %3033 = vmatprep.subr.bf16.mxu0 %v1596
        %3034 = vmatpush1.bf16.msra.mxu0 %v1595
        %3035 = vmatprep.subr.bf16.mxu0 %v1604
        %3036 = vmatpush1.bf16.msra.mxu0 %v1603
        %3037 = vmatprep.subr.bf16.mxu0 %v1612
        %3038 = vmatpush1.bf16.msra.mxu0 %v1611
        %3039 = vmatprep.subr.bf16.mxu0 %v1620
        %3040 = vmatpush1.bf16.msra.mxu0 %v1619
        %3041 = vmatprep.subr.bf16.mxu0 %v1628
        %3042 = vmatpush1.bf16.msra.mxu0 %v1627
        %3043 = vmatprep.subr.bf16.mxu0 %v1636
        %3044 = vmatpush1.bf16.msra.mxu0 %v1635
        %3045 = vmatprep.subr.bf16.mxu0 %v1644
        %3046 = vmatpush1.bf16.msra.mxu0 %v1643
        %3047 = vmatprep.subr.bf16.mxu0 %v1652
        %3048 = vmatpush1.bf16.msra.mxu0 %v1651
        %3049 = vmatprep.subr.bf16.mxu0 %v1660
        %3050 = vmatpush1.bf16.msra.mxu0 %v1659
        %3051 = vmatprep.subr.bf16.mxu0 %v1668
        %3052 = vmatpush1.bf16.msra.mxu0 %v1667
        %3053 = vmatprep.subr.bf16.mxu0 %v1676
        %3054 = vmatpush1.bf16.msra.mxu0 %v1675
        %3055 = vmatprep.subr.bf16.mxu0 %v1684
        %3056 = vmatpush1.bf16.msra.mxu0 %v1683
        %3057 = vmatprep.subr.bf16.mxu0 %v1692
        %3058 = vmatpush1.bf16.msra.mxu0 %v1691
        %3059 = vmatprep.subr.bf16.mxu0 %v1700
        %3060 = vmatpush1.bf16.msra.mxu0 %v1699
        %3061 = vmatprep.mubr.bf16.mxu0 %v3011
        %3062 = vmatmul.mubr.bf16.gmra.mrb[0].mxu0 %v3010
        %v3063 = vpop.f32.mrb[0].mxu0
        %v3064 = vadd.f32 0.0, %v3063
        %v3065 = vpop.f32.mrb[0].mxu0
        %v3066 = vadd.f32 0.0, %v3065
        %v3067 = vpop.f32.mrb[0].mxu0
        %v3068 = vpop.f32.mrb[0].mxu0
        %3069 = vdwg.mxu0
        %3070 = vmatprep.subr.bf16.mxu0 %v1582
        %3071 = vmatpush1.bf16.msra.mxu0 %v1581
        %3072 = vmatprep.subr.bf16.mxu0 %v1590
        %3073 = vmatpush1.bf16.msra.mxu0 %v1589
        %3074 = vmatprep.subr.bf16.mxu0 %v1598
        %3075 = vmatpush1.bf16.msra.mxu0 %v1597
        %3076 = vmatprep.subr.bf16.mxu0 %v1606
        %3077 = vmatpush1.bf16.msra.mxu0 %v1605
        %3078 = vmatprep.subr.bf16.mxu0 %v1614
        %3079 = vmatpush1.bf16.msra.mxu0 %v1613
        %3080 = vmatprep.subr.bf16.mxu0 %v1622
        %3081 = vmatpush1.bf16.msra.mxu0 %v1621
        %3082 = vmatprep.subr.bf16.mxu0 %v1630
        %3083 = vmatpush1.bf16.msra.mxu0 %v1629
        %3084 = vmatprep.subr.bf16.mxu0 %v1638
        %3085 = vmatpush1.bf16.msra.mxu0 %v1637
        %3086 = vmatprep.subr.bf16.mxu0 %v1646
        %3087 = vmatpush1.bf16.msra.mxu0 %v1645
        %3088 = vmatprep.subr.bf16.mxu0 %v1654
        %3089 = vmatpush1.bf16.msra.mxu0 %v1653
        %3090 = vmatprep.subr.bf16.mxu0 %v1662
        %3091 = vmatpush1.bf16.msra.mxu0 %v1661
        %3092 = vmatprep.subr.bf16.mxu0 %v1670
        %3093 = vmatpush1.bf16.msra.mxu0 %v1669
        %3094 = vmatprep.subr.bf16.mxu0 %v1678
        %3095 = vmatpush1.bf16.msra.mxu0 %v1677
        %3096 = vmatprep.subr.bf16.mxu0 %v1686
        %3097 = vmatpush1.bf16.msra.mxu0 %v1685
        %3098 = vmatprep.subr.bf16.mxu0 %v1694
        %3099 = vmatpush1.bf16.msra.mxu0 %v1693
        %3100 = vmatprep.subr.bf16.mxu0 %v1702
        %3101 = vmatpush1.bf16.msra.mxu0 %v1701
        %3102 = vmatprep.mubr.bf16.mxu0 %v3011
        %3103 = vmatmul.mubr.bf16.gmra.mrb[0].mxu0 %v3010
        %v3104 = vpop.f32.mrb[0].mxu0
        %v3105 = vadd.f32 0.0, %v3104
        %v3106 = vpop.f32.mrb[0].mxu0
        %v3107 = vadd.f32 0.0, %v3106
        %v3108 = vpop.f32.mrb[0].mxu0
        %v3109 = vpop.f32.mrb[0].mxu0
        %3110 = vdwg.mxu0
        %3111 = vmatprep.subr.bf16.mxu0 %v1584
        %3112 = vmatpush1.bf16.msra.mxu0 %v1583
        %3113 = vmatprep.subr.bf16.mxu0 %v1592
        %3114 = vmatpush1.bf16.msra.mxu0 %v1591
        %3115 = vmatprep.subr.bf16.mxu0 %v1600
        %3116 = vmatpush1.bf16.msra.mxu0 %v1599
        %3117 = vmatprep.subr.bf16.mxu0 %v1608
        %3118 = vmatpush1.bf16.msra.mxu0 %v1607
        %3119 = vmatprep.subr.bf16.mxu0 %v1616
        %3120 = vmatpush1.bf16.msra.mxu0 %v1615
        %3121 = vmatprep.subr.bf16.mxu0 %v1624
        %3122 = vmatpush1.bf16.msra.mxu0 %v1623
        %3123 = vmatprep.subr.bf16.mxu0 %v1632
        %3124 = vmatpush1.bf16.msra.mxu0 %v1631
        %3125 = vmatprep.subr.bf16.mxu0 %v1640
        %3126 = vmatpush1.bf16.msra.mxu0 %v1639
        %3127 = vmatprep.subr.bf16.mxu0 %v1648
        %3128 = vmatpush1.bf16.msra.mxu0 %v1647
        %3129 = vmatprep.subr.bf16.mxu0 %v1656
        %3130 = vmatpush1.bf16.msra.mxu0 %v1655
        %3131 = vmatprep.subr.bf16.mxu0 %v1664
        %3132 = vmatpush1.bf16.msra.mxu0 %v1663
        %3133 = vmatprep.subr.bf16.mxu0 %v1672
        %3134 = vmatpush1.bf16.msra.mxu0 %v1671
        %3135 = vmatprep.subr.bf16.mxu0 %v1680
        %3136 = vmatpush1.bf16.msra.mxu0 %v1679
        %3137 = vmatprep.subr.bf16.mxu0 %v1688
        %3138 = vmatpush1.bf16.msra.mxu0 %v1687
        %3139 = vmatprep.subr.bf16.mxu0 %v1696
        %3140 = vmatpush1.bf16.msra.mxu0 %v1695
        %3141 = vmatprep.subr.bf16.mxu0 %v1704
        %3142 = vmatpush1.bf16.msra.mxu0 %v1703
        %3143 = vmatprep.mubr.bf16.mxu0 %v3011
        %3144 = vmatmul.mubr.bf16.gmra.mrb[0].mxu0 %v3010
        %v3145 = vpop.f32.mrb[0].mxu0
        %v3146 = vadd.f32 0.0, %v3145
        %v3147 = vpop.f32.mrb[0].mxu0
        %v3148 = vadd.f32 0.0, %v3147
        %v3149 = vpop.f32.mrb[0].mxu0
        %v3150 = vpop.f32.mrb[0].mxu0
        %3151 = vdwg.mxu0
        %3152 = vmatprep.subr.bf16.mxu0 %v1586
        %3153 = vmatpush1.bf16.msra.mxu0 %v1585
        %3154 = vmatprep.subr.bf16.mxu0 %v1594
        %3155 = vmatpush1.bf16.msra.mxu0 %v1593
        %3156 = vmatprep.subr.bf16.mxu0 %v1602
        %3157 = vmatpush1.bf16.msra.mxu0 %v1601
        %3158 = vmatprep.subr.bf16.mxu0 %v1610
        %3159 = vmatpush1.bf16.msra.mxu0 %v1609
        %3160 = vmatprep.subr.bf16.mxu0 %v1618
        %3161 = vmatpush1.bf16.msra.mxu0 %v1617
        %3162 = vmatprep.subr.bf16.mxu0 %v1626
        %3163 = vmatpush1.bf16.msra.mxu0 %v1625
        %3164 = vmatprep.subr.bf16.mxu0 %v1634
        %3165 = vmatpush1.bf16.msra.mxu0 %v1633
        %3166 = vmatprep.subr.bf16.mxu0 %v1642
        %3167 = vmatpush1.bf16.msra.mxu0 %v1641
        %3168 = vmatprep.subr.bf16.mxu0 %v1650
        %3169 = vmatpush1.bf16.msra.mxu0 %v1649
        %3170 = vmatprep.subr.bf16.mxu0 %v1658
        %3171 = vmatpush1.bf16.msra.mxu0 %v1657
        %3172 = vmatprep.subr.bf16.mxu0 %v1666
        %3173 = vmatpush1.bf16.msra.mxu0 %v1665
        %3174 = vmatprep.subr.bf16.mxu0 %v1674
        %3175 = vmatpush1.bf16.msra.mxu0 %v1673
        %3176 = vmatprep.subr.bf16.mxu0 %v1682
        %3177 = vmatpush1.bf16.msra.mxu0 %v1681
        %3178 = vmatprep.subr.bf16.mxu0 %v1690
        %3179 = vmatpush1.bf16.msra.mxu0 %v1689
        %3180 = vmatprep.subr.bf16.mxu0 %v1698
        %3181 = vmatpush1.bf16.msra.mxu0 %v1697
        %3182 = vmatprep.subr.bf16.mxu0 %v1706
        %3183 = vmatpush1.bf16.msra.mxu0 %v1705
        %3184 = vmatprep.mubr.bf16.mxu0 %v3011
        %3185 = vmatmul.mubr.bf16.gmra.mrb[0].mxu0 %v3010
        %v3186 = vpop.f32.mrb[0].mxu0
        %v3187 = vadd.f32 0.0, %v3186
        %v3188 = vpop.f32.mrb[0].mxu0
        %v3189 = vadd.f32 0.0, %v3188
        %v3190 = vpop.f32.mrb[0].mxu0
        %v3191 = vpop.f32.mrb[0].mxu0
        %3192 = vdwg.mxu0
        %v3193 = vadd.f32 %v3021, %v3064
        %v3194 = vadd.f32 %v3022, %v3066
        %v3195 = vadd.f32 %v3023, %v3105
        %v3196 = vadd.f32 %v3024, %v3107
        %v3197 = vadd.f32 %v3025, %v3146
        %v3198 = vadd.f32 %v3026, %v3148
        %v3199 = vadd.f32 %v3027, %v3187
        %v3200 = vadd.f32 %v3028, %v3189
        %v3201 = vxor.u32 %v3193, 2147483648
        %v3202 = vxor.u32 %v3194, 2147483648
        %v3203 = vmul.f32 %v3201, 1.442695
        %v3204 = vpow.pop %v3203
        %v3205 = vmul.f32 %v3202, 1.442695
        %v3206 = vpow.pop %v3205
        %v3207 = vadd.f32 %v3204, 1.0
        %v3208 = vadd.f32 %v3206, 1.0
        %v3209 = vrcp.pop %v3207
        %v3210 = vmul.f32 1.0, %v3209
        %v3211 = vrcp.pop %v3208
        %v3212 = vmul.f32 1.0, %v3211
        %v3213 = vxor.u32 %v3195, 2147483648
        %v3214 = vxor.u32 %v3196, 2147483648
        %v3215 = vmul.f32 %v3213, 1.442695
        %v3216 = vpow.pop %v3215
        %v3217 = vmul.f32 %v3214, 1.442695
        %v3218 = vpow.pop %v3217
        %v3219 = vadd.f32 %v3216, 1.0
        %v3220 = vadd.f32 %v3218, 1.0
        %v3221 = vrcp.pop %v3219
        %v3222 = vmul.f32 1.0, %v3221
        %v3223 = vrcp.pop %v3220
        %v3224 = vmul.f32 1.0, %v3223
        %v3225 = vtanh.pop %v3197
        %v3226 = vtanh.pop %v3198
        %v3227 = vxor.u32 %v3199, 2147483648
        %v3228 = vxor.u32 %v3200, 2147483648
        %v3229 = vmul.f32 %v3227, 1.442695
        %v3230 = vpow.pop %v3229
        %v3231 = vmul.f32 %v3228, 1.442695
        %v3232 = vpow.pop %v3231
        %v3233 = vadd.f32 %v3230, 1.0
        %v3234 = vadd.f32 %v3232, 1.0
        %v3235 = vrcp.pop %v3233
        %v3236 = vmul.f32 1.0, %v3235
        %v3237 = vrcp.pop %v3234
        %v3238 = vmul.f32 1.0, %v3237
        %v3239 = vmul.f32 %v3222, %v3004
        %v3240 = vmul.f32 %v3224, %v3005
        %v3241 = vmul.f32 %v3210, %v3225
        %v3242 = vmul.f32 %v3212, %v3226
        %v3243 = vadd.f32 %v3239, %v3241
        %v3244 = vadd.f32 %v3240, %v3242
        %v3245 = vtanh.pop %v3243
        %v3246 = vtanh.pop %v3244
        %v3247 = vmul.f32 %v3236, %v3245
        %v3248 = vmul.f32 %v3238, %v3246
        %v3249 = vpack.c.bf16 %v3247, %v3247
        %v3250 = vpack.c.bf16 %v3248, %v3248
        %v3253 = vunpack.c.l.b16 %v3249
        %v3254 = vunpack.c.l.b16 %v3250
        %v3255 = vpack.c.b16 %v3254, %v3253
        %s3257 = scalar_lea.vmem [#allocation3], 40
        %3258 = vst [vmem:[%s3257] sm:$0xff] %v3255
        %s3259 = scalar_lea.vmem [#allocation2], 384
        %v3260 = vld [vmem:[%s3259] sm:$0xff]
        %v3261 = vld [vmem:[%s3259 + $0x8] sm:$0xff]
        %v3262 = vld [vmem:[%s3259 + $0x10] sm:$0xff]
        %v3263 = vld [vmem:[%s3259 + $0x18] sm:$0xff]
        %v3264 = vld [vmem:[%s3259 + $0x20] sm:$0xff]
        %v3265 = vld [vmem:[%s3259 + $0x28] sm:$0xff]
        %v3266 = vld [vmem:[%s3259 + $0x30] sm:$0xff]
        %v3267 = vld [vmem:[%s3259 + $0x38] sm:$0xff]
        %3268 = vmatprep.subr.bf16.mxu0 %v1580
        %3269 = vmatpush1.bf16.msra.mxu0 %v1579
        %3270 = vmatprep.subr.bf16.mxu0 %v1588
        %3271 = vmatpush1.bf16.msra.mxu0 %v1587
        %3272 = vmatprep.subr.bf16.mxu0 %v1596
        %3273 = vmatpush1.bf16.msra.mxu0 %v1595
        %3274 = vmatprep.subr.bf16.mxu0 %v1604
        %3275 = vmatpush1.bf16.msra.mxu0 %v1603
        %3276 = vmatprep.subr.bf16.mxu0 %v1612
        %3277 = vmatpush1.bf16.msra.mxu0 %v1611
        %3278 = vmatprep.subr.bf16.mxu0 %v1620
        %3279 = vmatpush1.bf16.msra.mxu0 %v1619
        %3280 = vmatprep.subr.bf16.mxu0 %v1628
        %3281 = vmatpush1.bf16.msra.mxu0 %v1627
        %3282 = vmatprep.subr.bf16.mxu0 %v1636
        %3283 = vmatpush1.bf16.msra.mxu0 %v1635
        %3284 = vmatprep.subr.bf16.mxu0 %v1644
        %3285 = vmatpush1.bf16.msra.mxu0 %v1643
        %3286 = vmatprep.subr.bf16.mxu0 %v1652
        %3287 = vmatpush1.bf16.msra.mxu0 %v1651
        %3288 = vmatprep.subr.bf16.mxu0 %v1660
        %3289 = vmatpush1.bf16.msra.mxu0 %v1659
        %3290 = vmatprep.subr.bf16.mxu0 %v1668
        %3291 = vmatpush1.bf16.msra.mxu0 %v1667
        %3292 = vmatprep.subr.bf16.mxu0 %v1676
        %3293 = vmatpush1.bf16.msra.mxu0 %v1675
        %3294 = vmatprep.subr.bf16.mxu0 %v1684
        %3295 = vmatpush1.bf16.msra.mxu0 %v1683
        %3296 = vmatprep.subr.bf16.mxu0 %v1692
        %3297 = vmatpush1.bf16.msra.mxu0 %v1691
        %3298 = vmatprep.subr.bf16.mxu0 %v1700
        %3299 = vmatpush1.bf16.msra.mxu0 %v1699
        %3300 = vmatprep.mubr.bf16.mxu0 %v3250
        %3301 = vmatmul.mubr.bf16.gmra.mrb[0].mxu0 %v3249
        %v3302 = vpop.f32.mrb[0].mxu0
        %v3303 = vadd.f32 0.0, %v3302
        %v3304 = vpop.f32.mrb[0].mxu0
        %v3305 = vadd.f32 0.0, %v3304
        %v3306 = vpop.f32.mrb[0].mxu0
        %v3307 = vpop.f32.mrb[0].mxu0
        %3308 = vdwg.mxu0
        %3309 = vmatprep.subr.bf16.mxu0 %v1582
        %3310 = vmatpush1.bf16.msra.mxu0 %v1581
        %3311 = vmatprep.subr.bf16.mxu0 %v1590
        %3312 = vmatpush1.bf16.msra.mxu0 %v1589
        %3313 = vmatprep.subr.bf16.mxu0 %v1598
        %3314 = vmatpush1.bf16.msra.mxu0 %v1597
        %3315 = vmatprep.subr.bf16.mxu0 %v1606
        %3316 = vmatpush1.bf16.msra.mxu0 %v1605
        %3317 = vmatprep.subr.bf16.mxu0 %v1614
        %3318 = vmatpush1.bf16.msra.mxu0 %v1613
        %3319 = vmatprep.subr.bf16.mxu0 %v1622
        %3320 = vmatpush1.bf16.msra.mxu0 %v1621
        %3321 = vmatprep.subr.bf16.mxu0 %v1630
        %3322 = vmatpush1.bf16.msra.mxu0 %v1629
        %3323 = vmatprep.subr.bf16.mxu0 %v1638
        %3324 = vmatpush1.bf16.msra.mxu0 %v1637
        %3325 = vmatprep.subr.bf16.mxu0 %v1646
        %3326 = vmatpush1.bf16.msra.mxu0 %v1645
        %3327 = vmatprep.subr.bf16.mxu0 %v1654
        %3328 = vmatpush1.bf16.msra.mxu0 %v1653
        %3329 = vmatprep.subr.bf16.mxu0 %v1662
        %3330 = vmatpush1.bf16.msra.mxu0 %v1661
        %3331 = vmatprep.subr.bf16.mxu0 %v1670
        %3332 = vmatpush1.bf16.msra.mxu0 %v1669
        %3333 = vmatprep.subr.bf16.mxu0 %v1678
        %3334 = vmatpush1.bf16.msra.mxu0 %v1677
        %3335 = vmatprep.subr.bf16.mxu0 %v1686
        %3336 = vmatpush1.bf16.msra.mxu0 %v1685
        %3337 = vmatprep.subr.bf16.mxu0 %v1694
        %3338 = vmatpush1.bf16.msra.mxu0 %v1693
        %3339 = vmatprep.subr.bf16.mxu0 %v1702
        %3340 = vmatpush1.bf16.msra.mxu0 %v1701
        %3341 = vmatprep.mubr.bf16.mxu0 %v3250
        %3342 = vmatmul.mubr.bf16.gmra.mrb[0].mxu0 %v3249
        %v3343 = vpop.f32.mrb[0].mxu0
        %v3344 = vadd.f32 0.0, %v3343
        %v3345 = vpop.f32.mrb[0].mxu0
        %v3346 = vadd.f32 0.0, %v3345
        %v3347 = vpop.f32.mrb[0].mxu0
        %v3348 = vpop.f32.mrb[0].mxu0
        %3349 = vdwg.mxu0
        %3350 = vmatprep.subr.bf16.mxu0 %v1584
        %3351 = vmatpush1.bf16.msra.mxu0 %v1583
        %3352 = vmatprep.subr.bf16.mxu0 %v1592
        %3353 = vmatpush1.bf16.msra.mxu0 %v1591
        %3354 = vmatprep.subr.bf16.mxu0 %v1600
        %3355 = vmatpush1.bf16.msra.mxu0 %v1599
        %3356 = vmatprep.subr.bf16.mxu0 %v1608
        %3357 = vmatpush1.bf16.msra.mxu0 %v1607
        %3358 = vmatprep.subr.bf16.mxu0 %v1616
        %3359 = vmatpush1.bf16.msra.mxu0 %v1615
        %3360 = vmatprep.subr.bf16.mxu0 %v1624
        %3361 = vmatpush1.bf16.msra.mxu0 %v1623
        %3362 = vmatprep.subr.bf16.mxu0 %v1632
        %3363 = vmatpush1.bf16.msra.mxu0 %v1631
        %3364 = vmatprep.subr.bf16.mxu0 %v1640
        %3365 = vmatpush1.bf16.msra.mxu0 %v1639
        %3366 = vmatprep.subr.bf16.mxu0 %v1648
        %3367 = vmatpush1.bf16.msra.mxu0 %v1647
        %3368 = vmatprep.subr.bf16.mxu0 %v1656
        %3369 = vmatpush1.bf16.msra.mxu0 %v1655
        %3370 = vmatprep.subr.bf16.mxu0 %v1664
        %3371 = vmatpush1.bf16.msra.mxu0 %v1663
        %3372 = vmatprep.subr.bf16.mxu0 %v1672
        %3373 = vmatpush1.bf16.msra.mxu0 %v1671
        %3374 = vmatprep.subr.bf16.mxu0 %v1680
        %3375 = vmatpush1.bf16.msra.mxu0 %v1679
        %3376 = vmatprep.subr.bf16.mxu0 %v1688
        %3377 = vmatpush1.bf16.msra.mxu0 %v1687
        %3378 = vmatprep.subr.bf16.mxu0 %v1696
        %3379 = vmatpush1.bf16.msra.mxu0 %v1695
        %3380 = vmatprep.subr.bf16.mxu0 %v1704
        %3381 = vmatpush1.bf16.msra.mxu0 %v1703
        %3382 = vmatprep.mubr.bf16.mxu0 %v3250
        %3383 = vmatmul.mubr.bf16.gmra.mrb[0].mxu0 %v3249
        %v3384 = vpop.f32.mrb[0].mxu0
        %v3385 = vadd.f32 0.0, %v3384
        %v3386 = vpop.f32.mrb[0].mxu0
        %v3387 = vadd.f32 0.0, %v3386
        %v3388 = vpop.f32.mrb[0].mxu0
        %v3389 = vpop.f32.mrb[0].mxu0
        %3390 = vdwg.mxu0
        %3391 = vmatprep.subr.bf16.mxu0 %v1586
        %3392 = vmatpush1.bf16.msra.mxu0 %v1585
        %3393 = vmatprep.subr.bf16.mxu0 %v1594
        %3394 = vmatpush1.bf16.msra.mxu0 %v1593
        %3395 = vmatprep.subr.bf16.mxu0 %v1602
        %3396 = vmatpush1.bf16.msra.mxu0 %v1601
        %3397 = vmatprep.subr.bf16.mxu0 %v1610
        %3398 = vmatpush1.bf16.msra.mxu0 %v1609
        %3399 = vmatprep.subr.bf16.mxu0 %v1618
        %3400 = vmatpush1.bf16.msra.mxu0 %v1617
        %3401 = vmatprep.subr.bf16.mxu0 %v1626
        %3402 = vmatpush1.bf16.msra.mxu0 %v1625
        %3403 = vmatprep.subr.bf16.mxu0 %v1634
        %3404 = vmatpush1.bf16.msra.mxu0 %v1633
        %3405 = vmatprep.subr.bf16.mxu0 %v1642
        %3406 = vmatpush1.bf16.msra.mxu0 %v1641
        %3407 = vmatprep.subr.bf16.mxu0 %v1650
        %3408 = vmatpush1.bf16.msra.mxu0 %v1649
        %3409 = vmatprep.subr.bf16.mxu0 %v1658
        %3410 = vmatpush1.bf16.msra.mxu0 %v1657
        %3411 = vmatprep.subr.bf16.mxu0 %v1666
        %3412 = vmatpush1.bf16.msra.mxu0 %v1665
        %3413 = vmatprep.subr.bf16.mxu0 %v1674
        %3414 = vmatpush1.bf16.msra.mxu0 %v1673
        %3415 = vmatprep.subr.bf16.mxu0 %v1682
        %3416 = vmatpush1.bf16.msra.mxu0 %v1681
        %3417 = vmatprep.subr.bf16.mxu0 %v1690
        %3418 = vmatpush1.bf16.msra.mxu0 %v1689
        %3419 = vmatprep.subr.bf16.mxu0 %v1698
        %3420 = vmatpush1.bf16.msra.mxu0 %v1697
        %3421 = vmatprep.subr.bf16.mxu0 %v1706
        %3422 = vmatpush1.bf16.msra.mxu0 %v1705
        %3423 = vmatprep.mubr.bf16.mxu0 %v3250
        %3424 = vmatmul.mubr.bf16.gmra.mrb[0].mxu0 %v3249
        %v3425 = vpop.f32.mrb[0].mxu0
        %v3426 = vadd.f32 0.0, %v3425
        %v3427 = vpop.f32.mrb[0].mxu0
        %v3428 = vadd.f32 0.0, %v3427
        %v3429 = vpop.f32.mrb[0].mxu0
        %v3430 = vpop.f32.mrb[0].mxu0
        %3431 = vdwg.mxu0
        %v3432 = vadd.f32 %v3260, %v3303
        %v3433 = vadd.f32 %v3261, %v3305
        %v3434 = vadd.f32 %v3262, %v3344
        %v3435 = vadd.f32 %v3263, %v3346
        %v3436 = vadd.f32 %v3264, %v3385
        %v3437 = vadd.f32 %v3265, %v3387
        %v3438 = vadd.f32 %v3266, %v3426
        %v3439 = vadd.f32 %v3267, %v3428
        %v3440 = vxor.u32 %v3432, 2147483648
        %v3441 = vxor.u32 %v3433, 2147483648
        %v3442 = vmul.f32 %v3440, 1.442695
        %v3443 = vpow.pop %v3442
        %v3444 = vmul.f32 %v3441, 1.442695
        %v3445 = vpow.pop %v3444
        %v3446 = vadd.f32 %v3443, 1.0
        %v3447 = vadd.f32 %v3445, 1.0
        %v3448 = vrcp.pop %v3446
        %v3449 = vmul.f32 1.0, %v3448
        %v3450 = vrcp.pop %v3447
        %v3451 = vmul.f32 1.0, %v3450
        %v3452 = vxor.u32 %v3434, 2147483648
        %v3453 = vxor.u32 %v3435, 2147483648
        %v3454 = vmul.f32 %v3452, 1.442695
        %v3455 = vpow.pop %v3454
        %v3456 = vmul.f32 %v3453, 1.442695
        %v3457 = vpow.pop %v3456
        %v3458 = vadd.f32 %v3455, 1.0
        %v3459 = vadd.f32 %v3457, 1.0
        %v3460 = vrcp.pop %v3458
        %v3461 = vmul.f32 1.0, %v3460
        %v3462 = vrcp.pop %v3459
        %v3463 = vmul.f32 1.0, %v3462
        %v3464 = vtanh.pop %v3436
        %v3465 = vtanh.pop %v3437
        %v3466 = vxor.u32 %v3438, 2147483648
        %v3467 = vxor.u32 %v3439, 2147483648
        %v3468 = vmul.f32 %v3466, 1.442695
        %v3469 = vpow.pop %v3468
        %v3470 = vmul.f32 %v3467, 1.442695
        %v3471 = vpow.pop %v3470
        %v3472 = vadd.f32 %v3469, 1.0
        %v3473 = vadd.f32 %v3471, 1.0
        %v3474 = vrcp.pop %v3472
        %v3475 = vmul.f32 1.0, %v3474
        %v3476 = vrcp.pop %v3473
        %v3477 = vmul.f32 1.0, %v3476
        %v3478 = vmul.f32 %v3461, %v3243
        %v3479 = vmul.f32 %v3463, %v3244
        %v3480 = vmul.f32 %v3449, %v3464
        %v3481 = vmul.f32 %v3451, %v3465
        %v3482 = vadd.f32 %v3478, %v3480
        %v3483 = vadd.f32 %v3479, %v3481
        %v3484 = vtanh.pop %v3482
        %v3485 = vtanh.pop %v3483
        %v3486 = vmul.f32 %v3475, %v3484
        %v3487 = vmul.f32 %v3477, %v3485
        %v3488 = vpack.c.bf16 %v3486, %v3486
        %v3489 = vpack.c.bf16 %v3487, %v3487
        %v3492 = vunpack.c.l.b16 %v3488
        %v3493 = vunpack.c.l.b16 %v3489
        %v3494 = vpack.c.b16 %v3493, %v3492
        %s3496 = scalar_lea.vmem [#allocation3], 48
        %3497 = vst [vmem:[%s3496] sm:$0xff] %v3494
        %s3498 = scalar_lea.vmem [#allocation2], 448
        %v3499 = vld [vmem:[%s3498] sm:$0xff]
        %v3500 = vld [vmem:[%s3498 + $0x8] sm:$0xff]
        %v3501 = vld [vmem:[%s3498 + $0x10] sm:$0xff]
        %v3502 = vld [vmem:[%s3498 + $0x18] sm:$0xff]
        %v3503 = vld [vmem:[%s3498 + $0x20] sm:$0xff]
        %v3504 = vld [vmem:[%s3498 + $0x28] sm:$0xff]
        %v3505 = vld [vmem:[%s3498 + $0x30] sm:$0xff]
        %v3506 = vld [vmem:[%s3498 + $0x38] sm:$0xff]
        %3507 = vmatprep.subr.bf16.mxu0 %v1580
        %3508 = vmatpush1.bf16.msra.mxu0 %v1579
        %3509 = vmatprep.subr.bf16.mxu0 %v1588
        %3510 = vmatpush1.bf16.msra.mxu0 %v1587
        %3511 = vmatprep.subr.bf16.mxu0 %v1596
        %3512 = vmatpush1.bf16.msra.mxu0 %v1595
        %3513 = vmatprep.subr.bf16.mxu0 %v1604
        %3514 = vmatpush1.bf16.msra.mxu0 %v1603
        %3515 = vmatprep.subr.bf16.mxu0 %v1612
        %3516 = vmatpush1.bf16.msra.mxu0 %v1611
        %3517 = vmatprep.subr.bf16.mxu0 %v1620
        %3518 = vmatpush1.bf16.msra.mxu0 %v1619
        %3519 = vmatprep.subr.bf16.mxu0 %v1628
        %3520 = vmatpush1.bf16.msra.mxu0 %v1627
        %3521 = vmatprep.subr.bf16.mxu0 %v1636
        %3522 = vmatpush1.bf16.msra.mxu0 %v1635
        %3523 = vmatprep.subr.bf16.mxu0 %v1644
        %3524 = vmatpush1.bf16.msra.mxu0 %v1643
        %3525 = vmatprep.subr.bf16.mxu0 %v1652
        %3526 = vmatpush1.bf16.msra.mxu0 %v1651
        %3527 = vmatprep.subr.bf16.mxu0 %v1660
        %3528 = vmatpush1.bf16.msra.mxu0 %v1659
        %3529 = vmatprep.subr.bf16.mxu0 %v1668
        %3530 = vmatpush1.bf16.msra.mxu0 %v1667
        %3531 = vmatprep.subr.bf16.mxu0 %v1676
        %3532 = vmatpush1.bf16.msra.mxu0 %v1675
        %3533 = vmatprep.subr.bf16.mxu0 %v1684
        %3534 = vmatpush1.bf16.msra.mxu0 %v1683
        %3535 = vmatprep.subr.bf16.mxu0 %v1692
        %3536 = vmatpush1.bf16.msra.mxu0 %v1691
        %3537 = vmatprep.subr.bf16.mxu0 %v1700
        %3538 = vmatpush1.bf16.msra.mxu0 %v1699
        %3539 = vmatprep.mubr.bf16.mxu0 %v3489
        %3540 = vmatmul.mubr.bf16.gmra.mrb[0].mxu0 %v3488
        %v3541 = vpop.f32.mrb[0].mxu0
        %v3542 = vadd.f32 0.0, %v3541
        %v3543 = vpop.f32.mrb[0].mxu0
        %v3544 = vadd.f32 0.0, %v3543
        %v3545 = vpop.f32.mrb[0].mxu0
        %v3546 = vpop.f32.mrb[0].mxu0
        %3547 = vdwg.mxu0
        %3548 = vmatprep.subr.bf16.mxu0 %v1582
        %3549 = vmatpush1.bf16.msra.mxu0 %v1581
        %3550 = vmatprep.subr.bf16.mxu0 %v1590
        %3551 = vmatpush1.bf16.msra.mxu0 %v1589
        %3552 = vmatprep.subr.bf16.mxu0 %v1598
        %3553 = vmatpush1.bf16.msra.mxu0 %v1597
        %3554 = vmatprep.subr.bf16.mxu0 %v1606
        %3555 = vmatpush1.bf16.msra.mxu0 %v1605
        %3556 = vmatprep.subr.bf16.mxu0 %v1614
        %3557 = vmatpush1.bf16.msra.mxu0 %v1613
        %3558 = vmatprep.subr.bf16.mxu0 %v1622
        %3559 = vmatpush1.bf16.msra.mxu0 %v1621
        %3560 = vmatprep.subr.bf16.mxu0 %v1630
        %3561 = vmatpush1.bf16.msra.mxu0 %v1629
        %3562 = vmatprep.subr.bf16.mxu0 %v1638
        %3563 = vmatpush1.bf16.msra.mxu0 %v1637
        %3564 = vmatprep.subr.bf16.mxu0 %v1646
        %3565 = vmatpush1.bf16.msra.mxu0 %v1645
        %3566 = vmatprep.subr.bf16.mxu0 %v1654
        %3567 = vmatpush1.bf16.msra.mxu0 %v1653
        %3568 = vmatprep.subr.bf16.mxu0 %v1662
        %3569 = vmatpush1.bf16.msra.mxu0 %v1661
        %3570 = vmatprep.subr.bf16.mxu0 %v1670
        %3571 = vmatpush1.bf16.msra.mxu0 %v1669
        %3572 = vmatprep.subr.bf16.mxu0 %v1678
        %3573 = vmatpush1.bf16.msra.mxu0 %v1677
        %3574 = vmatprep.subr.bf16.mxu0 %v1686
        %3575 = vmatpush1.bf16.msra.mxu0 %v1685
        %3576 = vmatprep.subr.bf16.mxu0 %v1694
        %3577 = vmatpush1.bf16.msra.mxu0 %v1693
        %3578 = vmatprep.subr.bf16.mxu0 %v1702
        %3579 = vmatpush1.bf16.msra.mxu0 %v1701
        %3580 = vmatprep.mubr.bf16.mxu0 %v3489
        %3581 = vmatmul.mubr.bf16.gmra.mrb[0].mxu0 %v3488
        %v3582 = vpop.f32.mrb[0].mxu0
        %v3583 = vadd.f32 0.0, %v3582
        %v3584 = vpop.f32.mrb[0].mxu0
        %v3585 = vadd.f32 0.0, %v3584
        %v3586 = vpop.f32.mrb[0].mxu0
        %v3587 = vpop.f32.mrb[0].mxu0
        %3588 = vdwg.mxu0
        %3589 = vmatprep.subr.bf16.mxu0 %v1584
        %3590 = vmatpush1.bf16.msra.mxu0 %v1583
        %3591 = vmatprep.subr.bf16.mxu0 %v1592
        %3592 = vmatpush1.bf16.msra.mxu0 %v1591
        %3593 = vmatprep.subr.bf16.mxu0 %v1600
        %3594 = vmatpush1.bf16.msra.mxu0 %v1599
        %3595 = vmatprep.subr.bf16.mxu0 %v1608
        %3596 = vmatpush1.bf16.msra.mxu0 %v1607
        %3597 = vmatprep.subr.bf16.mxu0 %v1616
        %3598 = vmatpush1.bf16.msra.mxu0 %v1615
        %3599 = vmatprep.subr.bf16.mxu0 %v1624
        %3600 = vmatpush1.bf16.msra.mxu0 %v1623
        %3601 = vmatprep.subr.bf16.mxu0 %v1632
        %3602 = vmatpush1.bf16.msra.mxu0 %v1631
        %3603 = vmatprep.subr.bf16.mxu0 %v1640
        %3604 = vmatpush1.bf16.msra.mxu0 %v1639
        %3605 = vmatprep.subr.bf16.mxu0 %v1648
        %3606 = vmatpush1.bf16.msra.mxu0 %v1647
        %3607 = vmatprep.subr.bf16.mxu0 %v1656
        %3608 = vmatpush1.bf16.msra.mxu0 %v1655
        %3609 = vmatprep.subr.bf16.mxu0 %v1664
        %3610 = vmatpush1.bf16.msra.mxu0 %v1663
        %3611 = vmatprep.subr.bf16.mxu0 %v1672
        %3612 = vmatpush1.bf16.msra.mxu0 %v1671
        %3613 = vmatprep.subr.bf16.mxu0 %v1680
        %3614 = vmatpush1.bf16.msra.mxu0 %v1679
        %3615 = vmatprep.subr.bf16.mxu0 %v1688
        %3616 = vmatpush1.bf16.msra.mxu0 %v1687
        %3617 = vmatprep.subr.bf16.mxu0 %v1696
        %3618 = vmatpush1.bf16.msra.mxu0 %v1695
        %3619 = vmatprep.subr.bf16.mxu0 %v1704
        %3620 = vmatpush1.bf16.msra.mxu0 %v1703
        %3621 = vmatprep.mubr.bf16.mxu0 %v3489
        %3622 = vmatmul.mubr.bf16.gmra.mrb[0].mxu0 %v3488
        %v3623 = vpop.f32.mrb[0].mxu0
        %v3624 = vadd.f32 0.0, %v3623
        %v3625 = vpop.f32.mrb[0].mxu0
        %v3626 = vadd.f32 0.0, %v3625
        %v3627 = vpop.f32.mrb[0].mxu0
        %v3628 = vpop.f32.mrb[0].mxu0
        %3629 = vdwg.mxu0
        %3630 = vmatprep.subr.bf16.mxu0 %v1586
        %3631 = vmatpush1.bf16.msra.mxu0 %v1585
        %3632 = vmatprep.subr.bf16.mxu0 %v1594
        %3633 = vmatpush1.bf16.msra.mxu0 %v1593
        %3634 = vmatprep.subr.bf16.mxu0 %v1602
        %3635 = vmatpush1.bf16.msra.mxu0 %v1601
        %3636 = vmatprep.subr.bf16.mxu0 %v1610
        %3637 = vmatpush1.bf16.msra.mxu0 %v1609
        %3638 = vmatprep.subr.bf16.mxu0 %v1618
        %3639 = vmatpush1.bf16.msra.mxu0 %v1617
        %3640 = vmatprep.subr.bf16.mxu0 %v1626
        %3641 = vmatpush1.bf16.msra.mxu0 %v1625
        %3642 = vmatprep.subr.bf16.mxu0 %v1634
        %3643 = vmatpush1.bf16.msra.mxu0 %v1633
        %3644 = vmatprep.subr.bf16.mxu0 %v1642
        %3645 = vmatpush1.bf16.msra.mxu0 %v1641
        %3646 = vmatprep.subr.bf16.mxu0 %v1650
        %3647 = vmatpush1.bf16.msra.mxu0 %v1649
        %3648 = vmatprep.subr.bf16.mxu0 %v1658
        %3649 = vmatpush1.bf16.msra.mxu0 %v1657
        %3650 = vmatprep.subr.bf16.mxu0 %v1666
        %3651 = vmatpush1.bf16.msra.mxu0 %v1665
        %3652 = vmatprep.subr.bf16.mxu0 %v1674
        %3653 = vmatpush1.bf16.msra.mxu0 %v1673
        %3654 = vmatprep.subr.bf16.mxu0 %v1682
        %3655 = vmatpush1.bf16.msra.mxu0 %v1681
        %3656 = vmatprep.subr.bf16.mxu0 %v1690
        %3657 = vmatpush1.bf16.msra.mxu0 %v1689
        %3658 = vmatprep.subr.bf16.mxu0 %v1698
        %3659 = vmatpush1.bf16.msra.mxu0 %v1697
        %3660 = vmatprep.subr.bf16.mxu0 %v1706
        %3661 = vmatpush1.bf16.msra.mxu0 %v1705
        %3662 = vmatprep.mubr.bf16.mxu0 %v3489
        %3663 = vmatmul.mubr.bf16.gmra.mrb[0].mxu0 %v3488
        %v3664 = vpop.f32.mrb[0].mxu0
        %v3665 = vadd.f32 0.0, %v3664
        %v3666 = vpop.f32.mrb[0].mxu0
        %v3667 = vadd.f32 0.0, %v3666
        %v3668 = vpop.f32.mrb[0].mxu0
        %v3669 = vpop.f32.mrb[0].mxu0
        %3670 = vdwg.mxu0
        %v3671 = vadd.f32 %v3499, %v3542
        %v3672 = vadd.f32 %v3500, %v3544
        %v3673 = vadd.f32 %v3501, %v3583
        %v3674 = vadd.f32 %v3502, %v3585
        %v3675 = vadd.f32 %v3503, %v3624
        %v3676 = vadd.f32 %v3504, %v3626
        %v3677 = vadd.f32 %v3505, %v3665
        %v3678 = vadd.f32 %v3506, %v3667
        %v3679 = vxor.u32 %v3671, 2147483648
        %v3680 = vxor.u32 %v3672, 2147483648
        %v3681 = vmul.f32 %v3679, 1.442695
        %v3682 = vpow.pop %v3681
        %v3683 = vmul.f32 %v3680, 1.442695
        %v3684 = vpow.pop %v3683
        %v3685 = vadd.f32 %v3682, 1.0
        %v3686 = vadd.f32 %v3684, 1.0
        %v3687 = vrcp.pop %v3685
        %v3688 = vmul.f32 1.0, %v3687
        %v3689 = vrcp.pop %v3686
        %v3690 = vmul.f32 1.0, %v3689
        %v3691 = vxor.u32 %v3673, 2147483648
        %v3692 = vxor.u32 %v3674, 2147483648
        %v3693 = vmul.f32 %v3691, 1.442695
        %v3694 = vpow.pop %v3693
        %v3695 = vmul.f32 %v3692, 1.442695
        %v3696 = vpow.pop %v3695
        %v3697 = vadd.f32 %v3694, 1.0
        %v3698 = vadd.f32 %v3696, 1.0
        %v3699 = vrcp.pop %v3697
        %v3700 = vmul.f32 1.0, %v3699
        %v3701 = vrcp.pop %v3698
        %v3702 = vmul.f32 1.0, %v3701
        %v3703 = vtanh.pop %v3675
        %v3704 = vtanh.pop %v3676
        %v3705 = vxor.u32 %v3677, 2147483648
        %v3706 = vxor.u32 %v3678, 2147483648
        %v3707 = vmul.f32 %v3705, 1.442695
        %v3708 = vpow.pop %v3707
        %v3709 = vmul.f32 %v3706, 1.442695
        %v3710 = vpow.pop %v3709
        %v3711 = vadd.f32 %v3708, 1.0
        %v3712 = vadd.f32 %v3710, 1.0
        %v3713 = vrcp.pop %v3711
        %v3714 = vmul.f32 1.0, %v3713
        %v3715 = vrcp.pop %v3712
        %v3716 = vmul.f32 1.0, %v3715
        %v3717 = vmul.f32 %v3700, %v3482
        %v3718 = vmul.f32 %v3702, %v3483
        %v3719 = vmul.f32 %v3688, %v3703
        %v3720 = vmul.f32 %v3690, %v3704
        %v3721 = vadd.f32 %v3717, %v3719
        %v3722 = vadd.f32 %v3718, %v3720
        %v3723 = vtanh.pop %v3721
        %v3724 = vtanh.pop %v3722
        %v3725 = vmul.f32 %v3714, %v3723
        %v3726 = vmul.f32 %v3716, %v3724
        %v3727 = vpack.c.bf16 %v3725, %v3725
        %v3728 = vpack.c.bf16 %v3726, %v3726
        %v3731 = vunpack.c.l.b16 %v3727
        %v3732 = vunpack.c.l.b16 %v3728
        %v3733 = vpack.c.b16 %v3732, %v3731
        %s3735 = scalar_lea.vmem [#allocation3], 56
        %3736 = vst [vmem:[%s3735] sm:$0xff] %v3733
        %s3737 = scalar_lea.vmem [#allocation2], 512
        %v3738 = vld [vmem:[%s3737] sm:$0xff]
        %v3739 = vld [vmem:[%s3737 + $0x8] sm:$0xff]
        %v3740 = vld [vmem:[%s3737 + $0x10] sm:$0xff]
        %v3741 = vld [vmem:[%s3737 + $0x18] sm:$0xff]
        %v3742 = vld [vmem:[%s3737 + $0x20] sm:$0xff]
        %v3743 = vld [vmem:[%s3737 + $0x28] sm:$0xff]
        %v3744 = vld [vmem:[%s3737 + $0x30] sm:$0xff]
        %v3745 = vld [vmem:[%s3737 + $0x38] sm:$0xff]
        %3746 = vmatprep.subr.bf16.mxu0 %v1580
        %3747 = vmatpush1.bf16.msra.mxu0 %v1579
        %3748 = vmatprep.subr.bf16.mxu0 %v1588
        %3749 = vmatpush1.bf16.msra.mxu0 %v1587
        %3750 = vmatprep.subr.bf16.mxu0 %v1596
        %3751 = vmatpush1.bf16.msra.mxu0 %v1595
        %3752 = vmatprep.subr.bf16.mxu0 %v1604
        %3753 = vmatpush1.bf16.msra.mxu0 %v1603
        %3754 = vmatprep.subr.bf16.mxu0 %v1612
        %3755 = vmatpush1.bf16.msra.mxu0 %v1611
        %3756 = vmatprep.subr.bf16.mxu0 %v1620
        %3757 = vmatpush1.bf16.msra.mxu0 %v1619
        %3758 = vmatprep.subr.bf16.mxu0 %v1628
        %3759 = vmatpush1.bf16.msra.mxu0 %v1627
        %3760 = vmatprep.subr.bf16.mxu0 %v1636
        %3761 = vmatpush1.bf16.msra.mxu0 %v1635
        %3762 = vmatprep.subr.bf16.mxu0 %v1644
        %3763 = vmatpush1.bf16.msra.mxu0 %v1643
        %3764 = vmatprep.subr.bf16.mxu0 %v1652
        %3765 = vmatpush1.bf16.msra.mxu0 %v1651
        %3766 = vmatprep.subr.bf16.mxu0 %v1660
        %3767 = vmatpush1.bf16.msra.mxu0 %v1659
        %3768 = vmatprep.subr.bf16.mxu0 %v1668
        %3769 = vmatpush1.bf16.msra.mxu0 %v1667
        %3770 = vmatprep.subr.bf16.mxu0 %v1676
        %3771 = vmatpush1.bf16.msra.mxu0 %v1675
        %3772 = vmatprep.subr.bf16.mxu0 %v1684
        %3773 = vmatpush1.bf16.msra.mxu0 %v1683
        %3774 = vmatprep.subr.bf16.mxu0 %v1692
        %3775 = vmatpush1.bf16.msra.mxu0 %v1691
        %3776 = vmatprep.subr.bf16.mxu0 %v1700
        %3777 = vmatpush1.bf16.msra.mxu0 %v1699
        %3778 = vmatprep.mubr.bf16.mxu0 %v3728
        %3779 = vmatmul.mubr.bf16.gmra.mrb[0].mxu0 %v3727
        %v3780 = vpop.f32.mrb[0].mxu0
        %v3781 = vadd.f32 0.0, %v3780
        %v3782 = vpop.f32.mrb[0].mxu0
        %v3783 = vadd.f32 0.0, %v3782
        %v3784 = vpop.f32.mrb[0].mxu0
        %v3785 = vpop.f32.mrb[0].mxu0
        %3786 = vdwg.mxu0
        %3787 = vmatprep.subr.bf16.mxu0 %v1582
        %3788 = vmatpush1.bf16.msra.mxu0 %v1581
        %3789 = vmatprep.subr.bf16.mxu0 %v1590
        %3790 = vmatpush1.bf16.msra.mxu0 %v1589
        %3791 = vmatprep.subr.bf16.mxu0 %v1598
        %3792 = vmatpush1.bf16.msra.mxu0 %v1597
        %3793 = vmatprep.subr.bf16.mxu0 %v1606
        %3794 = vmatpush1.bf16.msra.mxu0 %v1605
        %3795 = vmatprep.subr.bf16.mxu0 %v1614
        %3796 = vmatpush1.bf16.msra.mxu0 %v1613
        %3797 = vmatprep.subr.bf16.mxu0 %v1622
        %3798 = vmatpush1.bf16.msra.mxu0 %v1621
        %3799 = vmatprep.subr.bf16.mxu0 %v1630
        %3800 = vmatpush1.bf16.msra.mxu0 %v1629
        %3801 = vmatprep.subr.bf16.mxu0 %v1638
        %3802 = vmatpush1.bf16.msra.mxu0 %v1637
        %3803 = vmatprep.subr.bf16.mxu0 %v1646
        %3804 = vmatpush1.bf16.msra.mxu0 %v1645
        %3805 = vmatprep.subr.bf16.mxu0 %v1654
        %3806 = vmatpush1.bf16.msra.mxu0 %v1653
        %3807 = vmatprep.subr.bf16.mxu0 %v1662
        %3808 = vmatpush1.bf16.msra.mxu0 %v1661
        %3809 = vmatprep.subr.bf16.mxu0 %v1670
        %3810 = vmatpush1.bf16.msra.mxu0 %v1669
        %3811 = vmatprep.subr.bf16.mxu0 %v1678
        %3812 = vmatpush1.bf16.msra.mxu0 %v1677
        %3813 = vmatprep.subr.bf16.mxu0 %v1686
        %3814 = vmatpush1.bf16.msra.mxu0 %v1685
        %3815 = vmatprep.subr.bf16.mxu0 %v1694
        %3816 = vmatpush1.bf16.msra.mxu0 %v1693
        %3817 = vmatprep.subr.bf16.mxu0 %v1702
        %3818 = vmatpush1.bf16.msra.mxu0 %v1701
        %3819 = vmatprep.mubr.bf16.mxu0 %v3728
        %3820 = vmatmul.mubr.bf16.gmra.mrb[0].mxu0 %v3727
        %v3821 = vpop.f32.mrb[0].mxu0
        %v3822 = vadd.f32 0.0, %v3821
        %v3823 = vpop.f32.mrb[0].mxu0
        %v3824 = vadd.f32 0.0, %v3823
        %v3825 = vpop.f32.mrb[0].mxu0
        %v3826 = vpop.f32.mrb[0].mxu0
        %3827 = vdwg.mxu0
        %3828 = vmatprep.subr.bf16.mxu0 %v1584
        %3829 = vmatpush1.bf16.msra.mxu0 %v1583
        %3830 = vmatprep.subr.bf16.mxu0 %v1592
        %3831 = vmatpush1.bf16.msra.mxu0 %v1591
        %3832 = vmatprep.subr.bf16.mxu0 %v1600
        %3833 = vmatpush1.bf16.msra.mxu0 %v1599
        %3834 = vmatprep.subr.bf16.mxu0 %v1608
        %3835 = vmatpush1.bf16.msra.mxu0 %v1607
        %3836 = vmatprep.subr.bf16.mxu0 %v1616
        %3837 = vmatpush1.bf16.msra.mxu0 %v1615
        %3838 = vmatprep.subr.bf16.mxu0 %v1624
        %3839 = vmatpush1.bf16.msra.mxu0 %v1623
        %3840 = vmatprep.subr.bf16.mxu0 %v1632
        %3841 = vmatpush1.bf16.msra.mxu0 %v1631
        %3842 = vmatprep.subr.bf16.mxu0 %v1640
        %3843 = vmatpush1.bf16.msra.mxu0 %v1639
        %3844 = vmatprep.subr.bf16.mxu0 %v1648
        %3845 = vmatpush1.bf16.msra.mxu0 %v1647
        %3846 = vmatprep.subr.bf16.mxu0 %v1656
        %3847 = vmatpush1.bf16.msra.mxu0 %v1655
        %3848 = vmatprep.subr.bf16.mxu0 %v1664
        %3849 = vmatpush1.bf16.msra.mxu0 %v1663
        %3850 = vmatprep.subr.bf16.mxu0 %v1672
        %3851 = vmatpush1.bf16.msra.mxu0 %v1671
        %3852 = vmatprep.subr.bf16.mxu0 %v1680
        %3853 = vmatpush1.bf16.msra.mxu0 %v1679
        %3854 = vmatprep.subr.bf16.mxu0 %v1688
        %3855 = vmatpush1.bf16.msra.mxu0 %v1687
        %3856 = vmatprep.subr.bf16.mxu0 %v1696
        %3857 = vmatpush1.bf16.msra.mxu0 %v1695
        %3858 = vmatprep.subr.bf16.mxu0 %v1704
        %3859 = vmatpush1.bf16.msra.mxu0 %v1703
        %3860 = vmatprep.mubr.bf16.mxu0 %v3728
        %3861 = vmatmul.mubr.bf16.gmra.mrb[0].mxu0 %v3727
        %v3862 = vpop.f32.mrb[0].mxu0
        %v3863 = vadd.f32 0.0, %v3862
        %v3864 = vpop.f32.mrb[0].mxu0
        %v3865 = vadd.f32 0.0, %v3864
        %v3866 = vpop.f32.mrb[0].mxu0
        %v3867 = vpop.f32.mrb[0].mxu0
        %3868 = vdwg.mxu0
        %3869 = vmatprep.subr.bf16.mxu0 %v1586
        %3870 = vmatpush1.bf16.msra.mxu0 %v1585
        %3871 = vmatprep.subr.bf16.mxu0 %v1594
        %3872 = vmatpush1.bf16.msra.mxu0 %v1593
        %3873 = vmatprep.subr.bf16.mxu0 %v1602
        %3874 = vmatpush1.bf16.msra.mxu0 %v1601
        %3875 = vmatprep.subr.bf16.mxu0 %v1610
        %3876 = vmatpush1.bf16.msra.mxu0 %v1609
        %3877 = vmatprep.subr.bf16.mxu0 %v1618
        %3878 = vmatpush1.bf16.msra.mxu0 %v1617
        %3879 = vmatprep.subr.bf16.mxu0 %v1626
        %3880 = vmatpush1.bf16.msra.mxu0 %v1625
        %3881 = vmatprep.subr.bf16.mxu0 %v1634
        %3882 = vmatpush1.bf16.msra.mxu0 %v1633
        %3883 = vmatprep.subr.bf16.mxu0 %v1642
        %3884 = vmatpush1.bf16.msra.mxu0 %v1641
        %3885 = vmatprep.subr.bf16.mxu0 %v1650
        %3886 = vmatpush1.bf16.msra.mxu0 %v1649
        %3887 = vmatprep.subr.bf16.mxu0 %v1658
        %3888 = vmatpush1.bf16.msra.mxu0 %v1657
        %3889 = vmatprep.subr.bf16.mxu0 %v1666
        %3890 = vmatpush1.bf16.msra.mxu0 %v1665
        %3891 = vmatprep.subr.bf16.mxu0 %v1674
        %3892 = vmatpush1.bf16.msra.mxu0 %v1673
        %3893 = vmatprep.subr.bf16.mxu0 %v1682
        %3894 = vmatpush1.bf16.msra.mxu0 %v1681
        %3895 = vmatprep.subr.bf16.mxu0 %v1690
        %3896 = vmatpush1.bf16.msra.mxu0 %v1689
        %3897 = vmatprep.subr.bf16.mxu0 %v1698
        %3898 = vmatpush1.bf16.msra.mxu0 %v1697
        %3899 = vmatprep.subr.bf16.mxu0 %v1706
        %3900 = vmatpush1.bf16.msra.mxu0 %v1705
        %3901 = vmatprep.mubr.bf16.mxu0 %v3728
        %3902 = vmatmul.mubr.bf16.gmra.mrb[0].mxu0 %v3727
        %v3903 = vpop.f32.mrb[0].mxu0
        %v3904 = vadd.f32 0.0, %v3903
        %v3905 = vpop.f32.mrb[0].mxu0
        %v3906 = vadd.f32 0.0, %v3905
        %v3907 = vpop.f32.mrb[0].mxu0
        %v3908 = vpop.f32.mrb[0].mxu0
        %3909 = vdwg.mxu0
        %v3910 = vadd.f32 %v3738, %v3781
        %v3911 = vadd.f32 %v3739, %v3783
        %v3912 = vadd.f32 %v3740, %v3822
        %v3913 = vadd.f32 %v3741, %v3824
        %v3914 = vadd.f32 %v3742, %v3863
        %v3915 = vadd.f32 %v3743, %v3865
        %v3916 = vadd.f32 %v3744, %v3904
        %v3917 = vadd.f32 %v3745, %v3906
        %v3918 = vxor.u32 %v3910, 2147483648
        %v3919 = vxor.u32 %v3911, 2147483648
        %v3920 = vmul.f32 %v3918, 1.442695
        %v3921 = vpow.pop %v3920
        %v3922 = vmul.f32 %v3919, 1.442695
        %v3923 = vpow.pop %v3922
        %v3924 = vadd.f32 %v3921, 1.0
        %v3925 = vadd.f32 %v3923, 1.0
        %v3926 = vrcp.pop %v3924
        %v3927 = vmul.f32 1.0, %v3926
        %v3928 = vrcp.pop %v3925
        %v3929 = vmul.f32 1.0, %v3928
        %v3930 = vxor.u32 %v3912, 2147483648
        %v3931 = vxor.u32 %v3913, 2147483648
        %v3932 = vmul.f32 %v3930, 1.442695
        %v3933 = vpow.pop %v3932
        %v3934 = vmul.f32 %v3931, 1.442695
        %v3935 = vpow.pop %v3934
        %v3936 = vadd.f32 %v3933, 1.0
        %v3937 = vadd.f32 %v3935, 1.0
        %v3938 = vrcp.pop %v3936
        %v3939 = vmul.f32 1.0, %v3938
        %v3940 = vrcp.pop %v3937
        %v3941 = vmul.f32 1.0, %v3940
        %v3942 = vtanh.pop %v3914
        %v3943 = vtanh.pop %v3915
        %v3944 = vxor.u32 %v3916, 2147483648
        %v3945 = vxor.u32 %v3917, 2147483648
        %v3946 = vmul.f32 %v3944, 1.442695
        %v3947 = vpow.pop %v3946
        %v3948 = vmul.f32 %v3945, 1.442695
        %v3949 = vpow.pop %v3948
        %v3950 = vadd.f32 %v3947, 1.0
        %v3951 = vadd.f32 %v3949, 1.0
        %v3952 = vrcp.pop %v3950
        %v3953 = vmul.f32 1.0, %v3952
        %v3954 = vrcp.pop %v3951
        %v3955 = vmul.f32 1.0, %v3954
        %v3956 = vmul.f32 %v3939, %v3721
        %v3957 = vmul.f32 %v3941, %v3722
        %v3958 = vmul.f32 %v3927, %v3942
        %v3959 = vmul.f32 %v3929, %v3943
        %v3960 = vadd.f32 %v3956, %v3958
        %v3961 = vadd.f32 %v3957, %v3959
        %v3962 = vtanh.pop %v3960
        %v3963 = vtanh.pop %v3961
        %v3964 = vmul.f32 %v3953, %v3962
        %v3965 = vmul.f32 %v3955, %v3963
        %v3966 = vpack.c.bf16 %v3964, %v3964
        %v3967 = vpack.c.bf16 %v3965, %v3965
        %v3970 = vunpack.c.l.b16 %v3966
        %v3971 = vunpack.c.l.b16 %v3967
        %v3972 = vpack.c.b16 %v3971, %v3970
        %s3974 = scalar_lea.vmem [#allocation3], 64
        %3975 = vst [vmem:[%s3974] sm:$0xff] %v3972
        %s3976 = scalar_lea.vmem [#allocation2], 576
        %v3977 = vld [vmem:[%s3976] sm:$0xff]
        %v3978 = vld [vmem:[%s3976 + $0x8] sm:$0xff]
        %v3979 = vld [vmem:[%s3976 + $0x10] sm:$0xff]
        %v3980 = vld [vmem:[%s3976 + $0x18] sm:$0xff]
        %v3981 = vld [vmem:[%s3976 + $0x20] sm:$0xff]
        %v3982 = vld [vmem:[%s3976 + $0x28] sm:$0xff]
        %v3983 = vld [vmem:[%s3976 + $0x30] sm:$0xff]
        %v3984 = vld [vmem:[%s3976 + $0x38] sm:$0xff]
        %3985 = vmatprep.subr.bf16.mxu0 %v1580
        %3986 = vmatpush1.bf16.msra.mxu0 %v1579
        %3987 = vmatprep.subr.bf16.mxu0 %v1588
        %3988 = vmatpush1.bf16.msra.mxu0 %v1587
        %3989 = vmatprep.subr.bf16.mxu0 %v1596
        %3990 = vmatpush1.bf16.msra.mxu0 %v1595
        %3991 = vmatprep.subr.bf16.mxu0 %v1604
        %3992 = vmatpush1.bf16.msra.mxu0 %v1603
        %3993 = vmatprep.subr.bf16.mxu0 %v1612
        %3994 = vmatpush1.bf16.msra.mxu0 %v1611
        %3995 = vmatprep.subr.bf16.mxu0 %v1620
        %3996 = vmatpush1.bf16.msra.mxu0 %v1619
        %3997 = vmatprep.subr.bf16.mxu0 %v1628
        %3998 = vmatpush1.bf16.msra.mxu0 %v1627
        %3999 = vmatprep.subr.bf16.mxu0 %v1636
        %4000 = vmatpush1.bf16.msra.mxu0 %v1635
        %4001 = vmatprep.subr.bf16.mxu0 %v1644
        %4002 = vmatpush1.bf16.msra.mxu0 %v1643
        %4003 = vmatprep.subr.bf16.mxu0 %v1652
        %4004 = vmatpush1.bf16.msra.mxu0 %v1651
        %4005 = vmatprep.subr.bf16.mxu0 %v1660
        %4006 = vmatpush1.bf16.msra.mxu0 %v1659
        %4007 = vmatprep.subr.bf16.mxu0 %v1668
        %4008 = vmatpush1.bf16.msra.mxu0 %v1667
        %4009 = vmatprep.subr.bf16.mxu0 %v1676
        %4010 = vmatpush1.bf16.msra.mxu0 %v1675
        %4011 = vmatprep.subr.bf16.mxu0 %v1684
        %4012 = vmatpush1.bf16.msra.mxu0 %v1683
        %4013 = vmatprep.subr.bf16.mxu0 %v1692
        %4014 = vmatpush1.bf16.msra.mxu0 %v1691
        %4015 = vmatprep.subr.bf16.mxu0 %v1700
        %4016 = vmatpush1.bf16.msra.mxu0 %v1699
        %4017 = vmatprep.mubr.bf16.mxu0 %v3967
        %4018 = vmatmul.mubr.bf16.gmra.mrb[0].mxu0 %v3966
        %v4019 = vpop.f32.mrb[0].mxu0
        %v4020 = vadd.f32 0.0, %v4019
        %v4021 = vpop.f32.mrb[0].mxu0
        %v4022 = vadd.f32 0.0, %v4021
        %v4023 = vpop.f32.mrb[0].mxu0
        %v4024 = vpop.f32.mrb[0].mxu0
        %4025 = vdwg.mxu0
        %4026 = vmatprep.subr.bf16.mxu0 %v1582
        %4027 = vmatpush1.bf16.msra.mxu0 %v1581
        %4028 = vmatprep.subr.bf16.mxu0 %v1590
        %4029 = vmatpush1.bf16.msra.mxu0 %v1589
        %4030 = vmatprep.subr.bf16.mxu0 %v1598
        %4031 = vmatpush1.bf16.msra.mxu0 %v1597
        %4032 = vmatprep.subr.bf16.mxu0 %v1606
        %4033 = vmatpush1.bf16.msra.mxu0 %v1605
        %4034 = vmatprep.subr.bf16.mxu0 %v1614
        %4035 = vmatpush1.bf16.msra.mxu0 %v1613
        %4036 = vmatprep.subr.bf16.mxu0 %v1622
        %4037 = vmatpush1.bf16.msra.mxu0 %v1621
        %4038 = vmatprep.subr.bf16.mxu0 %v1630
        %4039 = vmatpush1.bf16.msra.mxu0 %v1629
        %4040 = vmatprep.subr.bf16.mxu0 %v1638
        %4041 = vmatpush1.bf16.msra.mxu0 %v1637
        %4042 = vmatprep.subr.bf16.mxu0 %v1646
        %4043 = vmatpush1.bf16.msra.mxu0 %v1645
        %4044 = vmatprep.subr.bf16.mxu0 %v1654
        %4045 = vmatpush1.bf16.msra.mxu0 %v1653
        %4046 = vmatprep.subr.bf16.mxu0 %v1662
        %4047 = vmatpush1.bf16.msra.mxu0 %v1661
        %4048 = vmatprep.subr.bf16.mxu0 %v1670
        %4049 = vmatpush1.bf16.msra.mxu0 %v1669
        %4050 = vmatprep.subr.bf16.mxu0 %v1678
        %4051 = vmatpush1.bf16.msra.mxu0 %v1677
        %4052 = vmatprep.subr.bf16.mxu0 %v1686
        %4053 = vmatpush1.bf16.msra.mxu0 %v1685
        %4054 = vmatprep.subr.bf16.mxu0 %v1694
        %4055 = vmatpush1.bf16.msra.mxu0 %v1693
        %4056 = vmatprep.subr.bf16.mxu0 %v1702
        %4057 = vmatpush1.bf16.msra.mxu0 %v1701
        %4058 = vmatprep.mubr.bf16.mxu0 %v3967
        %4059 = vmatmul.mubr.bf16.gmra.mrb[0].mxu0 %v3966
        %v4060 = vpop.f32.mrb[0].mxu0
        %v4061 = vadd.f32 0.0, %v4060
        %v4062 = vpop.f32.mrb[0].mxu0
        %v4063 = vadd.f32 0.0, %v4062
        %v4064 = vpop.f32.mrb[0].mxu0
        %v4065 = vpop.f32.mrb[0].mxu0
        %4066 = vdwg.mxu0
        %4067 = vmatprep.subr.bf16.mxu0 %v1584
        %4068 = vmatpush1.bf16.msra.mxu0 %v1583
        %4069 = vmatprep.subr.bf16.mxu0 %v1592
        %4070 = vmatpush1.bf16.msra.mxu0 %v1591
        %4071 = vmatprep.subr.bf16.mxu0 %v1600
        %4072 = vmatpush1.bf16.msra.mxu0 %v1599
        %4073 = vmatprep.subr.bf16.mxu0 %v1608
        %4074 = vmatpush1.bf16.msra.mxu0 %v1607
        %4075 = vmatprep.subr.bf16.mxu0 %v1616
        %4076 = vmatpush1.bf16.msra.mxu0 %v1615
        %4077 = vmatprep.subr.bf16.mxu0 %v1624
        %4078 = vmatpush1.bf16.msra.mxu0 %v1623
        %4079 = vmatprep.subr.bf16.mxu0 %v1632
        %4080 = vmatpush1.bf16.msra.mxu0 %v1631
        %4081 = vmatprep.subr.bf16.mxu0 %v1640
        %4082 = vmatpush1.bf16.msra.mxu0 %v1639
        %4083 = vmatprep.subr.bf16.mxu0 %v1648
        %4084 = vmatpush1.bf16.msra.mxu0 %v1647
        %4085 = vmatprep.subr.bf16.mxu0 %v1656
        %4086 = vmatpush1.bf16.msra.mxu0 %v1655
        %4087 = vmatprep.subr.bf16.mxu0 %v1664
        %4088 = vmatpush1.bf16.msra.mxu0 %v1663
        %4089 = vmatprep.subr.bf16.mxu0 %v1672
        %4090 = vmatpush1.bf16.msra.mxu0 %v1671
        %4091 = vmatprep.subr.bf16.mxu0 %v1680
        %4092 = vmatpush1.bf16.msra.mxu0 %v1679
        %4093 = vmatprep.subr.bf16.mxu0 %v1688
        %4094 = vmatpush1.bf16.msra.mxu0 %v1687
        %4095 = vmatprep.subr.bf16.mxu0 %v1696
        %4096 = vmatpush1.bf16.msra.mxu0 %v1695
        %4097 = vmatprep.subr.bf16.mxu0 %v1704
        %4098 = vmatpush1.bf16.msra.mxu0 %v1703
        %4099 = vmatprep.mubr.bf16.mxu0 %v3967
        %4100 = vmatmul.mubr.bf16.gmra.mrb[0].mxu0 %v3966
        %v4101 = vpop.f32.mrb[0].mxu0
        %v4102 = vadd.f32 0.0, %v4101
        %v4103 = vpop.f32.mrb[0].mxu0
        %v4104 = vadd.f32 0.0, %v4103
        %v4105 = vpop.f32.mrb[0].mxu0
        %v4106 = vpop.f32.mrb[0].mxu0
        %4107 = vdwg.mxu0
        %4108 = vmatprep.subr.bf16.mxu0 %v1586
        %4109 = vmatpush1.bf16.msra.mxu0 %v1585
        %4110 = vmatprep.subr.bf16.mxu0 %v1594
        %4111 = vmatpush1.bf16.msra.mxu0 %v1593
        %4112 = vmatprep.subr.bf16.mxu0 %v1602
        %4113 = vmatpush1.bf16.msra.mxu0 %v1601
        %4114 = vmatprep.subr.bf16.mxu0 %v1610
        %4115 = vmatpush1.bf16.msra.mxu0 %v1609
        %4116 = vmatprep.subr.bf16.mxu0 %v1618
        %4117 = vmatpush1.bf16.msra.mxu0 %v1617
        %4118 = vmatprep.subr.bf16.mxu0 %v1626
        %4119 = vmatpush1.bf16.msra.mxu0 %v1625
        %4120 = vmatprep.subr.bf16.mxu0 %v1634
        %4121 = vmatpush1.bf16.msra.mxu0 %v1633
        %4122 = vmatprep.subr.bf16.mxu0 %v1642
        %4123 = vmatpush1.bf16.msra.mxu0 %v1641
        %4124 = vmatprep.subr.bf16.mxu0 %v1650
        %4125 = vmatpush1.bf16.msra.mxu0 %v1649
        %4126 = vmatprep.subr.bf16.mxu0 %v1658
        %4127 = vmatpush1.bf16.msra.mxu0 %v1657
        %4128 = vmatprep.subr.bf16.mxu0 %v1666
        %4129 = vmatpush1.bf16.msra.mxu0 %v1665
        %4130 = vmatprep.subr.bf16.mxu0 %v1674
        %4131 = vmatpush1.bf16.msra.mxu0 %v1673
        %4132 = vmatprep.subr.bf16.mxu0 %v1682
        %4133 = vmatpush1.bf16.msra.mxu0 %v1681
        %4134 = vmatprep.subr.bf16.mxu0 %v1690
        %4135 = vmatpush1.bf16.msra.mxu0 %v1689
        %4136 = vmatprep.subr.bf16.mxu0 %v1698
        %4137 = vmatpush1.bf16.msra.mxu0 %v1697
        %4138 = vmatprep.subr.bf16.mxu0 %v1706
        %4139 = vmatpush1.bf16.msra.mxu0 %v1705
        %4140 = vmatprep.mubr.bf16.mxu0 %v3967
        %4141 = vmatmul.mubr.bf16.gmra.mrb[0].mxu0 %v3966
        %v4142 = vpop.f32.mrb[0].mxu0
        %v4143 = vadd.f32 0.0, %v4142
        %v4144 = vpop.f32.mrb[0].mxu0
        %v4145 = vadd.f32 0.0, %v4144
        %v4146 = vpop.f32.mrb[0].mxu0
        %v4147 = vpop.f32.mrb[0].mxu0
        %4148 = vdwg.mxu0
        %v4149 = vadd.f32 %v3977, %v4020
        %v4150 = vadd.f32 %v3978, %v4022
        %v4151 = vadd.f32 %v3979, %v4061
        %v4152 = vadd.f32 %v3980, %v4063
        %v4153 = vadd.f32 %v3981, %v4102
        %v4154 = vadd.f32 %v3982, %v4104
        %v4155 = vadd.f32 %v3983, %v4143
        %v4156 = vadd.f32 %v3984, %v4145
        %v4157 = vxor.u32 %v4149, 2147483648
        %v4158 = vxor.u32 %v4150, 2147483648
        %v4159 = vmul.f32 %v4157, 1.442695
        %v4160 = vpow.pop %v4159
        %v4161 = vmul.f32 %v4158, 1.442695
        %v4162 = vpow.pop %v4161
        %v4163 = vadd.f32 %v4160, 1.0
        %v4164 = vadd.f32 %v4162, 1.0
        %v4165 = vrcp.pop %v4163
        %v4166 = vmul.f32 1.0, %v4165
        %v4167 = vrcp.pop %v4164
        %v4168 = vmul.f32 1.0, %v4167
        %v4169 = vxor.u32 %v4151, 2147483648
        %v4170 = vxor.u32 %v4152, 2147483648
        %v4171 = vmul.f32 %v4169, 1.442695
        %v4172 = vpow.pop %v4171
        %v4173 = vmul.f32 %v4170, 1.442695
        %v4174 = vpow.pop %v4173
        %v4175 = vadd.f32 %v4172, 1.0
        %v4176 = vadd.f32 %v4174, 1.0
        %v4177 = vrcp.pop %v4175
        %v4178 = vmul.f32 1.0, %v4177
        %v4179 = vrcp.pop %v4176
        %v4180 = vmul.f32 1.0, %v4179
        %v4181 = vtanh.pop %v4153
        %v4182 = vtanh.pop %v4154
        %v4183 = vxor.u32 %v4155, 2147483648
        %v4184 = vxor.u32 %v4156, 2147483648
        %v4185 = vmul.f32 %v4183, 1.442695
        %v4186 = vpow.pop %v4185
        %v4187 = vmul.f32 %v4184, 1.442695
        %v4188 = vpow.pop %v4187
        %v4189 = vadd.f32 %v4186, 1.0
        %v4190 = vadd.f32 %v4188, 1.0
        %v4191 = vrcp.pop %v4189
        %v4192 = vmul.f32 1.0, %v4191
        %v4193 = vrcp.pop %v4190
        %v4194 = vmul.f32 1.0, %v4193
        %v4195 = vmul.f32 %v4178, %v3960
        %v4196 = vmul.f32 %v4180, %v3961
        %v4197 = vmul.f32 %v4166, %v4181
        %v4198 = vmul.f32 %v4168, %v4182
        %v4199 = vadd.f32 %v4195, %v4197
        %v4200 = vadd.f32 %v4196, %v4198
        %v4201 = vtanh.pop %v4199
        %v4202 = vtanh.pop %v4200
        %v4203 = vmul.f32 %v4192, %v4201
        %v4204 = vmul.f32 %v4194, %v4202
        %v4205 = vpack.c.bf16 %v4203, %v4203
        %v4206 = vpack.c.bf16 %v4204, %v4204
        %v4209 = vunpack.c.l.b16 %v4205
        %v4210 = vunpack.c.l.b16 %v4206
        %v4211 = vpack.c.b16 %v4210, %v4209
        %s4213 = scalar_lea.vmem [#allocation3], 72
        %4214 = vst [vmem:[%s4213] sm:$0xff] %v4211
        %s4215 = scalar_lea.vmem [#allocation2], 640
        %v4216 = vld [vmem:[%s4215] sm:$0xff]
        %v4217 = vld [vmem:[%s4215 + $0x8] sm:$0xff]
        %v4218 = vld [vmem:[%s4215 + $0x10] sm:$0xff]
        %v4219 = vld [vmem:[%s4215 + $0x18] sm:$0xff]
        %v4220 = vld [vmem:[%s4215 + $0x20] sm:$0xff]
        %v4221 = vld [vmem:[%s4215 + $0x28] sm:$0xff]
        %v4222 = vld [vmem:[%s4215 + $0x30] sm:$0xff]
        %v4223 = vld [vmem:[%s4215 + $0x38] sm:$0xff]
        %4224 = vmatprep.subr.bf16.mxu0 %v1580
        %4225 = vmatpush1.bf16.msra.mxu0 %v1579
        %4226 = vmatprep.subr.bf16.mxu0 %v1588
        %4227 = vmatpush1.bf16.msra.mxu0 %v1587
        %4228 = vmatprep.subr.bf16.mxu0 %v1596
        %4229 = vmatpush1.bf16.msra.mxu0 %v1595
        %4230 = vmatprep.subr.bf16.mxu0 %v1604
        %4231 = vmatpush1.bf16.msra.mxu0 %v1603
        %4232 = vmatprep.subr.bf16.mxu0 %v1612
        %4233 = vmatpush1.bf16.msra.mxu0 %v1611
        %4234 = vmatprep.subr.bf16.mxu0 %v1620
        %4235 = vmatpush1.bf16.msra.mxu0 %v1619
        %4236 = vmatprep.subr.bf16.mxu0 %v1628
        %4237 = vmatpush1.bf16.msra.mxu0 %v1627
        %4238 = vmatprep.subr.bf16.mxu0 %v1636
        %4239 = vmatpush1.bf16.msra.mxu0 %v1635
        %4240 = vmatprep.subr.bf16.mxu0 %v1644
        %4241 = vmatpush1.bf16.msra.mxu0 %v1643
        %4242 = vmatprep.subr.bf16.mxu0 %v1652
        %4243 = vmatpush1.bf16.msra.mxu0 %v1651
        %4244 = vmatprep.subr.bf16.mxu0 %v1660
        %4245 = vmatpush1.bf16.msra.mxu0 %v1659
        %4246 = vmatprep.subr.bf16.mxu0 %v1668
        %4247 = vmatpush1.bf16.msra.mxu0 %v1667
        %4248 = vmatprep.subr.bf16.mxu0 %v1676
        %4249 = vmatpush1.bf16.msra.mxu0 %v1675
        %4250 = vmatprep.subr.bf16.mxu0 %v1684
        %4251 = vmatpush1.bf16.msra.mxu0 %v1683
        %4252 = vmatprep.subr.bf16.mxu0 %v1692
        %4253 = vmatpush1.bf16.msra.mxu0 %v1691
        %4254 = vmatprep.subr.bf16.mxu0 %v1700
        %4255 = vmatpush1.bf16.msra.mxu0 %v1699
        %4256 = vmatprep.mubr.bf16.mxu0 %v4206
        %4257 = vmatmul.mubr.bf16.gmra.mrb[0].mxu0 %v4205
        %v4258 = vpop.f32.mrb[0].mxu0
        %v4259 = vadd.f32 0.0, %v4258
        %v4260 = vpop.f32.mrb[0].mxu0
        %v4261 = vadd.f32 0.0, %v4260
        %v4262 = vpop.f32.mrb[0].mxu0
        %v4263 = vpop.f32.mrb[0].mxu0
        %4264 = vdwg.mxu0
        %4265 = vmatprep.subr.bf16.mxu0 %v1582
        %4266 = vmatpush1.bf16.msra.mxu0 %v1581
        %4267 = vmatprep.subr.bf16.mxu0 %v1590
        %4268 = vmatpush1.bf16.msra.mxu0 %v1589
        %4269 = vmatprep.subr.bf16.mxu0 %v1598
        %4270 = vmatpush1.bf16.msra.mxu0 %v1597
        %4271 = vmatprep.subr.bf16.mxu0 %v1606
        %4272 = vmatpush1.bf16.msra.mxu0 %v1605
        %4273 = vmatprep.subr.bf16.mxu0 %v1614
        %4274 = vmatpush1.bf16.msra.mxu0 %v1613
        %4275 = vmatprep.subr.bf16.mxu0 %v1622
        %4276 = vmatpush1.bf16.msra.mxu0 %v1621
        %4277 = vmatprep.subr.bf16.mxu0 %v1630
        %4278 = vmatpush1.bf16.msra.mxu0 %v1629
        %4279 = vmatprep.subr.bf16.mxu0 %v1638
        %4280 = vmatpush1.bf16.msra.mxu0 %v1637
        %4281 = vmatprep.subr.bf16.mxu0 %v1646
        %4282 = vmatpush1.bf16.msra.mxu0 %v1645
        %4283 = vmatprep.subr.bf16.mxu0 %v1654
        %4284 = vmatpush1.bf16.msra.mxu0 %v1653
        %4285 = vmatprep.subr.bf16.mxu0 %v1662
        %4286 = vmatpush1.bf16.msra.mxu0 %v1661
        %4287 = vmatprep.subr.bf16.mxu0 %v1670
        %4288 = vmatpush1.bf16.msra.mxu0 %v1669
        %4289 = vmatprep.subr.bf16.mxu0 %v1678
        %4290 = vmatpush1.bf16.msra.mxu0 %v1677
        %4291 = vmatprep.subr.bf16.mxu0 %v1686
        %4292 = vmatpush1.bf16.msra.mxu0 %v1685
        %4293 = vmatprep.subr.bf16.mxu0 %v1694
        %4294 = vmatpush1.bf16.msra.mxu0 %v1693
        %4295 = vmatprep.subr.bf16.mxu0 %v1702
        %4296 = vmatpush1.bf16.msra.mxu0 %v1701
        %4297 = vmatprep.mubr.bf16.mxu0 %v4206
        %4298 = vmatmul.mubr.bf16.gmra.mrb[0].mxu0 %v4205
        %v4299 = vpop.f32.mrb[0].mxu0
        %v4300 = vadd.f32 0.0, %v4299
        %v4301 = vpop.f32.mrb[0].mxu0
        %v4302 = vadd.f32 0.0, %v4301
        %v4303 = vpop.f32.mrb[0].mxu0
        %v4304 = vpop.f32.mrb[0].mxu0
        %4305 = vdwg.mxu0
        %4306 = vmatprep.subr.bf16.mxu0 %v1584
        %4307 = vmatpush1.bf16.msra.mxu0 %v1583
        %4308 = vmatprep.subr.bf16.mxu0 %v1592
        %4309 = vmatpush1.bf16.msra.mxu0 %v1591
        %4310 = vmatprep.subr.bf16.mxu0 %v1600
        %4311 = vmatpush1.bf16.msra.mxu0 %v1599
        %4312 = vmatprep.subr.bf16.mxu0 %v1608
        %4313 = vmatpush1.bf16.msra.mxu0 %v1607
        %4314 = vmatprep.subr.bf16.mxu0 %v1616
        %4315 = vmatpush1.bf16.msra.mxu0 %v1615
        %4316 = vmatprep.subr.bf16.mxu0 %v1624
        %4317 = vmatpush1.bf16.msra.mxu0 %v1623
        %4318 = vmatprep.subr.bf16.mxu0 %v1632
        %4319 = vmatpush1.bf16.msra.mxu0 %v1631
        %4320 = vmatprep.subr.bf16.mxu0 %v1640
        %4321 = vmatpush1.bf16.msra.mxu0 %v1639
        %4322 = vmatprep.subr.bf16.mxu0 %v1648
        %4323 = vmatpush1.bf16.msra.mxu0 %v1647
        %4324 = vmatprep.subr.bf16.mxu0 %v1656
        %4325 = vmatpush1.bf16.msra.mxu0 %v1655
        %4326 = vmatprep.subr.bf16.mxu0 %v1664
        %4327 = vmatpush1.bf16.msra.mxu0 %v1663
        %4328 = vmatprep.subr.bf16.mxu0 %v1672
        %4329 = vmatpush1.bf16.msra.mxu0 %v1671
        %4330 = vmatprep.subr.bf16.mxu0 %v1680
        %4331 = vmatpush1.bf16.msra.mxu0 %v1679
        %4332 = vmatprep.subr.bf16.mxu0 %v1688
        %4333 = vmatpush1.bf16.msra.mxu0 %v1687
        %4334 = vmatprep.subr.bf16.mxu0 %v1696
        %4335 = vmatpush1.bf16.msra.mxu0 %v1695
        %4336 = vmatprep.subr.bf16.mxu0 %v1704
        %4337 = vmatpush1.bf16.msra.mxu0 %v1703
        %4338 = vmatprep.mubr.bf16.mxu0 %v4206
        %4339 = vmatmul.mubr.bf16.gmra.mrb[0].mxu0 %v4205
        %v4340 = vpop.f32.mrb[0].mxu0
        %v4341 = vadd.f32 0.0, %v4340
        %v4342 = vpop.f32.mrb[0].mxu0
        %v4343 = vadd.f32 0.0, %v4342
        %v4344 = vpop.f32.mrb[0].mxu0
        %v4345 = vpop.f32.mrb[0].mxu0
        %4346 = vdwg.mxu0
        %4347 = vmatprep.subr.bf16.mxu0 %v1586
        %4348 = vmatpush1.bf16.msra.mxu0 %v1585
        %4349 = vmatprep.subr.bf16.mxu0 %v1594
        %4350 = vmatpush1.bf16.msra.mxu0 %v1593
        %4351 = vmatprep.subr.bf16.mxu0 %v1602
        %4352 = vmatpush1.bf16.msra.mxu0 %v1601
        %4353 = vmatprep.subr.bf16.mxu0 %v1610
        %4354 = vmatpush1.bf16.msra.mxu0 %v1609
        %4355 = vmatprep.subr.bf16.mxu0 %v1618
        %4356 = vmatpush1.bf16.msra.mxu0 %v1617
        %4357 = vmatprep.subr.bf16.mxu0 %v1626
        %4358 = vmatpush1.bf16.msra.mxu0 %v1625
        %4359 = vmatprep.subr.bf16.mxu0 %v1634
        %4360 = vmatpush1.bf16.msra.mxu0 %v1633
        %4361 = vmatprep.subr.bf16.mxu0 %v1642
        %4362 = vmatpush1.bf16.msra.mxu0 %v1641
        %4363 = vmatprep.subr.bf16.mxu0 %v1650
        %4364 = vmatpush1.bf16.msra.mxu0 %v1649
        %4365 = vmatprep.subr.bf16.mxu0 %v1658
        %4366 = vmatpush1.bf16.msra.mxu0 %v1657
        %4367 = vmatprep.subr.bf16.mxu0 %v1666
        %4368 = vmatpush1.bf16.msra.mxu0 %v1665
        %4369 = vmatprep.subr.bf16.mxu0 %v1674
        %4370 = vmatpush1.bf16.msra.mxu0 %v1673
        %4371 = vmatprep.subr.bf16.mxu0 %v1682
        %4372 = vmatpush1.bf16.msra.mxu0 %v1681
        %4373 = vmatprep.subr.bf16.mxu0 %v1690
        %4374 = vmatpush1.bf16.msra.mxu0 %v1689
        %4375 = vmatprep.subr.bf16.mxu0 %v1698
        %4376 = vmatpush1.bf16.msra.mxu0 %v1697
        %4377 = vmatprep.subr.bf16.mxu0 %v1706
        %4378 = vmatpush1.bf16.msra.mxu0 %v1705
        %4379 = vmatprep.mubr.bf16.mxu0 %v4206
        %4380 = vmatmul.mubr.bf16.gmra.mrb[0].mxu0 %v4205
        %v4381 = vpop.f32.mrb[0].mxu0
        %v4382 = vadd.f32 0.0, %v4381
        %v4383 = vpop.f32.mrb[0].mxu0
        %v4384 = vadd.f32 0.0, %v4383
        %v4385 = vpop.f32.mrb[0].mxu0
        %v4386 = vpop.f32.mrb[0].mxu0
        %4387 = vdwg.mxu0
        %v4388 = vadd.f32 %v4216, %v4259
        %v4389 = vadd.f32 %v4217, %v4261
        %v4390 = vadd.f32 %v4218, %v4300
        %v4391 = vadd.f32 %v4219, %v4302
        %v4392 = vadd.f32 %v4220, %v4341
        %v4393 = vadd.f32 %v4221, %v4343
        %v4394 = vadd.f32 %v4222, %v4382
        %v4395 = vadd.f32 %v4223, %v4384
        %v4396 = vxor.u32 %v4388, 2147483648
        %v4397 = vxor.u32 %v4389, 2147483648
        %v4398 = vmul.f32 %v4396, 1.442695
        %v4399 = vpow.pop %v4398
        %v4400 = vmul.f32 %v4397, 1.442695
        %v4401 = vpow.pop %v4400
        %v4402 = vadd.f32 %v4399, 1.0
        %v4403 = vadd.f32 %v4401, 1.0
        %v4404 = vrcp.pop %v4402
        %v4405 = vmul.f32 1.0, %v4404
        %v4406 = vrcp.pop %v4403
        %v4407 = vmul.f32 1.0, %v4406
        %v4408 = vxor.u32 %v4390, 2147483648
        %v4409 = vxor.u32 %v4391, 2147483648
        %v4410 = vmul.f32 %v4408, 1.442695
        %v4411 = vpow.pop %v4410
        %v4412 = vmul.f32 %v4409, 1.442695
        %v4413 = vpow.pop %v4412
        %v4414 = vadd.f32 %v4411, 1.0
        %v4415 = vadd.f32 %v4413, 1.0
        %v4416 = vrcp.pop %v4414
        %v4417 = vmul.f32 1.0, %v4416
        %v4418 = vrcp.pop %v4415
        %v4419 = vmul.f32 1.0, %v4418
        %v4420 = vtanh.pop %v4392
        %v4421 = vtanh.pop %v4393
        %v4422 = vxor.u32 %v4394, 2147483648
        %v4423 = vxor.u32 %v4395, 2147483648
        %v4424 = vmul.f32 %v4422, 1.442695
        %v4425 = vpow.pop %v4424
        %v4426 = vmul.f32 %v4423, 1.442695
        %v4427 = vpow.pop %v4426
        %v4428 = vadd.f32 %v4425, 1.0
        %v4429 = vadd.f32 %v4427, 1.0
        %v4430 = vrcp.pop %v4428
        %v4431 = vmul.f32 1.0, %v4430
        %v4432 = vrcp.pop %v4429
        %v4433 = vmul.f32 1.0, %v4432
        %v4434 = vmul.f32 %v4417, %v4199
        %v4435 = vmul.f32 %v4419, %v4200
        %v4436 = vmul.f32 %v4405, %v4420
        %v4437 = vmul.f32 %v4407, %v4421
        %v4438 = vadd.f32 %v4434, %v4436
        %v4439 = vadd.f32 %v4435, %v4437
        %v4440 = vtanh.pop %v4438
        %v4441 = vtanh.pop %v4439
        %v4442 = vmul.f32 %v4431, %v4440
        %v4443 = vmul.f32 %v4433, %v4441
        %v4444 = vpack.c.bf16 %v4442, %v4442
        %v4445 = vpack.c.bf16 %v4443, %v4443
        %v4448 = vunpack.c.l.b16 %v4444
        %v4449 = vunpack.c.l.b16 %v4445
        %v4450 = vpack.c.b16 %v4449, %v4448
        %s4452 = scalar_lea.vmem [#allocation3], 80
        %4453 = vst [vmem:[%s4452] sm:$0xff] %v4450
        %s4454 = scalar_lea.vmem [#allocation2], 704
        %v4455 = vld [vmem:[%s4454] sm:$0xff]
        %v4456 = vld [vmem:[%s4454 + $0x8] sm:$0xff]
        %v4457 = vld [vmem:[%s4454 + $0x10] sm:$0xff]
        %v4458 = vld [vmem:[%s4454 + $0x18] sm:$0xff]
        %v4459 = vld [vmem:[%s4454 + $0x20] sm:$0xff]
        %v4460 = vld [vmem:[%s4454 + $0x28] sm:$0xff]
        %v4461 = vld [vmem:[%s4454 + $0x30] sm:$0xff]
        %v4462 = vld [vmem:[%s4454 + $0x38] sm:$0xff]
        %4463 = vmatprep.subr.bf16.mxu0 %v1580
        %4464 = vmatpush1.bf16.msra.mxu0 %v1579
        %4465 = vmatprep.subr.bf16.mxu0 %v1588
        %4466 = vmatpush1.bf16.msra.mxu0 %v1587
        %4467 = vmatprep.subr.bf16.mxu0 %v1596
        %4468 = vmatpush1.bf16.msra.mxu0 %v1595
        %4469 = vmatprep.subr.bf16.mxu0 %v1604
        %4470 = vmatpush1.bf16.msra.mxu0 %v1603
        %4471 = vmatprep.subr.bf16.mxu0 %v1612
        %4472 = vmatpush1.bf16.msra.mxu0 %v1611
        %4473 = vmatprep.subr.bf16.mxu0 %v1620
        %4474 = vmatpush1.bf16.msra.mxu0 %v1619
        %4475 = vmatprep.subr.bf16.mxu0 %v1628
        %4476 = vmatpush1.bf16.msra.mxu0 %v1627
        %4477 = vmatprep.subr.bf16.mxu0 %v1636
        %4478 = vmatpush1.bf16.msra.mxu0 %v1635
        %4479 = vmatprep.subr.bf16.mxu0 %v1644
        %4480 = vmatpush1.bf16.msra.mxu0 %v1643
        %4481 = vmatprep.subr.bf16.mxu0 %v1652
        %4482 = vmatpush1.bf16.msra.mxu0 %v1651
        %4483 = vmatprep.subr.bf16.mxu0 %v1660
        %4484 = vmatpush1.bf16.msra.mxu0 %v1659
        %4485 = vmatprep.subr.bf16.mxu0 %v1668
        %4486 = vmatpush1.bf16.msra.mxu0 %v1667
        %4487 = vmatprep.subr.bf16.mxu0 %v1676
        %4488 = vmatpush1.bf16.msra.mxu0 %v1675
        %4489 = vmatprep.subr.bf16.mxu0 %v1684
        %4490 = vmatpush1.bf16.msra.mxu0 %v1683
        %4491 = vmatprep.subr.bf16.mxu0 %v1692
        %4492 = vmatpush1.bf16.msra.mxu0 %v1691
        %4493 = vmatprep.subr.bf16.mxu0 %v1700
        %4494 = vmatpush1.bf16.msra.mxu0 %v1699
        %4495 = vmatprep.mubr.bf16.mxu0 %v4445
        %4496 = vmatmul.mubr.bf16.gmra.mrb[0].mxu0 %v4444
        %v4497 = vpop.f32.mrb[0].mxu0
        %v4498 = vadd.f32 0.0, %v4497
        %v4499 = vpop.f32.mrb[0].mxu0
        %v4500 = vadd.f32 0.0, %v4499
        %v4501 = vpop.f32.mrb[0].mxu0
        %v4502 = vpop.f32.mrb[0].mxu0
        %4503 = vdwg.mxu0
        %4504 = vmatprep.subr.bf16.mxu0 %v1582
        %4505 = vmatpush1.bf16.msra.mxu0 %v1581
        %4506 = vmatprep.subr.bf16.mxu0 %v1590
        %4507 = vmatpush1.bf16.msra.mxu0 %v1589
        %4508 = vmatprep.subr.bf16.mxu0 %v1598
        %4509 = vmatpush1.bf16.msra.mxu0 %v1597
        %4510 = vmatprep.subr.bf16.mxu0 %v1606
        %4511 = vmatpush1.bf16.msra.mxu0 %v1605
        %4512 = vmatprep.subr.bf16.mxu0 %v1614
        %4513 = vmatpush1.bf16.msra.mxu0 %v1613
        %4514 = vmatprep.subr.bf16.mxu0 %v1622
        %4515 = vmatpush1.bf16.msra.mxu0 %v1621
        %4516 = vmatprep.subr.bf16.mxu0 %v1630
        %4517 = vmatpush1.bf16.msra.mxu0 %v1629
        %4518 = vmatprep.subr.bf16.mxu0 %v1638
        %4519 = vmatpush1.bf16.msra.mxu0 %v1637
        %4520 = vmatprep.subr.bf16.mxu0 %v1646
        %4521 = vmatpush1.bf16.msra.mxu0 %v1645
        %4522 = vmatprep.subr.bf16.mxu0 %v1654
        %4523 = vmatpush1.bf16.msra.mxu0 %v1653
        %4524 = vmatprep.subr.bf16.mxu0 %v1662
        %4525 = vmatpush1.bf16.msra.mxu0 %v1661
        %4526 = vmatprep.subr.bf16.mxu0 %v1670
        %4527 = vmatpush1.bf16.msra.mxu0 %v1669
        %4528 = vmatprep.subr.bf16.mxu0 %v1678
        %4529 = vmatpush1.bf16.msra.mxu0 %v1677
        %4530 = vmatprep.subr.bf16.mxu0 %v1686
        %4531 = vmatpush1.bf16.msra.mxu0 %v1685
        %4532 = vmatprep.subr.bf16.mxu0 %v1694
        %4533 = vmatpush1.bf16.msra.mxu0 %v1693
        %4534 = vmatprep.subr.bf16.mxu0 %v1702
        %4535 = vmatpush1.bf16.msra.mxu0 %v1701
        %4536 = vmatprep.mubr.bf16.mxu0 %v4445
        %4537 = vmatmul.mubr.bf16.gmra.mrb[0].mxu0 %v4444
        %v4538 = vpop.f32.mrb[0].mxu0
        %v4539 = vadd.f32 0.0, %v4538
        %v4540 = vpop.f32.mrb[0].mxu0
        %v4541 = vadd.f32 0.0, %v4540
        %v4542 = vpop.f32.mrb[0].mxu0
        %v4543 = vpop.f32.mrb[0].mxu0
        %4544 = vdwg.mxu0
        %4545 = vmatprep.subr.bf16.mxu0 %v1584
        %4546 = vmatpush1.bf16.msra.mxu0 %v1583
        %4547 = vmatprep.subr.bf16.mxu0 %v1592
        %4548 = vmatpush1.bf16.msra.mxu0 %v1591
        %4549 = vmatprep.subr.bf16.mxu0 %v1600
        %4550 = vmatpush1.bf16.msra.mxu0 %v1599
        %4551 = vmatprep.subr.bf16.mxu0 %v1608
        %4552 = vmatpush1.bf16.msra.mxu0 %v1607
        %4553 = vmatprep.subr.bf16.mxu0 %v1616
        %4554 = vmatpush1.bf16.msra.mxu0 %v1615
        %4555 = vmatprep.subr.bf16.mxu0 %v1624
        %4556 = vmatpush1.bf16.msra.mxu0 %v1623
        %4557 = vmatprep.subr.bf16.mxu0 %v1632
        %4558 = vmatpush1.bf16.msra.mxu0 %v1631
        %4559 = vmatprep.subr.bf16.mxu0 %v1640
        %4560 = vmatpush1.bf16.msra.mxu0 %v1639
        %4561 = vmatprep.subr.bf16.mxu0 %v1648
        %4562 = vmatpush1.bf16.msra.mxu0 %v1647
        %4563 = vmatprep.subr.bf16.mxu0 %v1656
        %4564 = vmatpush1.bf16.msra.mxu0 %v1655
        %4565 = vmatprep.subr.bf16.mxu0 %v1664
        %4566 = vmatpush1.bf16.msra.mxu0 %v1663
        %4567 = vmatprep.subr.bf16.mxu0 %v1672
        %4568 = vmatpush1.bf16.msra.mxu0 %v1671
        %4569 = vmatprep.subr.bf16.mxu0 %v1680
        %4570 = vmatpush1.bf16.msra.mxu0 %v1679
        %4571 = vmatprep.subr.bf16.mxu0 %v1688
        %4572 = vmatpush1.bf16.msra.mxu0 %v1687
        %4573 = vmatprep.subr.bf16.mxu0 %v1696
        %4574 = vmatpush1.bf16.msra.mxu0 %v1695
        %4575 = vmatprep.subr.bf16.mxu0 %v1704
        %4576 = vmatpush1.bf16.msra.mxu0 %v1703
        %4577 = vmatprep.mubr.bf16.mxu0 %v4445
        %4578 = vmatmul.mubr.bf16.gmra.mrb[0].mxu0 %v4444
        %v4579 = vpop.f32.mrb[0].mxu0
        %v4580 = vadd.f32 0.0, %v4579
        %v4581 = vpop.f32.mrb[0].mxu0
        %v4582 = vadd.f32 0.0, %v4581
        %v4583 = vpop.f32.mrb[0].mxu0
        %v4584 = vpop.f32.mrb[0].mxu0
        %4585 = vdwg.mxu0
        %4586 = vmatprep.subr.bf16.mxu0 %v1586
        %4587 = vmatpush1.bf16.msra.mxu0 %v1585
        %4588 = vmatprep.subr.bf16.mxu0 %v1594
        %4589 = vmatpush1.bf16.msra.mxu0 %v1593
        %4590 = vmatprep.subr.bf16.mxu0 %v1602
        %4591 = vmatpush1.bf16.msra.mxu0 %v1601
        %4592 = vmatprep.subr.bf16.mxu0 %v1610
        %4593 = vmatpush1.bf16.msra.mxu0 %v1609
        %4594 = vmatprep.subr.bf16.mxu0 %v1618
        %4595 = vmatpush1.bf16.msra.mxu0 %v1617
        %4596 = vmatprep.subr.bf16.mxu0 %v1626
        %4597 = vmatpush1.bf16.msra.mxu0 %v1625
        %4598 = vmatprep.subr.bf16.mxu0 %v1634
        %4599 = vmatpush1.bf16.msra.mxu0 %v1633
        %4600 = vmatprep.subr.bf16.mxu0 %v1642
        %4601 = vmatpush1.bf16.msra.mxu0 %v1641
        %4602 = vmatprep.subr.bf16.mxu0 %v1650
        %4603 = vmatpush1.bf16.msra.mxu0 %v1649
        %4604 = vmatprep.subr.bf16.mxu0 %v1658
        %4605 = vmatpush1.bf16.msra.mxu0 %v1657
        %4606 = vmatprep.subr.bf16.mxu0 %v1666
        %4607 = vmatpush1.bf16.msra.mxu0 %v1665
        %4608 = vmatprep.subr.bf16.mxu0 %v1674
        %4609 = vmatpush1.bf16.msra.mxu0 %v1673
        %4610 = vmatprep.subr.bf16.mxu0 %v1682
        %4611 = vmatpush1.bf16.msra.mxu0 %v1681
        %4612 = vmatprep.subr.bf16.mxu0 %v1690
        %4613 = vmatpush1.bf16.msra.mxu0 %v1689
        %4614 = vmatprep.subr.bf16.mxu0 %v1698
        %4615 = vmatpush1.bf16.msra.mxu0 %v1697
        %4616 = vmatprep.subr.bf16.mxu0 %v1706
        %4617 = vmatpush1.bf16.msra.mxu0 %v1705
        %4618 = vmatprep.mubr.bf16.mxu0 %v4445
        %4619 = vmatmul.mubr.bf16.gmra.mrb[0].mxu0 %v4444
        %v4620 = vpop.f32.mrb[0].mxu0
        %v4621 = vadd.f32 0.0, %v4620
        %v4622 = vpop.f32.mrb[0].mxu0
        %v4623 = vadd.f32 0.0, %v4622
        %v4624 = vpop.f32.mrb[0].mxu0
        %v4625 = vpop.f32.mrb[0].mxu0
        %4626 = vdwg.mxu0
        %v4627 = vadd.f32 %v4455, %v4498
        %v4628 = vadd.f32 %v4456, %v4500
        %v4629 = vadd.f32 %v4457, %v4539
        %v4630 = vadd.f32 %v4458, %v4541
        %v4631 = vadd.f32 %v4459, %v4580
        %v4632 = vadd.f32 %v4460, %v4582
        %v4633 = vadd.f32 %v4461, %v4621
        %v4634 = vadd.f32 %v4462, %v4623
        %v4635 = vxor.u32 %v4627, 2147483648
        %v4636 = vxor.u32 %v4628, 2147483648
        %v4637 = vmul.f32 %v4635, 1.442695
        %v4638 = vpow.pop %v4637
        %v4639 = vmul.f32 %v4636, 1.442695
        %v4640 = vpow.pop %v4639
        %v4641 = vadd.f32 %v4638, 1.0
        %v4642 = vadd.f32 %v4640, 1.0
        %v4643 = vrcp.pop %v4641
        %v4644 = vmul.f32 1.0, %v4643
        %v4645 = vrcp.pop %v4642
        %v4646 = vmul.f32 1.0, %v4645
        %v4647 = vxor.u32 %v4629, 2147483648
        %v4648 = vxor.u32 %v4630, 2147483648
        %v4649 = vmul.f32 %v4647, 1.442695
        %v4650 = vpow.pop %v4649
        %v4651 = vmul.f32 %v4648, 1.442695
        %v4652 = vpow.pop %v4651
        %v4653 = vadd.f32 %v4650, 1.0
        %v4654 = vadd.f32 %v4652, 1.0
        %v4655 = vrcp.pop %v4653
        %v4656 = vmul.f32 1.0, %v4655
        %v4657 = vrcp.pop %v4654
        %v4658 = vmul.f32 1.0, %v4657
        %v4659 = vtanh.pop %v4631
        %v4660 = vtanh.pop %v4632
        %v4661 = vxor.u32 %v4633, 2147483648
        %v4662 = vxor.u32 %v4634, 2147483648
        %v4663 = vmul.f32 %v4661, 1.442695
        %v4664 = vpow.pop %v4663
        %v4665 = vmul.f32 %v4662, 1.442695
        %v4666 = vpow.pop %v4665
        %v4667 = vadd.f32 %v4664, 1.0
        %v4668 = vadd.f32 %v4666, 1.0
        %v4669 = vrcp.pop %v4667
        %v4670 = vmul.f32 1.0, %v4669
        %v4671 = vrcp.pop %v4668
        %v4672 = vmul.f32 1.0, %v4671
        %v4673 = vmul.f32 %v4656, %v4438
        %v4674 = vmul.f32 %v4658, %v4439
        %v4675 = vmul.f32 %v4644, %v4659
        %v4676 = vmul.f32 %v4646, %v4660
        %v4677 = vadd.f32 %v4673, %v4675
        %v4678 = vadd.f32 %v4674, %v4676
        %v4679 = vtanh.pop %v4677
        %v4680 = vtanh.pop %v4678
        %v4681 = vmul.f32 %v4670, %v4679
        %v4682 = vmul.f32 %v4672, %v4680
        %v4683 = vpack.c.bf16 %v4681, %v4681
        %v4684 = vpack.c.bf16 %v4682, %v4682
        %v4687 = vunpack.c.l.b16 %v4683
        %v4688 = vunpack.c.l.b16 %v4684
        %v4689 = vpack.c.b16 %v4688, %v4687
        %s4691 = scalar_lea.vmem [#allocation3], 88
        %4692 = vst [vmem:[%s4691] sm:$0xff] %v4689
        %s4693 = scalar_lea.vmem [#allocation2], 768
        %v4694 = vld [vmem:[%s4693] sm:$0xff]
        %v4695 = vld [vmem:[%s4693 + $0x8] sm:$0xff]
        %v4696 = vld [vmem:[%s4693 + $0x10] sm:$0xff]
        %v4697 = vld [vmem:[%s4693 + $0x18] sm:$0xff]
        %v4698 = vld [vmem:[%s4693 + $0x20] sm:$0xff]
        %v4699 = vld [vmem:[%s4693 + $0x28] sm:$0xff]
        %v4700 = vld [vmem:[%s4693 + $0x30] sm:$0xff]
        %v4701 = vld [vmem:[%s4693 + $0x38] sm:$0xff]
        %4702 = vmatprep.subr.bf16.mxu0 %v1580
        %4703 = vmatpush1.bf16.msra.mxu0 %v1579
        %4704 = vmatprep.subr.bf16.mxu0 %v1588
        %4705 = vmatpush1.bf16.msra.mxu0 %v1587
        %4706 = vmatprep.subr.bf16.mxu0 %v1596
        %4707 = vmatpush1.bf16.msra.mxu0 %v1595
        %4708 = vmatprep.subr.bf16.mxu0 %v1604
        %4709 = vmatpush1.bf16.msra.mxu0 %v1603
        %4710 = vmatprep.subr.bf16.mxu0 %v1612
        %4711 = vmatpush1.bf16.msra.mxu0 %v1611
        %4712 = vmatprep.subr.bf16.mxu0 %v1620
        %4713 = vmatpush1.bf16.msra.mxu0 %v1619
        %4714 = vmatprep.subr.bf16.mxu0 %v1628
        %4715 = vmatpush1.bf16.msra.mxu0 %v1627
        %4716 = vmatprep.subr.bf16.mxu0 %v1636
        %4717 = vmatpush1.bf16.msra.mxu0 %v1635
        %4718 = vmatprep.subr.bf16.mxu0 %v1644
        %4719 = vmatpush1.bf16.msra.mxu0 %v1643
        %4720 = vmatprep.subr.bf16.mxu0 %v1652
        %4721 = vmatpush1.bf16.msra.mxu0 %v1651
        %4722 = vmatprep.subr.bf16.mxu0 %v1660
        %4723 = vmatpush1.bf16.msra.mxu0 %v1659
        %4724 = vmatprep.subr.bf16.mxu0 %v1668
        %4725 = vmatpush1.bf16.msra.mxu0 %v1667
        %4726 = vmatprep.subr.bf16.mxu0 %v1676
        %4727 = vmatpush1.bf16.msra.mxu0 %v1675
        %4728 = vmatprep.subr.bf16.mxu0 %v1684
        %4729 = vmatpush1.bf16.msra.mxu0 %v1683
        %4730 = vmatprep.subr.bf16.mxu0 %v1692
        %4731 = vmatpush1.bf16.msra.mxu0 %v1691
        %4732 = vmatprep.subr.bf16.mxu0 %v1700
        %4733 = vmatpush1.bf16.msra.mxu0 %v1699
        %4734 = vmatprep.mubr.bf16.mxu0 %v4684
        %4735 = vmatmul.mubr.bf16.gmra.mrb[0].mxu0 %v4683
        %v4736 = vpop.f32.mrb[0].mxu0
        %v4737 = vadd.f32 0.0, %v4736
        %v4738 = vpop.f32.mrb[0].mxu0
        %v4739 = vadd.f32 0.0, %v4738
        %v4740 = vpop.f32.mrb[0].mxu0
        %v4741 = vpop.f32.mrb[0].mxu0
        %4742 = vdwg.mxu0
        %4743 = vmatprep.subr.bf16.mxu0 %v1582
        %4744 = vmatpush1.bf16.msra.mxu0 %v1581
        %4745 = vmatprep.subr.bf16.mxu0 %v1590
        %4746 = vmatpush1.bf16.msra.mxu0 %v1589
        %4747 = vmatprep.subr.bf16.mxu0 %v1598
        %4748 = vmatpush1.bf16.msra.mxu0 %v1597
        %4749 = vmatprep.subr.bf16.mxu0 %v1606
        %4750 = vmatpush1.bf16.msra.mxu0 %v1605
        %4751 = vmatprep.subr.bf16.mxu0 %v1614
        %4752 = vmatpush1.bf16.msra.mxu0 %v1613
        %4753 = vmatprep.subr.bf16.mxu0 %v1622
        %4754 = vmatpush1.bf16.msra.mxu0 %v1621
        %4755 = vmatprep.subr.bf16.mxu0 %v1630
        %4756 = vmatpush1.bf16.msra.mxu0 %v1629
        %4757 = vmatprep.subr.bf16.mxu0 %v1638
        %4758 = vmatpush1.bf16.msra.mxu0 %v1637
        %4759 = vmatprep.subr.bf16.mxu0 %v1646
        %4760 = vmatpush1.bf16.msra.mxu0 %v1645
        %4761 = vmatprep.subr.bf16.mxu0 %v1654
        %4762 = vmatpush1.bf16.msra.mxu0 %v1653
        %4763 = vmatprep.subr.bf16.mxu0 %v1662
        %4764 = vmatpush1.bf16.msra.mxu0 %v1661
        %4765 = vmatprep.subr.bf16.mxu0 %v1670
        %4766 = vmatpush1.bf16.msra.mxu0 %v1669
        %4767 = vmatprep.subr.bf16.mxu0 %v1678
        %4768 = vmatpush1.bf16.msra.mxu0 %v1677
        %4769 = vmatprep.subr.bf16.mxu0 %v1686
        %4770 = vmatpush1.bf16.msra.mxu0 %v1685
        %4771 = vmatprep.subr.bf16.mxu0 %v1694
        %4772 = vmatpush1.bf16.msra.mxu0 %v1693
        %4773 = vmatprep.subr.bf16.mxu0 %v1702
        %4774 = vmatpush1.bf16.msra.mxu0 %v1701
        %4775 = vmatprep.mubr.bf16.mxu0 %v4684
        %4776 = vmatmul.mubr.bf16.gmra.mrb[0].mxu0 %v4683
        %v4777 = vpop.f32.mrb[0].mxu0
        %v4778 = vadd.f32 0.0, %v4777
        %v4779 = vpop.f32.mrb[0].mxu0
        %v4780 = vadd.f32 0.0, %v4779
        %v4781 = vpop.f32.mrb[0].mxu0
        %v4782 = vpop.f32.mrb[0].mxu0
        %4783 = vdwg.mxu0
        %4784 = vmatprep.subr.bf16.mxu0 %v1584
        %4785 = vmatpush1.bf16.msra.mxu0 %v1583
        %4786 = vmatprep.subr.bf16.mxu0 %v1592
        %4787 = vmatpush1.bf16.msra.mxu0 %v1591
        %4788 = vmatprep.subr.bf16.mxu0 %v1600
        %4789 = vmatpush1.bf16.msra.mxu0 %v1599
        %4790 = vmatprep.subr.bf16.mxu0 %v1608
        %4791 = vmatpush1.bf16.msra.mxu0 %v1607
        %4792 = vmatprep.subr.bf16.mxu0 %v1616
        %4793 = vmatpush1.bf16.msra.mxu0 %v1615
        %4794 = vmatprep.subr.bf16.mxu0 %v1624
        %4795 = vmatpush1.bf16.msra.mxu0 %v1623
        %4796 = vmatprep.subr.bf16.mxu0 %v1632
        %4797 = vmatpush1.bf16.msra.mxu0 %v1631
        %4798 = vmatprep.subr.bf16.mxu0 %v1640
        %4799 = vmatpush1.bf16.msra.mxu0 %v1639
        %4800 = vmatprep.subr.bf16.mxu0 %v1648
        %4801 = vmatpush1.bf16.msra.mxu0 %v1647
        %4802 = vmatprep.subr.bf16.mxu0 %v1656
        %4803 = vmatpush1.bf16.msra.mxu0 %v1655
        %4804 = vmatprep.subr.bf16.mxu0 %v1664
        %4805 = vmatpush1.bf16.msra.mxu0 %v1663
        %4806 = vmatprep.subr.bf16.mxu0 %v1672
        %4807 = vmatpush1.bf16.msra.mxu0 %v1671
        %4808 = vmatprep.subr.bf16.mxu0 %v1680
        %4809 = vmatpush1.bf16.msra.mxu0 %v1679
        %4810 = vmatprep.subr.bf16.mxu0 %v1688
        %4811 = vmatpush1.bf16.msra.mxu0 %v1687
        %4812 = vmatprep.subr.bf16.mxu0 %v1696
        %4813 = vmatpush1.bf16.msra.mxu0 %v1695
        %4814 = vmatprep.subr.bf16.mxu0 %v1704
        %4815 = vmatpush1.bf16.msra.mxu0 %v1703
        %4816 = vmatprep.mubr.bf16.mxu0 %v4684
        %4817 = vmatmul.mubr.bf16.gmra.mrb[0].mxu0 %v4683
        %v4818 = vpop.f32.mrb[0].mxu0
        %v4819 = vadd.f32 0.0, %v4818
        %v4820 = vpop.f32.mrb[0].mxu0
        %v4821 = vadd.f32 0.0, %v4820
        %v4822 = vpop.f32.mrb[0].mxu0
        %v4823 = vpop.f32.mrb[0].mxu0
        %4824 = vdwg.mxu0
        %4825 = vmatprep.subr.bf16.mxu0 %v1586
        %4826 = vmatpush1.bf16.msra.mxu0 %v1585
        %4827 = vmatprep.subr.bf16.mxu0 %v1594
        %4828 = vmatpush1.bf16.msra.mxu0 %v1593
        %4829 = vmatprep.subr.bf16.mxu0 %v1602
        %4830 = vmatpush1.bf16.msra.mxu0 %v1601
        %4831 = vmatprep.subr.bf16.mxu0 %v1610
        %4832 = vmatpush1.bf16.msra.mxu0 %v1609
        %4833 = vmatprep.subr.bf16.mxu0 %v1618
        %4834 = vmatpush1.bf16.msra.mxu0 %v1617
        %4835 = vmatprep.subr.bf16.mxu0 %v1626
        %4836 = vmatpush1.bf16.msra.mxu0 %v1625
        %4837 = vmatprep.subr.bf16.mxu0 %v1634
        %4838 = vmatpush1.bf16.msra.mxu0 %v1633
        %4839 = vmatprep.subr.bf16.mxu0 %v1642
        %4840 = vmatpush1.bf16.msra.mxu0 %v1641
        %4841 = vmatprep.subr.bf16.mxu0 %v1650
        %4842 = vmatpush1.bf16.msra.mxu0 %v1649
        %4843 = vmatprep.subr.bf16.mxu0 %v1658
        %4844 = vmatpush1.bf16.msra.mxu0 %v1657
        %4845 = vmatprep.subr.bf16.mxu0 %v1666
        %4846 = vmatpush1.bf16.msra.mxu0 %v1665
        %4847 = vmatprep.subr.bf16.mxu0 %v1674
        %4848 = vmatpush1.bf16.msra.mxu0 %v1673
        %4849 = vmatprep.subr.bf16.mxu0 %v1682
        %4850 = vmatpush1.bf16.msra.mxu0 %v1681
        %4851 = vmatprep.subr.bf16.mxu0 %v1690
        %4852 = vmatpush1.bf16.msra.mxu0 %v1689
        %4853 = vmatprep.subr.bf16.mxu0 %v1698
        %4854 = vmatpush1.bf16.msra.mxu0 %v1697
        %4855 = vmatprep.subr.bf16.mxu0 %v1706
        %4856 = vmatpush1.bf16.msra.mxu0 %v1705
        %4857 = vmatprep.mubr.bf16.mxu0 %v4684
        %4858 = vmatmul.mubr.bf16.gmra.mrb[0].mxu0 %v4683
        %v4859 = vpop.f32.mrb[0].mxu0
        %v4860 = vadd.f32 0.0, %v4859
        %v4861 = vpop.f32.mrb[0].mxu0
        %v4862 = vadd.f32 0.0, %v4861
        %v4863 = vpop.f32.mrb[0].mxu0
        %v4864 = vpop.f32.mrb[0].mxu0
        %4865 = vdwg.mxu0
        %v4866 = vadd.f32 %v4694, %v4737
        %v4867 = vadd.f32 %v4695, %v4739
        %v4868 = vadd.f32 %v4696, %v4778
        %v4869 = vadd.f32 %v4697, %v4780
        %v4870 = vadd.f32 %v4698, %v4819
        %v4871 = vadd.f32 %v4699, %v4821
        %v4872 = vadd.f32 %v4700, %v4860
        %v4873 = vadd.f32 %v4701, %v4862
        %v4874 = vxor.u32 %v4866, 2147483648
        %v4875 = vxor.u32 %v4867, 2147483648
        %v4876 = vmul.f32 %v4874, 1.442695
        %v4877 = vpow.pop %v4876
        %v4878 = vmul.f32 %v4875, 1.442695
        %v4879 = vpow.pop %v4878
        %v4880 = vadd.f32 %v4877, 1.0
        %v4881 = vadd.f32 %v4879, 1.0
        %v4882 = vrcp.pop %v4880
        %v4883 = vmul.f32 1.0, %v4882
        %v4884 = vrcp.pop %v4881
        %v4885 = vmul.f32 1.0, %v4884
        %v4886 = vxor.u32 %v4868, 2147483648
        %v4887 = vxor.u32 %v4869, 2147483648
        %v4888 = vmul.f32 %v4886, 1.442695
        %v4889 = vpow.pop %v4888
        %v4890 = vmul.f32 %v4887, 1.442695
        %v4891 = vpow.pop %v4890
        %v4892 = vadd.f32 %v4889, 1.0
        %v4893 = vadd.f32 %v4891, 1.0
        %v4894 = vrcp.pop %v4892
        %v4895 = vmul.f32 1.0, %v4894
        %v4896 = vrcp.pop %v4893
        %v4897 = vmul.f32 1.0, %v4896
        %v4898 = vtanh.pop %v4870
        %v4899 = vtanh.pop %v4871
        %v4900 = vxor.u32 %v4872, 2147483648
        %v4901 = vxor.u32 %v4873, 2147483648
        %v4902 = vmul.f32 %v4900, 1.442695
        %v4903 = vpow.pop %v4902
        %v4904 = vmul.f32 %v4901, 1.442695
        %v4905 = vpow.pop %v4904
        %v4906 = vadd.f32 %v4903, 1.0
        %v4907 = vadd.f32 %v4905, 1.0
        %v4908 = vrcp.pop %v4906
        %v4909 = vmul.f32 1.0, %v4908
        %v4910 = vrcp.pop %v4907
        %v4911 = vmul.f32 1.0, %v4910
        %v4912 = vmul.f32 %v4895, %v4677
        %v4913 = vmul.f32 %v4897, %v4678
        %v4914 = vmul.f32 %v4883, %v4898
        %v4915 = vmul.f32 %v4885, %v4899
        %v4916 = vadd.f32 %v4912, %v4914
        %v4917 = vadd.f32 %v4913, %v4915
        %v4918 = vtanh.pop %v4916
        %v4919 = vtanh.pop %v4917
        %v4920 = vmul.f32 %v4909, %v4918
        %v4921 = vmul.f32 %v4911, %v4919
        %v4922 = vpack.c.bf16 %v4920, %v4920
        %v4923 = vpack.c.bf16 %v4921, %v4921
        %v4926 = vunpack.c.l.b16 %v4922
        %v4927 = vunpack.c.l.b16 %v4923
        %v4928 = vpack.c.b16 %v4927, %v4926
        %s4930 = scalar_lea.vmem [#allocation3], 96
        %4931 = vst [vmem:[%s4930] sm:$0xff] %v4928
        %s4932 = scalar_lea.vmem [#allocation2], 832
        %v4933 = vld [vmem:[%s4932] sm:$0xff]
        %v4934 = vld [vmem:[%s4932 + $0x8] sm:$0xff]
        %v4935 = vld [vmem:[%s4932 + $0x10] sm:$0xff]
        %v4936 = vld [vmem:[%s4932 + $0x18] sm:$0xff]
        %v4937 = vld [vmem:[%s4932 + $0x20] sm:$0xff]
        %v4938 = vld [vmem:[%s4932 + $0x28] sm:$0xff]
        %v4939 = vld [vmem:[%s4932 + $0x30] sm:$0xff]
        %v4940 = vld [vmem:[%s4932 + $0x38] sm:$0xff]
        %4941 = vmatprep.subr.bf16.mxu0 %v1580
        %4942 = vmatpush1.bf16.msra.mxu0 %v1579
        %4943 = vmatprep.subr.bf16.mxu0 %v1588
        %4944 = vmatpush1.bf16.msra.mxu0 %v1587
        %4945 = vmatprep.subr.bf16.mxu0 %v1596
        %4946 = vmatpush1.bf16.msra.mxu0 %v1595
        %4947 = vmatprep.subr.bf16.mxu0 %v1604
        %4948 = vmatpush1.bf16.msra.mxu0 %v1603
        %4949 = vmatprep.subr.bf16.mxu0 %v1612
        %4950 = vmatpush1.bf16.msra.mxu0 %v1611
        %4951 = vmatprep.subr.bf16.mxu0 %v1620
        %4952 = vmatpush1.bf16.msra.mxu0 %v1619
        %4953 = vmatprep.subr.bf16.mxu0 %v1628
        %4954 = vmatpush1.bf16.msra.mxu0 %v1627
        %4955 = vmatprep.subr.bf16.mxu0 %v1636
        %4956 = vmatpush1.bf16.msra.mxu0 %v1635
        %4957 = vmatprep.subr.bf16.mxu0 %v1644
        %4958 = vmatpush1.bf16.msra.mxu0 %v1643
        %4959 = vmatprep.subr.bf16.mxu0 %v1652
        %4960 = vmatpush1.bf16.msra.mxu0 %v1651
        %4961 = vmatprep.subr.bf16.mxu0 %v1660
        %4962 = vmatpush1.bf16.msra.mxu0 %v1659
        %4963 = vmatprep.subr.bf16.mxu0 %v1668
        %4964 = vmatpush1.bf16.msra.mxu0 %v1667
        %4965 = vmatprep.subr.bf16.mxu0 %v1676
        %4966 = vmatpush1.bf16.msra.mxu0 %v1675
        %4967 = vmatprep.subr.bf16.mxu0 %v1684
        %4968 = vmatpush1.bf16.msra.mxu0 %v1683
        %4969 = vmatprep.subr.bf16.mxu0 %v1692
        %4970 = vmatpush1.bf16.msra.mxu0 %v1691
        %4971 = vmatprep.subr.bf16.mxu0 %v1700
        %4972 = vmatpush1.bf16.msra.mxu0 %v1699
        %4973 = vmatprep.mubr.bf16.mxu0 %v4923
        %4974 = vmatmul.mubr.bf16.gmra.mrb[0].mxu0 %v4922
        %v4975 = vpop.f32.mrb[0].mxu0
        %v4976 = vadd.f32 0.0, %v4975
        %v4977 = vpop.f32.mrb[0].mxu0
        %v4978 = vadd.f32 0.0, %v4977
        %v4979 = vpop.f32.mrb[0].mxu0
        %v4980 = vpop.f32.mrb[0].mxu0
        %4981 = vdwg.mxu0
        %4982 = vmatprep.subr.bf16.mxu0 %v1582
        %4983 = vmatpush1.bf16.msra.mxu0 %v1581
        %4984 = vmatprep.subr.bf16.mxu0 %v1590
        %4985 = vmatpush1.bf16.msra.mxu0 %v1589
        %4986 = vmatprep.subr.bf16.mxu0 %v1598
        %4987 = vmatpush1.bf16.msra.mxu0 %v1597
        %4988 = vmatprep.subr.bf16.mxu0 %v1606
        %4989 = vmatpush1.bf16.msra.mxu0 %v1605
        %4990 = vmatprep.subr.bf16.mxu0 %v1614
        %4991 = vmatpush1.bf16.msra.mxu0 %v1613
        %4992 = vmatprep.subr.bf16.mxu0 %v1622
        %4993 = vmatpush1.bf16.msra.mxu0 %v1621
        %4994 = vmatprep.subr.bf16.mxu0 %v1630
        %4995 = vmatpush1.bf16.msra.mxu0 %v1629
        %4996 = vmatprep.subr.bf16.mxu0 %v1638
        %4997 = vmatpush1.bf16.msra.mxu0 %v1637
        %4998 = vmatprep.subr.bf16.mxu0 %v1646
        %4999 = vmatpush1.bf16.msra.mxu0 %v1645
        %5000 = vmatprep.subr.bf16.mxu0 %v1654
        %5001 = vmatpush1.bf16.msra.mxu0 %v1653
        %5002 = vmatprep.subr.bf16.mxu0 %v1662
        %5003 = vmatpush1.bf16.msra.mxu0 %v1661
        %5004 = vmatprep.subr.bf16.mxu0 %v1670
        %5005 = vmatpush1.bf16.msra.mxu0 %v1669
        %5006 = vmatprep.subr.bf16.mxu0 %v1678
        %5007 = vmatpush1.bf16.msra.mxu0 %v1677
        %5008 = vmatprep.subr.bf16.mxu0 %v1686
        %5009 = vmatpush1.bf16.msra.mxu0 %v1685
        %5010 = vmatprep.subr.bf16.mxu0 %v1694
        %5011 = vmatpush1.bf16.msra.mxu0 %v1693
        %5012 = vmatprep.subr.bf16.mxu0 %v1702
        %5013 = vmatpush1.bf16.msra.mxu0 %v1701
        %5014 = vmatprep.mubr.bf16.mxu0 %v4923
        %5015 = vmatmul.mubr.bf16.gmra.mrb[0].mxu0 %v4922
        %v5016 = vpop.f32.mrb[0].mxu0
        %v5017 = vadd.f32 0.0, %v5016
        %v5018 = vpop.f32.mrb[0].mxu0
        %v5019 = vadd.f32 0.0, %v5018
        %v5020 = vpop.f32.mrb[0].mxu0
        %v5021 = vpop.f32.mrb[0].mxu0
        %5022 = vdwg.mxu0
        %5023 = vmatprep.subr.bf16.mxu0 %v1584
        %5024 = vmatpush1.bf16.msra.mxu0 %v1583
        %5025 = vmatprep.subr.bf16.mxu0 %v1592
        %5026 = vmatpush1.bf16.msra.mxu0 %v1591
        %5027 = vmatprep.subr.bf16.mxu0 %v1600
        %5028 = vmatpush1.bf16.msra.mxu0 %v1599
        %5029 = vmatprep.subr.bf16.mxu0 %v1608
        %5030 = vmatpush1.bf16.msra.mxu0 %v1607
        %5031 = vmatprep.subr.bf16.mxu0 %v1616
        %5032 = vmatpush1.bf16.msra.mxu0 %v1615
        %5033 = vmatprep.subr.bf16.mxu0 %v1624
        %5034 = vmatpush1.bf16.msra.mxu0 %v1623
        %5035 = vmatprep.subr.bf16.mxu0 %v1632
        %5036 = vmatpush1.bf16.msra.mxu0 %v1631
        %5037 = vmatprep.subr.bf16.mxu0 %v1640
        %5038 = vmatpush1.bf16.msra.mxu0 %v1639
        %5039 = vmatprep.subr.bf16.mxu0 %v1648
        %5040 = vmatpush1.bf16.msra.mxu0 %v1647
        %5041 = vmatprep.subr.bf16.mxu0 %v1656
        %5042 = vmatpush1.bf16.msra.mxu0 %v1655
        %5043 = vmatprep.subr.bf16.mxu0 %v1664
        %5044 = vmatpush1.bf16.msra.mxu0 %v1663
        %5045 = vmatprep.subr.bf16.mxu0 %v1672
        %5046 = vmatpush1.bf16.msra.mxu0 %v1671
        %5047 = vmatprep.subr.bf16.mxu0 %v1680
        %5048 = vmatpush1.bf16.msra.mxu0 %v1679
        %5049 = vmatprep.subr.bf16.mxu0 %v1688
        %5050 = vmatpush1.bf16.msra.mxu0 %v1687
        %5051 = vmatprep.subr.bf16.mxu0 %v1696
        %5052 = vmatpush1.bf16.msra.mxu0 %v1695
        %5053 = vmatprep.subr.bf16.mxu0 %v1704
        %5054 = vmatpush1.bf16.msra.mxu0 %v1703
        %5055 = vmatprep.mubr.bf16.mxu0 %v4923
        %5056 = vmatmul.mubr.bf16.gmra.mrb[0].mxu0 %v4922
        %v5057 = vpop.f32.mrb[0].mxu0
        %v5058 = vadd.f32 0.0, %v5057
        %v5059 = vpop.f32.mrb[0].mxu0
        %v5060 = vadd.f32 0.0, %v5059
        %v5061 = vpop.f32.mrb[0].mxu0
        %v5062 = vpop.f32.mrb[0].mxu0
        %5063 = vdwg.mxu0
        %5064 = vmatprep.subr.bf16.mxu0 %v1586
        %5065 = vmatpush1.bf16.msra.mxu0 %v1585
        %5066 = vmatprep.subr.bf16.mxu0 %v1594
        %5067 = vmatpush1.bf16.msra.mxu0 %v1593
        %5068 = vmatprep.subr.bf16.mxu0 %v1602
        %5069 = vmatpush1.bf16.msra.mxu0 %v1601
        %5070 = vmatprep.subr.bf16.mxu0 %v1610
        %5071 = vmatpush1.bf16.msra.mxu0 %v1609
        %5072 = vmatprep.subr.bf16.mxu0 %v1618
        %5073 = vmatpush1.bf16.msra.mxu0 %v1617
        %5074 = vmatprep.subr.bf16.mxu0 %v1626
        %5075 = vmatpush1.bf16.msra.mxu0 %v1625
        %5076 = vmatprep.subr.bf16.mxu0 %v1634
        %5077 = vmatpush1.bf16.msra.mxu0 %v1633
        %5078 = vmatprep.subr.bf16.mxu0 %v1642
        %5079 = vmatpush1.bf16.msra.mxu0 %v1641
        %5080 = vmatprep.subr.bf16.mxu0 %v1650
        %5081 = vmatpush1.bf16.msra.mxu0 %v1649
        %5082 = vmatprep.subr.bf16.mxu0 %v1658
        %5083 = vmatpush1.bf16.msra.mxu0 %v1657
        %5084 = vmatprep.subr.bf16.mxu0 %v1666
        %5085 = vmatpush1.bf16.msra.mxu0 %v1665
        %5086 = vmatprep.subr.bf16.mxu0 %v1674
        %5087 = vmatpush1.bf16.msra.mxu0 %v1673
        %5088 = vmatprep.subr.bf16.mxu0 %v1682
        %5089 = vmatpush1.bf16.msra.mxu0 %v1681
        %5090 = vmatprep.subr.bf16.mxu0 %v1690
        %5091 = vmatpush1.bf16.msra.mxu0 %v1689
        %5092 = vmatprep.subr.bf16.mxu0 %v1698
        %5093 = vmatpush1.bf16.msra.mxu0 %v1697
        %5094 = vmatprep.subr.bf16.mxu0 %v1706
        %5095 = vmatpush1.bf16.msra.mxu0 %v1705
        %5096 = vmatprep.mubr.bf16.mxu0 %v4923
        %5097 = vmatmul.mubr.bf16.gmra.mrb[0].mxu0 %v4922
        %v5098 = vpop.f32.mrb[0].mxu0
        %v5099 = vadd.f32 0.0, %v5098
        %v5100 = vpop.f32.mrb[0].mxu0
        %v5101 = vadd.f32 0.0, %v5100
        %v5102 = vpop.f32.mrb[0].mxu0
        %v5103 = vpop.f32.mrb[0].mxu0
        %5104 = vdwg.mxu0
        %v5105 = vadd.f32 %v4933, %v4976
        %v5106 = vadd.f32 %v4934, %v4978
        %v5107 = vadd.f32 %v4935, %v5017
        %v5108 = vadd.f32 %v4936, %v5019
        %v5109 = vadd.f32 %v4937, %v5058
        %v5110 = vadd.f32 %v4938, %v5060
        %v5111 = vadd.f32 %v4939, %v5099
        %v5112 = vadd.f32 %v4940, %v5101
        %v5113 = vxor.u32 %v5105, 2147483648
        %v5114 = vxor.u32 %v5106, 2147483648
        %v5115 = vmul.f32 %v5113, 1.442695
        %v5116 = vpow.pop %v5115
        %v5117 = vmul.f32 %v5114, 1.442695
        %v5118 = vpow.pop %v5117
        %v5119 = vadd.f32 %v5116, 1.0
        %v5120 = vadd.f32 %v5118, 1.0
        %v5121 = vrcp.pop %v5119
        %v5122 = vmul.f32 1.0, %v5121
        %v5123 = vrcp.pop %v5120
        %v5124 = vmul.f32 1.0, %v5123
        %v5125 = vxor.u32 %v5107, 2147483648
        %v5126 = vxor.u32 %v5108, 2147483648
        %v5127 = vmul.f32 %v5125, 1.442695
        %v5128 = vpow.pop %v5127
        %v5129 = vmul.f32 %v5126, 1.442695
        %v5130 = vpow.pop %v5129
        %v5131 = vadd.f32 %v5128, 1.0
        %v5132 = vadd.f32 %v5130, 1.0
        %v5133 = vrcp.pop %v5131
        %v5134 = vmul.f32 1.0, %v5133
        %v5135 = vrcp.pop %v5132
        %v5136 = vmul.f32 1.0, %v5135
        %v5137 = vtanh.pop %v5109
        %v5138 = vtanh.pop %v5110
        %v5139 = vxor.u32 %v5111, 2147483648
        %v5140 = vxor.u32 %v5112, 2147483648
        %v5141 = vmul.f32 %v5139, 1.442695
        %v5142 = vpow.pop %v5141
        %v5143 = vmul.f32 %v5140, 1.442695
        %v5144 = vpow.pop %v5143
        %v5145 = vadd.f32 %v5142, 1.0
        %v5146 = vadd.f32 %v5144, 1.0
        %v5147 = vrcp.pop %v5145
        %v5148 = vmul.f32 1.0, %v5147
        %v5149 = vrcp.pop %v5146
        %v5150 = vmul.f32 1.0, %v5149
        %v5151 = vmul.f32 %v5134, %v4916
        %v5152 = vmul.f32 %v5136, %v4917
        %v5153 = vmul.f32 %v5122, %v5137
        %v5154 = vmul.f32 %v5124, %v5138
        %v5155 = vadd.f32 %v5151, %v5153
        %v5156 = vadd.f32 %v5152, %v5154
        %v5157 = vtanh.pop %v5155
        %v5158 = vtanh.pop %v5156
        %v5159 = vmul.f32 %v5148, %v5157
        %v5160 = vmul.f32 %v5150, %v5158
        %v5161 = vpack.c.bf16 %v5159, %v5159
        %v5162 = vpack.c.bf16 %v5160, %v5160
        %v5165 = vunpack.c.l.b16 %v5161
        %v5166 = vunpack.c.l.b16 %v5162
        %v5167 = vpack.c.b16 %v5166, %v5165
        %s5169 = scalar_lea.vmem [#allocation3], 104
        %5170 = vst [vmem:[%s5169] sm:$0xff] %v5167
        %s5171 = scalar_lea.vmem [#allocation2], 896
        %v5172 = vld [vmem:[%s5171] sm:$0xff]
        %v5173 = vld [vmem:[%s5171 + $0x8] sm:$0xff]
        %v5174 = vld [vmem:[%s5171 + $0x10] sm:$0xff]
        %v5175 = vld [vmem:[%s5171 + $0x18] sm:$0xff]
        %v5176 = vld [vmem:[%s5171 + $0x20] sm:$0xff]
        %v5177 = vld [vmem:[%s5171 + $0x28] sm:$0xff]
        %v5178 = vld [vmem:[%s5171 + $0x30] sm:$0xff]
        %v5179 = vld [vmem:[%s5171 + $0x38] sm:$0xff]
        %5180 = vmatprep.subr.bf16.mxu0 %v1580
        %5181 = vmatpush1.bf16.msra.mxu0 %v1579
        %5182 = vmatprep.subr.bf16.mxu0 %v1588
        %5183 = vmatpush1.bf16.msra.mxu0 %v1587
        %5184 = vmatprep.subr.bf16.mxu0 %v1596
        %5185 = vmatpush1.bf16.msra.mxu0 %v1595
        %5186 = vmatprep.subr.bf16.mxu0 %v1604
        %5187 = vmatpush1.bf16.msra.mxu0 %v1603
        %5188 = vmatprep.subr.bf16.mxu0 %v1612
        %5189 = vmatpush1.bf16.msra.mxu0 %v1611
        %5190 = vmatprep.subr.bf16.mxu0 %v1620
        %5191 = vmatpush1.bf16.msra.mxu0 %v1619
        %5192 = vmatprep.subr.bf16.mxu0 %v1628
        %5193 = vmatpush1.bf16.msra.mxu0 %v1627
        %5194 = vmatprep.subr.bf16.mxu0 %v1636
        %5195 = vmatpush1.bf16.msra.mxu0 %v1635
        %5196 = vmatprep.subr.bf16.mxu0 %v1644
        %5197 = vmatpush1.bf16.msra.mxu0 %v1643
        %5198 = vmatprep.subr.bf16.mxu0 %v1652
        %5199 = vmatpush1.bf16.msra.mxu0 %v1651
        %5200 = vmatprep.subr.bf16.mxu0 %v1660
        %5201 = vmatpush1.bf16.msra.mxu0 %v1659
        %5202 = vmatprep.subr.bf16.mxu0 %v1668
        %5203 = vmatpush1.bf16.msra.mxu0 %v1667
        %5204 = vmatprep.subr.bf16.mxu0 %v1676
        %5205 = vmatpush1.bf16.msra.mxu0 %v1675
        %5206 = vmatprep.subr.bf16.mxu0 %v1684
        %5207 = vmatpush1.bf16.msra.mxu0 %v1683
        %5208 = vmatprep.subr.bf16.mxu0 %v1692
        %5209 = vmatpush1.bf16.msra.mxu0 %v1691
        %5210 = vmatprep.subr.bf16.mxu0 %v1700
        %5211 = vmatpush1.bf16.msra.mxu0 %v1699
        %5212 = vmatprep.mubr.bf16.mxu0 %v5162
        %5213 = vmatmul.mubr.bf16.gmra.mrb[0].mxu0 %v5161
        %v5214 = vpop.f32.mrb[0].mxu0
        %v5215 = vadd.f32 0.0, %v5214
        %v5216 = vpop.f32.mrb[0].mxu0
        %v5217 = vadd.f32 0.0, %v5216
        %v5218 = vpop.f32.mrb[0].mxu0
        %v5219 = vpop.f32.mrb[0].mxu0
        %5220 = vdwg.mxu0
        %5221 = vmatprep.subr.bf16.mxu0 %v1582
        %5222 = vmatpush1.bf16.msra.mxu0 %v1581
        %5223 = vmatprep.subr.bf16.mxu0 %v1590
        %5224 = vmatpush1.bf16.msra.mxu0 %v1589
        %5225 = vmatprep.subr.bf16.mxu0 %v1598
        %5226 = vmatpush1.bf16.msra.mxu0 %v1597
        %5227 = vmatprep.subr.bf16.mxu0 %v1606
        %5228 = vmatpush1.bf16.msra.mxu0 %v1605
        %5229 = vmatprep.subr.bf16.mxu0 %v1614
        %5230 = vmatpush1.bf16.msra.mxu0 %v1613
        %5231 = vmatprep.subr.bf16.mxu0 %v1622
        %5232 = vmatpush1.bf16.msra.mxu0 %v1621
        %5233 = vmatprep.subr.bf16.mxu0 %v1630
        %5234 = vmatpush1.bf16.msra.mxu0 %v1629
        %5235 = vmatprep.subr.bf16.mxu0 %v1638
        %5236 = vmatpush1.bf16.msra.mxu0 %v1637
        %5237 = vmatprep.subr.bf16.mxu0 %v1646
        %5238 = vmatpush1.bf16.msra.mxu0 %v1645
        %5239 = vmatprep.subr.bf16.mxu0 %v1654
        %5240 = vmatpush1.bf16.msra.mxu0 %v1653
        %5241 = vmatprep.subr.bf16.mxu0 %v1662
        %5242 = vmatpush1.bf16.msra.mxu0 %v1661
        %5243 = vmatprep.subr.bf16.mxu0 %v1670
        %5244 = vmatpush1.bf16.msra.mxu0 %v1669
        %5245 = vmatprep.subr.bf16.mxu0 %v1678
        %5246 = vmatpush1.bf16.msra.mxu0 %v1677
        %5247 = vmatprep.subr.bf16.mxu0 %v1686
        %5248 = vmatpush1.bf16.msra.mxu0 %v1685
        %5249 = vmatprep.subr.bf16.mxu0 %v1694
        %5250 = vmatpush1.bf16.msra.mxu0 %v1693
        %5251 = vmatprep.subr.bf16.mxu0 %v1702
        %5252 = vmatpush1.bf16.msra.mxu0 %v1701
        %5253 = vmatprep.mubr.bf16.mxu0 %v5162
        %5254 = vmatmul.mubr.bf16.gmra.mrb[0].mxu0 %v5161
        %v5255 = vpop.f32.mrb[0].mxu0
        %v5256 = vadd.f32 0.0, %v5255
        %v5257 = vpop.f32.mrb[0].mxu0
        %v5258 = vadd.f32 0.0, %v5257
        %v5259 = vpop.f32.mrb[0].mxu0
        %v5260 = vpop.f32.mrb[0].mxu0
        %5261 = vdwg.mxu0
        %5262 = vmatprep.subr.bf16.mxu0 %v1584
        %5263 = vmatpush1.bf16.msra.mxu0 %v1583
        %5264 = vmatprep.subr.bf16.mxu0 %v1592
        %5265 = vmatpush1.bf16.msra.mxu0 %v1591
        %5266 = vmatprep.subr.bf16.mxu0 %v1600
        %5267 = vmatpush1.bf16.msra.mxu0 %v1599
        %5268 = vmatprep.subr.bf16.mxu0 %v1608
        %5269 = vmatpush1.bf16.msra.mxu0 %v1607
        %5270 = vmatprep.subr.bf16.mxu0 %v1616
        %5271 = vmatpush1.bf16.msra.mxu0 %v1615
        %5272 = vmatprep.subr.bf16.mxu0 %v1624
        %5273 = vmatpush1.bf16.msra.mxu0 %v1623
        %5274 = vmatprep.subr.bf16.mxu0 %v1632
        %5275 = vmatpush1.bf16.msra.mxu0 %v1631
        %5276 = vmatprep.subr.bf16.mxu0 %v1640
        %5277 = vmatpush1.bf16.msra.mxu0 %v1639
        %5278 = vmatprep.subr.bf16.mxu0 %v1648
        %5279 = vmatpush1.bf16.msra.mxu0 %v1647
        %5280 = vmatprep.subr.bf16.mxu0 %v1656
        %5281 = vmatpush1.bf16.msra.mxu0 %v1655
        %5282 = vmatprep.subr.bf16.mxu0 %v1664
        %5283 = vmatpush1.bf16.msra.mxu0 %v1663
        %5284 = vmatprep.subr.bf16.mxu0 %v1672
        %5285 = vmatpush1.bf16.msra.mxu0 %v1671
        %5286 = vmatprep.subr.bf16.mxu0 %v1680
        %5287 = vmatpush1.bf16.msra.mxu0 %v1679
        %5288 = vmatprep.subr.bf16.mxu0 %v1688
        %5289 = vmatpush1.bf16.msra.mxu0 %v1687
        %5290 = vmatprep.subr.bf16.mxu0 %v1696
        %5291 = vmatpush1.bf16.msra.mxu0 %v1695
        %5292 = vmatprep.subr.bf16.mxu0 %v1704
        %5293 = vmatpush1.bf16.msra.mxu0 %v1703
        %5294 = vmatprep.mubr.bf16.mxu0 %v5162
        %5295 = vmatmul.mubr.bf16.gmra.mrb[0].mxu0 %v5161
        %v5296 = vpop.f32.mrb[0].mxu0
        %v5297 = vadd.f32 0.0, %v5296
        %v5298 = vpop.f32.mrb[0].mxu0
        %v5299 = vadd.f32 0.0, %v5298
        %v5300 = vpop.f32.mrb[0].mxu0
        %v5301 = vpop.f32.mrb[0].mxu0
        %5302 = vdwg.mxu0
        %5303 = vmatprep.subr.bf16.mxu0 %v1586
        %5304 = vmatpush1.bf16.msra.mxu0 %v1585
        %5305 = vmatprep.subr.bf16.mxu0 %v1594
        %5306 = vmatpush1.bf16.msra.mxu0 %v1593
        %5307 = vmatprep.subr.bf16.mxu0 %v1602
        %5308 = vmatpush1.bf16.msra.mxu0 %v1601
        %5309 = vmatprep.subr.bf16.mxu0 %v1610
        %5310 = vmatpush1.bf16.msra.mxu0 %v1609
        %5311 = vmatprep.subr.bf16.mxu0 %v1618
        %5312 = vmatpush1.bf16.msra.mxu0 %v1617
        %5313 = vmatprep.subr.bf16.mxu0 %v1626
        %5314 = vmatpush1.bf16.msra.mxu0 %v1625
        %5315 = vmatprep.subr.bf16.mxu0 %v1634
        %5316 = vmatpush1.bf16.msra.mxu0 %v1633
        %5317 = vmatprep.subr.bf16.mxu0 %v1642
        %5318 = vmatpush1.bf16.msra.mxu0 %v1641
        %5319 = vmatprep.subr.bf16.mxu0 %v1650
        %5320 = vmatpush1.bf16.msra.mxu0 %v1649
        %5321 = vmatprep.subr.bf16.mxu0 %v1658
        %5322 = vmatpush1.bf16.msra.mxu0 %v1657
        %5323 = vmatprep.subr.bf16.mxu0 %v1666
        %5324 = vmatpush1.bf16.msra.mxu0 %v1665
        %5325 = vmatprep.subr.bf16.mxu0 %v1674
        %5326 = vmatpush1.bf16.msra.mxu0 %v1673
        %5327 = vmatprep.subr.bf16.mxu0 %v1682
        %5328 = vmatpush1.bf16.msra.mxu0 %v1681
        %5329 = vmatprep.subr.bf16.mxu0 %v1690
        %5330 = vmatpush1.bf16.msra.mxu0 %v1689
        %5331 = vmatprep.subr.bf16.mxu0 %v1698
        %5332 = vmatpush1.bf16.msra.mxu0 %v1697
        %5333 = vmatprep.subr.bf16.mxu0 %v1706
        %5334 = vmatpush1.bf16.msra.mxu0 %v1705
        %5335 = vmatprep.mubr.bf16.mxu0 %v5162
        %5336 = vmatmul.mubr.bf16.gmra.mrb[0].mxu0 %v5161
        %v5337 = vpop.f32.mrb[0].mxu0
        %v5338 = vadd.f32 0.0, %v5337
        %v5339 = vpop.f32.mrb[0].mxu0
        %v5340 = vadd.f32 0.0, %v5339
        %v5341 = vpop.f32.mrb[0].mxu0
        %v5342 = vpop.f32.mrb[0].mxu0
        %5343 = vdwg.mxu0
        %v5344 = vadd.f32 %v5172, %v5215
        %v5345 = vadd.f32 %v5173, %v5217
        %v5346 = vadd.f32 %v5174, %v5256
        %v5347 = vadd.f32 %v5175, %v5258
        %v5348 = vadd.f32 %v5176, %v5297
        %v5349 = vadd.f32 %v5177, %v5299
        %v5350 = vadd.f32 %v5178, %v5338
        %v5351 = vadd.f32 %v5179, %v5340
        %v5352 = vxor.u32 %v5344, 2147483648
        %v5353 = vxor.u32 %v5345, 2147483648
        %v5354 = vmul.f32 %v5352, 1.442695
        %v5355 = vpow.pop %v5354
        %v5356 = vmul.f32 %v5353, 1.442695
        %v5357 = vpow.pop %v5356
        %v5358 = vadd.f32 %v5355, 1.0
        %v5359 = vadd.f32 %v5357, 1.0
        %v5360 = vrcp.pop %v5358
        %v5361 = vmul.f32 1.0, %v5360
        %v5362 = vrcp.pop %v5359
        %v5363 = vmul.f32 1.0, %v5362
        %v5364 = vxor.u32 %v5346, 2147483648
        %v5365 = vxor.u32 %v5347, 2147483648
        %v5366 = vmul.f32 %v5364, 1.442695
        %v5367 = vpow.pop %v5366
        %v5368 = vmul.f32 %v5365, 1.442695
        %v5369 = vpow.pop %v5368
        %v5370 = vadd.f32 %v5367, 1.0
        %v5371 = vadd.f32 %v5369, 1.0
        %v5372 = vrcp.pop %v5370
        %v5373 = vmul.f32 1.0, %v5372
        %v5374 = vrcp.pop %v5371
        %v5375 = vmul.f32 1.0, %v5374
        %v5376 = vtanh.pop %v5348
        %v5377 = vtanh.pop %v5349
        %v5378 = vxor.u32 %v5350, 2147483648
        %v5379 = vxor.u32 %v5351, 2147483648
        %v5380 = vmul.f32 %v5378, 1.442695
        %v5381 = vpow.pop %v5380
        %v5382 = vmul.f32 %v5379, 1.442695
        %v5383 = vpow.pop %v5382
        %v5384 = vadd.f32 %v5381, 1.0
        %v5385 = vadd.f32 %v5383, 1.0
        %v5386 = vrcp.pop %v5384
        %v5387 = vmul.f32 1.0, %v5386
        %v5388 = vrcp.pop %v5385
        %v5389 = vmul.f32 1.0, %v5388
        %v5390 = vmul.f32 %v5373, %v5155
        %v5391 = vmul.f32 %v5375, %v5156
        %v5392 = vmul.f32 %v5361, %v5376
        %v5393 = vmul.f32 %v5363, %v5377
        %v5394 = vadd.f32 %v5390, %v5392
        %v5395 = vadd.f32 %v5391, %v5393
        %v5396 = vtanh.pop %v5394
        %v5397 = vtanh.pop %v5395
        %v5398 = vmul.f32 %v5387, %v5396
        %v5399 = vmul.f32 %v5389, %v5397
        %v5400 = vpack.c.bf16 %v5398, %v5398
        %v5401 = vpack.c.bf16 %v5399, %v5399
        %v5404 = vunpack.c.l.b16 %v5400
        %v5405 = vunpack.c.l.b16 %v5401
        %v5406 = vpack.c.b16 %v5405, %v5404
        %s5408 = scalar_lea.vmem [#allocation3], 112
        %5409 = vst [vmem:[%s5408] sm:$0xff] %v5406
        %s5410 = scalar_lea.vmem [#allocation2], 960
        %v5411 = vld [vmem:[%s5410] sm:$0xff]
        %v5412 = vld [vmem:[%s5410 + $0x8] sm:$0xff]
        %v5413 = vld [vmem:[%s5410 + $0x10] sm:$0xff]
        %v5414 = vld [vmem:[%s5410 + $0x18] sm:$0xff]
        %v5415 = vld [vmem:[%s5410 + $0x20] sm:$0xff]
        %v5416 = vld [vmem:[%s5410 + $0x28] sm:$0xff]
        %v5417 = vld [vmem:[%s5410 + $0x30] sm:$0xff]
        %v5418 = vld [vmem:[%s5410 + $0x38] sm:$0xff]
        %5419 = vmatprep.subr.bf16.mxu0 %v1580
        %5420 = vmatpush1.bf16.msra.mxu0 %v1579
        %5421 = vmatprep.subr.bf16.mxu0 %v1588
        %5422 = vmatpush1.bf16.msra.mxu0 %v1587
        %5423 = vmatprep.subr.bf16.mxu0 %v1596
        %5424 = vmatpush1.bf16.msra.mxu0 %v1595
        %5425 = vmatprep.subr.bf16.mxu0 %v1604
        %5426 = vmatpush1.bf16.msra.mxu0 %v1603
        %5427 = vmatprep.subr.bf16.mxu0 %v1612
        %5428 = vmatpush1.bf16.msra.mxu0 %v1611
        %5429 = vmatprep.subr.bf16.mxu0 %v1620
        %5430 = vmatpush1.bf16.msra.mxu0 %v1619
        %5431 = vmatprep.subr.bf16.mxu0 %v1628
        %5432 = vmatpush1.bf16.msra.mxu0 %v1627
        %5433 = vmatprep.subr.bf16.mxu0 %v1636
        %5434 = vmatpush1.bf16.msra.mxu0 %v1635
        %5435 = vmatprep.subr.bf16.mxu0 %v1644
        %5436 = vmatpush1.bf16.msra.mxu0 %v1643
        %5437 = vmatprep.subr.bf16.mxu0 %v1652
        %5438 = vmatpush1.bf16.msra.mxu0 %v1651
        %5439 = vmatprep.subr.bf16.mxu0 %v1660
        %5440 = vmatpush1.bf16.msra.mxu0 %v1659
        %5441 = vmatprep.subr.bf16.mxu0 %v1668
        %5442 = vmatpush1.bf16.msra.mxu0 %v1667
        %5443 = vmatprep.subr.bf16.mxu0 %v1676
        %5444 = vmatpush1.bf16.msra.mxu0 %v1675
        %5445 = vmatprep.subr.bf16.mxu0 %v1684
        %5446 = vmatpush1.bf16.msra.mxu0 %v1683
        %5447 = vmatprep.subr.bf16.mxu0 %v1692
        %5448 = vmatpush1.bf16.msra.mxu0 %v1691
        %5449 = vmatprep.subr.bf16.mxu0 %v1700
        %5450 = vmatpush1.bf16.msra.mxu0 %v1699
        %5451 = vmatprep.mubr.bf16.mxu0 %v5401
        %5452 = vmatmul.mubr.bf16.gmra.mrb[0].mxu0 %v5400
        %v5453 = vpop.f32.mrb[0].mxu0
        %v5454 = vadd.f32 0.0, %v5453
        %v5455 = vpop.f32.mrb[0].mxu0
        %v5456 = vadd.f32 0.0, %v5455
        %v5457 = vpop.f32.mrb[0].mxu0
        %v5458 = vpop.f32.mrb[0].mxu0
        %5459 = vdwg.mxu0
        %5460 = vmatprep.subr.bf16.mxu0 %v1582
        %5461 = vmatpush1.bf16.msra.mxu0 %v1581
        %5462 = vmatprep.subr.bf16.mxu0 %v1590
        %5463 = vmatpush1.bf16.msra.mxu0 %v1589
        %5464 = vmatprep.subr.bf16.mxu0 %v1598
        %5465 = vmatpush1.bf16.msra.mxu0 %v1597
        %5466 = vmatprep.subr.bf16.mxu0 %v1606
        %5467 = vmatpush1.bf16.msra.mxu0 %v1605
        %5468 = vmatprep.subr.bf16.mxu0 %v1614
        %5469 = vmatpush1.bf16.msra.mxu0 %v1613
        %5470 = vmatprep.subr.bf16.mxu0 %v1622
        %5471 = vmatpush1.bf16.msra.mxu0 %v1621
        %5472 = vmatprep.subr.bf16.mxu0 %v1630
        %5473 = vmatpush1.bf16.msra.mxu0 %v1629
        %5474 = vmatprep.subr.bf16.mxu0 %v1638
        %5475 = vmatpush1.bf16.msra.mxu0 %v1637
        %5476 = vmatprep.subr.bf16.mxu0 %v1646
        %5477 = vmatpush1.bf16.msra.mxu0 %v1645
        %5478 = vmatprep.subr.bf16.mxu0 %v1654
        %5479 = vmatpush1.bf16.msra.mxu0 %v1653
        %5480 = vmatprep.subr.bf16.mxu0 %v1662
        %5481 = vmatpush1.bf16.msra.mxu0 %v1661
        %5482 = vmatprep.subr.bf16.mxu0 %v1670
        %5483 = vmatpush1.bf16.msra.mxu0 %v1669
        %5484 = vmatprep.subr.bf16.mxu0 %v1678
        %5485 = vmatpush1.bf16.msra.mxu0 %v1677
        %5486 = vmatprep.subr.bf16.mxu0 %v1686
        %5487 = vmatpush1.bf16.msra.mxu0 %v1685
        %5488 = vmatprep.subr.bf16.mxu0 %v1694
        %5489 = vmatpush1.bf16.msra.mxu0 %v1693
        %5490 = vmatprep.subr.bf16.mxu0 %v1702
        %5491 = vmatpush1.bf16.msra.mxu0 %v1701
        %5492 = vmatprep.mubr.bf16.mxu0 %v5401
        %5493 = vmatmul.mubr.bf16.gmra.mrb[0].mxu0 %v5400
        %v5494 = vpop.f32.mrb[0].mxu0
        %v5495 = vadd.f32 0.0, %v5494
        %v5496 = vpop.f32.mrb[0].mxu0
        %v5497 = vadd.f32 0.0, %v5496
        %v5498 = vpop.f32.mrb[0].mxu0
        %v5499 = vpop.f32.mrb[0].mxu0
        %5500 = vdwg.mxu0
        %5501 = vmatprep.subr.bf16.mxu0 %v1584
        %5502 = vmatpush1.bf16.msra.mxu0 %v1583
        %5503 = vmatprep.subr.bf16.mxu0 %v1592
        %5504 = vmatpush1.bf16.msra.mxu0 %v1591
        %5505 = vmatprep.subr.bf16.mxu0 %v1600
        %5506 = vmatpush1.bf16.msra.mxu0 %v1599
        %5507 = vmatprep.subr.bf16.mxu0 %v1608
        %5508 = vmatpush1.bf16.msra.mxu0 %v1607
        %5509 = vmatprep.subr.bf16.mxu0 %v1616
        %5510 = vmatpush1.bf16.msra.mxu0 %v1615
        %5511 = vmatprep.subr.bf16.mxu0 %v1624
        %5512 = vmatpush1.bf16.msra.mxu0 %v1623
        %5513 = vmatprep.subr.bf16.mxu0 %v1632
        %5514 = vmatpush1.bf16.msra.mxu0 %v1631
        %5515 = vmatprep.subr.bf16.mxu0 %v1640
        %5516 = vmatpush1.bf16.msra.mxu0 %v1639
        %5517 = vmatprep.subr.bf16.mxu0 %v1648
        %5518 = vmatpush1.bf16.msra.mxu0 %v1647
        %5519 = vmatprep.subr.bf16.mxu0 %v1656
        %5520 = vmatpush1.bf16.msra.mxu0 %v1655
        %5521 = vmatprep.subr.bf16.mxu0 %v1664
        %5522 = vmatpush1.bf16.msra.mxu0 %v1663
        %5523 = vmatprep.subr.bf16.mxu0 %v1672
        %5524 = vmatpush1.bf16.msra.mxu0 %v1671
        %5525 = vmatprep.subr.bf16.mxu0 %v1680
        %5526 = vmatpush1.bf16.msra.mxu0 %v1679
        %5527 = vmatprep.subr.bf16.mxu0 %v1688
        %5528 = vmatpush1.bf16.msra.mxu0 %v1687
        %5529 = vmatprep.subr.bf16.mxu0 %v1696
        %5530 = vmatpush1.bf16.msra.mxu0 %v1695
        %5531 = vmatprep.subr.bf16.mxu0 %v1704
        %5532 = vmatpush1.bf16.msra.mxu0 %v1703
        %5533 = vmatprep.mubr.bf16.mxu0 %v5401
        %5534 = vmatmul.mubr.bf16.gmra.mrb[0].mxu0 %v5400
        %v5535 = vpop.f32.mrb[0].mxu0
        %v5536 = vadd.f32 0.0, %v5535
        %v5537 = vpop.f32.mrb[0].mxu0
        %v5538 = vadd.f32 0.0, %v5537
        %v5539 = vpop.f32.mrb[0].mxu0
        %v5540 = vpop.f32.mrb[0].mxu0
        %5541 = vdwg.mxu0
        %5542 = vmatprep.subr.bf16.mxu0 %v1586
        %5543 = vmatpush1.bf16.msra.mxu0 %v1585
        %5544 = vmatprep.subr.bf16.mxu0 %v1594
        %5545 = vmatpush1.bf16.msra.mxu0 %v1593
        %5546 = vmatprep.subr.bf16.mxu0 %v1602
        %5547 = vmatpush1.bf16.msra.mxu0 %v1601
        %5548 = vmatprep.subr.bf16.mxu0 %v1610
        %5549 = vmatpush1.bf16.msra.mxu0 %v1609
        %5550 = vmatprep.subr.bf16.mxu0 %v1618
        %5551 = vmatpush1.bf16.msra.mxu0 %v1617
        %5552 = vmatprep.subr.bf16.mxu0 %v1626
        %5553 = vmatpush1.bf16.msra.mxu0 %v1625
        %5554 = vmatprep.subr.bf16.mxu0 %v1634
        %5555 = vmatpush1.bf16.msra.mxu0 %v1633
        %5556 = vmatprep.subr.bf16.mxu0 %v1642
        %5557 = vmatpush1.bf16.msra.mxu0 %v1641
        %5558 = vmatprep.subr.bf16.mxu0 %v1650
        %5559 = vmatpush1.bf16.msra.mxu0 %v1649
        %5560 = vmatprep.subr.bf16.mxu0 %v1658
        %5561 = vmatpush1.bf16.msra.mxu0 %v1657
        %5562 = vmatprep.subr.bf16.mxu0 %v1666
        %5563 = vmatpush1.bf16.msra.mxu0 %v1665
        %5564 = vmatprep.subr.bf16.mxu0 %v1674
        %5565 = vmatpush1.bf16.msra.mxu0 %v1673
        %5566 = vmatprep.subr.bf16.mxu0 %v1682
        %5567 = vmatpush1.bf16.msra.mxu0 %v1681
        %5568 = vmatprep.subr.bf16.mxu0 %v1690
        %5569 = vmatpush1.bf16.msra.mxu0 %v1689
        %5570 = vmatprep.subr.bf16.mxu0 %v1698
        %5571 = vmatpush1.bf16.msra.mxu0 %v1697
        %5572 = vmatprep.subr.bf16.mxu0 %v1706
        %5573 = vmatpush1.bf16.msra.mxu0 %v1705
        %5574 = vmatprep.mubr.bf16.mxu0 %v5401
        %5575 = vmatmul.mubr.bf16.gmra.mrb[0].mxu0 %v5400
        %v5576 = vpop.f32.mrb[0].mxu0
        %v5577 = vadd.f32 0.0, %v5576
        %v5578 = vpop.f32.mrb[0].mxu0
        %v5579 = vadd.f32 0.0, %v5578
        %v5580 = vpop.f32.mrb[0].mxu0
        %v5581 = vpop.f32.mrb[0].mxu0
        %5582 = vdwg.mxu0
        %v5583 = vadd.f32 %v5411, %v5454
        %v5584 = vadd.f32 %v5412, %v5456
        %v5585 = vadd.f32 %v5413, %v5495
        %v5586 = vadd.f32 %v5414, %v5497
        %v5587 = vadd.f32 %v5415, %v5536
        %v5588 = vadd.f32 %v5416, %v5538
        %v5589 = vadd.f32 %v5417, %v5577
        %v5590 = vadd.f32 %v5418, %v5579
        %v5591 = vxor.u32 %v5583, 2147483648
        %v5592 = vxor.u32 %v5584, 2147483648
        %v5593 = vmul.f32 %v5591, 1.442695
        %v5594 = vpow.pop %v5593
        %v5595 = vmul.f32 %v5592, 1.442695
        %v5596 = vpow.pop %v5595
        %v5597 = vadd.f32 %v5594, 1.0
        %v5598 = vadd.f32 %v5596, 1.0
        %v5599 = vrcp.pop %v5597
        %v5600 = vmul.f32 1.0, %v5599
        %v5601 = vrcp.pop %v5598
        %v5602 = vmul.f32 1.0, %v5601
        %v5603 = vxor.u32 %v5585, 2147483648
        %v5604 = vxor.u32 %v5586, 2147483648
        %v5605 = vmul.f32 %v5603, 1.442695
        %v5606 = vpow.pop %v5605
        %v5607 = vmul.f32 %v5604, 1.442695
        %v5608 = vpow.pop %v5607
        %v5609 = vadd.f32 %v5606, 1.0
        %v5610 = vadd.f32 %v5608, 1.0
        %v5611 = vrcp.pop %v5609
        %v5612 = vmul.f32 1.0, %v5611
        %v5613 = vrcp.pop %v5610
        %v5614 = vmul.f32 1.0, %v5613
        %v5615 = vtanh.pop %v5587
        %v5616 = vtanh.pop %v5588
        %v5617 = vxor.u32 %v5589, 2147483648
        %v5618 = vxor.u32 %v5590, 2147483648
        %v5619 = vmul.f32 %v5617, 1.442695
        %v5620 = vpow.pop %v5619
        %v5621 = vmul.f32 %v5618, 1.442695
        %v5622 = vpow.pop %v5621
        %v5623 = vadd.f32 %v5620, 1.0
        %v5624 = vadd.f32 %v5622, 1.0
        %v5625 = vrcp.pop %v5623
        %v5626 = vmul.f32 1.0, %v5625
        %v5627 = vrcp.pop %v5624
        %v5628 = vmul.f32 1.0, %v5627
        %v5629 = vmul.f32 %v5612, %v5394
        %v5630 = vmul.f32 %v5614, %v5395
        %v5631 = vmul.f32 %v5600, %v5615
        %v5632 = vmul.f32 %v5602, %v5616
        %v5633 = vadd.f32 %v5629, %v5631
        %v5634 = vadd.f32 %v5630, %v5632
        %v5635 = vtanh.pop %v5633
        %v5636 = vtanh.pop %v5634
        %v5637 = vmul.f32 %v5626, %v5635
        %v5638 = vmul.f32 %v5628, %v5636
        %v5639 = vpack.c.bf16 %v5637, %v5637
        %v5640 = vpack.c.bf16 %v5638, %v5638
        %v5643 = vunpack.c.l.b16 %v5639
        %v5644 = vunpack.c.l.b16 %v5640
        %v5645 = vpack.c.b16 %v5644, %v5643
        %s5647 = scalar_lea.vmem [#allocation3], 120
        %5648 = vst [vmem:[%s5647] sm:$0xff] %v5645
        %5649 = vst [vmem:[#allocation4] sm:$0xff] %v5637
        %5650 = vst [vmem:[#allocation4 + $0x8] sm:$0xff] %v5638
        %5651 = vst [vmem:[#allocation5] sm:$0xff] %v5633
        %5652 = vst [vmem:[#allocation5 + $0x8] sm:$0xff] %v5634
        %v5653 = vld [vmem:[#allocation3] sm:$0xff]
        %v5654 = vld [vmem:[#allocation3 + $0x8] sm:$0xff]
        %v5655 = vld [vmem:[#allocation3 + $0x10] sm:$0xff]
        %v5656 = vld [vmem:[#allocation3 + $0x18] sm:$0xff]
        %v5657 = vld [vmem:[#allocation3 + $0x20] sm:$0xff]
        %v5658 = vld [vmem:[#allocation3 + $0x28] sm:$0xff]
        %v5659 = vld [vmem:[#allocation3 + $0x30] sm:$0xff]
        %v5660 = vld [vmem:[#allocation3 + $0x38] sm:$0xff]
        %v5661 = vld [vmem:[#allocation3 + $0x40] sm:$0xff]
        %v5662 = vld [vmem:[#allocation3 + $0x48] sm:$0xff]
        %v5663 = vld [vmem:[#allocation3 + $0x50] sm:$0xff]
        %v5664 = vld [vmem:[#allocation3 + $0x58] sm:$0xff]
        %v5665 = vld [vmem:[#allocation3 + $0x60] sm:$0xff]
        %v5666 = vld [vmem:[#allocation3 + $0x68] sm:$0xff]
        %v5667 = vld [vmem:[#allocation3 + $0x70] sm:$0xff]
        %v5668 = vld [vmem:[#allocation3 + $0x78] sm:$0xff]
        %v5669 = vld [vmem:[%s4] sm:$0xf]
        %v5670 = vld [vmem:[%s4 + $0x4] sm:$0xf]
        %v5671 = vld [vmem:[%s4 + $0x8] sm:$0xf]
        %v5672 = vld [vmem:[%s4 + $0xc] sm:$0xf]
        %v5673 = vld [vmem:[%s4 + $0x10] sm:$0xf]
        %v5674 = vld [vmem:[%s4 + $0x14] sm:$0xf]
        %v5675 = vld [vmem:[%s4 + $0x18] sm:$0xf]
        %v5676 = vld [vmem:[%s4 + $0x1c] sm:$0xf]
        %v5677 = vld [vmem:[%s4 + $0x20] sm:$0xf]
        %v5678 = vld [vmem:[%s4 + $0x24] sm:$0xf]
        %v5679 = vld [vmem:[%s4 + $0x28] sm:$0xf]
        %v5680 = vld [vmem:[%s4 + $0x2c] sm:$0xf]
        %v5681 = vld [vmem:[%s4 + $0x30] sm:$0xf]
        %v5682 = vld [vmem:[%s4 + $0x34] sm:$0xf]
        %v5683 = vld [vmem:[%s4 + $0x38] sm:$0xf]
        %v5684 = vld [vmem:[%s4 + $0x3c] sm:$0xf]
        %v5685 = vld [vmem:[%s4 + $0x40] sm:$0xf]
        %v5686 = vld [vmem:[%s4 + $0x44] sm:$0xf]
        %v5687 = vld [vmem:[%s4 + $0x48] sm:$0xf]
        %v5688 = vld [vmem:[%s4 + $0x4c] sm:$0xf]
        %v5689 = vld [vmem:[%s4 + $0x50] sm:$0xf]
        %v5690 = vld [vmem:[%s4 + $0x54] sm:$0xf]
        %v5691 = vld [vmem:[%s4 + $0x58] sm:$0xf]
        %v5692 = vld [vmem:[%s4 + $0x5c] sm:$0xf]
        %v5693 = vld [vmem:[%s4 + $0x60] sm:$0xf]
        %v5694 = vld [vmem:[%s4 + $0x64] sm:$0xf]
        %v5695 = vld [vmem:[%s4 + $0x68] sm:$0xf]
        %v5696 = vld [vmem:[%s4 + $0x6c] sm:$0xf]
        %v5697 = vld [vmem:[%s4 + $0x70] sm:$0xf]
        %v5698 = vld [vmem:[%s4 + $0x74] sm:$0xf]
        %v5699 = vld [vmem:[%s4 + $0x78] sm:$0xf]
        %v5700 = vld [vmem:[%s4 + $0x7c] sm:$0xf]
        %v5701 = vld [vmem:[%s5] sm:$0x1]
        %v5703 = vlaneseq
        %v5704 = vshrl.u32 %v5703, 7
        %v5705 = vsub.s32 0, %v5704
        %v5706 = vrot.slane %v5701, %v5705
        %v5724 = vunpack.c.l.b16 %v5653
        %v5725 = vunpack.c.h.b16 %v5653
        %v5726 = vunpack.c.l.b16 %v5654
        %v5727 = vunpack.c.h.b16 %v5654
        %v5728 = vunpack.c.l.b16 %v5655
        %v5729 = vunpack.c.h.b16 %v5655
        %v5730 = vunpack.c.l.b16 %v5656
        %v5731 = vunpack.c.h.b16 %v5656
        %v5732 = vunpack.c.l.b16 %v5657
        %v5733 = vunpack.c.h.b16 %v5657
        %v5734 = vunpack.c.l.b16 %v5658
        %v5735 = vunpack.c.h.b16 %v5658
        %v5736 = vunpack.c.l.b16 %v5659
        %v5737 = vunpack.c.h.b16 %v5659
        %v5738 = vunpack.c.l.b16 %v5660
        %v5739 = vunpack.c.h.b16 %v5660
        %v5740 = vunpack.c.l.b16 %v5661
        %v5741 = vunpack.c.h.b16 %v5661
        %v5742 = vunpack.c.l.b16 %v5662
        %v5743 = vunpack.c.h.b16 %v5662
        %v5744 = vunpack.c.l.b16 %v5663
        %v5745 = vunpack.c.h.b16 %v5663
        %v5746 = vunpack.c.l.b16 %v5664
        %v5747 = vunpack.c.h.b16 %v5664
        %v5748 = vunpack.c.l.b16 %v5665
        %v5749 = vunpack.c.h.b16 %v5665
        %v5750 = vunpack.c.l.b16 %v5666
        %v5751 = vunpack.c.h.b16 %v5666
        %v5752 = vunpack.c.l.b16 %v5667
        %v5753 = vunpack.c.h.b16 %v5667
        %v5754 = vunpack.c.l.b16 %v5668
        %v5755 = vunpack.c.h.b16 %v5668
        %v5756 = vpack.c.b16 %v5726, %v5724
        %v5757 = vpack.c.b16 %v5727, %v5725
        %v5758 = vpack.c.b16 %v5730, %v5728
        %v5759 = vpack.c.b16 %v5731, %v5729
        %v5760 = vpack.c.b16 %v5734, %v5732
        %v5761 = vpack.c.b16 %v5735, %v5733
        %v5762 = vpack.c.b16 %v5738, %v5736
        %v5763 = vpack.c.b16 %v5739, %v5737
        %v5764 = vpack.c.b16 %v5742, %v5740
        %v5765 = vpack.c.b16 %v5743, %v5741
        %v5766 = vpack.c.b16 %v5746, %v5744
        %v5767 = vpack.c.b16 %v5747, %v5745
        %v5768 = vpack.c.b16 %v5750, %v5748
        %v5769 = vpack.c.b16 %v5751, %v5749
        %v5770 = vpack.c.b16 %v5754, %v5752
        %v5771 = vpack.c.b16 %v5755, %v5753
        %v5820 = vunpack.c.l.b16 %v5669
        %v5821 = vunpack.c.l.b16 %v5670
        %v5822 = vunpack.c.l.b16 %v5671
        %v5823 = vunpack.c.l.b16 %v5672
        %v5824 = vunpack.c.l.b16 %v5673
        %v5825 = vunpack.c.l.b16 %v5674
        %v5826 = vunpack.c.l.b16 %v5675
        %v5827 = vunpack.c.l.b16 %v5676
        %v5828 = vunpack.c.l.b16 %v5677
        %v5829 = vunpack.c.l.b16 %v5678
        %v5830 = vunpack.c.l.b16 %v5679
        %v5831 = vunpack.c.l.b16 %v5680
        %v5832 = vunpack.c.l.b16 %v5681
        %v5833 = vunpack.c.l.b16 %v5682
        %v5834 = vunpack.c.l.b16 %v5683
        %v5835 = vunpack.c.l.b16 %v5684
        %v5836 = vunpack.c.l.b16 %v5685
        %v5837 = vunpack.c.l.b16 %v5686
        %v5838 = vunpack.c.l.b16 %v5687
        %v5839 = vunpack.c.l.b16 %v5688
        %v5840 = vunpack.c.l.b16 %v5689
        %v5841 = vunpack.c.l.b16 %v5690
        %v5842 = vunpack.c.l.b16 %v5691
        %v5843 = vunpack.c.l.b16 %v5692
        %v5844 = vunpack.c.l.b16 %v5693
        %v5845 = vunpack.c.l.b16 %v5694
        %v5846 = vunpack.c.l.b16 %v5695
        %v5847 = vunpack.c.l.b16 %v5696
        %v5848 = vunpack.c.l.b16 %v5697
        %v5849 = vunpack.c.l.b16 %v5698
        %v5850 = vunpack.c.l.b16 %v5699
        %v5851 = vunpack.c.l.b16 %v5700
        %v5852 = vpack.c.b16 %v5821, %v5820
        %v5853 = vpack.c.b16 %v5823, %v5822
        %v5854 = vpack.c.b16 %v5825, %v5824
        %v5855 = vpack.c.b16 %v5827, %v5826
        %v5856 = vpack.c.b16 %v5829, %v5828
        %v5857 = vpack.c.b16 %v5831, %v5830
        %v5858 = vpack.c.b16 %v5833, %v5832
        %v5859 = vpack.c.b16 %v5835, %v5834
        %v5860 = vpack.c.b16 %v5837, %v5836
        %v5861 = vpack.c.b16 %v5839, %v5838
        %v5862 = vpack.c.b16 %v5841, %v5840
        %v5863 = vpack.c.b16 %v5843, %v5842
        %v5864 = vpack.c.b16 %v5845, %v5844
        %v5865 = vpack.c.b16 %v5847, %v5846
        %v5866 = vpack.c.b16 %v5849, %v5848
        %v5867 = vpack.c.b16 %v5851, %v5850
        %5884 = vmatprep.subr.bf16.mxu0 0
        %5885 = vmatpush1.bf16.msra.mxu0 %v5852
        %5886 = vmatprep.subr.bf16.mxu0 0
        %5887 = vmatpush1.bf16.msra.mxu0 %v5853
        %5888 = vmatprep.subr.bf16.mxu0 0
        %5889 = vmatpush1.bf16.msra.mxu0 %v5854
        %5890 = vmatprep.subr.bf16.mxu0 0
        %5891 = vmatpush1.bf16.msra.mxu0 %v5855
        %5892 = vmatprep.subr.bf16.mxu0 0
        %5893 = vmatpush1.bf16.msra.mxu0 %v5856
        %5894 = vmatprep.subr.bf16.mxu0 0
        %5895 = vmatpush1.bf16.msra.mxu0 %v5857
        %5896 = vmatprep.subr.bf16.mxu0 0
        %5897 = vmatpush1.bf16.msra.mxu0 %v5858
        %5898 = vmatprep.subr.bf16.mxu0 0
        %5899 = vmatpush1.bf16.msra.mxu0 %v5859
        %5900 = vmatprep.subr.bf16.mxu0 0
        %5901 = vmatpush1.bf16.msra.mxu0 %v5860
        %5902 = vmatprep.subr.bf16.mxu0 0
        %5903 = vmatpush1.bf16.msra.mxu0 %v5861
        %5904 = vmatprep.subr.bf16.mxu0 0
        %5905 = vmatpush1.bf16.msra.mxu0 %v5862
        %5906 = vmatprep.subr.bf16.mxu0 0
        %5907 = vmatpush1.bf16.msra.mxu0 %v5863
        %5908 = vmatprep.subr.bf16.mxu0 0
        %5909 = vmatpush1.bf16.msra.mxu0 %v5864
        %5910 = vmatprep.subr.bf16.mxu0 0
        %5911 = vmatpush1.bf16.msra.mxu0 %v5865
        %5912 = vmatprep.subr.bf16.mxu0 0
        %5913 = vmatpush1.bf16.msra.mxu0 %v5866
        %5914 = vmatprep.subr.bf16.mxu0 0
        %5915 = vmatpush1.bf16.msra.mxu0 %v5867
        %5916 = vmatprep.mubr.bf16.mxu0 %v5757
        %5917 = vmatmul.mubr.bf16.gmra.mrb[0].mxu0 %v5756
        %v5918 = vpop.f32.mrb[0].mxu0
        %v5919 = vadd.f32 %v5706, %v5918
        %v5920 = vpop.f32.mrb[0].mxu0
        %v5921 = vpop.f32.mrb[0].mxu0
        %v5922 = vadd.f32 %v5706, %v5921
        %v5923 = vpop.f32.mrb[0].mxu0
        %5924 = vmatprep.mubr.bf16.mxu0 %v5759
        %5925 = vmatmul.mubr.bf16.gmra.mrb[0].mxu0 %v5758
        %v5926 = vpop.f32.mrb[0].mxu0
        %v5927 = vadd.f32 %v5706, %v5926
        %v5928 = vpop.f32.mrb[0].mxu0
        %v5929 = vpop.f32.mrb[0].mxu0
        %v5930 = vadd.f32 %v5706, %v5929
        %v5931 = vpop.f32.mrb[0].mxu0
        %5932 = vmatprep.mubr.bf16.mxu0 %v5761
        %5933 = vmatmul.mubr.bf16.gmra.mrb[0].mxu0 %v5760
        %v5934 = vpop.f32.mrb[0].mxu0
        %v5935 = vadd.f32 %v5706, %v5934
        %v5936 = vpop.f32.mrb[0].mxu0
        %v5937 = vpop.f32.mrb[0].mxu0
        %v5938 = vadd.f32 %v5706, %v5937
        %v5939 = vpop.f32.mrb[0].mxu0
        %5940 = vmatprep.mubr.bf16.mxu0 %v5763
        %5941 = vmatmul.mubr.bf16.gmra.mrb[0].mxu0 %v5762
        %v5942 = vpop.f32.mrb[0].mxu0
        %v5943 = vadd.f32 %v5706, %v5942
        %v5944 = vpop.f32.mrb[0].mxu0
        %v5945 = vpop.f32.mrb[0].mxu0
        %v5946 = vadd.f32 %v5706, %v5945
        %v5947 = vpop.f32.mrb[0].mxu0
        %5948 = vmatprep.mubr.bf16.mxu0 %v5765
        %5949 = vmatmul.mubr.bf16.gmra.mrb[0].mxu0 %v5764
        %v5950 = vpop.f32.mrb[0].mxu0
        %v5951 = vadd.f32 %v5706, %v5950
        %v5952 = vpop.f32.mrb[0].mxu0
        %v5953 = vpop.f32.mrb[0].mxu0
        %v5954 = vadd.f32 %v5706, %v5953
        %v5955 = vpop.f32.mrb[0].mxu0
        %5956 = vmatprep.mubr.bf16.mxu0 %v5767
        %5957 = vmatmul.mubr.bf16.gmra.mrb[0].mxu0 %v5766
        %v5958 = vpop.f32.mrb[0].mxu0
        %v5959 = vadd.f32 %v5706, %v5958
        %v5960 = vpop.f32.mrb[0].mxu0
        %v5961 = vpop.f32.mrb[0].mxu0
        %v5962 = vadd.f32 %v5706, %v5961
        %v5963 = vpop.f32.mrb[0].mxu0
        %5964 = vmatprep.mubr.bf16.mxu0 %v5769
        %5965 = vmatmul.mubr.bf16.gmra.mrb[0].mxu0 %v5768
        %v5966 = vpop.f32.mrb[0].mxu0
        %v5967 = vadd.f32 %v5706, %v5966
        %v5968 = vpop.f32.mrb[0].mxu0
        %v5969 = vpop.f32.mrb[0].mxu0
        %v5970 = vadd.f32 %v5706, %v5969
        %v5971 = vpop.f32.mrb[0].mxu0
        %5972 = vmatprep.mubr.bf16.mxu0 %v5771
        %5973 = vmatmul.mubr.bf16.gmra.mrb[0].mxu0 %v5770
        %v5974 = vpop.f32.mrb[0].mxu0
        %v5975 = vadd.f32 %v5706, %v5974
        %v5976 = vpop.f32.mrb[0].mxu0
        %v5977 = vpop.f32.mrb[0].mxu0
        %v5978 = vadd.f32 %v5706, %v5977
        %v5979 = vpop.f32.mrb[0].mxu0
        %5980 = vdwg.mxu0
        %v5981 = vtanh.pop %v5919
        %v5982 = vtanh.pop %v5922
        %v5983 = vtanh.pop %v5927
        %v5984 = vtanh.pop %v5930
        %v5985 = vtanh.pop %v5935
        %v5986 = vtanh.pop %v5938
        %v5987 = vtanh.pop %v5943
        %v5988 = vtanh.pop %v5946
        %v5989 = vtanh.pop %v5951
        %v5990 = vtanh.pop %v5954
        %v5991 = vtanh.pop %v5959
        %v5992 = vtanh.pop %v5962
        %v5993 = vtanh.pop %v5967
        %v5994 = vtanh.pop %v5970
        %v5995 = vtanh.pop %v5975
        %v5996 = vtanh.pop %v5978
        %5997 = vst [vmem:[%s282] sm:$0xff] %v5981
        %5998 = vst [vmem:[%s282 + $0x8] sm:$0xff] %v5982
        %5999 = vst [vmem:[%s282 + $0x10] sm:$0xff] %v5983
        %6000 = vst [vmem:[%s282 + $0x18] sm:$0xff] %v5984
        %6001 = vst [vmem:[%s282 + $0x20] sm:$0xff] %v5985
        %6002 = vst [vmem:[%s282 + $0x28] sm:$0xff] %v5986
        %6003 = vst [vmem:[%s282 + $0x30] sm:$0xff] %v5987
        %6004 = vst [vmem:[%s282 + $0x38] sm:$0xff] %v5988
        %6005 = vst [vmem:[%s282 + $0x40] sm:$0xff] %v5989
        %6006 = vst [vmem:[%s282 + $0x48] sm:$0xff] %v5990
        %6007 = vst [vmem:[%s282 + $0x50] sm:$0xff] %v5991
        %6008 = vst [vmem:[%s282 + $0x58] sm:$0xff] %v5992
        %6009 = vst [vmem:[%s282 + $0x60] sm:$0xff] %v5993
        %6010 = vst [vmem:[%s282 + $0x68] sm:$0xff] %v5994
        %6011 = vst [vmem:[%s282 + $0x70] sm:$0xff] %v5995
        %6012 = vst [vmem:[%s282 + $0x78] sm:$0xff] %v5996
        %s6013 = sand.u32 %s176, 1
        %s6014 = scalar_lea.sflag [#allocation8], %s6013
        %s6015 = sand.u32 %s176, 1
        %s6016 = smul.addr %s6015, 128
        %s6017 = scalar_lea.vmem [#allocation9], %s6016
        // Predicated region
        $region53: #{tpu_custom_call.1} parent=43 // pred_check
          %p6018 = pneg %p186
        $region54: #{tpu_custom_call.1} parent=43 // pred_check_branch
          %6020 = sbr.rel (%p6018) target = $region56
        $region55: #{tpu_custom_call.1} parent=43 // pred_region
          %s6021 = smul.u32 16, %s26
          %s6023 = ssub.s32 2048, 2048
          %6024 = vsyncadd %s6014, %s6023
          %s6025 = sadd.s32 %s25, %s6021
          %s6026 = smul.addr %s6025, 128
          %s6027 = scalar_lea.hbm %s6, %s6026
          %s6028 = sshll.u32 %s6017, 4
          %s6029 = int_to_ptr.vmem [resolvable:$true] %s6028
          %6034 = dma.vmem_to_hbm [thread:$0]  %s6029, 2048, %s6027, %s6014, 128, 128, 8
        $region56: #{tpu_custom_call.1} parent=43 // pred_fallthru
          _
      $region44: #{tpu_custom_call.1} parent=5 // pred_fallthru
        _
      %p6035 = scmp.le.s32.totalorder 2, %s16
      // Predicated region
      $region57: #{tpu_custom_call.1} parent=5 // pred_check
        %p6036 = pneg %p6035
      $region58: #{tpu_custom_call.1} parent=5 // pred_check_branch
        %6038 = sbr.rel (%p6036) target = $region60
      $region59: #{tpu_custom_call.1} parent=5 // pred_region
        %s6039 = ssub.s32 %s16, 2
        // Predicated region
        $region61: #{tpu_custom_call.1} parent=59 // pred_check
          %p6040 = pneg %p192
        $region62: #{tpu_custom_call.1} parent=59 // pred_check_branch
          %6042 = sbr.rel (%p6040) target = $region64
        $region63: #{tpu_custom_call.1} parent=59 // pred_region
          %s6043 = sand.u32 %s177, 1
          %s6044 = scalar_lea.sflag [#allocation8], %s6043
          %s6045 = sand.u32 %s177, 1
          %s6046 = smul.addr %s6045, 128
          %s6047 = scalar_lea.vmem [#allocation9], %s6046
          %6048 = dma.done %s6044, 2048
        $region64: #{tpu_custom_call.1} parent=59 // pred_fallthru
          _
      $region60: #{tpu_custom_call.1} parent=5 // pred_fallthru
        _
    $region6: #{tpu_custom_call.1} parent=1 // loop_footer
      %s20 = sadd.s32 1, %s16
    $region7: #{tpu_custom_call.1} parent=1 // loop_footer_branch
      %15 = sbr.rel target = $region3
    $region8: #{tpu_custom_call.1} parent=1 // loop_exit
      _
    %6049 = vsyncpa [#allocation7], 1
    %s6050 = scalar_lea.sflag [#allocation7], 1
    %6051 = vsyncpa %s6050, 1
    %6052 = vsyncpa [#allocation8], 1
    %s6053 = scalar_lea.sflag [#allocation8], 1
    %6054 = vsyncpa %s6053, 1

</llo_original>
